<compile_context>
chip_gen: v7x
topology: tpu7x:2x2x1
jax: 0.10.0
libtpu: 0.0.40
codegen_flags: <defaults>
</compile_context>

<pallas_src>
import functools

import jax
import jax.numpy as jnp
from jax import lax
from jax.experimental import pallas as pl
from jax.experimental.pallas import tpu as pltpu


KS = (3, 3, 5)       # conv kernel sizes (hard-coded in the PyTorch module)
PADS = (1, 1, 2)     # conv paddings
WIN = 5              # fused conv window = max(KS)
BP = 8               # batch rows padded to one sublane tile (aligned per-step reads)


def _kernel_sigmoid(z):
    # exp -> EUP; approximate reciprocal -> EUP (vrcp); one Newton step restores
    # full f32 accuracy (~1e-7 rel).  Clamp keeps exp finite so the Newton step
    # never sees inf * 0.
    d = 1.0 + jnp.exp(-jnp.maximum(z, -30.0))
    r = pl.reciprocal(d, approx=True)
    return r * (2.0 - d * r)


# ----------------------------- Pallas kernel ------------------------------- #
def _exp14_kernel(tok_ref,       # SMEM (B*L,) int32 token ids
                  emb_hbm,       # ANY  (V, H)  embedding table (stays in HBM)
                  wconv_ref,     # VMEM (5*H, 3*nf) fused conv weight
                  bconv_ref,     # VMEM (1, 3*nf)   fused conv bias
                  wih_ref,       # VMEM (nf, 4*Hd)  dense LSTM input projection
                  blstm_ref,     # VMEM (1, 4*Hd)   b_ih + b_hh
                  whh_ref,       # VMEM (Hd, 4*Hd)  recurrent weight (transposed)
                  wfc_ref,       # VMEM (Hd, C)     final Linear weight (transposed)
                  bfc_ref,       # VMEM (1, C)
                  o_ref,         # VMEM (B, C)
                  xemb_ref,      # VMEM ((L+4)*BP, H) scratch: padded time-major emb
                  gx_ref,        # VMEM (3*L*BP, 4*Hd) scratch: per-step gate inputs
                  sems,          # DMA semaphores (B*L,)
                  *, batch, seq_len):
    B, L = batch, seq_len
    H = emb_hbm.shape[1]
    nf = wih_ref.shape[0]
    Hd = whh_ref.shape[0]

    # ---- fused embedding gather + pad/transpose (HBM rows -> VMEM via DMA) ----
    # Row (t*BP + b) of xemb holds token (b, t-2); rows with t < 2, t >= L+2 or
    # b >= B stay zero (conv zero padding / batch sublane padding).
    xemb_ref[...] = jnp.zeros_like(xemb_ref)
    copies = []
    for t in range(B * L):
        b, l = t // L, t % L
        dst = (l + 2) * BP + b
        cp = pltpu.make_async_copy(emb_hbm.at[pl.ds(tok_ref[t], 1)],
                                   xemb_ref.at[pl.ds(dst, 1)],
                                   sems.at[t])
        cp.start()                       # overlapped; waited on below
        copies.append(cp)
    for cp in copies:
        cp.wait()

    # ---- all three Conv1d layers: 5 accumulated matmuls (no im2col concat) ----
    acc = jnp.dot(xemb_ref[pl.ds(0, L * BP), :],
                  wconv_ref[pl.ds(0, H), :],
                  preferred_element_type=jnp.float32)
    for dh in range(1, WIN):
        acc = acc + jnp.dot(xemb_ref[pl.ds(dh * BP, L * BP), :],
                            wconv_ref[pl.ds(dh * H, H), :],
                            preferred_element_type=jnp.float32)
    conv = jnp.maximum(acc + bconv_ref[...], 0.0)              # (L*BP, 3*nf)

    # ---- LSTM input projections for all 3L steps: ONE dense matmul -------------
    # Row-stack the three conv feature blocks so that step s = k*L + l occupies
    # rows [s*BP, (s+1)*BP): every per-step read is one aligned (8, 128) tile.
    seq_in = jnp.concatenate(
        [conv[:, 0:nf], conv[:, nf:2 * nf], conv[:, 2 * nf:3 * nf]], axis=0)
    gx_ref[...] = (jnp.dot(seq_in, wih_ref[...],
                           preferred_element_type=jnp.float32)
                   + blstm_ref[...])                           # (3*L*BP, 4*Hd)

    whh = whh_ref[...]                                          # (Hd, 4*Hd)

    h = jnp.zeros((BP, Hd), jnp.float32)
    c = jnp.zeros((BP, Hd), jnp.float32)
    hmax = jnp.full((BP, Hd), -jnp.inf, jnp.float32)

    # Sequential recurrence: only h @ Whh + the gate nonlinearities remain per
    # step (unavoidable data dependence).  NOTE: explicit MXU staging of Whh
    # (pltpu.matmul_push_rhs / matmul_acc_lhs / matmul_pop) would shave the
    # per-step RHS reload; kept as jnp.dot for portability across v5e/v6e/v7x.
    for s in range(3 * L):
        gxt = gx_ref[pl.ds(s * BP, BP), :]                      # aligned (8, 128)
        gates = gxt + jnp.dot(h, whh, preferred_element_type=jnp.float32)
        sg = _kernel_sigmoid(gates)      # one full-width sigmoid (i, f, o lanes)
        tg = jnp.tanh(gates)             # one full-width tanh   (g lanes)
        i_g = sg[:, 0 * Hd:1 * Hd]
        f_g = sg[:, 1 * Hd:2 * Hd]
        g_g = tg[:, 2 * Hd:3 * Hd]
        o_g = sg[:, 3 * Hd:4 * Hd]
        c = f_g * c + i_g * g_g
        h = o_g * jnp.tanh(c)
        hmax = jnp.maximum(hmax, h)                             # max over time

    # ---- fused final Linear on the valid batch rows ----------------------------
    o_ref[...] = (jnp.dot(hmax[0:B, :], wfc_ref[...],
                          preferred_element_type=jnp.float32) + bfc_ref[...])


# ----------------------- one-time weight preprocessing ---------------------- #
def prepare_params(conv_ws, conv_bs, w_ih, w_hh, b_ih, b_hh, fc_w, fc_b):
    """Run ONCE at model-load time (hoisted out of the per-call path)."""
    nf = conv_ws[0].shape[0]
    Hd = w_hh.shape[1]

    # Embed each conv into a common 5-tap window (zero taps for ks=3) and fuse
    # the three layers along the output-channel axis.
    padded = []
    for w, k, p in zip(conv_ws, KS, PADS):
        lo = 2 - p                               # window offset for max-pad = 2
        padded.append(jnp.pad(w, ((0, 0), (0, 0), (lo, WIN - k - lo))))
    w_all = jnp.concatenate(padded, axis=0)                  # (3*nf, H, 5)
    w_conv = jnp.transpose(w_all, (2, 1, 0))                  # (5, H, 3*nf)
    w_conv = w_conv.reshape(WIN * w_conv.shape[1], 3 * nf)    # (5*H, 3*nf)
    b_conv = jnp.concatenate(conv_bs).reshape(1, 3 * nf)

    return dict(
        w_conv=jnp.asarray(w_conv, jnp.float32),
        b_conv=jnp.asarray(b_conv, jnp.float32),
        wih_t=jnp.asarray(w_ih, jnp.float32).T,               # dense (nf, 4*Hd)
        b_lstm=jnp.asarray(b_ih + b_hh, jnp.float32).reshape(1, 4 * Hd),
        whh_t=jnp.asarray(w_hh, jnp.float32).T,               # (Hd, 4*Hd)
        wfc_t=jnp.asarray(fc_w, jnp.float32).T,               # (Hd, C)
        bfc=jnp.asarray(fc_b, jnp.float32).reshape(1, -1))


# ------------------------------ forward wrapper ----------------------------- #
@jax.jit
def experiment14_forward(x_tokens, emb_table, params):
    B, L = x_tokens.shape
    H = emb_table.shape[1]
    Hd = params["whh_t"].shape[0]
    C = params["bfc"].shape[1]

    tokens = x_tokens.reshape(B * L).astype(jnp.int32)

    kernel = functools.partial(_exp14_kernel, batch=B, seq_len=L)
    vmem = pl.BlockSpec(memory_space=pltpu.MemorySpace.VMEM)
    smem = pl.BlockSpec(memory_space=pltpu.MemorySpace.SMEM)
    anyspace = pl.BlockSpec(memory_space=pl.ANY)

    # NOTE: at B=2 / L=8 the problem is latency-bound and fits a single gridless
    # TensorCore invocation in f32.  For large B: add a batch grid (row blocks a
    # multiple of 8, dimension_semantics=("parallel",) -- required to use both
    # TensorCores on v7x), size tiles against v7x's 64 MiB VMEM / 32 MiB scoped
    # default (pltpu.CompilerParams(vmem_limit_bytes=...)), and bf16-cast the two
    # large matmul operands on v6e/v7x only (keep f32 elementwise math on v5e).
    return pl.pallas_call(
        kernel,
        out_shape=jax.ShapeDtypeStruct((B, C), jnp.float32),
        in_specs=[smem, anyspace, vmem, vmem, vmem, vmem, vmem, vmem, vmem],
        out_specs=vmem,
        scratch_shapes=[
            pltpu.VMEM(((L + 4) * BP, H), jnp.float32),      # padded embeddings
            pltpu.VMEM((3 * L * BP, 4 * Hd), jnp.float32),   # per-step gate inputs
            pltpu.SemaphoreType.DMA((B * L,)),               # gather DMA sems
        ],
    )(tokens, emb_table, params["w_conv"], params["b_conv"], params["wih_t"],
      params["b_lstm"], params["whh_t"], params["wfc_t"], params["bfc"])


# ---------------------------- pure-JAX reference ---------------------------- #
def _ref_sigmoid(z):
    return 1.0 / (1.0 + jnp.exp(-z))


def reference_forward(x_tokens, emb_table, conv_ws, conv_bs,
                      w_ih, w_hh, b_ih, b_hh, fc_w, fc_b):
    emb = emb_table[x_tokens]                                  # (B, L, H)
    B, L, _ = emb.shape
    feats = []
    for w, b, p in zip(conv_ws, conv_bs, PADS):
        O, _, K = w.shape
        xpad = jnp.pad(emb, ((0, 0), (p, p), (0, 0)))
        acc = jnp.zeros((B, L, O), jnp.float32)
        for d in range(K):
            acc = acc + jnp.einsum("blh,oh->blo", xpad[:, d:d + L, :], w[:, :, d])
        feats.append(jnp.maximum(acc + b, 0.0))                # (B, L, nf)
    seq = jnp.concatenate(feats, axis=1)                        # (B, 3L, nf)
    seq = jnp.transpose(seq, (1, 0, 2))                         # (3L, B, nf)

    Hd = w_hh.shape[1]

    def step(carry, x_t):
        h, c = carry
        gates = x_t @ w_ih.T + b_ih + h @ w_hh.T + b_hh
        i = _ref_sigmoid(gates[:, :Hd])
        f = _ref_sigmoid(gates[:, Hd:2 * Hd])
        g = jnp.tanh(gates[:, 2 * Hd:3 * Hd])
        o = _ref_sigmoid(gates[:, 3 * Hd:])
        c = f * c + i * g
        h = o * jnp.tanh(c)
        return (h, c), h

    h0 = jnp.zeros((B, Hd), jnp.float32)
    c0 = jnp.zeros((B, Hd), jnp.float32)
    _, hs = lax.scan(step, (h0, c0), seq)
    hmax = jnp.max(hs, axis=0)
    return hmax @ fc_w.T + fc_b


# ---------------------------------- main ------------------------------------ #
if __name__ == "__main__":
    vocab_size = 50
    embed_size = 32            # module requires embed_size == hidden_dim
    hidden_dim = 32
    num_classes = 4
    max_len = 8
    batch = 2
    nfms = 150                 # hard-coded in the PyTorch module

    key = jax.random.PRNGKey(0)
    keys = jax.random.split(key, 16)

    emb_table = jax.random.normal(keys[0], (vocab_size, hidden_dim),
                                  jnp.float32) * 0.1
    conv_ws = [jax.random.normal(keys[1 + i], (nfms, embed_size, k),
                                 jnp.float32) * 0.05 for i, k in enumerate(KS)]
    conv_bs = [jax.random.normal(keys[4 + i], (nfms,), jnp.float32) * 0.05
               for i in range(3)]
    w_ih = jax.random.normal(keys[7], (4 * hidden_dim, nfms), jnp.float32) * 0.05
    w_hh = jax.random.normal(keys[8], (4 * hidden_dim, hidden_dim),
                             jnp.float32) * 0.05
    b_ih = jax.random.normal(keys[9], (4 * hidden_dim,), jnp.float32) * 0.05
    b_hh = jax.random.normal(keys[10], (4 * hidden_dim,), jnp.float32) * 0.05
    fc_w = jax.random.normal(keys[11], (num_classes, hidden_dim),
                             jnp.float32) * 0.05
    fc_b = jax.random.normal(keys[12], (num_classes,), jnp.float32) * 0.05
    x_tokens = jax.random.randint(keys[13], (batch, max_len), 0, vocab_size)

    params = prepare_params(conv_ws, conv_bs, w_ih, w_hh, b_ih, b_hh, fc_w, fc_b)

    out = experiment14_forward(x_tokens, emb_table, params)
    out = jax.block_until_ready(out)

    ref = reference_forward(x_tokens, emb_table, conv_ws, conv_bs,
                            w_ih, w_hh, b_ih, b_hh, fc_w, fc_b)
    ref = jax.block_until_ready(ref)

    assert out.shape == (batch, num_classes)
    assert jnp.allclose(out, ref, atol=1e-4, rtol=1e-4), (out, ref)
    print("KERNEL_OK")
</pallas_src>

<mosaic_0001>
module attributes {stable_mosaic.version = 11 : i64} {
  func.func @_exp14_kernel(%arg0: memref<16xi32, #tpu.memory_space<smem>>, %arg1: memref<50x32xf32, #tpu.memory_space<any>>, %arg2: memref<160x450xf32, #tpu.memory_space<vmem>>, %arg3: memref<1x450xf32, #tpu.memory_space<vmem>>, %arg4: memref<150x128xf32, #tpu.memory_space<vmem>>, %arg5: memref<1x128xf32, #tpu.memory_space<vmem>>, %arg6: memref<32x128xf32, #tpu.memory_space<vmem>>, %arg7: memref<32x4xf32, #tpu.memory_space<vmem>>, %arg8: memref<1x4xf32, #tpu.memory_space<vmem>>, %arg9: memref<2x4xf32, #tpu.memory_space<vmem>>, %arg10: memref<96x32xf32, #tpu.memory_space<vmem>>, %arg11: memref<192x128xf32, #tpu.memory_space<vmem>>, %arg12: memref<16x!tpu.dma_semaphore, #tpu.memory_space<semaphore_mem>>) attributes {dimension_semantics = [], scalar_prefetch = 0 : i64, scratch_operands = 3 : i64, tpu.core_type = #tpu.core_type<tc>} {
    %cst = arith.constant 0.000000e+00 : f32
    %0 = vector.broadcast %cst : f32 to vector<96x32xf32>
    %c0 = arith.constant 0 : index
    %c0_0 = arith.constant 0 : index
    %1 = vector.load %arg10[%c0, %c0_0] : memref<96x32xf32, #tpu.memory_space<vmem>>, vector<96x32xf32>
    tpu.vector_store %arg10[%c0, %c0_0], %0 {strides = array<i32>} : memref<96x32xf32, #tpu.memory_space<vmem>>, vector<96x32xf32>,
    %c0_1 = arith.constant 0 : index
    %2 = memref.load %arg0[%c0_1] : memref<16xi32, #tpu.memory_space<smem>>
    %c0_i32 = arith.constant 0 : i32
    %c0_i32_2 = arith.constant 0 : i32
    %3 = tpu.memref_slice %arg1[%2, %c0_i32_2] : memref<50x32xf32, #tpu.memory_space<any>> -> memref<1x32xf32, #tpu.memory_space<any>>
    %c16_i32 = arith.constant 16 : i32
    %c0_i32_3 = arith.constant 0 : i32
    %4 = tpu.memref_slice %arg10[%c16_i32, %c0_i32_3] : memref<96x32xf32, #tpu.memory_space<vmem>> -> memref<1x32xf32, #tpu.memory_space<vmem>>
    %5 = tpu.memref_slice %arg12[%c0_i32] : memref<16x!tpu.dma_semaphore, #tpu.memory_space<semaphore_mem>> -> memref<1x!tpu.dma_semaphore, #tpu.memory_space<semaphore_mem>>
    %6 = tpu.memref_squeeze %5 : memref<1x!tpu.dma_semaphore, #tpu.memory_space<semaphore_mem>> -> memref<!tpu.dma_semaphore, #tpu.memory_space<semaphore_mem>>
    tpu.enqueue_dma source(%3 : memref<1x32xf32, #tpu.memory_space<any>>) target(%4 : memref<1x32xf32, #tpu.memory_space<vmem>>) target_semaphore(%6 : memref<!tpu.dma_semaphore, #tpu.memory_space<semaphore_mem>>)
    %c1 = arith.constant 1 : index
    %7 = memref.load %arg0[%c1] : memref<16xi32, #tpu.memory_space<smem>>
    %c1_i32 = arith.constant 1 : i32
    %c0_i32_4 = arith.constant 0 : i32
    %8 = tpu.memref_slice %arg1[%7, %c0_i32_4] : memref<50x32xf32, #tpu.memory_space<any>> -> memref<1x32xf32, #tpu.memory_space<any>>
    %c24_i32 = arith.constant 24 : i32
    %c0_i32_5 = arith.constant 0 : i32
    %9 = tpu.memref_slice %arg10[%c24_i32, %c0_i32_5] : memref<96x32xf32, #tpu.memory_space<vmem>> -> memref<1x32xf32, #tpu.memory_space<vmem>>
    %10 = tpu.memref_slice %arg12[%c1_i32] : memref<16x!tpu.dma_semaphore, #tpu.memory_space<semaphore_mem>> -> memref<1x!tpu.dma_semaphore, #tpu.memory_space<semaphore_mem>>
    %11 = tpu.memref_squeeze %10 : memref<1x!tpu.dma_semaphore, #tpu.memory_space<semaphore_mem>> -> memref<!tpu.dma_semaphore, #tpu.memory_space<semaphore_mem>>
    tpu.enqueue_dma source(%8 : memref<1x32xf32, #tpu.memory_space<any>>) target(%9 : memref<1x32xf32, #tpu.memory_space<vmem>>) target_semaphore(%11 : memref<!tpu.dma_semaphore, #tpu.memory_space<semaphore_mem>>)
    %c2 = arith.constant 2 : index
    %12 = memref.load %arg0[%c2] : memref<16xi32, #tpu.memory_space<smem>>
    %c2_i32 = arith.constant 2 : i32
    %c0_i32_6 = arith.constant 0 : i32
    %13 = tpu.memref_slice %arg1[%12, %c0_i32_6] : memref<50x32xf32, #tpu.memory_space<any>> -> memref<1x32xf32, #tpu.memory_space<any>>
    %c32_i32 = arith.constant 32 : i32
    %c0_i32_7 = arith.constant 0 : i32
    %14 = tpu.memref_slice %arg10[%c32_i32, %c0_i32_7] : memref<96x32xf32, #tpu.memory_space<vmem>> -> memref<1x32xf32, #tpu.memory_space<vmem>>
    %15 = tpu.memref_slice %arg12[%c2_i32] : memref<16x!tpu.dma_semaphore, #tpu.memory_space<semaphore_mem>> -> memref<1x!tpu.dma_semaphore, #tpu.memory_space<semaphore_mem>>
    %16 = tpu.memref_squeeze %15 : memref<1x!tpu.dma_semaphore, #tpu.memory_space<semaphore_mem>> -> memref<!tpu.dma_semaphore, #tpu.memory_space<semaphore_mem>>
    tpu.enqueue_dma source(%13 : memref<1x32xf32, #tpu.memory_space<any>>) target(%14 : memref<1x32xf32, #tpu.memory_space<vmem>>) target_semaphore(%16 : memref<!tpu.dma_semaphore, #tpu.memory_space<semaphore_mem>>)
    %c3 = arith.constant 3 : index
    %17 = memref.load %arg0[%c3] : memref<16xi32, #tpu.memory_space<smem>>
    %c3_i32 = arith.constant 3 : i32
    %c0_i32_8 = arith.constant 0 : i32
    %18 = tpu.memref_slice %arg1[%17, %c0_i32_8] : memref<50x32xf32, #tpu.memory_space<any>> -> memref<1x32xf32, #tpu.memory_space<any>>
    %c40_i32 = arith.constant 40 : i32
    %c0_i32_9 = arith.constant 0 : i32
    %19 = tpu.memref_slice %arg10[%c40_i32, %c0_i32_9] : memref<96x32xf32, #tpu.memory_space<vmem>> -> memref<1x32xf32, #tpu.memory_space<vmem>>
    %20 = tpu.memref_slice %arg12[%c3_i32] : memref<16x!tpu.dma_semaphore, #tpu.memory_space<semaphore_mem>> -> memref<1x!tpu.dma_semaphore, #tpu.memory_space<semaphore_mem>>
    %21 = tpu.memref_squeeze %20 : memref<1x!tpu.dma_semaphore, #tpu.memory_space<semaphore_mem>> -> memref<!tpu.dma_semaphore, #tpu.memory_space<semaphore_mem>>
    tpu.enqueue_dma source(%18 : memref<1x32xf32, #tpu.memory_space<any>>) target(%19 : memref<1x32xf32, #tpu.memory_space<vmem>>) target_semaphore(%21 : memref<!tpu.dma_semaphore, #tpu.memory_space<semaphore_mem>>)
    %c4 = arith.constant 4 : index
    %22 = memref.load %arg0[%c4] : memref<16xi32, #tpu.memory_space<smem>>
    %c4_i32 = arith.constant 4 : i32
    %c0_i32_10 = arith.constant 0 : i32
    %23 = tpu.memref_slice %arg1[%22, %c0_i32_10] : memref<50x32xf32, #tpu.memory_space<any>> -> memref<1x32xf32, #tpu.memory_space<any>>
    %c48_i32 = arith.constant 48 : i32
    %c0_i32_11 = arith.constant 0 : i32
    %24 = tpu.memref_slice %arg10[%c48_i32, %c0_i32_11] : memref<96x32xf32, #tpu.memory_space<vmem>> -> memref<1x32xf32, #tpu.memory_space<vmem>>
    %25 = tpu.memref_slice %arg12[%c4_i32] : memref<16x!tpu.dma_semaphore, #tpu.memory_space<semaphore_mem>> -> memref<1x!tpu.dma_semaphore, #tpu.memory_space<semaphore_mem>>
    %26 = tpu.memref_squeeze %25 : memref<1x!tpu.dma_semaphore, #tpu.memory_space<semaphore_mem>> -> memref<!tpu.dma_semaphore, #tpu.memory_space<semaphore_mem>>
    tpu.enqueue_dma source(%23 : memref<1x32xf32, #tpu.memory_space<any>>) target(%24 : memref<1x32xf32, #tpu.memory_space<vmem>>) target_semaphore(%26 : memref<!tpu.dma_semaphore, #tpu.memory_space<semaphore_mem>>)
    %c5 = arith.constant 5 : index
    %27 = memref.load %arg0[%c5] : memref<16xi32, #tpu.memory_space<smem>>
    %c5_i32 = arith.constant 5 : i32
    %c0_i32_12 = arith.constant 0 : i32
    %28 = tpu.memref_slice %arg1[%27, %c0_i32_12] : memref<50x32xf32, #tpu.memory_space<any>> -> memref<1x32xf32, #tpu.memory_space<any>>
    %c56_i32 = arith.constant 56 : i32
    %c0_i32_13 = arith.constant 0 : i32
    %29 = tpu.memref_slice %arg10[%c56_i32, %c0_i32_13] : memref<96x32xf32, #tpu.memory_space<vmem>> -> memref<1x32xf32, #tpu.memory_space<vmem>>
    %30 = tpu.memref_slice %arg12[%c5_i32] : memref<16x!tpu.dma_semaphore, #tpu.memory_space<semaphore_mem>> -> memref<1x!tpu.dma_semaphore, #tpu.memory_space<semaphore_mem>>
    %31 = tpu.memref_squeeze %30 : memref<1x!tpu.dma_semaphore, #tpu.memory_space<semaphore_mem>> -> memref<!tpu.dma_semaphore, #tpu.memory_space<semaphore_mem>>
    tpu.enqueue_dma source(%28 : memref<1x32xf32, #tpu.memory_space<any>>) target(%29 : memref<1x32xf32, #tpu.memory_space<vmem>>) target_semaphore(%31 : memref<!tpu.dma_semaphore, #tpu.memory_space<semaphore_mem>>)
    %c6 = arith.constant 6 : index
    %32 = memref.load %arg0[%c6] : memref<16xi32, #tpu.memory_space<smem>>
    %c6_i32 = arith.constant 6 : i32
    %c0_i32_14 = arith.constant 0 : i32
    %33 = tpu.memref_slice %arg1[%32, %c0_i32_14] : memref<50x32xf32, #tpu.memory_space<any>> -> memref<1x32xf32, #tpu.memory_space<any>>
    %c64_i32 = arith.constant 64 : i32
    %c0_i32_15 = arith.constant 0 : i32
    %34 = tpu.memref_slice %arg10[%c64_i32, %c0_i32_15] : memref<96x32xf32, #tpu.memory_space<vmem>> -> memref<1x32xf32, #tpu.memory_space<vmem>>
    %35 = tpu.memref_slice %arg12[%c6_i32] : memref<16x!tpu.dma_semaphore, #tpu.memory_space<semaphore_mem>> -> memref<1x!tpu.dma_semaphore, #tpu.memory_space<semaphore_mem>>
    %36 = tpu.memref_squeeze %35 : memref<1x!tpu.dma_semaphore, #tpu.memory_space<semaphore_mem>> -> memref<!tpu.dma_semaphore, #tpu.memory_space<semaphore_mem>>
    tpu.enqueue_dma source(%33 : memref<1x32xf32, #tpu.memory_space<any>>) target(%34 : memref<1x32xf32, #tpu.memory_space<vmem>>) target_semaphore(%36 : memref<!tpu.dma_semaphore, #tpu.memory_space<semaphore_mem>>)
    %c7 = arith.constant 7 : index
    %37 = memref.load %arg0[%c7] : memref<16xi32, #tpu.memory_space<smem>>
    %c7_i32 = arith.constant 7 : i32
    %c0_i32_16 = arith.constant 0 : i32
    %38 = tpu.memref_slice %arg1[%37, %c0_i32_16] : memref<50x32xf32, #tpu.memory_space<any>> -> memref<1x32xf32, #tpu.memory_space<any>>
    %c72_i32 = arith.constant 72 : i32
    %c0_i32_17 = arith.constant 0 : i32
    %39 = tpu.memref_slice %arg10[%c72_i32, %c0_i32_17] : memref<96x32xf32, #tpu.memory_space<vmem>> -> memref<1x32xf32, #tpu.memory_space<vmem>>
    %40 = tpu.memref_slice %arg12[%c7_i32] : memref<16x!tpu.dma_semaphore, #tpu.memory_space<semaphore_mem>> -> memref<1x!tpu.dma_semaphore, #tpu.memory_space<semaphore_mem>>
    %41 = tpu.memref_squeeze %40 : memref<1x!tpu.dma_semaphore, #tpu.memory_space<semaphore_mem>> -> memref<!tpu.dma_semaphore, #tpu.memory_space<semaphore_mem>>
    tpu.enqueue_dma source(%38 : memref<1x32xf32, #tpu.memory_space<any>>) target(%39 : memref<1x32xf32, #tpu.memory_space<vmem>>) target_semaphore(%41 : memref<!tpu.dma_semaphore, #tpu.memory_space<semaphore_mem>>)
    %c8 = arith.constant 8 : index
    %42 = memref.load %arg0[%c8] : memref<16xi32, #tpu.memory_space<smem>>
    %c8_i32 = arith.constant 8 : i32
    %c0_i32_18 = arith.constant 0 : i32
    %43 = tpu.memref_slice %arg1[%42, %c0_i32_18] : memref<50x32xf32, #tpu.memory_space<any>> -> memref<1x32xf32, #tpu.memory_space<any>>
    %c17_i32 = arith.constant 17 : i32
    %c0_i32_19 = arith.constant 0 : i32
    %44 = tpu.memref_slice %arg10[%c17_i32, %c0_i32_19] : memref<96x32xf32, #tpu.memory_space<vmem>> -> memref<1x32xf32, #tpu.memory_space<vmem>>
    %45 = tpu.memref_slice %arg12[%c8_i32] : memref<16x!tpu.dma_semaphore, #tpu.memory_space<semaphore_mem>> -> memref<1x!tpu.dma_semaphore, #tpu.memory_space<semaphore_mem>>
    %46 = tpu.memref_squeeze %45 : memref<1x!tpu.dma_semaphore, #tpu.memory_space<semaphore_mem>> -> memref<!tpu.dma_semaphore, #tpu.memory_space<semaphore_mem>>
    tpu.enqueue_dma source(%43 : memref<1x32xf32, #tpu.memory_space<any>>) target(%44 : memref<1x32xf32, #tpu.memory_space<vmem>>) target_semaphore(%46 : memref<!tpu.dma_semaphore, #tpu.memory_space<semaphore_mem>>)
    %c9 = arith.constant 9 : index
    %47 = memref.load %arg0[%c9] : memref<16xi32, #tpu.memory_space<smem>>
    %c9_i32 = arith.constant 9 : i32
    %c0_i32_20 = arith.constant 0 : i32
    %48 = tpu.memref_slice %arg1[%47, %c0_i32_20] : memref<50x32xf32, #tpu.memory_space<any>> -> memref<1x32xf32, #tpu.memory_space<any>>
    %c25_i32 = arith.constant 25 : i32
    %c0_i32_21 = arith.constant 0 : i32
    %49 = tpu.memref_slice %arg10[%c25_i32, %c0_i32_21] : memref<96x32xf32, #tpu.memory_space<vmem>> -> memref<1x32xf32, #tpu.memory_space<vmem>>
    %50 = tpu.memref_slice %arg12[%c9_i32] : memref<16x!tpu.dma_semaphore, #tpu.memory_space<semaphore_mem>> -> memref<1x!tpu.dma_semaphore, #tpu.memory_space<semaphore_mem>>
    %51 = tpu.memref_squeeze %50 : memref<1x!tpu.dma_semaphore, #tpu.memory_space<semaphore_mem>> -> memref<!tpu.dma_semaphore, #tpu.memory_space<semaphore_mem>>
    tpu.enqueue_dma source(%48 : memref<1x32xf32, #tpu.memory_space<any>>) target(%49 : memref<1x32xf32, #tpu.memory_space<vmem>>) target_semaphore(%51 : memref<!tpu.dma_semaphore, #tpu.memory_space<semaphore_mem>>)
    %c10 = arith.constant 10 : index
    %52 = memref.load %arg0[%c10] : memref<16xi32, #tpu.memory_space<smem>>
    %c10_i32 = arith.constant 10 : i32
    %c0_i32_22 = arith.constant 0 : i32
    %53 = tpu.memref_slice %arg1[%52, %c0_i32_22] : memref<50x32xf32, #tpu.memory_space<any>> -> memref<1x32xf32, #tpu.memory_space<any>>
    %c33_i32 = arith.constant 33 : i32
    %c0_i32_23 = arith.constant 0 : i32
    %54 = tpu.memref_slice %arg10[%c33_i32, %c0_i32_23] : memref<96x32xf32, #tpu.memory_space<vmem>> -> memref<1x32xf32, #tpu.memory_space<vmem>>
    %55 = tpu.memref_slice %arg12[%c10_i32] : memref<16x!tpu.dma_semaphore, #tpu.memory_space<semaphore_mem>> -> memref<1x!tpu.dma_semaphore, #tpu.memory_space<semaphore_mem>>
    %56 = tpu.memref_squeeze %55 : memref<1x!tpu.dma_semaphore, #tpu.memory_space<semaphore_mem>> -> memref<!tpu.dma_semaphore, #tpu.memory_space<semaphore_mem>>
    tpu.enqueue_dma source(%53 : memref<1x32xf32, #tpu.memory_space<any>>) target(%54 : memref<1x32xf32, #tpu.memory_space<vmem>>) target_semaphore(%56 : memref<!tpu.dma_semaphore, #tpu.memory_space<semaphore_mem>>)
    %c11 = arith.constant 11 : index
    %57 = memref.load %arg0[%c11] : memref<16xi32, #tpu.memory_space<smem>>
    %c11_i32 = arith.constant 11 : i32
    %c0_i32_24 = arith.constant 0 : i32
    %58 = tpu.memref_slice %arg1[%57, %c0_i32_24] : memref<50x32xf32, #tpu.memory_space<any>> -> memref<1x32xf32, #tpu.memory_space<any>>
    %c41_i32 = arith.constant 41 : i32
    %c0_i32_25 = arith.constant 0 : i32
    %59 = tpu.memref_slice %arg10[%c41_i32, %c0_i32_25] : memref<96x32xf32, #tpu.memory_space<vmem>> -> memref<1x32xf32, #tpu.memory_space<vmem>>
    %60 = tpu.memref_slice %arg12[%c11_i32] : memref<16x!tpu.dma_semaphore, #tpu.memory_space<semaphore_mem>> -> memref<1x!tpu.dma_semaphore, #tpu.memory_space<semaphore_mem>>
    %61 = tpu.memref_squeeze %60 : memref<1x!tpu.dma_semaphore, #tpu.memory_space<semaphore_mem>> -> memref<!tpu.dma_semaphore, #tpu.memory_space<semaphore_mem>>
    tpu.enqueue_dma source(%58 : memref<1x32xf32, #tpu.memory_space<any>>) target(%59 : memref<1x32xf32, #tpu.memory_space<vmem>>) target_semaphore(%61 : memref<!tpu.dma_semaphore, #tpu.memory_space<semaphore_mem>>)
    %c12 = arith.constant 12 : index
    %62 = memref.load %arg0[%c12] : memref<16xi32, #tpu.memory_space<smem>>
    %c12_i32 = arith.constant 12 : i32
    %c0_i32_26 = arith.constant 0 : i32
    %63 = tpu.memref_slice %arg1[%62, %c0_i32_26] : memref<50x32xf32, #tpu.memory_space<any>> -> memref<1x32xf32, #tpu.memory_space<any>>
    %c49_i32 = arith.constant 49 : i32
    %c0_i32_27 = arith.constant 0 : i32
    %64 = tpu.memref_slice %arg10[%c49_i32, %c0_i32_27] : memref<96x32xf32, #tpu.memory_space<vmem>> -> memref<1x32xf32, #tpu.memory_space<vmem>>
    %65 = tpu.memref_slice %arg12[%c12_i32] : memref<16x!tpu.dma_semaphore, #tpu.memory_space<semaphore_mem>> -> memref<1x!tpu.dma_semaphore, #tpu.memory_space<semaphore_mem>>
    %66 = tpu.memref_squeeze %65 : memref<1x!tpu.dma_semaphore, #tpu.memory_space<semaphore_mem>> -> memref<!tpu.dma_semaphore, #tpu.memory_space<semaphore_mem>>
    tpu.enqueue_dma source(%63 : memref<1x32xf32, #tpu.memory_space<any>>) target(%64 : memref<1x32xf32, #tpu.memory_space<vmem>>) target_semaphore(%66 : memref<!tpu.dma_semaphore, #tpu.memory_space<semaphore_mem>>)
    %c13 = arith.constant 13 : index
    %67 = memref.load %arg0[%c13] : memref<16xi32, #tpu.memory_space<smem>>
    %c13_i32 = arith.constant 13 : i32
    %c0_i32_28 = arith.constant 0 : i32
    %68 = tpu.memref_slice %arg1[%67, %c0_i32_28] : memref<50x32xf32, #tpu.memory_space<any>> -> memref<1x32xf32, #tpu.memory_space<any>>
    %c57_i32 = arith.constant 57 : i32
    %c0_i32_29 = arith.constant 0 : i32
    %69 = tpu.memref_slice %arg10[%c57_i32, %c0_i32_29] : memref<96x32xf32, #tpu.memory_space<vmem>> -> memref<1x32xf32, #tpu.memory_space<vmem>>
    %70 = tpu.memref_slice %arg12[%c13_i32] : memref<16x!tpu.dma_semaphore, #tpu.memory_space<semaphore_mem>> -> memref<1x!tpu.dma_semaphore, #tpu.memory_space<semaphore_mem>>
    %71 = tpu.memref_squeeze %70 : memref<1x!tpu.dma_semaphore, #tpu.memory_space<semaphore_mem>> -> memref<!tpu.dma_semaphore, #tpu.memory_space<semaphore_mem>>
    tpu.enqueue_dma source(%68 : memref<1x32xf32, #tpu.memory_space<any>>) target(%69 : memref<1x32xf32, #tpu.memory_space<vmem>>) target_semaphore(%71 : memref<!tpu.dma_semaphore, #tpu.memory_space<semaphore_mem>>)
    %c14 = arith.constant 14 : index
    %72 = memref.load %arg0[%c14] : memref<16xi32, #tpu.memory_space<smem>>
    %c14_i32 = arith.constant 14 : i32
    %c0_i32_30 = arith.constant 0 : i32
    %73 = tpu.memref_slice %arg1[%72, %c0_i32_30] : memref<50x32xf32, #tpu.memory_space<any>> -> memref<1x32xf32, #tpu.memory_space<any>>
    %c65_i32 = arith.constant 65 : i32
    %c0_i32_31 = arith.constant 0 : i32
    %74 = tpu.memref_slice %arg10[%c65_i32, %c0_i32_31] : memref<96x32xf32, #tpu.memory_space<vmem>> -> memref<1x32xf32, #tpu.memory_space<vmem>>
    %75 = tpu.memref_slice %arg12[%c14_i32] : memref<16x!tpu.dma_semaphore, #tpu.memory_space<semaphore_mem>> -> memref<1x!tpu.dma_semaphore, #tpu.memory_space<semaphore_mem>>
    %76 = tpu.memref_squeeze %75 : memref<1x!tpu.dma_semaphore, #tpu.memory_space<semaphore_mem>> -> memref<!tpu.dma_semaphore, #tpu.memory_space<semaphore_mem>>
    tpu.enqueue_dma source(%73 : memref<1x32xf32, #tpu.memory_space<any>>) target(%74 : memref<1x32xf32, #tpu.memory_space<vmem>>) target_semaphore(%76 : memref<!tpu.dma_semaphore, #tpu.memory_space<semaphore_mem>>)
    %c15 = arith.constant 15 : index
    %77 = memref.load %arg0[%c15] : memref<16xi32, #tpu.memory_space<smem>>
    %c15_i32 = arith.constant 15 : i32
    %c0_i32_32 = arith.constant 0 : i32
    %78 = tpu.memref_slice %arg1[%77, %c0_i32_32] : memref<50x32xf32, #tpu.memory_space<any>> -> memref<1x32xf32, #tpu.memory_space<any>>
    %c73_i32 = arith.constant 73 : i32
    %c0_i32_33 = arith.constant 0 : i32
    %79 = tpu.memref_slice %arg10[%c73_i32, %c0_i32_33] : memref<96x32xf32, #tpu.memory_space<vmem>> -> memref<1x32xf32, #tpu.memory_space<vmem>>
    %80 = tpu.memref_slice %arg12[%c15_i32] : memref<16x!tpu.dma_semaphore, #tpu.memory_space<semaphore_mem>> -> memref<1x!tpu.dma_semaphore, #tpu.memory_space<semaphore_mem>>
    %81 = tpu.memref_squeeze %80 : memref<1x!tpu.dma_semaphore, #tpu.memory_space<semaphore_mem>> -> memref<!tpu.dma_semaphore, #tpu.memory_space<semaphore_mem>>
    tpu.enqueue_dma source(%78 : memref<1x32xf32, #tpu.memory_space<any>>) target(%79 : memref<1x32xf32, #tpu.memory_space<vmem>>) target_semaphore(%81 : memref<!tpu.dma_semaphore, #tpu.memory_space<semaphore_mem>>)
    %c0_i32_34 = arith.constant 0 : i32
    %c0_i32_35 = arith.constant 0 : i32
    %82 = tpu.memref_slice %arg1[%2, %c0_i32_35] : memref<50x32xf32, #tpu.memory_space<any>> -> memref<1x32xf32, #tpu.memory_space<any>>
    %c16_i32_36 = arith.constant 16 : i32
    %c0_i32_37 = arith.constant 0 : i32
    %83 = tpu.memref_slice %arg10[%c16_i32_36, %c0_i32_37] : memref<96x32xf32, #tpu.memory_space<vmem>> -> memref<1x32xf32, #tpu.memory_space<vmem>>
    %84 = tpu.memref_slice %arg12[%c0_i32_34] : memref<16x!tpu.dma_semaphore, #tpu.memory_space<semaphore_mem>> -> memref<1x!tpu.dma_semaphore, #tpu.memory_space<semaphore_mem>>
    %85 = tpu.memref_squeeze %84 : memref<1x!tpu.dma_semaphore, #tpu.memory_space<semaphore_mem>> -> memref<!tpu.dma_semaphore, #tpu.memory_space<semaphore_mem>>
    tpu.wait_dma2 semaphore(%85 : memref<!tpu.dma_semaphore, #tpu.memory_space<semaphore_mem>>) src(%82 : memref<1x32xf32, #tpu.memory_space<any>>) dst(%83 : memref<1x32xf32, #tpu.memory_space<vmem>>)
    %c1_i32_38 = arith.constant 1 : i32
    %c0_i32_39 = arith.constant 0 : i32
    %86 = tpu.memref_slice %arg1[%7, %c0_i32_39] : memref<50x32xf32, #tpu.memory_space<any>> -> memref<1x32xf32, #tpu.memory_space<any>>
    %c24_i32_40 = arith.constant 24 : i32
    %c0_i32_41 = arith.constant 0 : i32
    %87 = tpu.memref_slice %arg10[%c24_i32_40, %c0_i32_41] : memref<96x32xf32, #tpu.memory_space<vmem>> -> memref<1x32xf32, #tpu.memory_space<vmem>>
    %88 = tpu.memref_slice %arg12[%c1_i32_38] : memref<16x!tpu.dma_semaphore, #tpu.memory_space<semaphore_mem>> -> memref<1x!tpu.dma_semaphore, #tpu.memory_space<semaphore_mem>>
    %89 = tpu.memref_squeeze %88 : memref<1x!tpu.dma_semaphore, #tpu.memory_space<semaphore_mem>> -> memref<!tpu.dma_semaphore, #tpu.memory_space<semaphore_mem>>
    tpu.wait_dma2 semaphore(%89 : memref<!tpu.dma_semaphore, #tpu.memory_space<semaphore_mem>>) src(%86 : memref<1x32xf32, #tpu.memory_space<any>>) dst(%87 : memref<1x32xf32, #tpu.memory_space<vmem>>)
    %c2_i32_42 = arith.constant 2 : i32
    %c0_i32_43 = arith.constant 0 : i32
    %90 = tpu.memref_slice %arg1[%12, %c0_i32_43] : memref<50x32xf32, #tpu.memory_space<any>> -> memref<1x32xf32, #tpu.memory_space<any>>
    %c32_i32_44 = arith.constant 32 : i32
    %c0_i32_45 = arith.constant 0 : i32
    %91 = tpu.memref_slice %arg10[%c32_i32_44, %c0_i32_45] : memref<96x32xf32, #tpu.memory_space<vmem>> -> memref<1x32xf32, #tpu.memory_space<vmem>>
    %92 = tpu.memref_slice %arg12[%c2_i32_42] : memref<16x!tpu.dma_semaphore, #tpu.memory_space<semaphore_mem>> -> memref<1x!tpu.dma_semaphore, #tpu.memory_space<semaphore_mem>>
    %93 = tpu.memref_squeeze %92 : memref<1x!tpu.dma_semaphore, #tpu.memory_space<semaphore_mem>> -> memref<!tpu.dma_semaphore, #tpu.memory_space<semaphore_mem>>
    tpu.wait_dma2 semaphore(%93 : memref<!tpu.dma_semaphore, #tpu.memory_space<semaphore_mem>>) src(%90 : memref<1x32xf32, #tpu.memory_space<any>>) dst(%91 : memref<1x32xf32, #tpu.memory_space<vmem>>)
    %c3_i32_46 = arith.constant 3 : i32
    %c0_i32_47 = arith.constant 0 : i32
    %94 = tpu.memref_slice %arg1[%17, %c0_i32_47] : memref<50x32xf32, #tpu.memory_space<any>> -> memref<1x32xf32, #tpu.memory_space<any>>
    %c40_i32_48 = arith.constant 40 : i32
    %c0_i32_49 = arith.constant 0 : i32
    %95 = tpu.memref_slice %arg10[%c40_i32_48, %c0_i32_49] : memref<96x32xf32, #tpu.memory_space<vmem>> -> memref<1x32xf32, #tpu.memory_space<vmem>>
    %96 = tpu.memref_slice %arg12[%c3_i32_46] : memref<16x!tpu.dma_semaphore, #tpu.memory_space<semaphore_mem>> -> memref<1x!tpu.dma_semaphore, #tpu.memory_space<semaphore_mem>>
    %97 = tpu.memref_squeeze %96 : memref<1x!tpu.dma_semaphore, #tpu.memory_space<semaphore_mem>> -> memref<!tpu.dma_semaphore, #tpu.memory_space<semaphore_mem>>
    tpu.wait_dma2 semaphore(%97 : memref<!tpu.dma_semaphore, #tpu.memory_space<semaphore_mem>>) src(%94 : memref<1x32xf32, #tpu.memory_space<any>>) dst(%95 : memref<1x32xf32, #tpu.memory_space<vmem>>)
    %c4_i32_50 = arith.constant 4 : i32
    %c0_i32_51 = arith.constant 0 : i32
    %98 = tpu.memref_slice %arg1[%22, %c0_i32_51] : memref<50x32xf32, #tpu.memory_space<any>> -> memref<1x32xf32, #tpu.memory_space<any>>
    %c48_i32_52 = arith.constant 48 : i32
    %c0_i32_53 = arith.constant 0 : i32
    %99 = tpu.memref_slice %arg10[%c48_i32_52, %c0_i32_53] : memref<96x32xf32, #tpu.memory_space<vmem>> -> memref<1x32xf32, #tpu.memory_space<vmem>>
    %100 = tpu.memref_slice %arg12[%c4_i32_50] : memref<16x!tpu.dma_semaphore, #tpu.memory_space<semaphore_mem>> -> memref<1x!tpu.dma_semaphore, #tpu.memory_space<semaphore_mem>>
    %101 = tpu.memref_squeeze %100 : memref<1x!tpu.dma_semaphore, #tpu.memory_space<semaphore_mem>> -> memref<!tpu.dma_semaphore, #tpu.memory_space<semaphore_mem>>
    tpu.wait_dma2 semaphore(%101 : memref<!tpu.dma_semaphore, #tpu.memory_space<semaphore_mem>>) src(%98 : memref<1x32xf32, #tpu.memory_space<any>>) dst(%99 : memref<1x32xf32, #tpu.memory_space<vmem>>)
    %c5_i32_54 = arith.constant 5 : i32
    %c0_i32_55 = arith.constant 0 : i32
    %102 = tpu.memref_slice %arg1[%27, %c0_i32_55] : memref<50x32xf32, #tpu.memory_space<any>> -> memref<1x32xf32, #tpu.memory_space<any>>
    %c56_i32_56 = arith.constant 56 : i32
    %c0_i32_57 = arith.constant 0 : i32
    %103 = tpu.memref_slice %arg10[%c56_i32_56, %c0_i32_57] : memref<96x32xf32, #tpu.memory_space<vmem>> -> memref<1x32xf32, #tpu.memory_space<vmem>>
    %104 = tpu.memref_slice %arg12[%c5_i32_54] : memref<16x!tpu.dma_semaphore, #tpu.memory_space<semaphore_mem>> -> memref<1x!tpu.dma_semaphore, #tpu.memory_space<semaphore_mem>>
    %105 = tpu.memref_squeeze %104 : memref<1x!tpu.dma_semaphore, #tpu.memory_space<semaphore_mem>> -> memref<!tpu.dma_semaphore, #tpu.memory_space<semaphore_mem>>
    tpu.wait_dma2 semaphore(%105 : memref<!tpu.dma_semaphore, #tpu.memory_space<semaphore_mem>>) src(%102 : memref<1x32xf32, #tpu.memory_space<any>>) dst(%103 : memref<1x32xf32, #tpu.memory_space<vmem>>)
    %c6_i32_58 = arith.constant 6 : i32
    %c0_i32_59 = arith.constant 0 : i32
    %106 = tpu.memref_slice %arg1[%32, %c0_i32_59] : memref<50x32xf32, #tpu.memory_space<any>> -> memref<1x32xf32, #tpu.memory_space<any>>
    %c64_i32_60 = arith.constant 64 : i32
    %c0_i32_61 = arith.constant 0 : i32
    %107 = tpu.memref_slice %arg10[%c64_i32_60, %c0_i32_61] : memref<96x32xf32, #tpu.memory_space<vmem>> -> memref<1x32xf32, #tpu.memory_space<vmem>>
    %108 = tpu.memref_slice %arg12[%c6_i32_58] : memref<16x!tpu.dma_semaphore, #tpu.memory_space<semaphore_mem>> -> memref<1x!tpu.dma_semaphore, #tpu.memory_space<semaphore_mem>>
    %109 = tpu.memref_squeeze %108 : memref<1x!tpu.dma_semaphore, #tpu.memory_space<semaphore_mem>> -> memref<!tpu.dma_semaphore, #tpu.memory_space<semaphore_mem>>
    tpu.wait_dma2 semaphore(%109 : memref<!tpu.dma_semaphore, #tpu.memory_space<semaphore_mem>>) src(%106 : memref<1x32xf32, #tpu.memory_space<any>>) dst(%107 : memref<1x32xf32, #tpu.memory_space<vmem>>)
    %c7_i32_62 = arith.constant 7 : i32
    %c0_i32_63 = arith.constant 0 : i32
    %110 = tpu.memref_slice %arg1[%37, %c0_i32_63] : memref<50x32xf32, #tpu.memory_space<any>> -> memref<1x32xf32, #tpu.memory_space<any>>
    %c72_i32_64 = arith.constant 72 : i32
    %c0_i32_65 = arith.constant 0 : i32
    %111 = tpu.memref_slice %arg10[%c72_i32_64, %c0_i32_65] : memref<96x32xf32, #tpu.memory_space<vmem>> -> memref<1x32xf32, #tpu.memory_space<vmem>>
    %112 = tpu.memref_slice %arg12[%c7_i32_62] : memref<16x!tpu.dma_semaphore, #tpu.memory_space<semaphore_mem>> -> memref<1x!tpu.dma_semaphore, #tpu.memory_space<semaphore_mem>>
    %113 = tpu.memref_squeeze %112 : memref<1x!tpu.dma_semaphore, #tpu.memory_space<semaphore_mem>> -> memref<!tpu.dma_semaphore, #tpu.memory_space<semaphore_mem>>
    tpu.wait_dma2 semaphore(%113 : memref<!tpu.dma_semaphore, #tpu.memory_space<semaphore_mem>>) src(%110 : memref<1x32xf32, #tpu.memory_space<any>>) dst(%111 : memref<1x32xf32, #tpu.memory_space<vmem>>)
    %c8_i32_66 = arith.constant 8 : i32
    %c0_i32_67 = arith.constant 0 : i32
    %114 = tpu.memref_slice %arg1[%42, %c0_i32_67] : memref<50x32xf32, #tpu.memory_space<any>> -> memref<1x32xf32, #tpu.memory_space<any>>
    %c17_i32_68 = arith.constant 17 : i32
    %c0_i32_69 = arith.constant 0 : i32
    %115 = tpu.memref_slice %arg10[%c17_i32_68, %c0_i32_69] : memref<96x32xf32, #tpu.memory_space<vmem>> -> memref<1x32xf32, #tpu.memory_space<vmem>>
    %116 = tpu.memref_slice %arg12[%c8_i32_66] : memref<16x!tpu.dma_semaphore, #tpu.memory_space<semaphore_mem>> -> memref<1x!tpu.dma_semaphore, #tpu.memory_space<semaphore_mem>>
    %117 = tpu.memref_squeeze %116 : memref<1x!tpu.dma_semaphore, #tpu.memory_space<semaphore_mem>> -> memref<!tpu.dma_semaphore, #tpu.memory_space<semaphore_mem>>
    tpu.wait_dma2 semaphore(%117 : memref<!tpu.dma_semaphore, #tpu.memory_space<semaphore_mem>>) src(%114 : memref<1x32xf32, #tpu.memory_space<any>>) dst(%115 : memref<1x32xf32, #tpu.memory_space<vmem>>)
    %c9_i32_70 = arith.constant 9 : i32
    %c0_i32_71 = arith.constant 0 : i32
    %118 = tpu.memref_slice %arg1[%47, %c0_i32_71] : memref<50x32xf32, #tpu.memory_space<any>> -> memref<1x32xf32, #tpu.memory_space<any>>
    %c25_i32_72 = arith.constant 25 : i32
    %c0_i32_73 = arith.constant 0 : i32
    %119 = tpu.memref_slice %arg10[%c25_i32_72, %c0_i32_73] : memref<96x32xf32, #tpu.memory_space<vmem>> -> memref<1x32xf32, #tpu.memory_space<vmem>>
    %120 = tpu.memref_slice %arg12[%c9_i32_70] : memref<16x!tpu.dma_semaphore, #tpu.memory_space<semaphore_mem>> -> memref<1x!tpu.dma_semaphore, #tpu.memory_space<semaphore_mem>>
    %121 = tpu.memref_squeeze %120 : memref<1x!tpu.dma_semaphore, #tpu.memory_space<semaphore_mem>> -> memref<!tpu.dma_semaphore, #tpu.memory_space<semaphore_mem>>
    tpu.wait_dma2 semaphore(%121 : memref<!tpu.dma_semaphore, #tpu.memory_space<semaphore_mem>>) src(%118 : memref<1x32xf32, #tpu.memory_space<any>>) dst(%119 : memref<1x32xf32, #tpu.memory_space<vmem>>)
    %c10_i32_74 = arith.constant 10 : i32
    %c0_i32_75 = arith.constant 0 : i32
    %122 = tpu.memref_slice %arg1[%52, %c0_i32_75] : memref<50x32xf32, #tpu.memory_space<any>> -> memref<1x32xf32, #tpu.memory_space<any>>
    %c33_i32_76 = arith.constant 33 : i32
    %c0_i32_77 = arith.constant 0 : i32
    %123 = tpu.memref_slice %arg10[%c33_i32_76, %c0_i32_77] : memref<96x32xf32, #tpu.memory_space<vmem>> -> memref<1x32xf32, #tpu.memory_space<vmem>>
    %124 = tpu.memref_slice %arg12[%c10_i32_74] : memref<16x!tpu.dma_semaphore, #tpu.memory_space<semaphore_mem>> -> memref<1x!tpu.dma_semaphore, #tpu.memory_space<semaphore_mem>>
    %125 = tpu.memref_squeeze %124 : memref<1x!tpu.dma_semaphore, #tpu.memory_space<semaphore_mem>> -> memref<!tpu.dma_semaphore, #tpu.memory_space<semaphore_mem>>
    tpu.wait_dma2 semaphore(%125 : memref<!tpu.dma_semaphore, #tpu.memory_space<semaphore_mem>>) src(%122 : memref<1x32xf32, #tpu.memory_space<any>>) dst(%123 : memref<1x32xf32, #tpu.memory_space<vmem>>)
    %c11_i32_78 = arith.constant 11 : i32
    %c0_i32_79 = arith.constant 0 : i32
    %126 = tpu.memref_slice %arg1[%57, %c0_i32_79] : memref<50x32xf32, #tpu.memory_space<any>> -> memref<1x32xf32, #tpu.memory_space<any>>
    %c41_i32_80 = arith.constant 41 : i32
    %c0_i32_81 = arith.constant 0 : i32
    %127 = tpu.memref_slice %arg10[%c41_i32_80, %c0_i32_81] : memref<96x32xf32, #tpu.memory_space<vmem>> -> memref<1x32xf32, #tpu.memory_space<vmem>>
    %128 = tpu.memref_slice %arg12[%c11_i32_78] : memref<16x!tpu.dma_semaphore, #tpu.memory_space<semaphore_mem>> -> memref<1x!tpu.dma_semaphore, #tpu.memory_space<semaphore_mem>>
    %129 = tpu.memref_squeeze %128 : memref<1x!tpu.dma_semaphore, #tpu.memory_space<semaphore_mem>> -> memref<!tpu.dma_semaphore, #tpu.memory_space<semaphore_mem>>
    tpu.wait_dma2 semaphore(%129 : memref<!tpu.dma_semaphore, #tpu.memory_space<semaphore_mem>>) src(%126 : memref<1x32xf32, #tpu.memory_space<any>>) dst(%127 : memref<1x32xf32, #tpu.memory_space<vmem>>)
    %c12_i32_82 = arith.constant 12 : i32
    %c0_i32_83 = arith.constant 0 : i32
    %130 = tpu.memref_slice %arg1[%62, %c0_i32_83] : memref<50x32xf32, #tpu.memory_space<any>> -> memref<1x32xf32, #tpu.memory_space<any>>
    %c49_i32_84 = arith.constant 49 : i32
    %c0_i32_85 = arith.constant 0 : i32
    %131 = tpu.memref_slice %arg10[%c49_i32_84, %c0_i32_85] : memref<96x32xf32, #tpu.memory_space<vmem>> -> memref<1x32xf32, #tpu.memory_space<vmem>>
    %132 = tpu.memref_slice %arg12[%c12_i32_82] : memref<16x!tpu.dma_semaphore, #tpu.memory_space<semaphore_mem>> -> memref<1x!tpu.dma_semaphore, #tpu.memory_space<semaphore_mem>>
    %133 = tpu.memref_squeeze %132 : memref<1x!tpu.dma_semaphore, #tpu.memory_space<semaphore_mem>> -> memref<!tpu.dma_semaphore, #tpu.memory_space<semaphore_mem>>
    tpu.wait_dma2 semaphore(%133 : memref<!tpu.dma_semaphore, #tpu.memory_space<semaphore_mem>>) src(%130 : memref<1x32xf32, #tpu.memory_space<any>>) dst(%131 : memref<1x32xf32, #tpu.memory_space<vmem>>)
    %c13_i32_86 = arith.constant 13 : i32
    %c0_i32_87 = arith.constant 0 : i32
    %134 = tpu.memref_slice %arg1[%67, %c0_i32_87] : memref<50x32xf32, #tpu.memory_space<any>> -> memref<1x32xf32, #tpu.memory_space<any>>
    %c57_i32_88 = arith.constant 57 : i32
    %c0_i32_89 = arith.constant 0 : i32
    %135 = tpu.memref_slice %arg10[%c57_i32_88, %c0_i32_89] : memref<96x32xf32, #tpu.memory_space<vmem>> -> memref<1x32xf32, #tpu.memory_space<vmem>>
    %136 = tpu.memref_slice %arg12[%c13_i32_86] : memref<16x!tpu.dma_semaphore, #tpu.memory_space<semaphore_mem>> -> memref<1x!tpu.dma_semaphore, #tpu.memory_space<semaphore_mem>>
    %137 = tpu.memref_squeeze %136 : memref<1x!tpu.dma_semaphore, #tpu.memory_space<semaphore_mem>> -> memref<!tpu.dma_semaphore, #tpu.memory_space<semaphore_mem>>
    tpu.wait_dma2 semaphore(%137 : memref<!tpu.dma_semaphore, #tpu.memory_space<semaphore_mem>>) src(%134 : memref<1x32xf32, #tpu.memory_space<any>>) dst(%135 : memref<1x32xf32, #tpu.memory_space<vmem>>)
    %c14_i32_90 = arith.constant 14 : i32
    %c0_i32_91 = arith.constant 0 : i32
    %138 = tpu.memref_slice %arg1[%72, %c0_i32_91] : memref<50x32xf32, #tpu.memory_space<any>> -> memref<1x32xf32, #tpu.memory_space<any>>
    %c65_i32_92 = arith.constant 65 : i32
    %c0_i32_93 = arith.constant 0 : i32
    %139 = tpu.memref_slice %arg10[%c65_i32_92, %c0_i32_93] : memref<96x32xf32, #tpu.memory_space<vmem>> -> memref<1x32xf32, #tpu.memory_space<vmem>>
    %140 = tpu.memref_slice %arg12[%c14_i32_90] : memref<16x!tpu.dma_semaphore, #tpu.memory_space<semaphore_mem>> -> memref<1x!tpu.dma_semaphore, #tpu.memory_space<semaphore_mem>>
    %141 = tpu.memref_squeeze %140 : memref<1x!tpu.dma_semaphore, #tpu.memory_space<semaphore_mem>> -> memref<!tpu.dma_semaphore, #tpu.memory_space<semaphore_mem>>
    tpu.wait_dma2 semaphore(%141 : memref<!tpu.dma_semaphore, #tpu.memory_space<semaphore_mem>>) src(%138 : memref<1x32xf32, #tpu.memory_space<any>>) dst(%139 : memref<1x32xf32, #tpu.memory_space<vmem>>)
    %c15_i32_94 = arith.constant 15 : i32
    %c0_i32_95 = arith.constant 0 : i32
    %142 = tpu.memref_slice %arg1[%77, %c0_i32_95] : memref<50x32xf32, #tpu.memory_space<any>> -> memref<1x32xf32, #tpu.memory_space<any>>
    %c73_i32_96 = arith.constant 73 : i32
    %c0_i32_97 = arith.constant 0 : i32
    %143 = tpu.memref_slice %arg10[%c73_i32_96, %c0_i32_97] : memref<96x32xf32, #tpu.memory_space<vmem>> -> memref<1x32xf32, #tpu.memory_space<vmem>>
    %144 = tpu.memref_slice %arg12[%c15_i32_94] : memref<16x!tpu.dma_semaphore, #tpu.memory_space<semaphore_mem>> -> memref<1x!tpu.dma_semaphore, #tpu.memory_space<semaphore_mem>>
    %145 = tpu.memref_squeeze %144 : memref<1x!tpu.dma_semaphore, #tpu.memory_space<semaphore_mem>> -> memref<!tpu.dma_semaphore, #tpu.memory_space<semaphore_mem>>
    tpu.wait_dma2 semaphore(%145 : memref<!tpu.dma_semaphore, #tpu.memory_space<semaphore_mem>>) src(%142 : memref<1x32xf32, #tpu.memory_space<any>>) dst(%143 : memref<1x32xf32, #tpu.memory_space<vmem>>)
    %c0_98 = arith.constant 0 : index
    %c0_99 = arith.constant 0 : index
    %146 = vector.load %arg10[%c0_98, %c0_99] : memref<96x32xf32, #tpu.memory_space<vmem>>, vector<64x32xf32>
    %c0_100 = arith.constant 0 : index
    %c0_101 = arith.constant 0 : index
    %147 = vector.load %arg2[%c0_100, %c0_101] : memref<160x450xf32, #tpu.memory_space<vmem>>, vector<32x450xf32>
    %cst_102 = arith.constant dense<0.000000e+00> : vector<64x450xf32>
    %148 = tpu.matmul %146, %147, %cst_102 {dimension_numbers = #tpu.dot_dimension_numbers<[1], [0], [0], [1], [0, 0, 1, 1], [], []>} : vector<64x32xf32>, vector<32x450xf32>, vector<64x450xf32> -> vector<64x450xf32>
    %c8_103 = arith.constant 8 : index
    %c0_104 = arith.constant 0 : index
    %149 = vector.load %arg10[%c8_103, %c0_104] : memref<96x32xf32, #tpu.memory_space<vmem>>, vector<64x32xf32>
    %c32 = arith.constant 32 : index
    %c0_105 = arith.constant 0 : index
    %150 = vector.load %arg2[%c32, %c0_105] : memref<160x450xf32, #tpu.memory_space<vmem>>, vector<32x450xf32>
    %cst_106 = arith.constant dense<0.000000e+00> : vector<64x450xf32>
    %151 = tpu.matmul %149, %150, %cst_106 {dimension_numbers = #tpu.dot_dimension_numbers<[1], [0], [0], [1], [0, 0, 1, 1], [], []>} : vector<64x32xf32>, vector<32x450xf32>, vector<64x450xf32> -> vector<64x450xf32>
    %152 = arith.addf %148, %151 : vector<64x450xf32>
    %c16 = arith.constant 16 : index
    %c0_107 = arith.constant 0 : index
    %153 = vector.load %arg10[%c16, %c0_107] : memref<96x32xf32, #tpu.memory_space<vmem>>, vector<64x32xf32>
    %c64 = arith.constant 64 : index
    %c0_108 = arith.constant 0 : index
    %154 = vector.load %arg2[%c64, %c0_108] : memref<160x450xf32, #tpu.memory_space<vmem>>, vector<32x450xf32>
    %cst_109 = arith.constant dense<0.000000e+00> : vector<64x450xf32>
    %155 = tpu.matmul %153, %154, %cst_109 {dimension_numbers = #tpu.dot_dimension_numbers<[1], [0], [0], [1], [0, 0, 1, 1], [], []>} : vector<64x32xf32>, vector<32x450xf32>, vector<64x450xf32> -> vector<64x450xf32>
    %156 = arith.addf %152, %155 : vector<64x450xf32>
    %c24 = arith.constant 24 : index
    %c0_110 = arith.constant 0 : index
    %157 = vector.load %arg10[%c24, %c0_110] : memref<96x32xf32, #tpu.memory_space<vmem>>, vector<64x32xf32>
    %c96 = arith.constant 96 : index
    %c0_111 = arith.constant 0 : index
    %158 = vector.load %arg2[%c96, %c0_111] : memref<160x450xf32, #tpu.memory_space<vmem>>, vector<32x450xf32>
    %cst_112 = arith.constant dense<0.000000e+00> : vector<64x450xf32>
    %159 = tpu.matmul %157, %158, %cst_112 {dimension_numbers = #tpu.dot_dimension_numbers<[1], [0], [0], [1], [0, 0, 1, 1], [], []>} : vector<64x32xf32>, vector<32x450xf32>, vector<64x450xf32> -> vector<64x450xf32>
    %160 = arith.addf %156, %159 : vector<64x450xf32>
    %c32_113 = arith.constant 32 : index
    %c0_114 = arith.constant 0 : index
    %161 = vector.load %arg10[%c32_113, %c0_114] : memref<96x32xf32, #tpu.memory_space<vmem>>, vector<64x32xf32>
    %c128 = arith.constant 128 : index
    %c0_115 = arith.constant 0 : index
    %162 = vector.load %arg2[%c128, %c0_115] : memref<160x450xf32, #tpu.memory_space<vmem>>, vector<32x450xf32>
    %cst_116 = arith.constant dense<0.000000e+00> : vector<64x450xf32>
    %163 = tpu.matmul %161, %162, %cst_116 {dimension_numbers = #tpu.dot_dimension_numbers<[1], [0], [0], [1], [0, 0, 1, 1], [], []>} : vector<64x32xf32>, vector<32x450xf32>, vector<64x450xf32> -> vector<64x450xf32>
    %164 = arith.addf %160, %163 : vector<64x450xf32>
    %c0_117 = arith.constant 0 : index
    %c0_118 = arith.constant 0 : index
    %165 = vector.load %arg3[%c0_117, %c0_118] : memref<1x450xf32, #tpu.memory_space<vmem>>, vector<1x450xf32>
    %166 = vector.broadcast %165 : vector<1x450xf32> to vector<64x450xf32>
    %167 = arith.addf %164, %166 : vector<64x450xf32>
    %cst_119 = arith.constant 0.000000e+00 : f32
    %168 = vector.broadcast %cst_119 : f32 to vector<64x450xf32>
    %169 = arith.maximumf %167, %168 : vector<64x450xf32>
    %170 = vector.extract_strided_slice %169 {offsets = [0, 0], sizes = [64, 150], strides = [1, 1]} : vector<64x450xf32> to vector<64x150xf32>
    %171 = vector.extract_strided_slice %169 {offsets = [0, 150], sizes = [64, 150], strides = [1, 1]} : vector<64x450xf32> to vector<64x150xf32>
    %172 = vector.extract_strided_slice %169 {offsets = [0, 300], sizes = [64, 150], strides = [1, 1]} : vector<64x450xf32> to vector<64x150xf32>
    %173 = tpu.concatenate %170, %171, %172 in 0 : vector<64x150xf32>, vector<64x150xf32>, vector<64x150xf32> -> vector<192x150xf32>
    %c0_120 = arith.constant 0 : index
    %c0_121 = arith.constant 0 : index
    %174 = vector.load %arg4[%c0_120, %c0_121] : memref<150x128xf32, #tpu.memory_space<vmem>>, vector<150x128xf32>
    %cst_122 = arith.constant dense<0.000000e+00> : vector<192x128xf32>
    %175 = tpu.matmul %173, %174, %cst_122 {dimension_numbers = #tpu.dot_dimension_numbers<[1], [0], [0], [1], [0, 0, 1, 1], [], []>} : vector<192x150xf32>, vector<150x128xf32>, vector<192x128xf32> -> vector<192x128xf32>
    %c0_123 = arith.constant 0 : index
    %c0_124 = arith.constant 0 : index
    %176 = vector.load %arg5[%c0_123, %c0_124] : memref<1x128xf32, #tpu.memory_space<vmem>>, vector<1x128xf32>
    %177 = vector.broadcast %176 : vector<1x128xf32> to vector<192x128xf32>
    %178 = arith.addf %175, %177 : vector<192x128xf32>
    %c0_125 = arith.constant 0 : index
    %c0_126 = arith.constant 0 : index
    %179 = vector.load %arg11[%c0_125, %c0_126] : memref<192x128xf32, #tpu.memory_space<vmem>>, vector<192x128xf32>
    tpu.vector_store %arg11[%c0_125, %c0_126], %178 {strides = array<i32>} : memref<192x128xf32, #tpu.memory_space<vmem>>, vector<192x128xf32>,
    %c0_127 = arith.constant 0 : index
    %c0_128 = arith.constant 0 : index
    %180 = vector.load %arg6[%c0_127, %c0_128] : memref<32x128xf32, #tpu.memory_space<vmem>>, vector<32x128xf32>
    %cst_129 = arith.constant 0.000000e+00 : f32
    %181 = vector.broadcast %cst_129 : f32 to vector<8x32xf32>
    %cst_130 = arith.constant 0.000000e+00 : f32
    %182 = vector.broadcast %cst_130 : f32 to vector<8x32xf32>
    %cst_131 = arith.constant 0xFF800000 : f32
    %183 = vector.broadcast %cst_131 : f32 to vector<8x32xf32>
    %c0_132 = arith.constant 0 : index
    %c0_133 = arith.constant 0 : index
    %184 = vector.load %arg11[%c0_132, %c0_133] : memref<192x128xf32, #tpu.memory_space<vmem>>, vector<8x128xf32>
    %cst_134 = arith.constant dense<0.000000e+00> : vector<8x128xf32>
    %185 = tpu.matmul %181, %180, %cst_134 {dimension_numbers = #tpu.dot_dimension_numbers<[1], [0], [0], [1], [0, 0, 1, 1], [], []>} : vector<8x32xf32>, vector<32x128xf32>, vector<8x128xf32> -> vector<8x128xf32>
    %186 = arith.addf %184, %185 : vector<8x128xf32>
    %cst_135 = arith.constant -3.000000e+01 : f32
    %187 = vector.broadcast %cst_135 : f32 to vector<8x128xf32>
    %188 = arith.maximumf %186, %187 : vector<8x128xf32>
    %cst_136 = arith.constant 0.000000e+00 : f32
    %189 = vector.broadcast %cst_136 : f32 to vector<8x128xf32>
    %190 = arith.subf %189, %188 : vector<8x128xf32>
    %191 = math.exp %190 : vector<8x128xf32>
    %cst_137 = arith.constant 1.000000e+00 : f32
    %192 = vector.broadcast %cst_137 : f32 to vector<8x128xf32>
    %193 = arith.addf %192, %191 : vector<8x128xf32>
    %194 = tpu.reciprocal %193 {approx = true} : vector<8x128xf32> -> vector<8x128xf32>
    %195 = arith.mulf %193, %194 : vector<8x128xf32>
    %cst_138 = arith.constant 2.000000e+00 : f32
    %196 = vector.broadcast %cst_138 : f32 to vector<8x128xf32>
    %197 = arith.subf %196, %195 : vector<8x128xf32>
    %198 = arith.mulf %194, %197 : vector<8x128xf32>
    %199 = math.tanh %186 : vector<8x128xf32>
    %200 = vector.extract_strided_slice %198 {offsets = [0, 0], sizes = [8, 32], strides = [1, 1]} : vector<8x128xf32> to vector<8x32xf32>
    %201 = vector.extract_strided_slice %198 {offsets = [0, 32], sizes = [8, 32], strides = [1, 1]} : vector<8x128xf32> to vector<8x32xf32>
    %202 = vector.extract_strided_slice %199 {offsets = [0, 64], sizes = [8, 32], strides = [1, 1]} : vector<8x128xf32> to vector<8x32xf32>
    %203 = vector.extract_strided_slice %198 {offsets = [0, 96], sizes = [8, 32], strides = [1, 1]} : vector<8x128xf32> to vector<8x32xf32>
    %204 = arith.mulf %201, %182 : vector<8x32xf32>
    %205 = arith.mulf %200, %202 : vector<8x32xf32>
    %206 = arith.addf %204, %205 : vector<8x32xf32>
    %207 = math.tanh %206 : vector<8x32xf32>
    %208 = arith.mulf %203, %207 : vector<8x32xf32>
    %209 = arith.maximumf %183, %208 : vector<8x32xf32>
    %c8_139 = arith.constant 8 : index
    %c0_140 = arith.constant 0 : index
    %210 = vector.load %arg11[%c8_139, %c0_140] : memref<192x128xf32, #tpu.memory_space<vmem>>, vector<8x128xf32>
    %cst_141 = arith.constant dense<0.000000e+00> : vector<8x128xf32>
    %211 = tpu.matmul %208, %180, %cst_141 {dimension_numbers = #tpu.dot_dimension_numbers<[1], [0], [0], [1], [0, 0, 1, 1], [], []>} : vector<8x32xf32>, vector<32x128xf32>, vector<8x128xf32> -> vector<8x128xf32>
    %212 = arith.addf %210, %211 : vector<8x128xf32>
    %cst_142 = arith.constant -3.000000e+01 : f32
    %213 = vector.broadcast %cst_142 : f32 to vector<8x128xf32>
    %214 = arith.maximumf %212, %213 : vector<8x128xf32>
    %cst_143 = arith.constant 0.000000e+00 : f32
    %215 = vector.broadcast %cst_143 : f32 to vector<8x128xf32>
    %216 = arith.subf %215, %214 : vector<8x128xf32>
    %217 = math.exp %216 : vector<8x128xf32>
    %cst_144 = arith.constant 1.000000e+00 : f32
    %218 = vector.broadcast %cst_144 : f32 to vector<8x128xf32>
    %219 = arith.addf %218, %217 : vector<8x128xf32>
    %220 = tpu.reciprocal %219 {approx = true} : vector<8x128xf32> -> vector<8x128xf32>
    %221 = arith.mulf %219, %220 : vector<8x128xf32>
    %cst_145 = arith.constant 2.000000e+00 : f32
    %222 = vector.broadcast %cst_145 : f32 to vector<8x128xf32>
    %223 = arith.subf %222, %221 : vector<8x128xf32>
    %224 = arith.mulf %220, %223 : vector<8x128xf32>
    %225 = math.tanh %212 : vector<8x128xf32>
    %226 = vector.extract_strided_slice %224 {offsets = [0, 0], sizes = [8, 32], strides = [1, 1]} : vector<8x128xf32> to vector<8x32xf32>
    %227 = vector.extract_strided_slice %224 {offsets = [0, 32], sizes = [8, 32], strides = [1, 1]} : vector<8x128xf32> to vector<8x32xf32>
    %228 = vector.extract_strided_slice %225 {offsets = [0, 64], sizes = [8, 32], strides = [1, 1]} : vector<8x128xf32> to vector<8x32xf32>
    %229 = vector.extract_strided_slice %224 {offsets = [0, 96], sizes = [8, 32], strides = [1, 1]} : vector<8x128xf32> to vector<8x32xf32>
    %230 = arith.mulf %227, %206 : vector<8x32xf32>
    %231 = arith.mulf %226, %228 : vector<8x32xf32>
    %232 = arith.addf %230, %231 : vector<8x32xf32>
    %233 = math.tanh %232 : vector<8x32xf32>
    %234 = arith.mulf %229, %233 : vector<8x32xf32>
    %235 = arith.maximumf %209, %234 : vector<8x32xf32>
    %c16_146 = arith.constant 16 : index
    %c0_147 = arith.constant 0 : index
    %236 = vector.load %arg11[%c16_146, %c0_147] : memref<192x128xf32, #tpu.memory_space<vmem>>, vector<8x128xf32>
    %cst_148 = arith.constant dense<0.000000e+00> : vector<8x128xf32>
    %237 = tpu.matmul %234, %180, %cst_148 {dimension_numbers = #tpu.dot_dimension_numbers<[1], [0], [0], [1], [0, 0, 1, 1], [], []>} : vector<8x32xf32>, vector<32x128xf32>, vector<8x128xf32> -> vector<8x128xf32>
    %238 = arith.addf %236, %237 : vector<8x128xf32>
    %cst_149 = arith.constant -3.000000e+01 : f32
    %239 = vector.broadcast %cst_149 : f32 to vector<8x128xf32>
    %240 = arith.maximumf %238, %239 : vector<8x128xf32>
    %cst_150 = arith.constant 0.000000e+00 : f32
    %241 = vector.broadcast %cst_150 : f32 to vector<8x128xf32>
    %242 = arith.subf %241, %240 : vector<8x128xf32>
    %243 = math.exp %242 : vector<8x128xf32>
    %cst_151 = arith.constant 1.000000e+00 : f32
    %244 = vector.broadcast %cst_151 : f32 to vector<8x128xf32>
    %245 = arith.addf %244, %243 : vector<8x128xf32>
    %246 = tpu.reciprocal %245 {approx = true} : vector<8x128xf32> -> vector<8x128xf32>
    %247 = arith.mulf %245, %246 : vector<8x128xf32>
    %cst_152 = arith.constant 2.000000e+00 : f32
    %248 = vector.broadcast %cst_152 : f32 to vector<8x128xf32>
    %249 = arith.subf %248, %247 : vector<8x128xf32>
    %250 = arith.mulf %246, %249 : vector<8x128xf32>
    %251 = math.tanh %238 : vector<8x128xf32>
    %252 = vector.extract_strided_slice %250 {offsets = [0, 0], sizes = [8, 32], strides = [1, 1]} : vector<8x128xf32> to vector<8x32xf32>
    %253 = vector.extract_strided_slice %250 {offsets = [0, 32], sizes = [8, 32], strides = [1, 1]} : vector<8x128xf32> to vector<8x32xf32>
    %254 = vector.extract_strided_slice %251 {offsets = [0, 64], sizes = [8, 32], strides = [1, 1]} : vector<8x128xf32> to vector<8x32xf32>
    %255 = vector.extract_strided_slice %250 {offsets = [0, 96], sizes = [8, 32], strides = [1, 1]} : vector<8x128xf32> to vector<8x32xf32>
    %256 = arith.mulf %253, %232 : vector<8x32xf32>
    %257 = arith.mulf %252, %254 : vector<8x32xf32>
    %258 = arith.addf %256, %257 : vector<8x32xf32>
    %259 = math.tanh %258 : vector<8x32xf32>
    %260 = arith.mulf %255, %259 : vector<8x32xf32>
    %261 = arith.maximumf %235, %260 : vector<8x32xf32>
    %c24_153 = arith.constant 24 : index
    %c0_154 = arith.constant 0 : index
    %262 = vector.load %arg11[%c24_153, %c0_154] : memref<192x128xf32, #tpu.memory_space<vmem>>, vector<8x128xf32>
    %cst_155 = arith.constant dense<0.000000e+00> : vector<8x128xf32>
    %263 = tpu.matmul %260, %180, %cst_155 {dimension_numbers = #tpu.dot_dimension_numbers<[1], [0], [0], [1], [0, 0, 1, 1], [], []>} : vector<8x32xf32>, vector<32x128xf32>, vector<8x128xf32> -> vector<8x128xf32>
    %264 = arith.addf %262, %263 : vector<8x128xf32>
    %cst_156 = arith.constant -3.000000e+01 : f32
    %265 = vector.broadcast %cst_156 : f32 to vector<8x128xf32>
    %266 = arith.maximumf %264, %265 : vector<8x128xf32>
    %cst_157 = arith.constant 0.000000e+00 : f32
    %267 = vector.broadcast %cst_157 : f32 to vector<8x128xf32>
    %268 = arith.subf %267, %266 : vector<8x128xf32>
    %269 = math.exp %268 : vector<8x128xf32>
    %cst_158 = arith.constant 1.000000e+00 : f32
    %270 = vector.broadcast %cst_158 : f32 to vector<8x128xf32>
    %271 = arith.addf %270, %269 : vector<8x128xf32>
    %272 = tpu.reciprocal %271 {approx = true} : vector<8x128xf32> -> vector<8x128xf32>
    %273 = arith.mulf %271, %272 : vector<8x128xf32>
    %cst_159 = arith.constant 2.000000e+00 : f32
    %274 = vector.broadcast %cst_159 : f32 to vector<8x128xf32>
    %275 = arith.subf %274, %273 : vector<8x128xf32>
    %276 = arith.mulf %272, %275 : vector<8x128xf32>
    %277 = math.tanh %264 : vector<8x128xf32>
    %278 = vector.extract_strided_slice %276 {offsets = [0, 0], sizes = [8, 32], strides = [1, 1]} : vector<8x128xf32> to vector<8x32xf32>
    %279 = vector.extract_strided_slice %276 {offsets = [0, 32], sizes = [8, 32], strides = [1, 1]} : vector<8x128xf32> to vector<8x32xf32>
    %280 = vector.extract_strided_slice %277 {offsets = [0, 64], sizes = [8, 32], strides = [1, 1]} : vector<8x128xf32> to vector<8x32xf32>
    %281 = vector.extract_strided_slice %276 {offsets = [0, 96], sizes = [8, 32], strides = [1, 1]} : vector<8x128xf32> to vector<8x32xf32>
    %282 = arith.mulf %279, %258 : vector<8x32xf32>
    %283 = arith.mulf %278, %280 : vector<8x32xf32>
    %284 = arith.addf %282, %283 : vector<8x32xf32>
    %285 = math.tanh %284 : vector<8x32xf32>
    %286 = arith.mulf %281, %285 : vector<8x32xf32>
    %287 = arith.maximumf %261, %286 : vector<8x32xf32>
    %c32_160 = arith.constant 32 : index
    %c0_161 = arith.constant 0 : index
    %288 = vector.load %arg11[%c32_160, %c0_161] : memref<192x128xf32, #tpu.memory_space<vmem>>, vector<8x128xf32>
    %cst_162 = arith.constant dense<0.000000e+00> : vector<8x128xf32>
    %289 = tpu.matmul %286, %180, %cst_162 {dimension_numbers = #tpu.dot_dimension_numbers<[1], [0], [0], [1], [0, 0, 1, 1], [], []>} : vector<8x32xf32>, vector<32x128xf32>, vector<8x128xf32> -> vector<8x128xf32>
    %290 = arith.addf %288, %289 : vector<8x128xf32>
    %cst_163 = arith.constant -3.000000e+01 : f32
    %291 = vector.broadcast %cst_163 : f32 to vector<8x128xf32>
    %292 = arith.maximumf %290, %291 : vector<8x128xf32>
    %cst_164 = arith.constant 0.000000e+00 : f32
    %293 = vector.broadcast %cst_164 : f32 to vector<8x128xf32>
    %294 = arith.subf %293, %292 : vector<8x128xf32>
    %295 = math.exp %294 : vector<8x128xf32>
    %cst_165 = arith.constant 1.000000e+00 : f32
    %296 = vector.broadcast %cst_165 : f32 to vector<8x128xf32>
    %297 = arith.addf %296, %295 : vector<8x128xf32>
    %298 = tpu.reciprocal %297 {approx = true} : vector<8x128xf32> -> vector<8x128xf32>
    %299 = arith.mulf %297, %298 : vector<8x128xf32>
    %cst_166 = arith.constant 2.000000e+00 : f32
    %300 = vector.broadcast %cst_166 : f32 to vector<8x128xf32>
    %301 = arith.subf %300, %299 : vector<8x128xf32>
    %302 = arith.mulf %298, %301 : vector<8x128xf32>
    %303 = math.tanh %290 : vector<8x128xf32>
    %304 = vector.extract_strided_slice %302 {offsets = [0, 0], sizes = [8, 32], strides = [1, 1]} : vector<8x128xf32> to vector<8x32xf32>
    %305 = vector.extract_strided_slice %302 {offsets = [0, 32], sizes = [8, 32], strides = [1, 1]} : vector<8x128xf32> to vector<8x32xf32>
    %306 = vector.extract_strided_slice %303 {offsets = [0, 64], sizes = [8, 32], strides = [1, 1]} : vector<8x128xf32> to vector<8x32xf32>
    %307 = vector.extract_strided_slice %302 {offsets = [0, 96], sizes = [8, 32], strides = [1, 1]} : vector<8x128xf32> to vector<8x32xf32>
    %308 = arith.mulf %305, %284 : vector<8x32xf32>
    %309 = arith.mulf %304, %306 : vector<8x32xf32>
    %310 = arith.addf %308, %309 : vector<8x32xf32>
    %311 = math.tanh %310 : vector<8x32xf32>
    %312 = arith.mulf %307, %311 : vector<8x32xf32>
    %313 = arith.maximumf %287, %312 : vector<8x32xf32>
    %c40 = arith.constant 40 : index
    %c0_167 = arith.constant 0 : index
    %314 = vector.load %arg11[%c40, %c0_167] : memref<192x128xf32, #tpu.memory_space<vmem>>, vector<8x128xf32>
    %cst_168 = arith.constant dense<0.000000e+00> : vector<8x128xf32>
    %315 = tpu.matmul %312, %180, %cst_168 {dimension_numbers = #tpu.dot_dimension_numbers<[1], [0], [0], [1], [0, 0, 1, 1], [], []>} : vector<8x32xf32>, vector<32x128xf32>, vector<8x128xf32> -> vector<8x128xf32>
    %316 = arith.addf %314, %315 : vector<8x128xf32>
    %cst_169 = arith.constant -3.000000e+01 : f32
    %317 = vector.broadcast %cst_169 : f32 to vector<8x128xf32>
    %318 = arith.maximumf %316, %317 : vector<8x128xf32>
    %cst_170 = arith.constant 0.000000e+00 : f32
    %319 = vector.broadcast %cst_170 : f32 to vector<8x128xf32>
    %320 = arith.subf %319, %318 : vector<8x128xf32>
    %321 = math.exp %320 : vector<8x128xf32>
    %cst_171 = arith.constant 1.000000e+00 : f32
    %322 = vector.broadcast %cst_171 : f32 to vector<8x128xf32>
    %323 = arith.addf %322, %321 : vector<8x128xf32>
    %324 = tpu.reciprocal %323 {approx = true} : vector<8x128xf32> -> vector<8x128xf32>
    %325 = arith.mulf %323, %324 : vector<8x128xf32>
    %cst_172 = arith.constant 2.000000e+00 : f32
    %326 = vector.broadcast %cst_172 : f32 to vector<8x128xf32>
    %327 = arith.subf %326, %325 : vector<8x128xf32>
    %328 = arith.mulf %324, %327 : vector<8x128xf32>
    %329 = math.tanh %316 : vector<8x128xf32>
    %330 = vector.extract_strided_slice %328 {offsets = [0, 0], sizes = [8, 32], strides = [1, 1]} : vector<8x128xf32> to vector<8x32xf32>
    %331 = vector.extract_strided_slice %328 {offsets = [0, 32], sizes = [8, 32], strides = [1, 1]} : vector<8x128xf32> to vector<8x32xf32>
    %332 = vector.extract_strided_slice %329 {offsets = [0, 64], sizes = [8, 32], strides = [1, 1]} : vector<8x128xf32> to vector<8x32xf32>
    %333 = vector.extract_strided_slice %328 {offsets = [0, 96], sizes = [8, 32], strides = [1, 1]} : vector<8x128xf32> to vector<8x32xf32>
    %334 = arith.mulf %331, %310 : vector<8x32xf32>
    %335 = arith.mulf %330, %332 : vector<8x32xf32>
    %336 = arith.addf %334, %335 : vector<8x32xf32>
    %337 = math.tanh %336 : vector<8x32xf32>
    %338 = arith.mulf %333, %337 : vector<8x32xf32>
    %339 = arith.maximumf %313, %338 : vector<8x32xf32>
    %c48 = arith.constant 48 : index
    %c0_173 = arith.constant 0 : index
    %340 = vector.load %arg11[%c48, %c0_173] : memref<192x128xf32, #tpu.memory_space<vmem>>, vector<8x128xf32>
    %cst_174 = arith.constant dense<0.000000e+00> : vector<8x128xf32>
    %341 = tpu.matmul %338, %180, %cst_174 {dimension_numbers = #tpu.dot_dimension_numbers<[1], [0], [0], [1], [0, 0, 1, 1], [], []>} : vector<8x32xf32>, vector<32x128xf32>, vector<8x128xf32> -> vector<8x128xf32>
    %342 = arith.addf %340, %341 : vector<8x128xf32>
    %cst_175 = arith.constant -3.000000e+01 : f32
    %343 = vector.broadcast %cst_175 : f32 to vector<8x128xf32>
    %344 = arith.maximumf %342, %343 : vector<8x128xf32>
    %cst_176 = arith.constant 0.000000e+00 : f32
    %345 = vector.broadcast %cst_176 : f32 to vector<8x128xf32>
    %346 = arith.subf %345, %344 : vector<8x128xf32>
    %347 = math.exp %346 : vector<8x128xf32>
    %cst_177 = arith.constant 1.000000e+00 : f32
    %348 = vector.broadcast %cst_177 : f32 to vector<8x128xf32>
    %349 = arith.addf %348, %347 : vector<8x128xf32>
    %350 = tpu.reciprocal %349 {approx = true} : vector<8x128xf32> -> vector<8x128xf32>
    %351 = arith.mulf %349, %350 : vector<8x128xf32>
    %cst_178 = arith.constant 2.000000e+00 : f32
    %352 = vector.broadcast %cst_178 : f32 to vector<8x128xf32>
    %353 = arith.subf %352, %351 : vector<8x128xf32>
    %354 = arith.mulf %350, %353 : vector<8x128xf32>
    %355 = math.tanh %342 : vector<8x128xf32>
    %356 = vector.extract_strided_slice %354 {offsets = [0, 0], sizes = [8, 32], strides = [1, 1]} : vector<8x128xf32> to vector<8x32xf32>
    %357 = vector.extract_strided_slice %354 {offsets = [0, 32], sizes = [8, 32], strides = [1, 1]} : vector<8x128xf32> to vector<8x32xf32>
    %358 = vector.extract_strided_slice %355 {offsets = [0, 64], sizes = [8, 32], strides = [1, 1]} : vector<8x128xf32> to vector<8x32xf32>
    %359 = vector.extract_strided_slice %354 {offsets = [0, 96], sizes = [8, 32], strides = [1, 1]} : vector<8x128xf32> to vector<8x32xf32>
    %360 = arith.mulf %357, %336 : vector<8x32xf32>
    %361 = arith.mulf %356, %358 : vector<8x32xf32>
    %362 = arith.addf %360, %361 : vector<8x32xf32>
    %363 = math.tanh %362 : vector<8x32xf32>
    %364 = arith.mulf %359, %363 : vector<8x32xf32>
    %365 = arith.maximumf %339, %364 : vector<8x32xf32>
    %c56 = arith.constant 56 : index
    %c0_179 = arith.constant 0 : index
    %366 = vector.load %arg11[%c56, %c0_179] : memref<192x128xf32, #tpu.memory_space<vmem>>, vector<8x128xf32>
    %cst_180 = arith.constant dense<0.000000e+00> : vector<8x128xf32>
    %367 = tpu.matmul %364, %180, %cst_180 {dimension_numbers = #tpu.dot_dimension_numbers<[1], [0], [0], [1], [0, 0, 1, 1], [], []>} : vector<8x32xf32>, vector<32x128xf32>, vector<8x128xf32> -> vector<8x128xf32>
    %368 = arith.addf %366, %367 : vector<8x128xf32>
    %cst_181 = arith.constant -3.000000e+01 : f32
    %369 = vector.broadcast %cst_181 : f32 to vector<8x128xf32>
    %370 = arith.maximumf %368, %369 : vector<8x128xf32>
    %cst_182 = arith.constant 0.000000e+00 : f32
    %371 = vector.broadcast %cst_182 : f32 to vector<8x128xf32>
    %372 = arith.subf %371, %370 : vector<8x128xf32>
    %373 = math.exp %372 : vector<8x128xf32>
    %cst_183 = arith.constant 1.000000e+00 : f32
    %374 = vector.broadcast %cst_183 : f32 to vector<8x128xf32>
    %375 = arith.addf %374, %373 : vector<8x128xf32>
    %376 = tpu.reciprocal %375 {approx = true} : vector<8x128xf32> -> vector<8x128xf32>
    %377 = arith.mulf %375, %376 : vector<8x128xf32>
    %cst_184 = arith.constant 2.000000e+00 : f32
    %378 = vector.broadcast %cst_184 : f32 to vector<8x128xf32>
    %379 = arith.subf %378, %377 : vector<8x128xf32>
    %380 = arith.mulf %376, %379 : vector<8x128xf32>
    %381 = math.tanh %368 : vector<8x128xf32>
    %382 = vector.extract_strided_slice %380 {offsets = [0, 0], sizes = [8, 32], strides = [1, 1]} : vector<8x128xf32> to vector<8x32xf32>
    %383 = vector.extract_strided_slice %380 {offsets = [0, 32], sizes = [8, 32], strides = [1, 1]} : vector<8x128xf32> to vector<8x32xf32>
    %384 = vector.extract_strided_slice %381 {offsets = [0, 64], sizes = [8, 32], strides = [1, 1]} : vector<8x128xf32> to vector<8x32xf32>
    %385 = vector.extract_strided_slice %380 {offsets = [0, 96], sizes = [8, 32], strides = [1, 1]} : vector<8x128xf32> to vector<8x32xf32>
    %386 = arith.mulf %383, %362 : vector<8x32xf32>
    %387 = arith.mulf %382, %384 : vector<8x32xf32>
    %388 = arith.addf %386, %387 : vector<8x32xf32>
    %389 = math.tanh %388 : vector<8x32xf32>
    %390 = arith.mulf %385, %389 : vector<8x32xf32>
    %391 = arith.maximumf %365, %390 : vector<8x32xf32>
    %c64_185 = arith.constant 64 : index
    %c0_186 = arith.constant 0 : index
    %392 = vector.load %arg11[%c64_185, %c0_186] : memref<192x128xf32, #tpu.memory_space<vmem>>, vector<8x128xf32>
    %cst_187 = arith.constant dense<0.000000e+00> : vector<8x128xf32>
    %393 = tpu.matmul %390, %180, %cst_187 {dimension_numbers = #tpu.dot_dimension_numbers<[1], [0], [0], [1], [0, 0, 1, 1], [], []>} : vector<8x32xf32>, vector<32x128xf32>, vector<8x128xf32> -> vector<8x128xf32>
    %394 = arith.addf %392, %393 : vector<8x128xf32>
    %cst_188 = arith.constant -3.000000e+01 : f32
    %395 = vector.broadcast %cst_188 : f32 to vector<8x128xf32>
    %396 = arith.maximumf %394, %395 : vector<8x128xf32>
    %cst_189 = arith.constant 0.000000e+00 : f32
    %397 = vector.broadcast %cst_189 : f32 to vector<8x128xf32>
    %398 = arith.subf %397, %396 : vector<8x128xf32>
    %399 = math.exp %398 : vector<8x128xf32>
    %cst_190 = arith.constant 1.000000e+00 : f32
    %400 = vector.broadcast %cst_190 : f32 to vector<8x128xf32>
    %401 = arith.addf %400, %399 : vector<8x128xf32>
    %402 = tpu.reciprocal %401 {approx = true} : vector<8x128xf32> -> vector<8x128xf32>
    %403 = arith.mulf %401, %402 : vector<8x128xf32>
    %cst_191 = arith.constant 2.000000e+00 : f32
    %404 = vector.broadcast %cst_191 : f32 to vector<8x128xf32>
    %405 = arith.subf %404, %403 : vector<8x128xf32>
    %406 = arith.mulf %402, %405 : vector<8x128xf32>
    %407 = math.tanh %394 : vector<8x128xf32>
    %408 = vector.extract_strided_slice %406 {offsets = [0, 0], sizes = [8, 32], strides = [1, 1]} : vector<8x128xf32> to vector<8x32xf32>
    %409 = vector.extract_strided_slice %406 {offsets = [0, 32], sizes = [8, 32], strides = [1, 1]} : vector<8x128xf32> to vector<8x32xf32>
    %410 = vector.extract_strided_slice %407 {offsets = [0, 64], sizes = [8, 32], strides = [1, 1]} : vector<8x128xf32> to vector<8x32xf32>
    %411 = vector.extract_strided_slice %406 {offsets = [0, 96], sizes = [8, 32], strides = [1, 1]} : vector<8x128xf32> to vector<8x32xf32>
    %412 = arith.mulf %409, %388 : vector<8x32xf32>
    %413 = arith.mulf %408, %410 : vector<8x32xf32>
    %414 = arith.addf %412, %413 : vector<8x32xf32>
    %415 = math.tanh %414 : vector<8x32xf32>
    %416 = arith.mulf %411, %415 : vector<8x32xf32>
    %417 = arith.maximumf %391, %416 : vector<8x32xf32>
    %c72 = arith.constant 72 : index
    %c0_192 = arith.constant 0 : index
    %418 = vector.load %arg11[%c72, %c0_192] : memref<192x128xf32, #tpu.memory_space<vmem>>, vector<8x128xf32>
    %cst_193 = arith.constant dense<0.000000e+00> : vector<8x128xf32>
    %419 = tpu.matmul %416, %180, %cst_193 {dimension_numbers = #tpu.dot_dimension_numbers<[1], [0], [0], [1], [0, 0, 1, 1], [], []>} : vector<8x32xf32>, vector<32x128xf32>, vector<8x128xf32> -> vector<8x128xf32>
    %420 = arith.addf %418, %419 : vector<8x128xf32>
    %cst_194 = arith.constant -3.000000e+01 : f32
    %421 = vector.broadcast %cst_194 : f32 to vector<8x128xf32>
    %422 = arith.maximumf %420, %421 : vector<8x128xf32>
    %cst_195 = arith.constant 0.000000e+00 : f32
    %423 = vector.broadcast %cst_195 : f32 to vector<8x128xf32>
    %424 = arith.subf %423, %422 : vector<8x128xf32>
    %425 = math.exp %424 : vector<8x128xf32>
    %cst_196 = arith.constant 1.000000e+00 : f32
    %426 = vector.broadcast %cst_196 : f32 to vector<8x128xf32>
    %427 = arith.addf %426, %425 : vector<8x128xf32>
    %428 = tpu.reciprocal %427 {approx = true} : vector<8x128xf32> -> vector<8x128xf32>
    %429 = arith.mulf %427, %428 : vector<8x128xf32>
    %cst_197 = arith.constant 2.000000e+00 : f32
    %430 = vector.broadcast %cst_197 : f32 to vector<8x128xf32>
    %431 = arith.subf %430, %429 : vector<8x128xf32>
    %432 = arith.mulf %428, %431 : vector<8x128xf32>
    %433 = math.tanh %420 : vector<8x128xf32>
    %434 = vector.extract_strided_slice %432 {offsets = [0, 0], sizes = [8, 32], strides = [1, 1]} : vector<8x128xf32> to vector<8x32xf32>
    %435 = vector.extract_strided_slice %432 {offsets = [0, 32], sizes = [8, 32], strides = [1, 1]} : vector<8x128xf32> to vector<8x32xf32>
    %436 = vector.extract_strided_slice %433 {offsets = [0, 64], sizes = [8, 32], strides = [1, 1]} : vector<8x128xf32> to vector<8x32xf32>
    %437 = vector.extract_strided_slice %432 {offsets = [0, 96], sizes = [8, 32], strides = [1, 1]} : vector<8x128xf32> to vector<8x32xf32>
    %438 = arith.mulf %435, %414 : vector<8x32xf32>
    %439 = arith.mulf %434, %436 : vector<8x32xf32>
    %440 = arith.addf %438, %439 : vector<8x32xf32>
    %441 = math.tanh %440 : vector<8x32xf32>
    %442 = arith.mulf %437, %441 : vector<8x32xf32>
    %443 = arith.maximumf %417, %442 : vector<8x32xf32>
    %c80 = arith.constant 80 : index
    %c0_198 = arith.constant 0 : index
    %444 = vector.load %arg11[%c80, %c0_198] : memref<192x128xf32, #tpu.memory_space<vmem>>, vector<8x128xf32>
    %cst_199 = arith.constant dense<0.000000e+00> : vector<8x128xf32>
    %445 = tpu.matmul %442, %180, %cst_199 {dimension_numbers = #tpu.dot_dimension_numbers<[1], [0], [0], [1], [0, 0, 1, 1], [], []>} : vector<8x32xf32>, vector<32x128xf32>, vector<8x128xf32> -> vector<8x128xf32>
    %446 = arith.addf %444, %445 : vector<8x128xf32>
    %cst_200 = arith.constant -3.000000e+01 : f32
    %447 = vector.broadcast %cst_200 : f32 to vector<8x128xf32>
    %448 = arith.maximumf %446, %447 : vector<8x128xf32>
    %cst_201 = arith.constant 0.000000e+00 : f32
    %449 = vector.broadcast %cst_201 : f32 to vector<8x128xf32>
    %450 = arith.subf %449, %448 : vector<8x128xf32>
    %451 = math.exp %450 : vector<8x128xf32>
    %cst_202 = arith.constant 1.000000e+00 : f32
    %452 = vector.broadcast %cst_202 : f32 to vector<8x128xf32>
    %453 = arith.addf %452, %451 : vector<8x128xf32>
    %454 = tpu.reciprocal %453 {approx = true} : vector<8x128xf32> -> vector<8x128xf32>
    %455 = arith.mulf %453, %454 : vector<8x128xf32>
    %cst_203 = arith.constant 2.000000e+00 : f32
    %456 = vector.broadcast %cst_203 : f32 to vector<8x128xf32>
    %457 = arith.subf %456, %455 : vector<8x128xf32>
    %458 = arith.mulf %454, %457 : vector<8x128xf32>
    %459 = math.tanh %446 : vector<8x128xf32>
    %460 = vector.extract_strided_slice %458 {offsets = [0, 0], sizes = [8, 32], strides = [1, 1]} : vector<8x128xf32> to vector<8x32xf32>
    %461 = vector.extract_strided_slice %458 {offsets = [0, 32], sizes = [8, 32], strides = [1, 1]} : vector<8x128xf32> to vector<8x32xf32>
    %462 = vector.extract_strided_slice %459 {offsets = [0, 64], sizes = [8, 32], strides = [1, 1]} : vector<8x128xf32> to vector<8x32xf32>
    %463 = vector.extract_strided_slice %458 {offsets = [0, 96], sizes = [8, 32], strides = [1, 1]} : vector<8x128xf32> to vector<8x32xf32>
    %464 = arith.mulf %461, %440 : vector<8x32xf32>
    %465 = arith.mulf %460, %462 : vector<8x32xf32>
    %466 = arith.addf %464, %465 : vector<8x32xf32>
    %467 = math.tanh %466 : vector<8x32xf32>
    %468 = arith.mulf %463, %467 : vector<8x32xf32>
    %469 = arith.maximumf %443, %468 : vector<8x32xf32>
    %c88 = arith.constant 88 : index
    %c0_204 = arith.constant 0 : index
    %470 = vector.load %arg11[%c88, %c0_204] : memref<192x128xf32, #tpu.memory_space<vmem>>, vector<8x128xf32>
    %cst_205 = arith.constant dense<0.000000e+00> : vector<8x128xf32>
    %471 = tpu.matmul %468, %180, %cst_205 {dimension_numbers = #tpu.dot_dimension_numbers<[1], [0], [0], [1], [0, 0, 1, 1], [], []>} : vector<8x32xf32>, vector<32x128xf32>, vector<8x128xf32> -> vector<8x128xf32>
    %472 = arith.addf %470, %471 : vector<8x128xf32>
    %cst_206 = arith.constant -3.000000e+01 : f32
    %473 = vector.broadcast %cst_206 : f32 to vector<8x128xf32>
    %474 = arith.maximumf %472, %473 : vector<8x128xf32>
    %cst_207 = arith.constant 0.000000e+00 : f32
    %475 = vector.broadcast %cst_207 : f32 to vector<8x128xf32>
    %476 = arith.subf %475, %474 : vector<8x128xf32>
    %477 = math.exp %476 : vector<8x128xf32>
    %cst_208 = arith.constant 1.000000e+00 : f32
    %478 = vector.broadcast %cst_208 : f32 to vector<8x128xf32>
    %479 = arith.addf %478, %477 : vector<8x128xf32>
    %480 = tpu.reciprocal %479 {approx = true} : vector<8x128xf32> -> vector<8x128xf32>
    %481 = arith.mulf %479, %480 : vector<8x128xf32>
    %cst_209 = arith.constant 2.000000e+00 : f32
    %482 = vector.broadcast %cst_209 : f32 to vector<8x128xf32>
    %483 = arith.subf %482, %481 : vector<8x128xf32>
    %484 = arith.mulf %480, %483 : vector<8x128xf32>
    %485 = math.tanh %472 : vector<8x128xf32>
    %486 = vector.extract_strided_slice %484 {offsets = [0, 0], sizes = [8, 32], strides = [1, 1]} : vector<8x128xf32> to vector<8x32xf32>
    %487 = vector.extract_strided_slice %484 {offsets = [0, 32], sizes = [8, 32], strides = [1, 1]} : vector<8x128xf32> to vector<8x32xf32>
    %488 = vector.extract_strided_slice %485 {offsets = [0, 64], sizes = [8, 32], strides = [1, 1]} : vector<8x128xf32> to vector<8x32xf32>
    %489 = vector.extract_strided_slice %484 {offsets = [0, 96], sizes = [8, 32], strides = [1, 1]} : vector<8x128xf32> to vector<8x32xf32>
    %490 = arith.mulf %487, %466 : vector<8x32xf32>
    %491 = arith.mulf %486, %488 : vector<8x32xf32>
    %492 = arith.addf %490, %491 : vector<8x32xf32>
    %493 = math.tanh %492 : vector<8x32xf32>
    %494 = arith.mulf %489, %493 : vector<8x32xf32>
    %495 = arith.maximumf %469, %494 : vector<8x32xf32>
    %c96_210 = arith.constant 96 : index
    %c0_211 = arith.constant 0 : index
    %496 = vector.load %arg11[%c96_210, %c0_211] : memref<192x128xf32, #tpu.memory_space<vmem>>, vector<8x128xf32>
    %cst_212 = arith.constant dense<0.000000e+00> : vector<8x128xf32>
    %497 = tpu.matmul %494, %180, %cst_212 {dimension_numbers = #tpu.dot_dimension_numbers<[1], [0], [0], [1], [0, 0, 1, 1], [], []>} : vector<8x32xf32>, vector<32x128xf32>, vector<8x128xf32> -> vector<8x128xf32>
    %498 = arith.addf %496, %497 : vector<8x128xf32>
    %cst_213 = arith.constant -3.000000e+01 : f32
    %499 = vector.broadcast %cst_213 : f32 to vector<8x128xf32>
    %500 = arith.maximumf %498, %499 : vector<8x128xf32>
    %cst_214 = arith.constant 0.000000e+00 : f32
    %501 = vector.broadcast %cst_214 : f32 to vector<8x128xf32>
    %502 = arith.subf %501, %500 : vector<8x128xf32>
    %503 = math.exp %502 : vector<8x128xf32>
    %cst_215 = arith.constant 1.000000e+00 : f32
    %504 = vector.broadcast %cst_215 : f32 to vector<8x128xf32>
    %505 = arith.addf %504, %503 : vector<8x128xf32>
    %506 = tpu.reciprocal %505 {approx = true} : vector<8x128xf32> -> vector<8x128xf32>
    %507 = arith.mulf %505, %506 : vector<8x128xf32>
    %cst_216 = arith.constant 2.000000e+00 : f32
    %508 = vector.broadcast %cst_216 : f32 to vector<8x128xf32>
    %509 = arith.subf %508, %507 : vector<8x128xf32>
    %510 = arith.mulf %506, %509 : vector<8x128xf32>
    %511 = math.tanh %498 : vector<8x128xf32>
    %512 = vector.extract_strided_slice %510 {offsets = [0, 0], sizes = [8, 32], strides = [1, 1]} : vector<8x128xf32> to vector<8x32xf32>
    %513 = vector.extract_strided_slice %510 {offsets = [0, 32], sizes = [8, 32], strides = [1, 1]} : vector<8x128xf32> to vector<8x32xf32>
    %514 = vector.extract_strided_slice %511 {offsets = [0, 64], sizes = [8, 32], strides = [1, 1]} : vector<8x128xf32> to vector<8x32xf32>
    %515 = vector.extract_strided_slice %510 {offsets = [0, 96], sizes = [8, 32], strides = [1, 1]} : vector<8x128xf32> to vector<8x32xf32>
    %516 = arith.mulf %513, %492 : vector<8x32xf32>
    %517 = arith.mulf %512, %514 : vector<8x32xf32>
    %518 = arith.addf %516, %517 : vector<8x32xf32>
    %519 = math.tanh %518 : vector<8x32xf32>
    %520 = arith.mulf %515, %519 : vector<8x32xf32>
    %521 = arith.maximumf %495, %520 : vector<8x32xf32>
    %c104 = arith.constant 104 : index
    %c0_217 = arith.constant 0 : index
    %522 = vector.load %arg11[%c104, %c0_217] : memref<192x128xf32, #tpu.memory_space<vmem>>, vector<8x128xf32>
    %cst_218 = arith.constant dense<0.000000e+00> : vector<8x128xf32>
    %523 = tpu.matmul %520, %180, %cst_218 {dimension_numbers = #tpu.dot_dimension_numbers<[1], [0], [0], [1], [0, 0, 1, 1], [], []>} : vector<8x32xf32>, vector<32x128xf32>, vector<8x128xf32> -> vector<8x128xf32>
    %524 = arith.addf %522, %523 : vector<8x128xf32>
    %cst_219 = arith.constant -3.000000e+01 : f32
    %525 = vector.broadcast %cst_219 : f32 to vector<8x128xf32>
    %526 = arith.maximumf %524, %525 : vector<8x128xf32>
    %cst_220 = arith.constant 0.000000e+00 : f32
    %527 = vector.broadcast %cst_220 : f32 to vector<8x128xf32>
    %528 = arith.subf %527, %526 : vector<8x128xf32>
    %529 = math.exp %528 : vector<8x128xf32>
    %cst_221 = arith.constant 1.000000e+00 : f32
    %530 = vector.broadcast %cst_221 : f32 to vector<8x128xf32>
    %531 = arith.addf %530, %529 : vector<8x128xf32>
    %532 = tpu.reciprocal %531 {approx = true} : vector<8x128xf32> -> vector<8x128xf32>
    %533 = arith.mulf %531, %532 : vector<8x128xf32>
    %cst_222 = arith.constant 2.000000e+00 : f32
    %534 = vector.broadcast %cst_222 : f32 to vector<8x128xf32>
    %535 = arith.subf %534, %533 : vector<8x128xf32>
    %536 = arith.mulf %532, %535 : vector<8x128xf32>
    %537 = math.tanh %524 : vector<8x128xf32>
    %538 = vector.extract_strided_slice %536 {offsets = [0, 0], sizes = [8, 32], strides = [1, 1]} : vector<8x128xf32> to vector<8x32xf32>
    %539 = vector.extract_strided_slice %536 {offsets = [0, 32], sizes = [8, 32], strides = [1, 1]} : vector<8x128xf32> to vector<8x32xf32>
    %540 = vector.extract_strided_slice %537 {offsets = [0, 64], sizes = [8, 32], strides = [1, 1]} : vector<8x128xf32> to vector<8x32xf32>
    %541 = vector.extract_strided_slice %536 {offsets = [0, 96], sizes = [8, 32], strides = [1, 1]} : vector<8x128xf32> to vector<8x32xf32>
    %542 = arith.mulf %539, %518 : vector<8x32xf32>
    %543 = arith.mulf %538, %540 : vector<8x32xf32>
    %544 = arith.addf %542, %543 : vector<8x32xf32>
    %545 = math.tanh %544 : vector<8x32xf32>
    %546 = arith.mulf %541, %545 : vector<8x32xf32>
    %547 = arith.maximumf %521, %546 : vector<8x32xf32>
    %c112 = arith.constant 112 : index
    %c0_223 = arith.constant 0 : index
    %548 = vector.load %arg11[%c112, %c0_223] : memref<192x128xf32, #tpu.memory_space<vmem>>, vector<8x128xf32>
    %cst_224 = arith.constant dense<0.000000e+00> : vector<8x128xf32>
    %549 = tpu.matmul %546, %180, %cst_224 {dimension_numbers = #tpu.dot_dimension_numbers<[1], [0], [0], [1], [0, 0, 1, 1], [], []>} : vector<8x32xf32>, vector<32x128xf32>, vector<8x128xf32> -> vector<8x128xf32>
    %550 = arith.addf %548, %549 : vector<8x128xf32>
    %cst_225 = arith.constant -3.000000e+01 : f32
    %551 = vector.broadcast %cst_225 : f32 to vector<8x128xf32>
    %552 = arith.maximumf %550, %551 : vector<8x128xf32>
    %cst_226 = arith.constant 0.000000e+00 : f32
    %553 = vector.broadcast %cst_226 : f32 to vector<8x128xf32>
    %554 = arith.subf %553, %552 : vector<8x128xf32>
    %555 = math.exp %554 : vector<8x128xf32>
    %cst_227 = arith.constant 1.000000e+00 : f32
    %556 = vector.broadcast %cst_227 : f32 to vector<8x128xf32>
    %557 = arith.addf %556, %555 : vector<8x128xf32>
    %558 = tpu.reciprocal %557 {approx = true} : vector<8x128xf32> -> vector<8x128xf32>
    %559 = arith.mulf %557, %558 : vector<8x128xf32>
    %cst_228 = arith.constant 2.000000e+00 : f32
    %560 = vector.broadcast %cst_228 : f32 to vector<8x128xf32>
    %561 = arith.subf %560, %559 : vector<8x128xf32>
    %562 = arith.mulf %558, %561 : vector<8x128xf32>
    %563 = math.tanh %550 : vector<8x128xf32>
    %564 = vector.extract_strided_slice %562 {offsets = [0, 0], sizes = [8, 32], strides = [1, 1]} : vector<8x128xf32> to vector<8x32xf32>
    %565 = vector.extract_strided_slice %562 {offsets = [0, 32], sizes = [8, 32], strides = [1, 1]} : vector<8x128xf32> to vector<8x32xf32>
    %566 = vector.extract_strided_slice %563 {offsets = [0, 64], sizes = [8, 32], strides = [1, 1]} : vector<8x128xf32> to vector<8x32xf32>
    %567 = vector.extract_strided_slice %562 {offsets = [0, 96], sizes = [8, 32], strides = [1, 1]} : vector<8x128xf32> to vector<8x32xf32>
    %568 = arith.mulf %565, %544 : vector<8x32xf32>
    %569 = arith.mulf %564, %566 : vector<8x32xf32>
    %570 = arith.addf %568, %569 : vector<8x32xf32>
    %571 = math.tanh %570 : vector<8x32xf32>
    %572 = arith.mulf %567, %571 : vector<8x32xf32>
    %573 = arith.maximumf %547, %572 : vector<8x32xf32>
    %c120 = arith.constant 120 : index
    %c0_229 = arith.constant 0 : index
    %574 = vector.load %arg11[%c120, %c0_229] : memref<192x128xf32, #tpu.memory_space<vmem>>, vector<8x128xf32>
    %cst_230 = arith.constant dense<0.000000e+00> : vector<8x128xf32>
    %575 = tpu.matmul %572, %180, %cst_230 {dimension_numbers = #tpu.dot_dimension_numbers<[1], [0], [0], [1], [0, 0, 1, 1], [], []>} : vector<8x32xf32>, vector<32x128xf32>, vector<8x128xf32> -> vector<8x128xf32>
    %576 = arith.addf %574, %575 : vector<8x128xf32>
    %cst_231 = arith.constant -3.000000e+01 : f32
    %577 = vector.broadcast %cst_231 : f32 to vector<8x128xf32>
    %578 = arith.maximumf %576, %577 : vector<8x128xf32>
    %cst_232 = arith.constant 0.000000e+00 : f32
    %579 = vector.broadcast %cst_232 : f32 to vector<8x128xf32>
    %580 = arith.subf %579, %578 : vector<8x128xf32>
    %581 = math.exp %580 : vector<8x128xf32>
    %cst_233 = arith.constant 1.000000e+00 : f32
    %582 = vector.broadcast %cst_233 : f32 to vector<8x128xf32>
    %583 = arith.addf %582, %581 : vector<8x128xf32>
    %584 = tpu.reciprocal %583 {approx = true} : vector<8x128xf32> -> vector<8x128xf32>
    %585 = arith.mulf %583, %584 : vector<8x128xf32>
    %cst_234 = arith.constant 2.000000e+00 : f32
    %586 = vector.broadcast %cst_234 : f32 to vector<8x128xf32>
    %587 = arith.subf %586, %585 : vector<8x128xf32>
    %588 = arith.mulf %584, %587 : vector<8x128xf32>
    %589 = math.tanh %576 : vector<8x128xf32>
    %590 = vector.extract_strided_slice %588 {offsets = [0, 0], sizes = [8, 32], strides = [1, 1]} : vector<8x128xf32> to vector<8x32xf32>
    %591 = vector.extract_strided_slice %588 {offsets = [0, 32], sizes = [8, 32], strides = [1, 1]} : vector<8x128xf32> to vector<8x32xf32>
    %592 = vector.extract_strided_slice %589 {offsets = [0, 64], sizes = [8, 32], strides = [1, 1]} : vector<8x128xf32> to vector<8x32xf32>
    %593 = vector.extract_strided_slice %588 {offsets = [0, 96], sizes = [8, 32], strides = [1, 1]} : vector<8x128xf32> to vector<8x32xf32>
    %594 = arith.mulf %591, %570 : vector<8x32xf32>
    %595 = arith.mulf %590, %592 : vector<8x32xf32>
    %596 = arith.addf %594, %595 : vector<8x32xf32>
    %597 = math.tanh %596 : vector<8x32xf32>
    %598 = arith.mulf %593, %597 : vector<8x32xf32>
    %599 = arith.maximumf %573, %598 : vector<8x32xf32>
    %c128_235 = arith.constant 128 : index
    %c0_236 = arith.constant 0 : index
    %600 = vector.load %arg11[%c128_235, %c0_236] : memref<192x128xf32, #tpu.memory_space<vmem>>, vector<8x128xf32>
    %cst_237 = arith.constant dense<0.000000e+00> : vector<8x128xf32>
    %601 = tpu.matmul %598, %180, %cst_237 {dimension_numbers = #tpu.dot_dimension_numbers<[1], [0], [0], [1], [0, 0, 1, 1], [], []>} : vector<8x32xf32>, vector<32x128xf32>, vector<8x128xf32> -> vector<8x128xf32>
    %602 = arith.addf %600, %601 : vector<8x128xf32>
    %cst_238 = arith.constant -3.000000e+01 : f32
    %603 = vector.broadcast %cst_238 : f32 to vector<8x128xf32>
    %604 = arith.maximumf %602, %603 : vector<8x128xf32>
    %cst_239 = arith.constant 0.000000e+00 : f32
    %605 = vector.broadcast %cst_239 : f32 to vector<8x128xf32>
    %606 = arith.subf %605, %604 : vector<8x128xf32>
    %607 = math.exp %606 : vector<8x128xf32>
    %cst_240 = arith.constant 1.000000e+00 : f32
    %608 = vector.broadcast %cst_240 : f32 to vector<8x128xf32>
    %609 = arith.addf %608, %607 : vector<8x128xf32>
    %610 = tpu.reciprocal %609 {approx = true} : vector<8x128xf32> -> vector<8x128xf32>
    %611 = arith.mulf %609, %610 : vector<8x128xf32>
    %cst_241 = arith.constant 2.000000e+00 : f32
    %612 = vector.broadcast %cst_241 : f32 to vector<8x128xf32>
    %613 = arith.subf %612, %611 : vector<8x128xf32>
    %614 = arith.mulf %610, %613 : vector<8x128xf32>
    %615 = math.tanh %602 : vector<8x128xf32>
    %616 = vector.extract_strided_slice %614 {offsets = [0, 0], sizes = [8, 32], strides = [1, 1]} : vector<8x128xf32> to vector<8x32xf32>
    %617 = vector.extract_strided_slice %614 {offsets = [0, 32], sizes = [8, 32], strides = [1, 1]} : vector<8x128xf32> to vector<8x32xf32>
    %618 = vector.extract_strided_slice %615 {offsets = [0, 64], sizes = [8, 32], strides = [1, 1]} : vector<8x128xf32> to vector<8x32xf32>
    %619 = vector.extract_strided_slice %614 {offsets = [0, 96], sizes = [8, 32], strides = [1, 1]} : vector<8x128xf32> to vector<8x32xf32>
    %620 = arith.mulf %617, %596 : vector<8x32xf32>
    %621 = arith.mulf %616, %618 : vector<8x32xf32>
    %622 = arith.addf %620, %621 : vector<8x32xf32>
    %623 = math.tanh %622 : vector<8x32xf32>
    %624 = arith.mulf %619, %623 : vector<8x32xf32>
    %625 = arith.maximumf %599, %624 : vector<8x32xf32>
    %c136 = arith.constant 136 : index
    %c0_242 = arith.constant 0 : index
    %626 = vector.load %arg11[%c136, %c0_242] : memref<192x128xf32, #tpu.memory_space<vmem>>, vector<8x128xf32>
    %cst_243 = arith.constant dense<0.000000e+00> : vector<8x128xf32>
    %627 = tpu.matmul %624, %180, %cst_243 {dimension_numbers = #tpu.dot_dimension_numbers<[1], [0], [0], [1], [0, 0, 1, 1], [], []>} : vector<8x32xf32>, vector<32x128xf32>, vector<8x128xf32> -> vector<8x128xf32>
    %628 = arith.addf %626, %627 : vector<8x128xf32>
    %cst_244 = arith.constant -3.000000e+01 : f32
    %629 = vector.broadcast %cst_244 : f32 to vector<8x128xf32>
    %630 = arith.maximumf %628, %629 : vector<8x128xf32>
    %cst_245 = arith.constant 0.000000e+00 : f32
    %631 = vector.broadcast %cst_245 : f32 to vector<8x128xf32>
    %632 = arith.subf %631, %630 : vector<8x128xf32>
    %633 = math.exp %632 : vector<8x128xf32>
    %cst_246 = arith.constant 1.000000e+00 : f32
    %634 = vector.broadcast %cst_246 : f32 to vector<8x128xf32>
    %635 = arith.addf %634, %633 : vector<8x128xf32>
    %636 = tpu.reciprocal %635 {approx = true} : vector<8x128xf32> -> vector<8x128xf32>
    %637 = arith.mulf %635, %636 : vector<8x128xf32>
    %cst_247 = arith.constant 2.000000e+00 : f32
    %638 = vector.broadcast %cst_247 : f32 to vector<8x128xf32>
    %639 = arith.subf %638, %637 : vector<8x128xf32>
    %640 = arith.mulf %636, %639 : vector<8x128xf32>
    %641 = math.tanh %628 : vector<8x128xf32>
    %642 = vector.extract_strided_slice %640 {offsets = [0, 0], sizes = [8, 32], strides = [1, 1]} : vector<8x128xf32> to vector<8x32xf32>
    %643 = vector.extract_strided_slice %640 {offsets = [0, 32], sizes = [8, 32], strides = [1, 1]} : vector<8x128xf32> to vector<8x32xf32>
    %644 = vector.extract_strided_slice %641 {offsets = [0, 64], sizes = [8, 32], strides = [1, 1]} : vector<8x128xf32> to vector<8x32xf32>
    %645 = vector.extract_strided_slice %640 {offsets = [0, 96], sizes = [8, 32], strides = [1, 1]} : vector<8x128xf32> to vector<8x32xf32>
    %646 = arith.mulf %643, %622 : vector<8x32xf32>
    %647 = arith.mulf %642, %644 : vector<8x32xf32>
    %648 = arith.addf %646, %647 : vector<8x32xf32>
    %649 = math.tanh %648 : vector<8x32xf32>
    %650 = arith.mulf %645, %649 : vector<8x32xf32>
    %651 = arith.maximumf %625, %650 : vector<8x32xf32>
    %c144 = arith.constant 144 : index
    %c0_248 = arith.constant 0 : index
    %652 = vector.load %arg11[%c144, %c0_248] : memref<192x128xf32, #tpu.memory_space<vmem>>, vector<8x128xf32>
    %cst_249 = arith.constant dense<0.000000e+00> : vector<8x128xf32>
    %653 = tpu.matmul %650, %180, %cst_249 {dimension_numbers = #tpu.dot_dimension_numbers<[1], [0], [0], [1], [0, 0, 1, 1], [], []>} : vector<8x32xf32>, vector<32x128xf32>, vector<8x128xf32> -> vector<8x128xf32>
    %654 = arith.addf %652, %653 : vector<8x128xf32>
    %cst_250 = arith.constant -3.000000e+01 : f32
    %655 = vector.broadcast %cst_250 : f32 to vector<8x128xf32>
    %656 = arith.maximumf %654, %655 : vector<8x128xf32>
    %cst_251 = arith.constant 0.000000e+00 : f32
    %657 = vector.broadcast %cst_251 : f32 to vector<8x128xf32>
    %658 = arith.subf %657, %656 : vector<8x128xf32>
    %659 = math.exp %658 : vector<8x128xf32>
    %cst_252 = arith.constant 1.000000e+00 : f32
    %660 = vector.broadcast %cst_252 : f32 to vector<8x128xf32>
    %661 = arith.addf %660, %659 : vector<8x128xf32>
    %662 = tpu.reciprocal %661 {approx = true} : vector<8x128xf32> -> vector<8x128xf32>
    %663 = arith.mulf %661, %662 : vector<8x128xf32>
    %cst_253 = arith.constant 2.000000e+00 : f32
    %664 = vector.broadcast %cst_253 : f32 to vector<8x128xf32>
    %665 = arith.subf %664, %663 : vector<8x128xf32>
    %666 = arith.mulf %662, %665 : vector<8x128xf32>
    %667 = math.tanh %654 : vector<8x128xf32>
    %668 = vector.extract_strided_slice %666 {offsets = [0, 0], sizes = [8, 32], strides = [1, 1]} : vector<8x128xf32> to vector<8x32xf32>
    %669 = vector.extract_strided_slice %666 {offsets = [0, 32], sizes = [8, 32], strides = [1, 1]} : vector<8x128xf32> to vector<8x32xf32>
    %670 = vector.extract_strided_slice %667 {offsets = [0, 64], sizes = [8, 32], strides = [1, 1]} : vector<8x128xf32> to vector<8x32xf32>
    %671 = vector.extract_strided_slice %666 {offsets = [0, 96], sizes = [8, 32], strides = [1, 1]} : vector<8x128xf32> to vector<8x32xf32>
    %672 = arith.mulf %669, %648 : vector<8x32xf32>
    %673 = arith.mulf %668, %670 : vector<8x32xf32>
    %674 = arith.addf %672, %673 : vector<8x32xf32>
    %675 = math.tanh %674 : vector<8x32xf32>
    %676 = arith.mulf %671, %675 : vector<8x32xf32>
    %677 = arith.maximumf %651, %676 : vector<8x32xf32>
    %c152 = arith.constant 152 : index
    %c0_254 = arith.constant 0 : index
    %678 = vector.load %arg11[%c152, %c0_254] : memref<192x128xf32, #tpu.memory_space<vmem>>, vector<8x128xf32>
    %cst_255 = arith.constant dense<0.000000e+00> : vector<8x128xf32>
    %679 = tpu.matmul %676, %180, %cst_255 {dimension_numbers = #tpu.dot_dimension_numbers<[1], [0], [0], [1], [0, 0, 1, 1], [], []>} : vector<8x32xf32>, vector<32x128xf32>, vector<8x128xf32> -> vector<8x128xf32>
    %680 = arith.addf %678, %679 : vector<8x128xf32>
    %cst_256 = arith.constant -3.000000e+01 : f32
    %681 = vector.broadcast %cst_256 : f32 to vector<8x128xf32>
    %682 = arith.maximumf %680, %681 : vector<8x128xf32>
    %cst_257 = arith.constant 0.000000e+00 : f32
    %683 = vector.broadcast %cst_257 : f32 to vector<8x128xf32>
    %684 = arith.subf %683, %682 : vector<8x128xf32>
    %685 = math.exp %684 : vector<8x128xf32>
    %cst_258 = arith.constant 1.000000e+00 : f32
    %686 = vector.broadcast %cst_258 : f32 to vector<8x128xf32>
    %687 = arith.addf %686, %685 : vector<8x128xf32>
    %688 = tpu.reciprocal %687 {approx = true} : vector<8x128xf32> -> vector<8x128xf32>
    %689 = arith.mulf %687, %688 : vector<8x128xf32>
    %cst_259 = arith.constant 2.000000e+00 : f32
    %690 = vector.broadcast %cst_259 : f32 to vector<8x128xf32>
    %691 = arith.subf %690, %689 : vector<8x128xf32>
    %692 = arith.mulf %688, %691 : vector<8x128xf32>
    %693 = math.tanh %680 : vector<8x128xf32>
    %694 = vector.extract_strided_slice %692 {offsets = [0, 0], sizes = [8, 32], strides = [1, 1]} : vector<8x128xf32> to vector<8x32xf32>
    %695 = vector.extract_strided_slice %692 {offsets = [0, 32], sizes = [8, 32], strides = [1, 1]} : vector<8x128xf32> to vector<8x32xf32>
    %696 = vector.extract_strided_slice %693 {offsets = [0, 64], sizes = [8, 32], strides = [1, 1]} : vector<8x128xf32> to vector<8x32xf32>
    %697 = vector.extract_strided_slice %692 {offsets = [0, 96], sizes = [8, 32], strides = [1, 1]} : vector<8x128xf32> to vector<8x32xf32>
    %698 = arith.mulf %695, %674 : vector<8x32xf32>
    %699 = arith.mulf %694, %696 : vector<8x32xf32>
    %700 = arith.addf %698, %699 : vector<8x32xf32>
    %701 = math.tanh %700 : vector<8x32xf32>
    %702 = arith.mulf %697, %701 : vector<8x32xf32>
    %703 = arith.maximumf %677, %702 : vector<8x32xf32>
    %c160 = arith.constant 160 : index
    %c0_260 = arith.constant 0 : index
    %704 = vector.load %arg11[%c160, %c0_260] : memref<192x128xf32, #tpu.memory_space<vmem>>, vector<8x128xf32>
    %cst_261 = arith.constant dense<0.000000e+00> : vector<8x128xf32>
    %705 = tpu.matmul %702, %180, %cst_261 {dimension_numbers = #tpu.dot_dimension_numbers<[1], [0], [0], [1], [0, 0, 1, 1], [], []>} : vector<8x32xf32>, vector<32x128xf32>, vector<8x128xf32> -> vector<8x128xf32>
    %706 = arith.addf %704, %705 : vector<8x128xf32>
    %cst_262 = arith.constant -3.000000e+01 : f32
    %707 = vector.broadcast %cst_262 : f32 to vector<8x128xf32>
    %708 = arith.maximumf %706, %707 : vector<8x128xf32>
    %cst_263 = arith.constant 0.000000e+00 : f32
    %709 = vector.broadcast %cst_263 : f32 to vector<8x128xf32>
    %710 = arith.subf %709, %708 : vector<8x128xf32>
    %711 = math.exp %710 : vector<8x128xf32>
    %cst_264 = arith.constant 1.000000e+00 : f32
    %712 = vector.broadcast %cst_264 : f32 to vector<8x128xf32>
    %713 = arith.addf %712, %711 : vector<8x128xf32>
    %714 = tpu.reciprocal %713 {approx = true} : vector<8x128xf32> -> vector<8x128xf32>
    %715 = arith.mulf %713, %714 : vector<8x128xf32>
    %cst_265 = arith.constant 2.000000e+00 : f32
    %716 = vector.broadcast %cst_265 : f32 to vector<8x128xf32>
    %717 = arith.subf %716, %715 : vector<8x128xf32>
    %718 = arith.mulf %714, %717 : vector<8x128xf32>
    %719 = math.tanh %706 : vector<8x128xf32>
    %720 = vector.extract_strided_slice %718 {offsets = [0, 0], sizes = [8, 32], strides = [1, 1]} : vector<8x128xf32> to vector<8x32xf32>
    %721 = vector.extract_strided_slice %718 {offsets = [0, 32], sizes = [8, 32], strides = [1, 1]} : vector<8x128xf32> to vector<8x32xf32>
    %722 = vector.extract_strided_slice %719 {offsets = [0, 64], sizes = [8, 32], strides = [1, 1]} : vector<8x128xf32> to vector<8x32xf32>
    %723 = vector.extract_strided_slice %718 {offsets = [0, 96], sizes = [8, 32], strides = [1, 1]} : vector<8x128xf32> to vector<8x32xf32>
    %724 = arith.mulf %721, %700 : vector<8x32xf32>
    %725 = arith.mulf %720, %722 : vector<8x32xf32>
    %726 = arith.addf %724, %725 : vector<8x32xf32>
    %727 = math.tanh %726 : vector<8x32xf32>
    %728 = arith.mulf %723, %727 : vector<8x32xf32>
    %729 = arith.maximumf %703, %728 : vector<8x32xf32>
    %c168 = arith.constant 168 : index
    %c0_266 = arith.constant 0 : index
    %730 = vector.load %arg11[%c168, %c0_266] : memref<192x128xf32, #tpu.memory_space<vmem>>, vector<8x128xf32>
    %cst_267 = arith.constant dense<0.000000e+00> : vector<8x128xf32>
    %731 = tpu.matmul %728, %180, %cst_267 {dimension_numbers = #tpu.dot_dimension_numbers<[1], [0], [0], [1], [0, 0, 1, 1], [], []>} : vector<8x32xf32>, vector<32x128xf32>, vector<8x128xf32> -> vector<8x128xf32>
    %732 = arith.addf %730, %731 : vector<8x128xf32>
    %cst_268 = arith.constant -3.000000e+01 : f32
    %733 = vector.broadcast %cst_268 : f32 to vector<8x128xf32>
    %734 = arith.maximumf %732, %733 : vector<8x128xf32>
    %cst_269 = arith.constant 0.000000e+00 : f32
    %735 = vector.broadcast %cst_269 : f32 to vector<8x128xf32>
    %736 = arith.subf %735, %734 : vector<8x128xf32>
    %737 = math.exp %736 : vector<8x128xf32>
    %cst_270 = arith.constant 1.000000e+00 : f32
    %738 = vector.broadcast %cst_270 : f32 to vector<8x128xf32>
    %739 = arith.addf %738, %737 : vector<8x128xf32>
    %740 = tpu.reciprocal %739 {approx = true} : vector<8x128xf32> -> vector<8x128xf32>
    %741 = arith.mulf %739, %740 : vector<8x128xf32>
    %cst_271 = arith.constant 2.000000e+00 : f32
    %742 = vector.broadcast %cst_271 : f32 to vector<8x128xf32>
    %743 = arith.subf %742, %741 : vector<8x128xf32>
    %744 = arith.mulf %740, %743 : vector<8x128xf32>
    %745 = math.tanh %732 : vector<8x128xf32>
    %746 = vector.extract_strided_slice %744 {offsets = [0, 0], sizes = [8, 32], strides = [1, 1]} : vector<8x128xf32> to vector<8x32xf32>
    %747 = vector.extract_strided_slice %744 {offsets = [0, 32], sizes = [8, 32], strides = [1, 1]} : vector<8x128xf32> to vector<8x32xf32>
    %748 = vector.extract_strided_slice %745 {offsets = [0, 64], sizes = [8, 32], strides = [1, 1]} : vector<8x128xf32> to vector<8x32xf32>
    %749 = vector.extract_strided_slice %744 {offsets = [0, 96], sizes = [8, 32], strides = [1, 1]} : vector<8x128xf32> to vector<8x32xf32>
    %750 = arith.mulf %747, %726 : vector<8x32xf32>
    %751 = arith.mulf %746, %748 : vector<8x32xf32>
    %752 = arith.addf %750, %751 : vector<8x32xf32>
    %753 = math.tanh %752 : vector<8x32xf32>
    %754 = arith.mulf %749, %753 : vector<8x32xf32>
    %755 = arith.maximumf %729, %754 : vector<8x32xf32>
    %c176 = arith.constant 176 : index
    %c0_272 = arith.constant 0 : index
    %756 = vector.load %arg11[%c176, %c0_272] : memref<192x128xf32, #tpu.memory_space<vmem>>, vector<8x128xf32>
    %cst_273 = arith.constant dense<0.000000e+00> : vector<8x128xf32>
    %757 = tpu.matmul %754, %180, %cst_273 {dimension_numbers = #tpu.dot_dimension_numbers<[1], [0], [0], [1], [0, 0, 1, 1], [], []>} : vector<8x32xf32>, vector<32x128xf32>, vector<8x128xf32> -> vector<8x128xf32>
    %758 = arith.addf %756, %757 : vector<8x128xf32>
    %cst_274 = arith.constant -3.000000e+01 : f32
    %759 = vector.broadcast %cst_274 : f32 to vector<8x128xf32>
    %760 = arith.maximumf %758, %759 : vector<8x128xf32>
    %cst_275 = arith.constant 0.000000e+00 : f32
    %761 = vector.broadcast %cst_275 : f32 to vector<8x128xf32>
    %762 = arith.subf %761, %760 : vector<8x128xf32>
    %763 = math.exp %762 : vector<8x128xf32>
    %cst_276 = arith.constant 1.000000e+00 : f32
    %764 = vector.broadcast %cst_276 : f32 to vector<8x128xf32>
    %765 = arith.addf %764, %763 : vector<8x128xf32>
    %766 = tpu.reciprocal %765 {approx = true} : vector<8x128xf32> -> vector<8x128xf32>
    %767 = arith.mulf %765, %766 : vector<8x128xf32>
    %cst_277 = arith.constant 2.000000e+00 : f32
    %768 = vector.broadcast %cst_277 : f32 to vector<8x128xf32>
    %769 = arith.subf %768, %767 : vector<8x128xf32>
    %770 = arith.mulf %766, %769 : vector<8x128xf32>
    %771 = math.tanh %758 : vector<8x128xf32>
    %772 = vector.extract_strided_slice %770 {offsets = [0, 0], sizes = [8, 32], strides = [1, 1]} : vector<8x128xf32> to vector<8x32xf32>
    %773 = vector.extract_strided_slice %770 {offsets = [0, 32], sizes = [8, 32], strides = [1, 1]} : vector<8x128xf32> to vector<8x32xf32>
    %774 = vector.extract_strided_slice %771 {offsets = [0, 64], sizes = [8, 32], strides = [1, 1]} : vector<8x128xf32> to vector<8x32xf32>
    %775 = vector.extract_strided_slice %770 {offsets = [0, 96], sizes = [8, 32], strides = [1, 1]} : vector<8x128xf32> to vector<8x32xf32>
    %776 = arith.mulf %773, %752 : vector<8x32xf32>
    %777 = arith.mulf %772, %774 : vector<8x32xf32>
    %778 = arith.addf %776, %777 : vector<8x32xf32>
    %779 = math.tanh %778 : vector<8x32xf32>
    %780 = arith.mulf %775, %779 : vector<8x32xf32>
    %781 = arith.maximumf %755, %780 : vector<8x32xf32>
    %c184 = arith.constant 184 : index
    %c0_278 = arith.constant 0 : index
    %782 = vector.load %arg11[%c184, %c0_278] : memref<192x128xf32, #tpu.memory_space<vmem>>, vector<8x128xf32>
    %cst_279 = arith.constant dense<0.000000e+00> : vector<8x128xf32>
    %783 = tpu.matmul %780, %180, %cst_279 {dimension_numbers = #tpu.dot_dimension_numbers<[1], [0], [0], [1], [0, 0, 1, 1], [], []>} : vector<8x32xf32>, vector<32x128xf32>, vector<8x128xf32> -> vector<8x128xf32>
    %784 = arith.addf %782, %783 : vector<8x128xf32>
    %cst_280 = arith.constant -3.000000e+01 : f32
    %785 = vector.broadcast %cst_280 : f32 to vector<8x128xf32>
    %786 = arith.maximumf %784, %785 : vector<8x128xf32>
    %cst_281 = arith.constant 0.000000e+00 : f32
    %787 = vector.broadcast %cst_281 : f32 to vector<8x128xf32>
    %788 = arith.subf %787, %786 : vector<8x128xf32>
    %789 = math.exp %788 : vector<8x128xf32>
    %cst_282 = arith.constant 1.000000e+00 : f32
    %790 = vector.broadcast %cst_282 : f32 to vector<8x128xf32>
    %791 = arith.addf %790, %789 : vector<8x128xf32>
    %792 = tpu.reciprocal %791 {approx = true} : vector<8x128xf32> -> vector<8x128xf32>
    %793 = arith.mulf %791, %792 : vector<8x128xf32>
    %cst_283 = arith.constant 2.000000e+00 : f32
    %794 = vector.broadcast %cst_283 : f32 to vector<8x128xf32>
    %795 = arith.subf %794, %793 : vector<8x128xf32>
    %796 = arith.mulf %792, %795 : vector<8x128xf32>
    %797 = math.tanh %784 : vector<8x128xf32>
    %798 = vector.extract_strided_slice %796 {offsets = [0, 0], sizes = [8, 32], strides = [1, 1]} : vector<8x128xf32> to vector<8x32xf32>
    %799 = vector.extract_strided_slice %796 {offsets = [0, 32], sizes = [8, 32], strides = [1, 1]} : vector<8x128xf32> to vector<8x32xf32>
    %800 = vector.extract_strided_slice %797 {offsets = [0, 64], sizes = [8, 32], strides = [1, 1]} : vector<8x128xf32> to vector<8x32xf32>
    %801 = vector.extract_strided_slice %796 {offsets = [0, 96], sizes = [8, 32], strides = [1, 1]} : vector<8x128xf32> to vector<8x32xf32>
    %802 = arith.mulf %799, %778 : vector<8x32xf32>
    %803 = arith.mulf %798, %800 : vector<8x32xf32>
    %804 = arith.addf %802, %803 : vector<8x32xf32>
    %805 = math.tanh %804 : vector<8x32xf32>
    %806 = arith.mulf %801, %805 : vector<8x32xf32>
    %807 = arith.maximumf %781, %806 : vector<8x32xf32>
    %808 = vector.extract_strided_slice %807 {offsets = [0, 0], sizes = [2, 32], strides = [1, 1]} : vector<8x32xf32> to vector<2x32xf32>
    %c0_284 = arith.constant 0 : index
    %c0_285 = arith.constant 0 : index
    %809 = vector.load %arg7[%c0_284, %c0_285] : memref<32x4xf32, #tpu.memory_space<vmem>>, vector<32x4xf32>
    %cst_286 = arith.constant dense<0.000000e+00> : vector<2x4xf32>
    %810 = tpu.matmul %808, %809, %cst_286 {dimension_numbers = #tpu.dot_dimension_numbers<[1], [0], [0], [1], [0, 0, 1, 1], [], []>} : vector<2x32xf32>, vector<32x4xf32>, vector<2x4xf32> -> vector<2x4xf32>
    %c0_287 = arith.constant 0 : index
    %c0_288 = arith.constant 0 : index
    %811 = vector.load %arg8[%c0_287, %c0_288] : memref<1x4xf32, #tpu.memory_space<vmem>>, vector<1x4xf32>
    %812 = vector.broadcast %811 : vector<1x4xf32> to vector<2x4xf32>
    %813 = arith.addf %810, %812 : vector<2x4xf32>
    %c0_289 = arith.constant 0 : index
    %c0_290 = arith.constant 0 : index
    %814 = vector.load %arg9[%c0_289, %c0_290] : memref<2x4xf32, #tpu.memory_space<vmem>>, vector<2x4xf32>
    tpu.vector_store %arg9[%c0_289, %c0_290], %813 {strides = array<i32>} : memref<2x4xf32, #tpu.memory_space<vmem>>, vector<2x4xf32>,
    return
  }
}

</mosaic_0001>

<llo_original>
// kernel: experiment14_forward.1
$region0: #{experiment14_forward.1}
  #allocation0 [shape = 'u32[]', space=smem, size = 0x4, offset = 0x4, fixed_abs, tag = 'smem constant byte address 0x4 - core index']
  #allocation1 [shape = 'u32[144,128]{1,0:T(1,128)}', space=vmem, size = 0x12000, scoped, tag = 'internal scratch']
  #allocation2 [shape = 'f32[96,32]{1,0:T(8,128)}', space=vmem, size = 0xc000, scoped, tag = 'scratch operand']
  #allocation3 [shape = 'f32[192,128]{1,0:T(8,128)}', space=vmem, size = 0x18000, scoped, tag = 'scratch operand']
  #allocation4 [shape = 's32[16]{0}', space=sflag, size = 0x40, scoped, tag = 'scratch operand']
  #allocation13 [shape = 's32[]', space=sflag, size = 0x4, offset = 0, fixed_abs, tag = 'sflag constant byte address 0x0 - dummy sync flag']
  #allocation14 [shape = 's32[]', space=sflag, size = 0x4, offset = 0, fixed_abs, tag = 'sflag constant byte address 0x0 - dummy sync flag']
  #allocation15 [shape = 's32[]', space=sflag, size = 0x4, offset = 0, fixed_abs, tag = 'sflag constant byte address 0x0 - dummy sync flag']
  #allocation16 [shape = 's32[]', space=sflag, size = 0x4, offset = 0, fixed_abs, tag = 'sflag constant byte address 0x0 - dummy sync flag']
  #allocation17 [shape = 's32[]', space=sflag, size = 0x4, offset = 0, fixed_abs, tag = 'sflag constant byte address 0x0 - dummy sync flag']
  #allocation18 [shape = 's32[]', space=sflag, size = 0x4, offset = 0, fixed_abs, tag = 'sflag constant byte address 0x0 - dummy sync flag']
  #allocation19 [shape = 's32[]', space=sflag, size = 0x4, offset = 0, fixed_abs, tag = 'sflag constant byte address 0x0 - dummy sync flag']
  #allocation20 [shape = 's32[]', space=sflag, size = 0x4, offset = 0, fixed_abs, tag = 'sflag constant byte address 0x0 - dummy sync flag']
  #allocation21 [shape = 's32[]', space=sflag, size = 0x4, offset = 0, fixed_abs, tag = 'sflag constant byte address 0x0 - dummy sync flag']
  #allocation22 [shape = 's32[]', space=sflag, size = 0x4, offset = 0, fixed_abs, tag = 'sflag constant byte address 0x0 - dummy sync flag']
  #allocation23 [shape = 's32[]', space=sflag, size = 0x4, offset = 0, fixed_abs, tag = 'sflag constant byte address 0x0 - dummy sync flag']
  #allocation24 [shape = 's32[]', space=sflag, size = 0x4, offset = 0, fixed_abs, tag = 'sflag constant byte address 0x0 - dummy sync flag']
  #allocation25 [shape = 's32[]', space=sflag, size = 0x4, offset = 0, fixed_abs, tag = 'sflag constant byte address 0x0 - dummy sync flag']
  #allocation26 [shape = 's32[]', space=sflag, size = 0x4, offset = 0, fixed_abs, tag = 'sflag constant byte address 0x0 - dummy sync flag']
  #allocation27 [shape = 's32[]', space=sflag, size = 0x4, offset = 0, fixed_abs, tag = 'sflag constant byte address 0x0 - dummy sync flag']
  #allocation28 [shape = 's32[]', space=sflag, size = 0x4, offset = 0, fixed_abs, tag = 'sflag constant byte address 0x0 - dummy sync flag']
  %s0 = inlined_call_operand.vmem [shape: s32[16], index: 0, kind: input, shape index: {}]
  %s1 = inlined_call_operand.vmem [shape: f32[50,32], index: 1, kind: input, shape index: {}]
  %s2 = inlined_call_operand.hbm [shape: f32[160,450], index: 2, kind: input, shape index: {}]
  %s3 = inlined_call_operand.vmem [shape: f32[1,450], index: 3, kind: input, shape index: {}]
  %s4 = inlined_call_operand.vmem [shape: f32[150,128], index: 4, kind: input, shape index: {}]
  %s5 = inlined_call_operand.vmem [shape: f32[1,128], index: 5, kind: input, shape index: {}]
  %s6 = inlined_call_operand.hbm [shape: f32[32,128], index: 6, kind: input, shape index: {}]
  %s7 = inlined_call_operand.vmem [shape: f32[32,4], index: 7, kind: input, shape index: {}]
  %s8 = inlined_call_operand.vmem [shape: f32[1,4], index: 8, kind: input, shape index: {}]
  %s9 = inlined_call_operand.hbm [shape: f32[2,4], index: 9, kind: output, shape index: {}]
  %s10 = sld [smem:[#allocation0]]
  $region534: #{experiment14_forward.1} parent=0
    _
  %s12 = ssub.s32 1, %s10
  %s13 = scalar_select 0, %s12, %s10
  $region1: #{experiment14_forward.1} parent=0
    #allocation5 [shape = 'u8[512]{0}', space=smem, size = 0x200, scoped, tag = 'input window, operand 0, single buffered']
    #allocation6 [shape = 's32[1]{0}', space=sflag, size = 0x4, scoped, tag = 'scoped memory for experiment14_forward.1']
    #allocation7 [shape = 's32[1]{0}', space=sflag, size = 0x4, scoped, tag = 'scoped memory for experiment14_forward.1']
    #allocation8 [shape = 's32[1]{0}', space=sflag, size = 0x4, scoped, tag = 'scoped memory for experiment14_forward.1']
    #allocation9 [shape = 'u8[327680]{0}', space=vmem, size = 0x50000, scoped, tag = 'input window, operand 2, single buffered']
    #allocation10 [shape = 'u8[16384]{0}', space=vmem, size = 0x4000, scoped, tag = 'input window, operand 6, single buffered']
    #allocation11 [shape = 's32[1]{0}', space=sflag, size = 0x4, scoped, tag = 'scoped memory for experiment14_forward.1']
    #allocation12 [shape = 'u8[1024]{0}', space=vmem, size = 0x400, scoped, tag = 'output window, operand 0, single buffered']
    %14 = vsyncpa [#allocation8], 0
    %15 = vsyncpa [#allocation6], 0
    %16 = vsyncpa [#allocation11], 0
    %17 = vsyncpa [#allocation7], 0
    // Predicated region
    $region2: #{experiment14_forward.1} parent=1 // pred_check
      _
    $region3: #{experiment14_forward.1} parent=1 // pred_check_branch
      %19 = sbr.rel (0) target = $region5
    $region4: #{experiment14_forward.1} parent=1 // pred_region
      %s21 = ssub.s32 16, 16
      %22 = vsyncadd [#allocation8], %s21
      %s24 = sshll.u32 %s0, 4
      %s25 = int_to_ptr.vmem [resolvable:$true] %s24
      %27 = dma.vmem_to_smem %s25, 16, [#allocation5], [#allocation8]
    $region5: #{experiment14_forward.1} parent=1 // pred_fallthru
      _
    // Predicated region
    $region6: #{experiment14_forward.1} parent=1 // pred_check
      _
    $region7: #{experiment14_forward.1} parent=1 // pred_check_branch
      %29 = sbr.rel (0) target = $region9
    $region8: #{experiment14_forward.1} parent=1 // pred_region
      %s31 = ssub.s32 10240, 10240
      %32 = vsyncadd [#allocation6], %s31
      %s33 = sshll.u32 [#allocation9], 4
      %s34 = int_to_ptr.vmem [resolvable:$true] %s33
      %39 = dma.hbm_to_vmem [thread:$0]  %s2, 10240, %s34, [#allocation6], 512, 512, 32
    $region9: #{experiment14_forward.1} parent=1 // pred_fallthru
      _
    // Predicated region
    $region10: #{experiment14_forward.1} parent=1 // pred_check
      _
    $region11: #{experiment14_forward.1} parent=1 // pred_check_branch
      %41 = sbr.rel (0) target = $region13
    $region12: #{experiment14_forward.1} parent=1 // pred_region
      _
    $region13: #{experiment14_forward.1} parent=1 // pred_fallthru
      _
    // Predicated region
    $region14: #{experiment14_forward.1} parent=1 // pred_check
      _
    $region15: #{experiment14_forward.1} parent=1 // pred_check_branch
      %43 = sbr.rel (0) target = $region17
    $region16: #{experiment14_forward.1} parent=1 // pred_region
      _
    $region17: #{experiment14_forward.1} parent=1 // pred_fallthru
      _
    // Predicated region
    $region18: #{experiment14_forward.1} parent=1 // pred_check
      _
    $region19: #{experiment14_forward.1} parent=1 // pred_check_branch
      %45 = sbr.rel (0) target = $region21
    $region20: #{experiment14_forward.1} parent=1 // pred_region
      _
    $region21: #{experiment14_forward.1} parent=1 // pred_fallthru
      _
    // Predicated region
    $region22: #{experiment14_forward.1} parent=1 // pred_check
      _
    $region23: #{experiment14_forward.1} parent=1 // pred_check_branch
      %47 = sbr.rel (0) target = $region25
    $region24: #{experiment14_forward.1} parent=1 // pred_region
      %s49 = ssub.s32 512, 512
      %50 = vsyncadd [#allocation11], %s49
      %s51 = sshll.u32 [#allocation10], 4
      %s52 = int_to_ptr.vmem [resolvable:$true] %s51
      %57 = dma.hbm_to_vmem [thread:$0]  %s6, 512, %s52, [#allocation11], 128, 128, 8
    $region25: #{experiment14_forward.1} parent=1 // pred_fallthru
      _
    // Predicated region
    $region26: #{experiment14_forward.1} parent=1 // pred_check
      _
    $region27: #{experiment14_forward.1} parent=1 // pred_check_branch
      %59 = sbr.rel (0) target = $region29
    $region28: #{experiment14_forward.1} parent=1 // pred_region
      _
    $region29: #{experiment14_forward.1} parent=1 // pred_fallthru
      _
    // Predicated region
    $region30: #{experiment14_forward.1} parent=1 // pred_check
      _
    $region31: #{experiment14_forward.1} parent=1 // pred_check_branch
      %61 = sbr.rel (0) target = $region33
    $region32: #{experiment14_forward.1} parent=1 // pred_region
      _
    $region33: #{experiment14_forward.1} parent=1 // pred_fallthru
      _
    // Predicated region
    $region34: #{experiment14_forward.1} parent=1 // pred_check
      _
    $region35: #{experiment14_forward.1} parent=1 // pred_check_branch
      %63 = sbr.rel (0) target = $region37
    $region36: #{experiment14_forward.1} parent=1 // pred_region
      %64 = dma.done [#allocation8], 16
    $region37: #{experiment14_forward.1} parent=1 // pred_fallthru
      _
    // Predicated region
    $region38: #{experiment14_forward.1} parent=1 // pred_check
      _
    $region39: #{experiment14_forward.1} parent=1 // pred_check_branch
      %66 = sbr.rel (0) target = $region41
    $region40: #{experiment14_forward.1} parent=1 // pred_region
      %67 = dma.done [#allocation6], 10240
    $region41: #{experiment14_forward.1} parent=1 // pred_fallthru
      _
    // Predicated region
    $region42: #{experiment14_forward.1} parent=1 // pred_check
      _
    $region43: #{experiment14_forward.1} parent=1 // pred_check_branch
      %69 = sbr.rel (0) target = $region45
    $region44: #{experiment14_forward.1} parent=1 // pred_region
      %70 = dma.done [#allocation11], 512
    $region45: #{experiment14_forward.1} parent=1 // pred_fallthru
      _
    %71 = sfence
    %vm72 = vcmask 261120
    %73 = vst.msk [vmem:[#allocation2] sm:$0xff] %vm72, 0.0
    %74 = vst.msk [vmem:[#allocation2 + $0x8] sm:$0xff] %vm72, 0.0
    %75 = vst.msk [vmem:[#allocation2 + $0x10] sm:$0xff] %vm72, 0.0
    %76 = vst.msk [vmem:[#allocation2 + $0x18] sm:$0xff] %vm72, 0.0
    %77 = vst.msk [vmem:[#allocation2 + $0x20] sm:$0xff] %vm72, 0.0
    %78 = vst.msk [vmem:[#allocation2 + $0x28] sm:$0xff] %vm72, 0.0
    %79 = vst.msk [vmem:[#allocation2 + $0x30] sm:$0xff] %vm72, 0.0
    %80 = vst.msk [vmem:[#allocation2 + $0x38] sm:$0xff] %vm72, 0.0
    %81 = vst.msk [vmem:[#allocation2 + $0x40] sm:$0xff] %vm72, 0.0
    %82 = vst.msk [vmem:[#allocation2 + $0x48] sm:$0xff] %vm72, 0.0
    %83 = vst.msk [vmem:[#allocation2 + $0x50] sm:$0xff] %vm72, 0.0
    %84 = vst.msk [vmem:[#allocation2 + $0x58] sm:$0xff] %vm72, 0.0
    %s85 = sld [smem:[#allocation5]]
    %s86 = scalar_lea.vmem %s1, %s85
    %s87 = scalar_lea.vmem [#allocation2], 16
    %p89 = scmp.lt.u32.totalorder 1, 8
    %p90 = pneg %p89
    // Predicated region
    $region46: #{experiment14_forward.1} parent=1 // pred_check
      _
    $region47: #{experiment14_forward.1} parent=1 // pred_check_branch
      %92 = sbr.rel (%p89) target = $region49
    $region48: #{experiment14_forward.1} parent=1 // pred_region
      %s107 = sand.u32 1, 7
      %p108 = scmp.eq.s32.totalorder %s107, 0
      %p109 = pneg %p108
      // Predicated region
      $region61: #{experiment14_forward.1} parent=48 // pred_check
        _
      $region62: #{experiment14_forward.1} parent=48 // pred_check_branch
        %111 = sbr.rel (%p108) target = $region64
      $region63: #{experiment14_forward.1} parent=48 // pred_region
        %s112 = sand.u32 1, 7
        %s113 = ssub.s32 1, %s112
        %s114 = scalar_lea.vmem %s86, %s113
        %s115 = ssub.s32 1, %s112
        %s116 = scalar_lea.vmem %s87, %s115 [#allocation2]
        %s117 = sshllo.u32 0, %s112
        loop: start=0, step=1, limit=1
        $region65: #{experiment14_forward.1} parent=63 // loop_pre_header
          _
        $region66: #{experiment14_forward.1} parent=63 // loop_header
          %s119 = sphi 0, %s123
          %p120 = scmp.ge.s32.totalorder %s119, 1
          %s124 = sphi %s114, %s114
          %s125 = sphi %s116, %s116
        $region67: #{experiment14_forward.1} parent=63 // loop_header_branch
          %122 = sbr.rel (%p120) target = $region71
        $region68: #{experiment14_forward.1} parent=63 // loop_body
          %v126 = vld [vmem:[%s124] sm:%s117]
          %127 = vst [vmem:[%s125] sm:%s117] %v126
        $region69: #{experiment14_forward.1} parent=63 // loop_footer
          %s123 = sadd.s32 1, %s119
        $region70: #{experiment14_forward.1} parent=63 // loop_footer_branch
          %118 = sbr.rel target = $region66
        $region71: #{experiment14_forward.1} parent=63 // loop_exit
          _
      $region64: #{experiment14_forward.1} parent=48 // pred_fallthru
        _
    $region49: #{experiment14_forward.1} parent=1 // pred_fallthru
      _
    // Predicated region
    $region50: #{experiment14_forward.1} parent=1 // pred_check
      %p93 = pneg %p89
    $region51: #{experiment14_forward.1} parent=1 // pred_check_branch
      %95 = sbr.rel (%p93) target = $region53
    $region52: #{experiment14_forward.1} parent=1 // pred_region
      %s96 = sshllo.u32 0, 1
      loop: start=0, step=1, limit=1
      $region54: #{experiment14_forward.1} parent=52 // loop_pre_header
        _
      $region55: #{experiment14_forward.1} parent=52 // loop_header
        %s98 = sphi 0, %s102
        %p99 = scmp.ge.s32.totalorder %s98, 1
        %s103 = sphi %s86, %s86
        %s104 = sphi %s87, %s87
      $region56: #{experiment14_forward.1} parent=52 // loop_header_branch
        %101 = sbr.rel (%p99) target = $region60
      $region57: #{experiment14_forward.1} parent=52 // loop_body
        %v105 = vld [vmem:[%s103] sm:%s96]
        %106 = vst [vmem:[%s104] sm:%s96] %v105
      $region58: #{experiment14_forward.1} parent=52 // loop_footer
        %s102 = sadd.s32 1, %s98
      $region59: #{experiment14_forward.1} parent=52 // loop_footer_branch
        %97 = sbr.rel target = $region55
      $region60: #{experiment14_forward.1} parent=52 // loop_exit
        _
    $region53: #{experiment14_forward.1} parent=1 // pred_fallthru
      _
    // Predicated region
    $region72: #{experiment14_forward.1} parent=1 // pred_check
      _
    $region73: #{experiment14_forward.1} parent=1 // pred_check_branch
      %130 = sbr.rel (0) target = $region75
    $region74: #{experiment14_forward.1} parent=1 // pred_region
      %131 = vsyncadd [#allocation4], 16
    $region75: #{experiment14_forward.1} parent=1 // pred_fallthru
      _
    %s132 = sld [smem:[#allocation5 + $0x1]]
    %s133 = scalar_lea.vmem %s1, %s132
    %s134 = scalar_lea.vmem [#allocation2], 24
    %s135 = scalar_lea.sflag [#allocation4], 1
    %p137 = scmp.lt.u32.totalorder 1, 8
    %p138 = pneg %p137
    // Predicated region
    $region76: #{experiment14_forward.1} parent=1 // pred_check
      _
    $region77: #{experiment14_forward.1} parent=1 // pred_check_branch
      %140 = sbr.rel (%p137) target = $region79
    $region78: #{experiment14_forward.1} parent=1 // pred_region
      %s155 = sand.u32 1, 7
      %p156 = scmp.eq.s32.totalorder %s155, 0
      %p157 = pneg %p156
      // Predicated region
      $region91: #{experiment14_forward.1} parent=78 // pred_check
        _
      $region92: #{experiment14_forward.1} parent=78 // pred_check_branch
        %159 = sbr.rel (%p156) target = $region94
      $region93: #{experiment14_forward.1} parent=78 // pred_region
        %s160 = sand.u32 1, 7
        %s161 = ssub.s32 1, %s160
        %s162 = scalar_lea.vmem %s133, %s161
        %s163 = ssub.s32 1, %s160
        %s164 = scalar_lea.vmem %s134, %s163 [#allocation2]
        %s165 = sshllo.u32 0, %s160
        loop: start=0, step=1, limit=1
        $region95: #{experiment14_forward.1} parent=93 // loop_pre_header
          _
        $region96: #{experiment14_forward.1} parent=93 // loop_header
          %s167 = sphi 0, %s171
          %p168 = scmp.ge.s32.totalorder %s167, 1
          %s172 = sphi %s162, %s162
          %s173 = sphi %s164, %s164
        $region97: #{experiment14_forward.1} parent=93 // loop_header_branch
          %170 = sbr.rel (%p168) target = $region101
        $region98: #{experiment14_forward.1} parent=93 // loop_body
          %v174 = vld [vmem:[%s172] sm:%s165]
          %175 = vst [vmem:[%s173] sm:%s165] %v174
        $region99: #{experiment14_forward.1} parent=93 // loop_footer
          %s171 = sadd.s32 1, %s167
        $region100: #{experiment14_forward.1} parent=93 // loop_footer_branch
          %166 = sbr.rel target = $region96
        $region101: #{experiment14_forward.1} parent=93 // loop_exit
          _
      $region94: #{experiment14_forward.1} parent=78 // pred_fallthru
        _
    $region79: #{experiment14_forward.1} parent=1 // pred_fallthru
      _
    // Predicated region
    $region80: #{experiment14_forward.1} parent=1 // pred_check
      %p141 = pneg %p137
    $region81: #{experiment14_forward.1} parent=1 // pred_check_branch
      %143 = sbr.rel (%p141) target = $region83
    $region82: #{experiment14_forward.1} parent=1 // pred_region
      %s144 = sshllo.u32 0, 1
      loop: start=0, step=1, limit=1
      $region84: #{experiment14_forward.1} parent=82 // loop_pre_header
        _
      $region85: #{experiment14_forward.1} parent=82 // loop_header
        %s146 = sphi 0, %s150
        %p147 = scmp.ge.s32.totalorder %s146, 1
        %s151 = sphi %s133, %s133
        %s152 = sphi %s134, %s134
      $region86: #{experiment14_forward.1} parent=82 // loop_header_branch
        %149 = sbr.rel (%p147) target = $region90
      $region87: #{experiment14_forward.1} parent=82 // loop_body
        %v153 = vld [vmem:[%s151] sm:%s144]
        %154 = vst [vmem:[%s152] sm:%s144] %v153
      $region88: #{experiment14_forward.1} parent=82 // loop_footer
        %s150 = sadd.s32 1, %s146
      $region89: #{experiment14_forward.1} parent=82 // loop_footer_branch
        %145 = sbr.rel target = $region85
      $region90: #{experiment14_forward.1} parent=82 // loop_exit
        _
    $region83: #{experiment14_forward.1} parent=1 // pred_fallthru
      _
    // Predicated region
    $region102: #{experiment14_forward.1} parent=1 // pred_check
      _
    $region103: #{experiment14_forward.1} parent=1 // pred_check_branch
      %178 = sbr.rel (0) target = $region105
    $region104: #{experiment14_forward.1} parent=1 // pred_region
      %179 = vsyncadd %s135, 16
    $region105: #{experiment14_forward.1} parent=1 // pred_fallthru
      _
    %s180 = sld [smem:[#allocation5 + $0x2]]
    %s181 = scalar_lea.vmem %s1, %s180
    %s182 = scalar_lea.vmem [#allocation2], 32
    %s183 = scalar_lea.sflag [#allocation4], 2
    %p185 = scmp.lt.u32.totalorder 1, 8
    %p186 = pneg %p185
    // Predicated region
    $region106: #{experiment14_forward.1} parent=1 // pred_check
      _
    $region107: #{experiment14_forward.1} parent=1 // pred_check_branch
      %188 = sbr.rel (%p185) target = $region109
    $region108: #{experiment14_forward.1} parent=1 // pred_region
      %s203 = sand.u32 1, 7
      %p204 = scmp.eq.s32.totalorder %s203, 0
      %p205 = pneg %p204
      // Predicated region
      $region121: #{experiment14_forward.1} parent=108 // pred_check
        _
      $region122: #{experiment14_forward.1} parent=108 // pred_check_branch
        %207 = sbr.rel (%p204) target = $region124
      $region123: #{experiment14_forward.1} parent=108 // pred_region
        %s208 = sand.u32 1, 7
        %s209 = ssub.s32 1, %s208
        %s210 = scalar_lea.vmem %s181, %s209
        %s211 = ssub.s32 1, %s208
        %s212 = scalar_lea.vmem %s182, %s211 [#allocation2]
        %s213 = sshllo.u32 0, %s208
        loop: start=0, step=1, limit=1
        $region125: #{experiment14_forward.1} parent=123 // loop_pre_header
          _
        $region126: #{experiment14_forward.1} parent=123 // loop_header
          %s215 = sphi 0, %s219
          %p216 = scmp.ge.s32.totalorder %s215, 1
          %s220 = sphi %s210, %s210
          %s221 = sphi %s212, %s212
        $region127: #{experiment14_forward.1} parent=123 // loop_header_branch
          %218 = sbr.rel (%p216) target = $region131
        $region128: #{experiment14_forward.1} parent=123 // loop_body
          %v222 = vld [vmem:[%s220] sm:%s213]
          %223 = vst [vmem:[%s221] sm:%s213] %v222
        $region129: #{experiment14_forward.1} parent=123 // loop_footer
          %s219 = sadd.s32 1, %s215
        $region130: #{experiment14_forward.1} parent=123 // loop_footer_branch
          %214 = sbr.rel target = $region126
        $region131: #{experiment14_forward.1} parent=123 // loop_exit
          _
      $region124: #{experiment14_forward.1} parent=108 // pred_fallthru
        _
    $region109: #{experiment14_forward.1} parent=1 // pred_fallthru
      _
    // Predicated region
    $region110: #{experiment14_forward.1} parent=1 // pred_check
      %p189 = pneg %p185
    $region111: #{experiment14_forward.1} parent=1 // pred_check_branch
      %191 = sbr.rel (%p189) target = $region113
    $region112: #{experiment14_forward.1} parent=1 // pred_region
      %s192 = sshllo.u32 0, 1
      loop: start=0, step=1, limit=1
      $region114: #{experiment14_forward.1} parent=112 // loop_pre_header
        _
      $region115: #{experiment14_forward.1} parent=112 // loop_header
        %s194 = sphi 0, %s198
        %p195 = scmp.ge.s32.totalorder %s194, 1
        %s199 = sphi %s181, %s181
        %s200 = sphi %s182, %s182
      $region116: #{experiment14_forward.1} parent=112 // loop_header_branch
        %197 = sbr.rel (%p195) target = $region120
      $region117: #{experiment14_forward.1} parent=112 // loop_body
        %v201 = vld [vmem:[%s199] sm:%s192]
        %202 = vst [vmem:[%s200] sm:%s192] %v201
      $region118: #{experiment14_forward.1} parent=112 // loop_footer
        %s198 = sadd.s32 1, %s194
      $region119: #{experiment14_forward.1} parent=112 // loop_footer_branch
        %193 = sbr.rel target = $region115
      $region120: #{experiment14_forward.1} parent=112 // loop_exit
        _
    $region113: #{experiment14_forward.1} parent=1 // pred_fallthru
      _
    // Predicated region
    $region132: #{experiment14_forward.1} parent=1 // pred_check
      _
    $region133: #{experiment14_forward.1} parent=1 // pred_check_branch
      %226 = sbr.rel (0) target = $region135
    $region134: #{experiment14_forward.1} parent=1 // pred_region
      %227 = vsyncadd %s183, 16
    $region135: #{experiment14_forward.1} parent=1 // pred_fallthru
      _
    %s228 = sld [smem:[#allocation5 + $0x3]]
    %s229 = scalar_lea.vmem %s1, %s228
    %s230 = scalar_lea.vmem [#allocation2], 40
    %s231 = scalar_lea.sflag [#allocation4], 3
    %p233 = scmp.lt.u32.totalorder 1, 8
    %p234 = pneg %p233
    // Predicated region
    $region136: #{experiment14_forward.1} parent=1 // pred_check
      _
    $region137: #{experiment14_forward.1} parent=1 // pred_check_branch
      %236 = sbr.rel (%p233) target = $region139
    $region138: #{experiment14_forward.1} parent=1 // pred_region
      %s251 = sand.u32 1, 7
      %p252 = scmp.eq.s32.totalorder %s251, 0
      %p253 = pneg %p252
      // Predicated region
      $region151: #{experiment14_forward.1} parent=138 // pred_check
        _
      $region152: #{experiment14_forward.1} parent=138 // pred_check_branch
        %255 = sbr.rel (%p252) target = $region154
      $region153: #{experiment14_forward.1} parent=138 // pred_region
        %s256 = sand.u32 1, 7
        %s257 = ssub.s32 1, %s256
        %s258 = scalar_lea.vmem %s229, %s257
        %s259 = ssub.s32 1, %s256
        %s260 = scalar_lea.vmem %s230, %s259 [#allocation2]
        %s261 = sshllo.u32 0, %s256
        loop: start=0, step=1, limit=1
        $region155: #{experiment14_forward.1} parent=153 // loop_pre_header
          _
        $region156: #{experiment14_forward.1} parent=153 // loop_header
          %s263 = sphi 0, %s267
          %p264 = scmp.ge.s32.totalorder %s263, 1
          %s268 = sphi %s258, %s258
          %s269 = sphi %s260, %s260
        $region157: #{experiment14_forward.1} parent=153 // loop_header_branch
          %266 = sbr.rel (%p264) target = $region161
        $region158: #{experiment14_forward.1} parent=153 // loop_body
          %v270 = vld [vmem:[%s268] sm:%s261]
          %271 = vst [vmem:[%s269] sm:%s261] %v270
        $region159: #{experiment14_forward.1} parent=153 // loop_footer
          %s267 = sadd.s32 1, %s263
        $region160: #{experiment14_forward.1} parent=153 // loop_footer_branch
          %262 = sbr.rel target = $region156
        $region161: #{experiment14_forward.1} parent=153 // loop_exit
          _
      $region154: #{experiment14_forward.1} parent=138 // pred_fallthru
        _
    $region139: #{experiment14_forward.1} parent=1 // pred_fallthru
      _
    // Predicated region
    $region140: #{experiment14_forward.1} parent=1 // pred_check
      %p237 = pneg %p233
    $region141: #{experiment14_forward.1} parent=1 // pred_check_branch
      %239 = sbr.rel (%p237) target = $region143
    $region142: #{experiment14_forward.1} parent=1 // pred_region
      %s240 = sshllo.u32 0, 1
      loop: start=0, step=1, limit=1
      $region144: #{experiment14_forward.1} parent=142 // loop_pre_header
        _
      $region145: #{experiment14_forward.1} parent=142 // loop_header
        %s242 = sphi 0, %s246
        %p243 = scmp.ge.s32.totalorder %s242, 1
        %s247 = sphi %s229, %s229
        %s248 = sphi %s230, %s230
      $region146: #{experiment14_forward.1} parent=142 // loop_header_branch
        %245 = sbr.rel (%p243) target = $region150
      $region147: #{experiment14_forward.1} parent=142 // loop_body
        %v249 = vld [vmem:[%s247] sm:%s240]
        %250 = vst [vmem:[%s248] sm:%s240] %v249
      $region148: #{experiment14_forward.1} parent=142 // loop_footer
        %s246 = sadd.s32 1, %s242
      $region149: #{experiment14_forward.1} parent=142 // loop_footer_branch
        %241 = sbr.rel target = $region145
      $region150: #{experiment14_forward.1} parent=142 // loop_exit
        _
    $region143: #{experiment14_forward.1} parent=1 // pred_fallthru
      _
    // Predicated region
    $region162: #{experiment14_forward.1} parent=1 // pred_check
      _
    $region163: #{experiment14_forward.1} parent=1 // pred_check_branch
      %274 = sbr.rel (0) target = $region165
    $region164: #{experiment14_forward.1} parent=1 // pred_region
      %275 = vsyncadd %s231, 16
    $region165: #{experiment14_forward.1} parent=1 // pred_fallthru
      _
    %s276 = sld [smem:[#allocation5 + $0x4]]
    %s277 = scalar_lea.vmem %s1, %s276
    %s278 = scalar_lea.vmem [#allocation2], 48
    %s279 = scalar_lea.sflag [#allocation4], 4
    %p281 = scmp.lt.u32.totalorder 1, 8
    %p282 = pneg %p281
    // Predicated region
    $region166: #{experiment14_forward.1} parent=1 // pred_check
      _
    $region167: #{experiment14_forward.1} parent=1 // pred_check_branch
      %284 = sbr.rel (%p281) target = $region169
    $region168: #{experiment14_forward.1} parent=1 // pred_region
      %s299 = sand.u32 1, 7
      %p300 = scmp.eq.s32.totalorder %s299, 0
      %p301 = pneg %p300
      // Predicated region
      $region181: #{experiment14_forward.1} parent=168 // pred_check
        _
      $region182: #{experiment14_forward.1} parent=168 // pred_check_branch
        %303 = sbr.rel (%p300) target = $region184
      $region183: #{experiment14_forward.1} parent=168 // pred_region
        %s304 = sand.u32 1, 7
        %s305 = ssub.s32 1, %s304
        %s306 = scalar_lea.vmem %s277, %s305
        %s307 = ssub.s32 1, %s304
        %s308 = scalar_lea.vmem %s278, %s307 [#allocation2]
        %s309 = sshllo.u32 0, %s304
        loop: start=0, step=1, limit=1
        $region185: #{experiment14_forward.1} parent=183 // loop_pre_header
          _
        $region186: #{experiment14_forward.1} parent=183 // loop_header
          %s311 = sphi 0, %s315
          %p312 = scmp.ge.s32.totalorder %s311, 1
          %s316 = sphi %s306, %s306
          %s317 = sphi %s308, %s308
        $region187: #{experiment14_forward.1} parent=183 // loop_header_branch
          %314 = sbr.rel (%p312) target = $region191
        $region188: #{experiment14_forward.1} parent=183 // loop_body
          %v318 = vld [vmem:[%s316] sm:%s309]
          %319 = vst [vmem:[%s317] sm:%s309] %v318
        $region189: #{experiment14_forward.1} parent=183 // loop_footer
          %s315 = sadd.s32 1, %s311
        $region190: #{experiment14_forward.1} parent=183 // loop_footer_branch
          %310 = sbr.rel target = $region186
        $region191: #{experiment14_forward.1} parent=183 // loop_exit
          _
      $region184: #{experiment14_forward.1} parent=168 // pred_fallthru
        _
    $region169: #{experiment14_forward.1} parent=1 // pred_fallthru
      _
    // Predicated region
    $region170: #{experiment14_forward.1} parent=1 // pred_check
      %p285 = pneg %p281
    $region171: #{experiment14_forward.1} parent=1 // pred_check_branch
      %287 = sbr.rel (%p285) target = $region173
    $region172: #{experiment14_forward.1} parent=1 // pred_region
      %s288 = sshllo.u32 0, 1
      loop: start=0, step=1, limit=1
      $region174: #{experiment14_forward.1} parent=172 // loop_pre_header
        _
      $region175: #{experiment14_forward.1} parent=172 // loop_header
        %s290 = sphi 0, %s294
        %p291 = scmp.ge.s32.totalorder %s290, 1
        %s295 = sphi %s277, %s277
        %s296 = sphi %s278, %s278
      $region176: #{experiment14_forward.1} parent=172 // loop_header_branch
        %293 = sbr.rel (%p291) target = $region180
      $region177: #{experiment14_forward.1} parent=172 // loop_body
        %v297 = vld [vmem:[%s295] sm:%s288]
        %298 = vst [vmem:[%s296] sm:%s288] %v297
      $region178: #{experiment14_forward.1} parent=172 // loop_footer
        %s294 = sadd.s32 1, %s290
      $region179: #{experiment14_forward.1} parent=172 // loop_footer_branch
        %289 = sbr.rel target = $region175
      $region180: #{experiment14_forward.1} parent=172 // loop_exit
        _
    $region173: #{experiment14_forward.1} parent=1 // pred_fallthru
      _
    // Predicated region
    $region192: #{experiment14_forward.1} parent=1 // pred_check
      _
    $region193: #{experiment14_forward.1} parent=1 // pred_check_branch
      %322 = sbr.rel (0) target = $region195
    $region194: #{experiment14_forward.1} parent=1 // pred_region
      %323 = vsyncadd %s279, 16
    $region195: #{experiment14_forward.1} parent=1 // pred_fallthru
      _
    %s324 = sld [smem:[#allocation5 + $0x5]]
    %s325 = scalar_lea.vmem %s1, %s324
    %s326 = scalar_lea.vmem [#allocation2], 56
    %s327 = scalar_lea.sflag [#allocation4], 5
    %p329 = scmp.lt.u32.totalorder 1, 8
    %p330 = pneg %p329
    // Predicated region
    $region196: #{experiment14_forward.1} parent=1 // pred_check
      _
    $region197: #{experiment14_forward.1} parent=1 // pred_check_branch
      %332 = sbr.rel (%p329) target = $region199
    $region198: #{experiment14_forward.1} parent=1 // pred_region
      %s347 = sand.u32 1, 7
      %p348 = scmp.eq.s32.totalorder %s347, 0
      %p349 = pneg %p348
      // Predicated region
      $region211: #{experiment14_forward.1} parent=198 // pred_check
        _
      $region212: #{experiment14_forward.1} parent=198 // pred_check_branch
        %351 = sbr.rel (%p348) target = $region214
      $region213: #{experiment14_forward.1} parent=198 // pred_region
        %s352 = sand.u32 1, 7
        %s353 = ssub.s32 1, %s352
        %s354 = scalar_lea.vmem %s325, %s353
        %s355 = ssub.s32 1, %s352
        %s356 = scalar_lea.vmem %s326, %s355 [#allocation2]
        %s357 = sshllo.u32 0, %s352
        loop: start=0, step=1, limit=1
        $region215: #{experiment14_forward.1} parent=213 // loop_pre_header
          _
        $region216: #{experiment14_forward.1} parent=213 // loop_header
          %s359 = sphi 0, %s363
          %p360 = scmp.ge.s32.totalorder %s359, 1
          %s364 = sphi %s354, %s354
          %s365 = sphi %s356, %s356
        $region217: #{experiment14_forward.1} parent=213 // loop_header_branch
          %362 = sbr.rel (%p360) target = $region221
        $region218: #{experiment14_forward.1} parent=213 // loop_body
          %v366 = vld [vmem:[%s364] sm:%s357]
          %367 = vst [vmem:[%s365] sm:%s357] %v366
        $region219: #{experiment14_forward.1} parent=213 // loop_footer
          %s363 = sadd.s32 1, %s359
        $region220: #{experiment14_forward.1} parent=213 // loop_footer_branch
          %358 = sbr.rel target = $region216
        $region221: #{experiment14_forward.1} parent=213 // loop_exit
          _
      $region214: #{experiment14_forward.1} parent=198 // pred_fallthru
        _
    $region199: #{experiment14_forward.1} parent=1 // pred_fallthru
      _
    // Predicated region
    $region200: #{experiment14_forward.1} parent=1 // pred_check
      %p333 = pneg %p329
    $region201: #{experiment14_forward.1} parent=1 // pred_check_branch
      %335 = sbr.rel (%p333) target = $region203
    $region202: #{experiment14_forward.1} parent=1 // pred_region
      %s336 = sshllo.u32 0, 1
      loop: start=0, step=1, limit=1
      $region204: #{experiment14_forward.1} parent=202 // loop_pre_header
        _
      $region205: #{experiment14_forward.1} parent=202 // loop_header
        %s338 = sphi 0, %s342
        %p339 = scmp.ge.s32.totalorder %s338, 1
        %s343 = sphi %s325, %s325
        %s344 = sphi %s326, %s326
      $region206: #{experiment14_forward.1} parent=202 // loop_header_branch
        %341 = sbr.rel (%p339) target = $region210
      $region207: #{experiment14_forward.1} parent=202 // loop_body
        %v345 = vld [vmem:[%s343] sm:%s336]
        %346 = vst [vmem:[%s344] sm:%s336] %v345
      $region208: #{experiment14_forward.1} parent=202 // loop_footer
        %s342 = sadd.s32 1, %s338
      $region209: #{experiment14_forward.1} parent=202 // loop_footer_branch
        %337 = sbr.rel target = $region205
      $region210: #{experiment14_forward.1} parent=202 // loop_exit
        _
    $region203: #{experiment14_forward.1} parent=1 // pred_fallthru
      _
    // Predicated region
    $region222: #{experiment14_forward.1} parent=1 // pred_check
      _
    $region223: #{experiment14_forward.1} parent=1 // pred_check_branch
      %370 = sbr.rel (0) target = $region225
    $region224: #{experiment14_forward.1} parent=1 // pred_region
      %371 = vsyncadd %s327, 16
    $region225: #{experiment14_forward.1} parent=1 // pred_fallthru
      _
    %s372 = sld [smem:[#allocation5 + $0x6]]
    %s373 = scalar_lea.vmem %s1, %s372
    %s374 = scalar_lea.vmem [#allocation2], 64
    %s375 = scalar_lea.sflag [#allocation4], 6
    %p377 = scmp.lt.u32.totalorder 1, 8
    %p378 = pneg %p377
    // Predicated region
    $region226: #{experiment14_forward.1} parent=1 // pred_check
      _
    $region227: #{experiment14_forward.1} parent=1 // pred_check_branch
      %380 = sbr.rel (%p377) target = $region229
    $region228: #{experiment14_forward.1} parent=1 // pred_region
      %s395 = sand.u32 1, 7
      %p396 = scmp.eq.s32.totalorder %s395, 0
      %p397 = pneg %p396
      // Predicated region
      $region241: #{experiment14_forward.1} parent=228 // pred_check
        _
      $region242: #{experiment14_forward.1} parent=228 // pred_check_branch
        %399 = sbr.rel (%p396) target = $region244
      $region243: #{experiment14_forward.1} parent=228 // pred_region
        %s400 = sand.u32 1, 7
        %s401 = ssub.s32 1, %s400
        %s402 = scalar_lea.vmem %s373, %s401
        %s403 = ssub.s32 1, %s400
        %s404 = scalar_lea.vmem %s374, %s403 [#allocation2]
        %s405 = sshllo.u32 0, %s400
        loop: start=0, step=1, limit=1
        $region245: #{experiment14_forward.1} parent=243 // loop_pre_header
          _
        $region246: #{experiment14_forward.1} parent=243 // loop_header
          %s407 = sphi 0, %s411
          %p408 = scmp.ge.s32.totalorder %s407, 1
          %s412 = sphi %s402, %s402
          %s413 = sphi %s404, %s404
        $region247: #{experiment14_forward.1} parent=243 // loop_header_branch
          %410 = sbr.rel (%p408) target = $region251
        $region248: #{experiment14_forward.1} parent=243 // loop_body
          %v414 = vld [vmem:[%s412] sm:%s405]
          %415 = vst [vmem:[%s413] sm:%s405] %v414
        $region249: #{experiment14_forward.1} parent=243 // loop_footer
          %s411 = sadd.s32 1, %s407
        $region250: #{experiment14_forward.1} parent=243 // loop_footer_branch
          %406 = sbr.rel target = $region246
        $region251: #{experiment14_forward.1} parent=243 // loop_exit
          _
      $region244: #{experiment14_forward.1} parent=228 // pred_fallthru
        _
    $region229: #{experiment14_forward.1} parent=1 // pred_fallthru
      _
    // Predicated region
    $region230: #{experiment14_forward.1} parent=1 // pred_check
      %p381 = pneg %p377
    $region231: #{experiment14_forward.1} parent=1 // pred_check_branch
      %383 = sbr.rel (%p381) target = $region233
    $region232: #{experiment14_forward.1} parent=1 // pred_region
      %s384 = sshllo.u32 0, 1
      loop: start=0, step=1, limit=1
      $region234: #{experiment14_forward.1} parent=232 // loop_pre_header
        _
      $region235: #{experiment14_forward.1} parent=232 // loop_header
        %s386 = sphi 0, %s390
        %p387 = scmp.ge.s32.totalorder %s386, 1
        %s391 = sphi %s373, %s373
        %s392 = sphi %s374, %s374
      $region236: #{experiment14_forward.1} parent=232 // loop_header_branch
        %389 = sbr.rel (%p387) target = $region240
      $region237: #{experiment14_forward.1} parent=232 // loop_body
        %v393 = vld [vmem:[%s391] sm:%s384]
        %394 = vst [vmem:[%s392] sm:%s384] %v393
      $region238: #{experiment14_forward.1} parent=232 // loop_footer
        %s390 = sadd.s32 1, %s386
      $region239: #{experiment14_forward.1} parent=232 // loop_footer_branch
        %385 = sbr.rel target = $region235
      $region240: #{experiment14_forward.1} parent=232 // loop_exit
        _
    $region233: #{experiment14_forward.1} parent=1 // pred_fallthru
      _
    // Predicated region
    $region252: #{experiment14_forward.1} parent=1 // pred_check
      _
    $region253: #{experiment14_forward.1} parent=1 // pred_check_branch
      %418 = sbr.rel (0) target = $region255
    $region254: #{experiment14_forward.1} parent=1 // pred_region
      %419 = vsyncadd %s375, 16
    $region255: #{experiment14_forward.1} parent=1 // pred_fallthru
      _
    %s420 = sld [smem:[#allocation5 + $0x7]]
    %s421 = scalar_lea.vmem %s1, %s420
    %s422 = scalar_lea.vmem [#allocation2], 72
    %s423 = scalar_lea.sflag [#allocation4], 7
    %p425 = scmp.lt.u32.totalorder 1, 8
    %p426 = pneg %p425
    // Predicated region
    $region256: #{experiment14_forward.1} parent=1 // pred_check
      _
    $region257: #{experiment14_forward.1} parent=1 // pred_check_branch
      %428 = sbr.rel (%p425) target = $region259
    $region258: #{experiment14_forward.1} parent=1 // pred_region
      %s443 = sand.u32 1, 7
      %p444 = scmp.eq.s32.totalorder %s443, 0
      %p445 = pneg %p444
      // Predicated region
      $region271: #{experiment14_forward.1} parent=258 // pred_check
        _
      $region272: #{experiment14_forward.1} parent=258 // pred_check_branch
        %447 = sbr.rel (%p444) target = $region274
      $region273: #{experiment14_forward.1} parent=258 // pred_region
        %s448 = sand.u32 1, 7
        %s449 = ssub.s32 1, %s448
        %s450 = scalar_lea.vmem %s421, %s449
        %s451 = ssub.s32 1, %s448
        %s452 = scalar_lea.vmem %s422, %s451 [#allocation2]
        %s453 = sshllo.u32 0, %s448
        loop: start=0, step=1, limit=1
        $region275: #{experiment14_forward.1} parent=273 // loop_pre_header
          _
        $region276: #{experiment14_forward.1} parent=273 // loop_header
          %s455 = sphi 0, %s459
          %p456 = scmp.ge.s32.totalorder %s455, 1
          %s460 = sphi %s450, %s450
          %s461 = sphi %s452, %s452
        $region277: #{experiment14_forward.1} parent=273 // loop_header_branch
          %458 = sbr.rel (%p456) target = $region281
        $region278: #{experiment14_forward.1} parent=273 // loop_body
          %v462 = vld [vmem:[%s460] sm:%s453]
          %463 = vst [vmem:[%s461] sm:%s453] %v462
        $region279: #{experiment14_forward.1} parent=273 // loop_footer
          %s459 = sadd.s32 1, %s455
        $region280: #{experiment14_forward.1} parent=273 // loop_footer_branch
          %454 = sbr.rel target = $region276
        $region281: #{experiment14_forward.1} parent=273 // loop_exit
          _
      $region274: #{experiment14_forward.1} parent=258 // pred_fallthru
        _
    $region259: #{experiment14_forward.1} parent=1 // pred_fallthru
      _
    // Predicated region
    $region260: #{experiment14_forward.1} parent=1 // pred_check
      %p429 = pneg %p425
    $region261: #{experiment14_forward.1} parent=1 // pred_check_branch
      %431 = sbr.rel (%p429) target = $region263
    $region262: #{experiment14_forward.1} parent=1 // pred_region
      %s432 = sshllo.u32 0, 1
      loop: start=0, step=1, limit=1
      $region264: #{experiment14_forward.1} parent=262 // loop_pre_header
        _
      $region265: #{experiment14_forward.1} parent=262 // loop_header
        %s434 = sphi 0, %s438
        %p435 = scmp.ge.s32.totalorder %s434, 1
        %s439 = sphi %s421, %s421
        %s440 = sphi %s422, %s422
      $region266: #{experiment14_forward.1} parent=262 // loop_header_branch
        %437 = sbr.rel (%p435) target = $region270
      $region267: #{experiment14_forward.1} parent=262 // loop_body
        %v441 = vld [vmem:[%s439] sm:%s432]
        %442 = vst [vmem:[%s440] sm:%s432] %v441
      $region268: #{experiment14_forward.1} parent=262 // loop_footer
        %s438 = sadd.s32 1, %s434
      $region269: #{experiment14_forward.1} parent=262 // loop_footer_branch
        %433 = sbr.rel target = $region265
      $region270: #{experiment14_forward.1} parent=262 // loop_exit
        _
    $region263: #{experiment14_forward.1} parent=1 // pred_fallthru
      _
    // Predicated region
    $region282: #{experiment14_forward.1} parent=1 // pred_check
      _
    $region283: #{experiment14_forward.1} parent=1 // pred_check_branch
      %466 = sbr.rel (0) target = $region285
    $region284: #{experiment14_forward.1} parent=1 // pred_region
      %467 = vsyncadd %s423, 16
    $region285: #{experiment14_forward.1} parent=1 // pred_fallthru
      _
    %s468 = sld [smem:[#allocation5 + $0x8]]
    %s469 = scalar_lea.vmem %s1, %s468
    %s470 = scalar_lea.vmem [#allocation2], 17
    %s471 = scalar_lea.sflag [#allocation4], 8
    %p473 = scmp.lt.u32.totalorder 1, 8
    %p474 = pneg %p473
    // Predicated region
    $region286: #{experiment14_forward.1} parent=1 // pred_check
      _
    $region287: #{experiment14_forward.1} parent=1 // pred_check_branch
      %476 = sbr.rel (%p473) target = $region289
    $region288: #{experiment14_forward.1} parent=1 // pred_region
      %s491 = sand.u32 1, 7
      %p492 = scmp.eq.s32.totalorder %s491, 0
      %p493 = pneg %p492
      // Predicated region
      $region301: #{experiment14_forward.1} parent=288 // pred_check
        _
      $region302: #{experiment14_forward.1} parent=288 // pred_check_branch
        %495 = sbr.rel (%p492) target = $region304
      $region303: #{experiment14_forward.1} parent=288 // pred_region
        %s496 = sand.u32 1, 7
        %s497 = ssub.s32 1, %s496
        %s498 = scalar_lea.vmem %s469, %s497
        %s499 = ssub.s32 1, %s496
        %s500 = scalar_lea.vmem %s470, %s499 [#allocation2]
        %s501 = sshllo.u32 0, %s496
        loop: start=0, step=1, limit=1
        $region305: #{experiment14_forward.1} parent=303 // loop_pre_header
          _
        $region306: #{experiment14_forward.1} parent=303 // loop_header
          %s503 = sphi 0, %s507
          %p504 = scmp.ge.s32.totalorder %s503, 1
          %s508 = sphi %s498, %s498
          %s509 = sphi %s500, %s500
        $region307: #{experiment14_forward.1} parent=303 // loop_header_branch
          %506 = sbr.rel (%p504) target = $region311
        $region308: #{experiment14_forward.1} parent=303 // loop_body
          %v510 = vld [vmem:[%s508] sm:%s501]
          %511 = vst [vmem:[%s509] sm:%s501] %v510
        $region309: #{experiment14_forward.1} parent=303 // loop_footer
          %s507 = sadd.s32 1, %s503
        $region310: #{experiment14_forward.1} parent=303 // loop_footer_branch
          %502 = sbr.rel target = $region306
        $region311: #{experiment14_forward.1} parent=303 // loop_exit
          _
      $region304: #{experiment14_forward.1} parent=288 // pred_fallthru
        _
    $region289: #{experiment14_forward.1} parent=1 // pred_fallthru
      _
    // Predicated region
    $region290: #{experiment14_forward.1} parent=1 // pred_check
      %p477 = pneg %p473
    $region291: #{experiment14_forward.1} parent=1 // pred_check_branch
      %479 = sbr.rel (%p477) target = $region293
    $region292: #{experiment14_forward.1} parent=1 // pred_region
      %s480 = sshllo.u32 0, 1
      loop: start=0, step=1, limit=1
      $region294: #{experiment14_forward.1} parent=292 // loop_pre_header
        _
      $region295: #{experiment14_forward.1} parent=292 // loop_header
        %s482 = sphi 0, %s486
        %p483 = scmp.ge.s32.totalorder %s482, 1
        %s487 = sphi %s469, %s469
        %s488 = sphi %s470, %s470
      $region296: #{experiment14_forward.1} parent=292 // loop_header_branch
        %485 = sbr.rel (%p483) target = $region300
      $region297: #{experiment14_forward.1} parent=292 // loop_body
        %v489 = vld [vmem:[%s487] sm:%s480]
        %490 = vst [vmem:[%s488] sm:%s480] %v489
      $region298: #{experiment14_forward.1} parent=292 // loop_footer
        %s486 = sadd.s32 1, %s482
      $region299: #{experiment14_forward.1} parent=292 // loop_footer_branch
        %481 = sbr.rel target = $region295
      $region300: #{experiment14_forward.1} parent=292 // loop_exit
        _
    $region293: #{experiment14_forward.1} parent=1 // pred_fallthru
      _
    // Predicated region
    $region312: #{experiment14_forward.1} parent=1 // pred_check
      _
    $region313: #{experiment14_forward.1} parent=1 // pred_check_branch
      %514 = sbr.rel (0) target = $region315
    $region314: #{experiment14_forward.1} parent=1 // pred_region
      %515 = vsyncadd %s471, 16
    $region315: #{experiment14_forward.1} parent=1 // pred_fallthru
      _
    %s516 = sld [smem:[#allocation5 + $0x9]]
    %s517 = scalar_lea.vmem %s1, %s516
    %s518 = scalar_lea.vmem [#allocation2], 25
    %s519 = scalar_lea.sflag [#allocation4], 9
    %p521 = scmp.lt.u32.totalorder 1, 8
    %p522 = pneg %p521
    // Predicated region
    $region316: #{experiment14_forward.1} parent=1 // pred_check
      _
    $region317: #{experiment14_forward.1} parent=1 // pred_check_branch
      %524 = sbr.rel (%p521) target = $region319
    $region318: #{experiment14_forward.1} parent=1 // pred_region
      %s539 = sand.u32 1, 7
      %p540 = scmp.eq.s32.totalorder %s539, 0
      %p541 = pneg %p540
      // Predicated region
      $region331: #{experiment14_forward.1} parent=318 // pred_check
        _
      $region332: #{experiment14_forward.1} parent=318 // pred_check_branch
        %543 = sbr.rel (%p540) target = $region334
      $region333: #{experiment14_forward.1} parent=318 // pred_region
        %s544 = sand.u32 1, 7
        %s545 = ssub.s32 1, %s544
        %s546 = scalar_lea.vmem %s517, %s545
        %s547 = ssub.s32 1, %s544
        %s548 = scalar_lea.vmem %s518, %s547 [#allocation2]
        %s549 = sshllo.u32 0, %s544
        loop: start=0, step=1, limit=1
        $region335: #{experiment14_forward.1} parent=333 // loop_pre_header
          _
        $region336: #{experiment14_forward.1} parent=333 // loop_header
          %s551 = sphi 0, %s555
          %p552 = scmp.ge.s32.totalorder %s551, 1
          %s556 = sphi %s546, %s546
          %s557 = sphi %s548, %s548
        $region337: #{experiment14_forward.1} parent=333 // loop_header_branch
          %554 = sbr.rel (%p552) target = $region341
        $region338: #{experiment14_forward.1} parent=333 // loop_body
          %v558 = vld [vmem:[%s556] sm:%s549]
          %559 = vst [vmem:[%s557] sm:%s549] %v558
        $region339: #{experiment14_forward.1} parent=333 // loop_footer
          %s555 = sadd.s32 1, %s551
        $region340: #{experiment14_forward.1} parent=333 // loop_footer_branch
          %550 = sbr.rel target = $region336
        $region341: #{experiment14_forward.1} parent=333 // loop_exit
          _
      $region334: #{experiment14_forward.1} parent=318 // pred_fallthru
        _
    $region319: #{experiment14_forward.1} parent=1 // pred_fallthru
      _
    // Predicated region
    $region320: #{experiment14_forward.1} parent=1 // pred_check
      %p525 = pneg %p521
    $region321: #{experiment14_forward.1} parent=1 // pred_check_branch
      %527 = sbr.rel (%p525) target = $region323
    $region322: #{experiment14_forward.1} parent=1 // pred_region
      %s528 = sshllo.u32 0, 1
      loop: start=0, step=1, limit=1
      $region324: #{experiment14_forward.1} parent=322 // loop_pre_header
        _
      $region325: #{experiment14_forward.1} parent=322 // loop_header
        %s530 = sphi 0, %s534
        %p531 = scmp.ge.s32.totalorder %s530, 1
        %s535 = sphi %s517, %s517
        %s536 = sphi %s518, %s518
      $region326: #{experiment14_forward.1} parent=322 // loop_header_branch
        %533 = sbr.rel (%p531) target = $region330
      $region327: #{experiment14_forward.1} parent=322 // loop_body
        %v537 = vld [vmem:[%s535] sm:%s528]
        %538 = vst [vmem:[%s536] sm:%s528] %v537
      $region328: #{experiment14_forward.1} parent=322 // loop_footer
        %s534 = sadd.s32 1, %s530
      $region329: #{experiment14_forward.1} parent=322 // loop_footer_branch
        %529 = sbr.rel target = $region325
      $region330: #{experiment14_forward.1} parent=322 // loop_exit
        _
    $region323: #{experiment14_forward.1} parent=1 // pred_fallthru
      _
    // Predicated region
    $region342: #{experiment14_forward.1} parent=1 // pred_check
      _
    $region343: #{experiment14_forward.1} parent=1 // pred_check_branch
      %562 = sbr.rel (0) target = $region345
    $region344: #{experiment14_forward.1} parent=1 // pred_region
      %563 = vsyncadd %s519, 16
    $region345: #{experiment14_forward.1} parent=1 // pred_fallthru
      _
    %s564 = sld [smem:[#allocation5 + $0xa]]
    %s565 = scalar_lea.vmem %s1, %s564
    %s566 = scalar_lea.vmem [#allocation2], 33
    %s567 = scalar_lea.sflag [#allocation4], 10
    %p569 = scmp.lt.u32.totalorder 1, 8
    %p570 = pneg %p569
    // Predicated region
    $region346: #{experiment14_forward.1} parent=1 // pred_check
      _
    $region347: #{experiment14_forward.1} parent=1 // pred_check_branch
      %572 = sbr.rel (%p569) target = $region349
    $region348: #{experiment14_forward.1} parent=1 // pred_region
      %s587 = sand.u32 1, 7
      %p588 = scmp.eq.s32.totalorder %s587, 0
      %p589 = pneg %p588
      // Predicated region
      $region361: #{experiment14_forward.1} parent=348 // pred_check
        _
      $region362: #{experiment14_forward.1} parent=348 // pred_check_branch
        %591 = sbr.rel (%p588) target = $region364
      $region363: #{experiment14_forward.1} parent=348 // pred_region
        %s592 = sand.u32 1, 7
        %s593 = ssub.s32 1, %s592
        %s594 = scalar_lea.vmem %s565, %s593
        %s595 = ssub.s32 1, %s592
        %s596 = scalar_lea.vmem %s566, %s595 [#allocation2]
        %s597 = sshllo.u32 0, %s592
        loop: start=0, step=1, limit=1
        $region365: #{experiment14_forward.1} parent=363 // loop_pre_header
          _
        $region366: #{experiment14_forward.1} parent=363 // loop_header
          %s599 = sphi 0, %s603
          %p600 = scmp.ge.s32.totalorder %s599, 1
          %s604 = sphi %s594, %s594
          %s605 = sphi %s596, %s596
        $region367: #{experiment14_forward.1} parent=363 // loop_header_branch
          %602 = sbr.rel (%p600) target = $region371
        $region368: #{experiment14_forward.1} parent=363 // loop_body
          %v606 = vld [vmem:[%s604] sm:%s597]
          %607 = vst [vmem:[%s605] sm:%s597] %v606
        $region369: #{experiment14_forward.1} parent=363 // loop_footer
          %s603 = sadd.s32 1, %s599
        $region370: #{experiment14_forward.1} parent=363 // loop_footer_branch
          %598 = sbr.rel target = $region366
        $region371: #{experiment14_forward.1} parent=363 // loop_exit
          _
      $region364: #{experiment14_forward.1} parent=348 // pred_fallthru
        _
    $region349: #{experiment14_forward.1} parent=1 // pred_fallthru
      _
    // Predicated region
    $region350: #{experiment14_forward.1} parent=1 // pred_check
      %p573 = pneg %p569
    $region351: #{experiment14_forward.1} parent=1 // pred_check_branch
      %575 = sbr.rel (%p573) target = $region353
    $region352: #{experiment14_forward.1} parent=1 // pred_region
      %s576 = sshllo.u32 0, 1
      loop: start=0, step=1, limit=1
      $region354: #{experiment14_forward.1} parent=352 // loop_pre_header
        _
      $region355: #{experiment14_forward.1} parent=352 // loop_header
        %s578 = sphi 0, %s582
        %p579 = scmp.ge.s32.totalorder %s578, 1
        %s583 = sphi %s565, %s565
        %s584 = sphi %s566, %s566
      $region356: #{experiment14_forward.1} parent=352 // loop_header_branch
        %581 = sbr.rel (%p579) target = $region360
      $region357: #{experiment14_forward.1} parent=352 // loop_body
        %v585 = vld [vmem:[%s583] sm:%s576]
        %586 = vst [vmem:[%s584] sm:%s576] %v585
      $region358: #{experiment14_forward.1} parent=352 // loop_footer
        %s582 = sadd.s32 1, %s578
      $region359: #{experiment14_forward.1} parent=352 // loop_footer_branch
        %577 = sbr.rel target = $region355
      $region360: #{experiment14_forward.1} parent=352 // loop_exit
        _
    $region353: #{experiment14_forward.1} parent=1 // pred_fallthru
      _
    // Predicated region
    $region372: #{experiment14_forward.1} parent=1 // pred_check
      _
    $region373: #{experiment14_forward.1} parent=1 // pred_check_branch
      %610 = sbr.rel (0) target = $region375
    $region374: #{experiment14_forward.1} parent=1 // pred_region
      %611 = vsyncadd %s567, 16
    $region375: #{experiment14_forward.1} parent=1 // pred_fallthru
      _
    %s612 = sld [smem:[#allocation5 + $0xb]]
    %s613 = scalar_lea.vmem %s1, %s612
    %s614 = scalar_lea.vmem [#allocation2], 41
    %s615 = scalar_lea.sflag [#allocation4], 11
    %p617 = scmp.lt.u32.totalorder 1, 8
    %p618 = pneg %p617
    // Predicated region
    $region376: #{experiment14_forward.1} parent=1 // pred_check
      _
    $region377: #{experiment14_forward.1} parent=1 // pred_check_branch
      %620 = sbr.rel (%p617) target = $region379
    $region378: #{experiment14_forward.1} parent=1 // pred_region
      %s635 = sand.u32 1, 7
      %p636 = scmp.eq.s32.totalorder %s635, 0
      %p637 = pneg %p636
      // Predicated region
      $region391: #{experiment14_forward.1} parent=378 // pred_check
        _
      $region392: #{experiment14_forward.1} parent=378 // pred_check_branch
        %639 = sbr.rel (%p636) target = $region394
      $region393: #{experiment14_forward.1} parent=378 // pred_region
        %s640 = sand.u32 1, 7
        %s641 = ssub.s32 1, %s640
        %s642 = scalar_lea.vmem %s613, %s641
        %s643 = ssub.s32 1, %s640
        %s644 = scalar_lea.vmem %s614, %s643 [#allocation2]
        %s645 = sshllo.u32 0, %s640
        loop: start=0, step=1, limit=1
        $region395: #{experiment14_forward.1} parent=393 // loop_pre_header
          _
        $region396: #{experiment14_forward.1} parent=393 // loop_header
          %s647 = sphi 0, %s651
          %p648 = scmp.ge.s32.totalorder %s647, 1
          %s652 = sphi %s642, %s642
          %s653 = sphi %s644, %s644
        $region397: #{experiment14_forward.1} parent=393 // loop_header_branch
          %650 = sbr.rel (%p648) target = $region401
        $region398: #{experiment14_forward.1} parent=393 // loop_body
          %v654 = vld [vmem:[%s652] sm:%s645]
          %655 = vst [vmem:[%s653] sm:%s645] %v654
        $region399: #{experiment14_forward.1} parent=393 // loop_footer
          %s651 = sadd.s32 1, %s647
        $region400: #{experiment14_forward.1} parent=393 // loop_footer_branch
          %646 = sbr.rel target = $region396
        $region401: #{experiment14_forward.1} parent=393 // loop_exit
          _
      $region394: #{experiment14_forward.1} parent=378 // pred_fallthru
        _
    $region379: #{experiment14_forward.1} parent=1 // pred_fallthru
      _
    // Predicated region
    $region380: #{experiment14_forward.1} parent=1 // pred_check
      %p621 = pneg %p617
    $region381: #{experiment14_forward.1} parent=1 // pred_check_branch
      %623 = sbr.rel (%p621) target = $region383
    $region382: #{experiment14_forward.1} parent=1 // pred_region
      %s624 = sshllo.u32 0, 1
      loop: start=0, step=1, limit=1
      $region384: #{experiment14_forward.1} parent=382 // loop_pre_header
        _
      $region385: #{experiment14_forward.1} parent=382 // loop_header
        %s626 = sphi 0, %s630
        %p627 = scmp.ge.s32.totalorder %s626, 1
        %s631 = sphi %s613, %s613
        %s632 = sphi %s614, %s614
      $region386: #{experiment14_forward.1} parent=382 // loop_header_branch
        %629 = sbr.rel (%p627) target = $region390
      $region387: #{experiment14_forward.1} parent=382 // loop_body
        %v633 = vld [vmem:[%s631] sm:%s624]
        %634 = vst [vmem:[%s632] sm:%s624] %v633
      $region388: #{experiment14_forward.1} parent=382 // loop_footer
        %s630 = sadd.s32 1, %s626
      $region389: #{experiment14_forward.1} parent=382 // loop_footer_branch
        %625 = sbr.rel target = $region385
      $region390: #{experiment14_forward.1} parent=382 // loop_exit
        _
    $region383: #{experiment14_forward.1} parent=1 // pred_fallthru
      _
    // Predicated region
    $region402: #{experiment14_forward.1} parent=1 // pred_check
      _
    $region403: #{experiment14_forward.1} parent=1 // pred_check_branch
      %658 = sbr.rel (0) target = $region405
    $region404: #{experiment14_forward.1} parent=1 // pred_region
      %659 = vsyncadd %s615, 16
    $region405: #{experiment14_forward.1} parent=1 // pred_fallthru
      _
    %s660 = sld [smem:[#allocation5 + $0xc]]
    %s661 = scalar_lea.vmem %s1, %s660
    %s662 = scalar_lea.vmem [#allocation2], 49
    %s663 = scalar_lea.sflag [#allocation4], 12
    %p665 = scmp.lt.u32.totalorder 1, 8
    %p666 = pneg %p665
    // Predicated region
    $region406: #{experiment14_forward.1} parent=1 // pred_check
      _
    $region407: #{experiment14_forward.1} parent=1 // pred_check_branch
      %668 = sbr.rel (%p665) target = $region409
    $region408: #{experiment14_forward.1} parent=1 // pred_region
      %s683 = sand.u32 1, 7
      %p684 = scmp.eq.s32.totalorder %s683, 0
      %p685 = pneg %p684
      // Predicated region
      $region421: #{experiment14_forward.1} parent=408 // pred_check
        _
      $region422: #{experiment14_forward.1} parent=408 // pred_check_branch
        %687 = sbr.rel (%p684) target = $region424
      $region423: #{experiment14_forward.1} parent=408 // pred_region
        %s688 = sand.u32 1, 7
        %s689 = ssub.s32 1, %s688
        %s690 = scalar_lea.vmem %s661, %s689
        %s691 = ssub.s32 1, %s688
        %s692 = scalar_lea.vmem %s662, %s691 [#allocation2]
        %s693 = sshllo.u32 0, %s688
        loop: start=0, step=1, limit=1
        $region425: #{experiment14_forward.1} parent=423 // loop_pre_header
          _
        $region426: #{experiment14_forward.1} parent=423 // loop_header
          %s695 = sphi 0, %s699
          %p696 = scmp.ge.s32.totalorder %s695, 1
          %s700 = sphi %s690, %s690
          %s701 = sphi %s692, %s692
        $region427: #{experiment14_forward.1} parent=423 // loop_header_branch
          %698 = sbr.rel (%p696) target = $region431
        $region428: #{experiment14_forward.1} parent=423 // loop_body
          %v702 = vld [vmem:[%s700] sm:%s693]
          %703 = vst [vmem:[%s701] sm:%s693] %v702
        $region429: #{experiment14_forward.1} parent=423 // loop_footer
          %s699 = sadd.s32 1, %s695
        $region430: #{experiment14_forward.1} parent=423 // loop_footer_branch
          %694 = sbr.rel target = $region426
        $region431: #{experiment14_forward.1} parent=423 // loop_exit
          _
      $region424: #{experiment14_forward.1} parent=408 // pred_fallthru
        _
    $region409: #{experiment14_forward.1} parent=1 // pred_fallthru
      _
    // Predicated region
    $region410: #{experiment14_forward.1} parent=1 // pred_check
      %p669 = pneg %p665
    $region411: #{experiment14_forward.1} parent=1 // pred_check_branch
      %671 = sbr.rel (%p669) target = $region413
    $region412: #{experiment14_forward.1} parent=1 // pred_region
      %s672 = sshllo.u32 0, 1
      loop: start=0, step=1, limit=1
      $region414: #{experiment14_forward.1} parent=412 // loop_pre_header
        _
      $region415: #{experiment14_forward.1} parent=412 // loop_header
        %s674 = sphi 0, %s678
        %p675 = scmp.ge.s32.totalorder %s674, 1
        %s679 = sphi %s661, %s661
        %s680 = sphi %s662, %s662
      $region416: #{experiment14_forward.1} parent=412 // loop_header_branch
        %677 = sbr.rel (%p675) target = $region420
      $region417: #{experiment14_forward.1} parent=412 // loop_body
        %v681 = vld [vmem:[%s679] sm:%s672]
        %682 = vst [vmem:[%s680] sm:%s672] %v681
      $region418: #{experiment14_forward.1} parent=412 // loop_footer
        %s678 = sadd.s32 1, %s674
      $region419: #{experiment14_forward.1} parent=412 // loop_footer_branch
        %673 = sbr.rel target = $region415
      $region420: #{experiment14_forward.1} parent=412 // loop_exit
        _
    $region413: #{experiment14_forward.1} parent=1 // pred_fallthru
      _
    // Predicated region
    $region432: #{experiment14_forward.1} parent=1 // pred_check
      _
    $region433: #{experiment14_forward.1} parent=1 // pred_check_branch
      %706 = sbr.rel (0) target = $region435
    $region434: #{experiment14_forward.1} parent=1 // pred_region
      %707 = vsyncadd %s663, 16
    $region435: #{experiment14_forward.1} parent=1 // pred_fallthru
      _
    %s708 = sld [smem:[#allocation5 + $0xd]]
    %s709 = scalar_lea.vmem %s1, %s708
    %s710 = scalar_lea.vmem [#allocation2], 57
    %s711 = scalar_lea.sflag [#allocation4], 13
    %p713 = scmp.lt.u32.totalorder 1, 8
    %p714 = pneg %p713
    // Predicated region
    $region436: #{experiment14_forward.1} parent=1 // pred_check
      _
    $region437: #{experiment14_forward.1} parent=1 // pred_check_branch
      %716 = sbr.rel (%p713) target = $region439
    $region438: #{experiment14_forward.1} parent=1 // pred_region
      %s731 = sand.u32 1, 7
      %p732 = scmp.eq.s32.totalorder %s731, 0
      %p733 = pneg %p732
      // Predicated region
      $region451: #{experiment14_forward.1} parent=438 // pred_check
        _
      $region452: #{experiment14_forward.1} parent=438 // pred_check_branch
        %735 = sbr.rel (%p732) target = $region454
      $region453: #{experiment14_forward.1} parent=438 // pred_region
        %s736 = sand.u32 1, 7
        %s737 = ssub.s32 1, %s736
        %s738 = scalar_lea.vmem %s709, %s737
        %s739 = ssub.s32 1, %s736
        %s740 = scalar_lea.vmem %s710, %s739 [#allocation2]
        %s741 = sshllo.u32 0, %s736
        loop: start=0, step=1, limit=1
        $region455: #{experiment14_forward.1} parent=453 // loop_pre_header
          _
        $region456: #{experiment14_forward.1} parent=453 // loop_header
          %s743 = sphi 0, %s747
          %p744 = scmp.ge.s32.totalorder %s743, 1
          %s748 = sphi %s738, %s738
          %s749 = sphi %s740, %s740
        $region457: #{experiment14_forward.1} parent=453 // loop_header_branch
          %746 = sbr.rel (%p744) target = $region461
        $region458: #{experiment14_forward.1} parent=453 // loop_body
          %v750 = vld [vmem:[%s748] sm:%s741]
          %751 = vst [vmem:[%s749] sm:%s741] %v750
        $region459: #{experiment14_forward.1} parent=453 // loop_footer
          %s747 = sadd.s32 1, %s743
        $region460: #{experiment14_forward.1} parent=453 // loop_footer_branch
          %742 = sbr.rel target = $region456
        $region461: #{experiment14_forward.1} parent=453 // loop_exit
          _
      $region454: #{experiment14_forward.1} parent=438 // pred_fallthru
        _
    $region439: #{experiment14_forward.1} parent=1 // pred_fallthru
      _
    // Predicated region
    $region440: #{experiment14_forward.1} parent=1 // pred_check
      %p717 = pneg %p713
    $region441: #{experiment14_forward.1} parent=1 // pred_check_branch
      %719 = sbr.rel (%p717) target = $region443
    $region442: #{experiment14_forward.1} parent=1 // pred_region
      %s720 = sshllo.u32 0, 1
      loop: start=0, step=1, limit=1
      $region444: #{experiment14_forward.1} parent=442 // loop_pre_header
        _
      $region445: #{experiment14_forward.1} parent=442 // loop_header
        %s722 = sphi 0, %s726
        %p723 = scmp.ge.s32.totalorder %s722, 1
        %s727 = sphi %s709, %s709
        %s728 = sphi %s710, %s710
      $region446: #{experiment14_forward.1} parent=442 // loop_header_branch
        %725 = sbr.rel (%p723) target = $region450
      $region447: #{experiment14_forward.1} parent=442 // loop_body
        %v729 = vld [vmem:[%s727] sm:%s720]
        %730 = vst [vmem:[%s728] sm:%s720] %v729
      $region448: #{experiment14_forward.1} parent=442 // loop_footer
        %s726 = sadd.s32 1, %s722
      $region449: #{experiment14_forward.1} parent=442 // loop_footer_branch
        %721 = sbr.rel target = $region445
      $region450: #{experiment14_forward.1} parent=442 // loop_exit
        _
    $region443: #{experiment14_forward.1} parent=1 // pred_fallthru
      _
    // Predicated region
    $region462: #{experiment14_forward.1} parent=1 // pred_check
      _
    $region463: #{experiment14_forward.1} parent=1 // pred_check_branch
      %754 = sbr.rel (0) target = $region465
    $region464: #{experiment14_forward.1} parent=1 // pred_region
      %755 = vsyncadd %s711, 16
    $region465: #{experiment14_forward.1} parent=1 // pred_fallthru
      _
    %s756 = sld [smem:[#allocation5 + $0xe]]
    %s757 = scalar_lea.vmem %s1, %s756
    %s758 = scalar_lea.vmem [#allocation2], 65
    %s759 = scalar_lea.sflag [#allocation4], 14
    %p761 = scmp.lt.u32.totalorder 1, 8
    %p762 = pneg %p761
    // Predicated region
    $region466: #{experiment14_forward.1} parent=1 // pred_check
      _
    $region467: #{experiment14_forward.1} parent=1 // pred_check_branch
      %764 = sbr.rel (%p761) target = $region469
    $region468: #{experiment14_forward.1} parent=1 // pred_region
      %s779 = sand.u32 1, 7
      %p780 = scmp.eq.s32.totalorder %s779, 0
      %p781 = pneg %p780
      // Predicated region
      $region481: #{experiment14_forward.1} parent=468 // pred_check
        _
      $region482: #{experiment14_forward.1} parent=468 // pred_check_branch
        %783 = sbr.rel (%p780) target = $region484
      $region483: #{experiment14_forward.1} parent=468 // pred_region
        %s784 = sand.u32 1, 7
        %s785 = ssub.s32 1, %s784
        %s786 = scalar_lea.vmem %s757, %s785
        %s787 = ssub.s32 1, %s784
        %s788 = scalar_lea.vmem %s758, %s787 [#allocation2]
        %s789 = sshllo.u32 0, %s784
        loop: start=0, step=1, limit=1
        $region485: #{experiment14_forward.1} parent=483 // loop_pre_header
          _
        $region486: #{experiment14_forward.1} parent=483 // loop_header
          %s791 = sphi 0, %s795
          %p792 = scmp.ge.s32.totalorder %s791, 1
          %s796 = sphi %s786, %s786
          %s797 = sphi %s788, %s788
        $region487: #{experiment14_forward.1} parent=483 // loop_header_branch
          %794 = sbr.rel (%p792) target = $region491
        $region488: #{experiment14_forward.1} parent=483 // loop_body
          %v798 = vld [vmem:[%s796] sm:%s789]
          %799 = vst [vmem:[%s797] sm:%s789] %v798
        $region489: #{experiment14_forward.1} parent=483 // loop_footer
          %s795 = sadd.s32 1, %s791
        $region490: #{experiment14_forward.1} parent=483 // loop_footer_branch
          %790 = sbr.rel target = $region486
        $region491: #{experiment14_forward.1} parent=483 // loop_exit
          _
      $region484: #{experiment14_forward.1} parent=468 // pred_fallthru
        _
    $region469: #{experiment14_forward.1} parent=1 // pred_fallthru
      _
    // Predicated region
    $region470: #{experiment14_forward.1} parent=1 // pred_check
      %p765 = pneg %p761
    $region471: #{experiment14_forward.1} parent=1 // pred_check_branch
      %767 = sbr.rel (%p765) target = $region473
    $region472: #{experiment14_forward.1} parent=1 // pred_region
      %s768 = sshllo.u32 0, 1
      loop: start=0, step=1, limit=1
      $region474: #{experiment14_forward.1} parent=472 // loop_pre_header
        _
      $region475: #{experiment14_forward.1} parent=472 // loop_header
        %s770 = sphi 0, %s774
        %p771 = scmp.ge.s32.totalorder %s770, 1
        %s775 = sphi %s757, %s757
        %s776 = sphi %s758, %s758
      $region476: #{experiment14_forward.1} parent=472 // loop_header_branch
        %773 = sbr.rel (%p771) target = $region480
      $region477: #{experiment14_forward.1} parent=472 // loop_body
        %v777 = vld [vmem:[%s775] sm:%s768]
        %778 = vst [vmem:[%s776] sm:%s768] %v777
      $region478: #{experiment14_forward.1} parent=472 // loop_footer
        %s774 = sadd.s32 1, %s770
      $region479: #{experiment14_forward.1} parent=472 // loop_footer_branch
        %769 = sbr.rel target = $region475
      $region480: #{experiment14_forward.1} parent=472 // loop_exit
        _
    $region473: #{experiment14_forward.1} parent=1 // pred_fallthru
      _
    // Predicated region
    $region492: #{experiment14_forward.1} parent=1 // pred_check
      _
    $region493: #{experiment14_forward.1} parent=1 // pred_check_branch
      %802 = sbr.rel (0) target = $region495
    $region494: #{experiment14_forward.1} parent=1 // pred_region
      %803 = vsyncadd %s759, 16
    $region495: #{experiment14_forward.1} parent=1 // pred_fallthru
      _
    %s804 = sld [smem:[#allocation5 + $0xf]]
    %s805 = scalar_lea.vmem %s1, %s804
    %s806 = scalar_lea.vmem [#allocation2], 73
    %s807 = scalar_lea.sflag [#allocation4], 15
    %p809 = scmp.lt.u32.totalorder 1, 8
    %p810 = pneg %p809
    // Predicated region
    $region496: #{experiment14_forward.1} parent=1 // pred_check
      _
    $region497: #{experiment14_forward.1} parent=1 // pred_check_branch
      %812 = sbr.rel (%p809) target = $region499
    $region498: #{experiment14_forward.1} parent=1 // pred_region
      %s827 = sand.u32 1, 7
      %p828 = scmp.eq.s32.totalorder %s827, 0
      %p829 = pneg %p828
      // Predicated region
      $region511: #{experiment14_forward.1} parent=498 // pred_check
        _
      $region512: #{experiment14_forward.1} parent=498 // pred_check_branch
        %831 = sbr.rel (%p828) target = $region514
      $region513: #{experiment14_forward.1} parent=498 // pred_region
        %s832 = sand.u32 1, 7
        %s833 = ssub.s32 1, %s832
        %s834 = scalar_lea.vmem %s805, %s833
        %s835 = ssub.s32 1, %s832
        %s836 = scalar_lea.vmem %s806, %s835 [#allocation2]
        %s837 = sshllo.u32 0, %s832
        loop: start=0, step=1, limit=1
        $region515: #{experiment14_forward.1} parent=513 // loop_pre_header
          _
        $region516: #{experiment14_forward.1} parent=513 // loop_header
          %s839 = sphi 0, %s843
          %p840 = scmp.ge.s32.totalorder %s839, 1
          %s844 = sphi %s834, %s834
          %s845 = sphi %s836, %s836
        $region517: #{experiment14_forward.1} parent=513 // loop_header_branch
          %842 = sbr.rel (%p840) target = $region521
        $region518: #{experiment14_forward.1} parent=513 // loop_body
          %v846 = vld [vmem:[%s844] sm:%s837]
          %847 = vst [vmem:[%s845] sm:%s837] %v846
        $region519: #{experiment14_forward.1} parent=513 // loop_footer
          %s843 = sadd.s32 1, %s839
        $region520: #{experiment14_forward.1} parent=513 // loop_footer_branch
          %838 = sbr.rel target = $region516
        $region521: #{experiment14_forward.1} parent=513 // loop_exit
          _
      $region514: #{experiment14_forward.1} parent=498 // pred_fallthru
        _
    $region499: #{experiment14_forward.1} parent=1 // pred_fallthru
      _
    // Predicated region
    $region500: #{experiment14_forward.1} parent=1 // pred_check
      %p813 = pneg %p809
    $region501: #{experiment14_forward.1} parent=1 // pred_check_branch
      %815 = sbr.rel (%p813) target = $region503
    $region502: #{experiment14_forward.1} parent=1 // pred_region
      %s816 = sshllo.u32 0, 1
      loop: start=0, step=1, limit=1
      $region504: #{experiment14_forward.1} parent=502 // loop_pre_header
        _
      $region505: #{experiment14_forward.1} parent=502 // loop_header
        %s818 = sphi 0, %s822
        %p819 = scmp.ge.s32.totalorder %s818, 1
        %s823 = sphi %s805, %s805
        %s824 = sphi %s806, %s806
      $region506: #{experiment14_forward.1} parent=502 // loop_header_branch
        %821 = sbr.rel (%p819) target = $region510
      $region507: #{experiment14_forward.1} parent=502 // loop_body
        %v825 = vld [vmem:[%s823] sm:%s816]
        %826 = vst [vmem:[%s824] sm:%s816] %v825
      $region508: #{experiment14_forward.1} parent=502 // loop_footer
        %s822 = sadd.s32 1, %s818
      $region509: #{experiment14_forward.1} parent=502 // loop_footer_branch
        %817 = sbr.rel target = $region505
      $region510: #{experiment14_forward.1} parent=502 // loop_exit
        _
    $region503: #{experiment14_forward.1} parent=1 // pred_fallthru
      _
    // Predicated region
    $region522: #{experiment14_forward.1} parent=1 // pred_check
      _
    $region523: #{experiment14_forward.1} parent=1 // pred_check_branch
      %850 = sbr.rel (0) target = $region525
    $region524: #{experiment14_forward.1} parent=1 // pred_region
      %851 = vsyncadd %s807, 16
    $region525: #{experiment14_forward.1} parent=1 // pred_fallthru
      _
    %s852 = smul.u32 1, 1
    %s853 = sshll.u32 %s852, 4
    %854 = dma.done [#allocation4], %s853
    %s855 = sshll.u32 %s852, 4
    %856 = dma.done %s135, %s855
    %s857 = sshll.u32 %s852, 4
    %858 = dma.done %s183, %s857
    %s859 = sshll.u32 %s852, 4
    %860 = dma.done %s231, %s859
    %s861 = sshll.u32 %s852, 4
    %862 = dma.done %s279, %s861
    %s863 = sshll.u32 %s852, 4
    %864 = dma.done %s327, %s863
    %s865 = sshll.u32 %s852, 4
    %866 = dma.done %s375, %s865
    %s867 = sshll.u32 %s852, 4
    %868 = dma.done %s423, %s867
    %s869 = sshll.u32 %s852, 4
    %870 = dma.done %s471, %s869
    %s871 = sshll.u32 %s852, 4
    %872 = dma.done %s519, %s871
    %s873 = sshll.u32 %s852, 4
    %874 = dma.done %s567, %s873
    %s875 = sshll.u32 %s852, 4
    %876 = dma.done %s615, %s875
    %s877 = sshll.u32 %s852, 4
    %878 = dma.done %s663, %s877
    %s879 = sshll.u32 %s852, 4
    %880 = dma.done %s711, %s879
    %s881 = sshll.u32 %s852, 4
    %882 = dma.done %s759, %s881
    %s883 = sshll.u32 %s852, 4
    %884 = dma.done %s807, %s883
    %v885 = vld [vmem:[#allocation2] sm:$0xff]
    %v886 = vld [vmem:[#allocation2 + $0x8] sm:$0xff]
    %v887 = vld [vmem:[#allocation2 + $0x10] sm:$0xff]
    %v888 = vld [vmem:[#allocation2 + $0x18] sm:$0xff]
    %v889 = vld [vmem:[#allocation2 + $0x20] sm:$0xff]
    %v890 = vld [vmem:[#allocation2 + $0x28] sm:$0xff]
    %v891 = vld [vmem:[#allocation2 + $0x30] sm:$0xff]
    %v892 = vld [vmem:[#allocation2 + $0x38] sm:$0xff]
    %v893 = vld [vmem:[#allocation9] sm:$0xff]
    %v894 = vld [vmem:[#allocation9 + $0x8] sm:$0xff]
    %v895 = vld [vmem:[#allocation9 + $0x10] sm:$0xff]
    %v896 = vld [vmem:[#allocation9 + $0x18] sm:$0xff]
    %v897 = vld [vmem:[#allocation9 + $0x20] sm:$0xff]
    %v898 = vld [vmem:[#allocation9 + $0x28] sm:$0xff]
    %v899 = vld [vmem:[#allocation9 + $0x30] sm:$0xff]
    %v900 = vld [vmem:[#allocation9 + $0x38] sm:$0xff]
    %v901 = vld [vmem:[#allocation9 + $0x40] sm:$0xff]
    %v902 = vld [vmem:[#allocation9 + $0x48] sm:$0xff]
    %v903 = vld [vmem:[#allocation9 + $0x50] sm:$0xff]
    %v904 = vld [vmem:[#allocation9 + $0x58] sm:$0xff]
    %v905 = vld [vmem:[#allocation9 + $0x60] sm:$0xff]
    %v906 = vld [vmem:[#allocation9 + $0x68] sm:$0xff]
    %v907 = vld [vmem:[#allocation9 + $0x70] sm:$0xff]
    %v908 = vld [vmem:[#allocation9 + $0x78] sm:$0xff]
    %v909 = vld [vmem:[#allocation2 + $0x40] sm:$0xff]
    %v910 = vld [vmem:[#allocation9 + $0x80] sm:$0xff]
    %v911 = vld [vmem:[#allocation9 + $0x88] sm:$0xff]
    %v912 = vld [vmem:[#allocation9 + $0x90] sm:$0xff]
    %v913 = vld [vmem:[#allocation9 + $0x98] sm:$0xff]
    %v914 = vld [vmem:[#allocation9 + $0xa0] sm:$0xff]
    %v915 = vld [vmem:[#allocation9 + $0xa8] sm:$0xff]
    %v916 = vld [vmem:[#allocation9 + $0xb0] sm:$0xff]
    %v917 = vld [vmem:[#allocation9 + $0xb8] sm:$0xff]
    %v918 = vld [vmem:[#allocation9 + $0xc0] sm:$0xff]
    %v919 = vld [vmem:[#allocation9 + $0xc8] sm:$0xff]
    %v920 = vld [vmem:[#allocation9 + $0xd0] sm:$0xff]
    %v921 = vld [vmem:[#allocation9 + $0xd8] sm:$0xff]
    %v922 = vld [vmem:[#allocation9 + $0xe0] sm:$0xff]
    %v923 = vld [vmem:[#allocation9 + $0xe8] sm:$0xff]
    %v924 = vld [vmem:[#allocation9 + $0xf0] sm:$0xff]
    %v925 = vld [vmem:[#allocation9 + $0xf8] sm:$0xff]
    %v927 = vsel %vm72, %v886, 0
    %v930 = vsel %vm72, %v887, 0
    %v933 = vsel %vm72, %v888, 0
    %v936 = vsel %vm72, %v889, 0
    %v939 = vsel %vm72, %v890, 0
    %v942 = vsel %vm72, %v891, 0
    %v945 = vsel %vm72, %v892, 0
    %v948 = vsel %vm72, %v909, 0
    %950 = vmatprep.subr.mxu0 %v911
    %951 = vmatpush1.msra.mxu0 %v910
    %952 = vmatprep.subr.mxu0 %v915
    %953 = vmatpush1.msra.mxu0 %v914
    %954 = vmatprep.subr.mxu0 %v919
    %955 = vmatpush1.msra.mxu0 %v918
    %956 = vmatprep.subr.mxu0 %v923
    %957 = vmatpush1.msra.mxu0 %v922
    %958 = vmatprep.subr.mxu0 0.0
    %959 = vmatpush1.msra.mxu0 0.0
    %960 = vmatprep.subr.mxu0 0.0
    %961 = vmatpush1.msra.mxu0 0.0
    %962 = vmatprep.subr.mxu0 0.0
    %963 = vmatpush1.msra.mxu0 0.0
    %964 = vmatprep.subr.mxu0 0.0
    %965 = vmatpush1.msra.mxu0 0.0
    %966 = vmatprep.subr.mxu0 0.0
    %967 = vmatpush1.msra.mxu0 0.0
    %968 = vmatprep.subr.mxu0 0.0
    %969 = vmatpush1.msra.mxu0 0.0
    %970 = vmatprep.subr.mxu0 0.0
    %971 = vmatpush1.msra.mxu0 0.0
    %972 = vmatprep.subr.mxu0 0.0
    %973 = vmatpush1.msra.mxu0 0.0
    %974 = vmatprep.subr.mxu0 0.0
    %975 = vmatpush1.msra.mxu0 0.0
    %976 = vmatprep.subr.mxu0 0.0
    %977 = vmatpush1.msra.mxu0 0.0
    %978 = vmatprep.subr.mxu0 0.0
    %979 = vmatpush1.msra.mxu0 0.0
    %980 = vmatprep.subr.mxu0 0.0
    %981 = vmatpush1.msra.mxu0 0.0
    %982 = vmatprep.subr.mxu0 0.0
    %983 = vmatpush1.msra.mxu0 0.0
    %984 = vmatprep.subr.mxu0 0.0
    %985 = vmatpush1.msra.mxu0 0.0
    %986 = vmatprep.subr.mxu0 0.0
    %987 = vmatpush1.msra.mxu0 0.0
    %988 = vmatprep.subr.mxu0 0.0
    %989 = vmatpush1.msra.mxu0 0.0
    %990 = vmatprep.subr.mxu0 0.0
    %991 = vmatpush1.msra.mxu0 0.0
    %992 = vmatprep.subr.mxu0 0.0
    %993 = vmatpush1.msra.mxu0 0.0
    %994 = vmatprep.subr.mxu0 0.0
    %995 = vmatpush1.msra.mxu0 0.0
    %996 = vmatprep.subr.mxu0 0.0
    %997 = vmatpush1.msra.mxu0 0.0
    %998 = vmatprep.subr.mxu0 0.0
    %999 = vmatpush1.msra.mxu0 0.0
    %1000 = vmatprep.subr.mxu0 0.0
    %1001 = vmatpush1.msra.mxu0 0.0
    %1002 = vmatprep.subr.mxu0 0.0
    %1003 = vmatpush1.msra.mxu0 0.0
    %1004 = vmatprep.subr.mxu0 0.0
    %1005 = vmatpush1.msra.mxu0 0.0
    %1006 = vmatprep.subr.mxu0 0.0
    %1007 = vmatpush1.msra.mxu0 0.0
    %1008 = vmatprep.subr.mxu0 0.0
    %1009 = vmatpush1.msra.mxu0 0.0
    %1010 = vmatprep.subr.mxu0 0.0
    %1011 = vmatpush1.msra.mxu0 0.0
    %1012 = vmatprep.subr.mxu0 0.0
    %1013 = vmatpush1.msra.mxu0 0.0
    %1014 = vmatprep.mubr.f32.mxu0 0.0
    %1015 = vmatmul.mubr.f32.gmra.mrb[0].mxu0 %v927
    %v1016 = vpop.f32.mrb[0].mxu0
    %v1017 = vadd.f32 0.0, %v1016
    %v1018 = vpop.f32.mrb[0].mxu0
    %v1019 = vadd.f32 0.0, %v1018
    %1020 = vmatprep.mubr.f32.mxu0 0.0
    %1021 = vmatmul.mubr.f32.gmra.mrb[0].mxu0 %v930
    %v1022 = vpop.f32.mrb[0].mxu0
    %v1023 = vadd.f32 0.0, %v1022
    %v1024 = vpop.f32.mrb[0].mxu0
    %v1025 = vadd.f32 0.0, %v1024
    %1026 = vmatprep.mubr.f32.mxu0 0.0
    %1027 = vmatmul.mubr.f32.gmra.mrb[0].mxu0 %v933
    %v1028 = vpop.f32.mrb[0].mxu0
    %v1029 = vadd.f32 0.0, %v1028
    %v1030 = vpop.f32.mrb[0].mxu0
    %v1031 = vadd.f32 0.0, %v1030
    %1032 = vmatprep.mubr.f32.mxu0 0.0
    %1033 = vmatmul.mubr.f32.gmra.mrb[0].mxu0 %v936
    %v1034 = vpop.f32.mrb[0].mxu0
    %v1035 = vadd.f32 0.0, %v1034
    %v1036 = vpop.f32.mrb[0].mxu0
    %v1037 = vadd.f32 0.0, %v1036
    %1038 = vmatprep.mubr.f32.mxu0 0.0
    %1039 = vmatmul.mubr.f32.gmra.mrb[0].mxu0 %v939
    %v1040 = vpop.f32.mrb[0].mxu0
    %v1041 = vadd.f32 0.0, %v1040
    %v1042 = vpop.f32.mrb[0].mxu0
    %v1043 = vadd.f32 0.0, %v1042
    %1044 = vmatprep.mubr.f32.mxu0 0.0
    %1045 = vmatmul.mubr.f32.gmra.mrb[0].mxu0 %v942
    %v1046 = vpop.f32.mrb[0].mxu0
    %v1047 = vadd.f32 0.0, %v1046
    %v1048 = vpop.f32.mrb[0].mxu0
    %v1049 = vadd.f32 0.0, %v1048
    %1050 = vmatprep.mubr.f32.mxu0 0.0
    %1051 = vmatmul.mubr.f32.gmra.mrb[0].mxu0 %v945
    %v1052 = vpop.f32.mrb[0].mxu0
    %v1053 = vadd.f32 0.0, %v1052
    %v1054 = vpop.f32.mrb[0].mxu0
    %v1055 = vadd.f32 0.0, %v1054
    %1056 = vmatprep.mubr.f32.mxu0 0.0
    %1057 = vmatmul.mubr.f32.gmra.mrb[0].mxu0 %v948
    %v1058 = vpop.f32.mrb[0].mxu0
    %v1059 = vadd.f32 0.0, %v1058
    %v1060 = vpop.f32.mrb[0].mxu0
    %v1061 = vadd.f32 0.0, %v1060
    %1062 = vdwg.mxu0
    %1063 = vmatprep.subr.mxu0 %v913
    %1064 = vmatpush1.msra.mxu0 %v912
    %1065 = vmatprep.subr.mxu0 %v917
    %1066 = vmatpush1.msra.mxu0 %v916
    %1067 = vmatprep.subr.mxu0 %v921
    %1068 = vmatpush1.msra.mxu0 %v920
    %1069 = vmatprep.subr.mxu0 %v925
    %1070 = vmatpush1.msra.mxu0 %v924
    %1071 = vmatprep.subr.mxu0 0.0
    %1072 = vmatpush1.msra.mxu0 0.0
    %1073 = vmatprep.subr.mxu0 0.0
    %1074 = vmatpush1.msra.mxu0 0.0
    %1075 = vmatprep.subr.mxu0 0.0
    %1076 = vmatpush1.msra.mxu0 0.0
    %1077 = vmatprep.subr.mxu0 0.0
    %1078 = vmatpush1.msra.mxu0 0.0
    %1079 = vmatprep.subr.mxu0 0.0
    %1080 = vmatpush1.msra.mxu0 0.0
    %1081 = vmatprep.subr.mxu0 0.0
    %1082 = vmatpush1.msra.mxu0 0.0
    %1083 = vmatprep.subr.mxu0 0.0
    %1084 = vmatpush1.msra.mxu0 0.0
    %1085 = vmatprep.subr.mxu0 0.0
    %1086 = vmatpush1.msra.mxu0 0.0
    %1087 = vmatprep.subr.mxu0 0.0
    %1088 = vmatpush1.msra.mxu0 0.0
    %1089 = vmatprep.subr.mxu0 0.0
    %1090 = vmatpush1.msra.mxu0 0.0
    %1091 = vmatprep.subr.mxu0 0.0
    %1092 = vmatpush1.msra.mxu0 0.0
    %1093 = vmatprep.subr.mxu0 0.0
    %1094 = vmatpush1.msra.mxu0 0.0
    %1095 = vmatprep.subr.mxu0 0.0
    %1096 = vmatpush1.msra.mxu0 0.0
    %1097 = vmatprep.subr.mxu0 0.0
    %1098 = vmatpush1.msra.mxu0 0.0
    %1099 = vmatprep.subr.mxu0 0.0
    %1100 = vmatpush1.msra.mxu0 0.0
    %1101 = vmatprep.subr.mxu0 0.0
    %1102 = vmatpush1.msra.mxu0 0.0
    %1103 = vmatprep.subr.mxu0 0.0
    %1104 = vmatpush1.msra.mxu0 0.0
    %1105 = vmatprep.subr.mxu0 0.0
    %1106 = vmatpush1.msra.mxu0 0.0
    %1107 = vmatprep.subr.mxu0 0.0
    %1108 = vmatpush1.msra.mxu0 0.0
    %1109 = vmatprep.subr.mxu0 0.0
    %1110 = vmatpush1.msra.mxu0 0.0
    %1111 = vmatprep.subr.mxu0 0.0
    %1112 = vmatpush1.msra.mxu0 0.0
    %1113 = vmatprep.subr.mxu0 0.0
    %1114 = vmatpush1.msra.mxu0 0.0
    %1115 = vmatprep.subr.mxu0 0.0
    %1116 = vmatpush1.msra.mxu0 0.0
    %1117 = vmatprep.subr.mxu0 0.0
    %1118 = vmatpush1.msra.mxu0 0.0
    %1119 = vmatprep.subr.mxu0 0.0
    %1120 = vmatpush1.msra.mxu0 0.0
    %1121 = vmatprep.subr.mxu0 0.0
    %1122 = vmatpush1.msra.mxu0 0.0
    %1123 = vmatprep.subr.mxu0 0.0
    %1124 = vmatpush1.msra.mxu0 0.0
    %1125 = vmatprep.subr.mxu0 0.0
    %1126 = vmatpush1.msra.mxu0 0.0
    %1127 = vmatprep.mubr.f32.mxu0 0.0
    %1128 = vmatmul.mubr.f32.gmra.mrb[0].mxu0 %v927
    %v1129 = vpop.f32.mrb[0].mxu0
    %v1130 = vadd.f32 0.0, %v1129
    %v1131 = vpop.f32.mrb[0].mxu0
    %v1132 = vadd.f32 0.0, %v1131
    %1133 = vmatprep.mubr.f32.mxu0 0.0
    %1134 = vmatmul.mubr.f32.gmra.mrb[0].mxu0 %v930
    %v1135 = vpop.f32.mrb[0].mxu0
    %v1136 = vadd.f32 0.0, %v1135
    %v1137 = vpop.f32.mrb[0].mxu0
    %v1138 = vadd.f32 0.0, %v1137
    %1139 = vmatprep.mubr.f32.mxu0 0.0
    %1140 = vmatmul.mubr.f32.gmra.mrb[0].mxu0 %v933
    %v1141 = vpop.f32.mrb[0].mxu0
    %v1142 = vadd.f32 0.0, %v1141
    %v1143 = vpop.f32.mrb[0].mxu0
    %v1144 = vadd.f32 0.0, %v1143
    %1145 = vmatprep.mubr.f32.mxu0 0.0
    %1146 = vmatmul.mubr.f32.gmra.mrb[0].mxu0 %v936
    %v1147 = vpop.f32.mrb[0].mxu0
    %v1148 = vadd.f32 0.0, %v1147
    %v1149 = vpop.f32.mrb[0].mxu0
    %v1150 = vadd.f32 0.0, %v1149
    %1151 = vmatprep.mubr.f32.mxu0 0.0
    %1152 = vmatmul.mubr.f32.gmra.mrb[0].mxu0 %v939
    %v1153 = vpop.f32.mrb[0].mxu0
    %v1154 = vadd.f32 0.0, %v1153
    %v1155 = vpop.f32.mrb[0].mxu0
    %v1156 = vadd.f32 0.0, %v1155
    %1157 = vmatprep.mubr.f32.mxu0 0.0
    %1158 = vmatmul.mubr.f32.gmra.mrb[0].mxu0 %v942
    %v1159 = vpop.f32.mrb[0].mxu0
    %v1160 = vadd.f32 0.0, %v1159
    %v1161 = vpop.f32.mrb[0].mxu0
    %v1162 = vadd.f32 0.0, %v1161
    %1163 = vmatprep.mubr.f32.mxu0 0.0
    %1164 = vmatmul.mubr.f32.gmra.mrb[0].mxu0 %v945
    %v1165 = vpop.f32.mrb[0].mxu0
    %v1166 = vadd.f32 0.0, %v1165
    %v1167 = vpop.f32.mrb[0].mxu0
    %v1168 = vadd.f32 0.0, %v1167
    %1169 = vmatprep.mubr.f32.mxu0 0.0
    %1170 = vmatmul.mubr.f32.gmra.mrb[0].mxu0 %v948
    %v1171 = vpop.f32.mrb[0].mxu0
    %v1172 = vadd.f32 0.0, %v1171
    %v1173 = vpop.f32.mrb[0].mxu0
    %v1174 = vadd.f32 0.0, %v1173
    %1175 = vdwg.mxu0
    %v1177 = vsel %vm72, %v885, 0
    %1179 = vmatprep.subr.mxu0 %v894
    %1180 = vmatpush1.msra.mxu0 %v893
    %1181 = vmatprep.subr.mxu0 %v898
    %1182 = vmatpush1.msra.mxu0 %v897
    %1183 = vmatprep.subr.mxu0 %v902
    %1184 = vmatpush1.msra.mxu0 %v901
    %1185 = vmatprep.subr.mxu0 %v906
    %1186 = vmatpush1.msra.mxu0 %v905
    %1187 = vmatprep.subr.mxu0 0.0
    %1188 = vmatpush1.msra.mxu0 0.0
    %1189 = vmatprep.subr.mxu0 0.0
    %1190 = vmatpush1.msra.mxu0 0.0
    %1191 = vmatprep.subr.mxu0 0.0
    %1192 = vmatpush1.msra.mxu0 0.0
    %1193 = vmatprep.subr.mxu0 0.0
    %1194 = vmatpush1.msra.mxu0 0.0
    %1195 = vmatprep.subr.mxu0 0.0
    %1196 = vmatpush1.msra.mxu0 0.0
    %1197 = vmatprep.subr.mxu0 0.0
    %1198 = vmatpush1.msra.mxu0 0.0
    %1199 = vmatprep.subr.mxu0 0.0
    %1200 = vmatpush1.msra.mxu0 0.0
    %1201 = vmatprep.subr.mxu0 0.0
    %1202 = vmatpush1.msra.mxu0 0.0
    %1203 = vmatprep.subr.mxu0 0.0
    %1204 = vmatpush1.msra.mxu0 0.0
    %1205 = vmatprep.subr.mxu0 0.0
    %1206 = vmatpush1.msra.mxu0 0.0
    %1207 = vmatprep.subr.mxu0 0.0
    %1208 = vmatpush1.msra.mxu0 0.0
    %1209 = vmatprep.subr.mxu0 0.0
    %1210 = vmatpush1.msra.mxu0 0.0
    %1211 = vmatprep.subr.mxu0 0.0
    %1212 = vmatpush1.msra.mxu0 0.0
    %1213 = vmatprep.subr.mxu0 0.0
    %1214 = vmatpush1.msra.mxu0 0.0
    %1215 = vmatprep.subr.mxu0 0.0
    %1216 = vmatpush1.msra.mxu0 0.0
    %1217 = vmatprep.subr.mxu0 0.0
    %1218 = vmatpush1.msra.mxu0 0.0
    %1219 = vmatprep.subr.mxu0 0.0
    %1220 = vmatpush1.msra.mxu0 0.0
    %1221 = vmatprep.subr.mxu0 0.0
    %1222 = vmatpush1.msra.mxu0 0.0
    %1223 = vmatprep.subr.mxu0 0.0
    %1224 = vmatpush1.msra.mxu0 0.0
    %1225 = vmatprep.subr.mxu0 0.0
    %1226 = vmatpush1.msra.mxu0 0.0
    %1227 = vmatprep.subr.mxu0 0.0
    %1228 = vmatpush1.msra.mxu0 0.0
    %1229 = vmatprep.subr.mxu0 0.0
    %1230 = vmatpush1.msra.mxu0 0.0
    %1231 = vmatprep.subr.mxu0 0.0
    %1232 = vmatpush1.msra.mxu0 0.0
    %1233 = vmatprep.subr.mxu0 0.0
    %1234 = vmatpush1.msra.mxu0 0.0
    %1235 = vmatprep.subr.mxu0 0.0
    %1236 = vmatpush1.msra.mxu0 0.0
    %1237 = vmatprep.subr.mxu0 0.0
    %1238 = vmatpush1.msra.mxu0 0.0
    %1239 = vmatprep.subr.mxu0 0.0
    %1240 = vmatpush1.msra.mxu0 0.0
    %1241 = vmatprep.subr.mxu0 0.0
    %1242 = vmatpush1.msra.mxu0 0.0
    %1243 = vmatprep.mubr.f32.mxu0 0.0
    %1244 = vmatmul.mubr.f32.gmra.mrb[0].mxu0 %v1177
    %v1245 = vpop.f32.mrb[0].mxu0
    %v1246 = vadd.f32 %v1017, %v1245
    %v1247 = vpop.f32.mrb[0].mxu0
    %v1248 = vadd.f32 %v1019, %v1247
    %1249 = vmatprep.mubr.f32.mxu0 0.0
    %1250 = vmatmul.mubr.f32.gmra.mrb[0].mxu0 %v927
    %v1251 = vpop.f32.mrb[0].mxu0
    %v1252 = vadd.f32 %v1023, %v1251
    %v1253 = vpop.f32.mrb[0].mxu0
    %v1254 = vadd.f32 %v1025, %v1253
    %1255 = vmatprep.mubr.f32.mxu0 0.0
    %1256 = vmatmul.mubr.f32.gmra.mrb[0].mxu0 %v930
    %v1257 = vpop.f32.mrb[0].mxu0
    %v1258 = vadd.f32 %v1029, %v1257
    %v1259 = vpop.f32.mrb[0].mxu0
    %v1260 = vadd.f32 %v1031, %v1259
    %1261 = vmatprep.mubr.f32.mxu0 0.0
    %1262 = vmatmul.mubr.f32.gmra.mrb[0].mxu0 %v933
    %v1263 = vpop.f32.mrb[0].mxu0
    %v1264 = vadd.f32 %v1035, %v1263
    %v1265 = vpop.f32.mrb[0].mxu0
    %v1266 = vadd.f32 %v1037, %v1265
    %1267 = vmatprep.mubr.f32.mxu0 0.0
    %1268 = vmatmul.mubr.f32.gmra.mrb[0].mxu0 %v936
    %v1269 = vpop.f32.mrb[0].mxu0
    %v1270 = vadd.f32 %v1041, %v1269
    %v1271 = vpop.f32.mrb[0].mxu0
    %v1272 = vadd.f32 %v1043, %v1271
    %1273 = vmatprep.mubr.f32.mxu0 0.0
    %1274 = vmatmul.mubr.f32.gmra.mrb[0].mxu0 %v939
    %v1275 = vpop.f32.mrb[0].mxu0
    %v1276 = vadd.f32 %v1047, %v1275
    %v1277 = vpop.f32.mrb[0].mxu0
    %v1278 = vadd.f32 %v1049, %v1277
    %1279 = vmatprep.mubr.f32.mxu0 0.0
    %1280 = vmatmul.mubr.f32.gmra.mrb[0].mxu0 %v942
    %v1281 = vpop.f32.mrb[0].mxu0
    %v1282 = vadd.f32 %v1053, %v1281
    %v1283 = vpop.f32.mrb[0].mxu0
    %v1284 = vadd.f32 %v1055, %v1283
    %1285 = vmatprep.mubr.f32.mxu0 0.0
    %1286 = vmatmul.mubr.f32.gmra.mrb[0].mxu0 %v945
    %v1287 = vpop.f32.mrb[0].mxu0
    %v1288 = vadd.f32 %v1059, %v1287
    %v1289 = vpop.f32.mrb[0].mxu0
    %v1290 = vadd.f32 %v1061, %v1289
    %1291 = vdwg.mxu0
    %1292 = vmatprep.subr.mxu0 %v896
    %1293 = vmatpush1.msra.mxu0 %v895
    %1294 = vmatprep.subr.mxu0 %v900
    %1295 = vmatpush1.msra.mxu0 %v899
    %1296 = vmatprep.subr.mxu0 %v904
    %1297 = vmatpush1.msra.mxu0 %v903
    %1298 = vmatprep.subr.mxu0 %v908
    %1299 = vmatpush1.msra.mxu0 %v907
    %1300 = vmatprep.subr.mxu0 0.0
    %1301 = vmatpush1.msra.mxu0 0.0
    %1302 = vmatprep.subr.mxu0 0.0
    %1303 = vmatpush1.msra.mxu0 0.0
    %1304 = vmatprep.subr.mxu0 0.0
    %1305 = vmatpush1.msra.mxu0 0.0
    %1306 = vmatprep.subr.mxu0 0.0
    %1307 = vmatpush1.msra.mxu0 0.0
    %1308 = vmatprep.subr.mxu0 0.0
    %1309 = vmatpush1.msra.mxu0 0.0
    %1310 = vmatprep.subr.mxu0 0.0
    %1311 = vmatpush1.msra.mxu0 0.0
    %1312 = vmatprep.subr.mxu0 0.0
    %1313 = vmatpush1.msra.mxu0 0.0
    %1314 = vmatprep.subr.mxu0 0.0
    %1315 = vmatpush1.msra.mxu0 0.0
    %1316 = vmatprep.subr.mxu0 0.0
    %1317 = vmatpush1.msra.mxu0 0.0
    %1318 = vmatprep.subr.mxu0 0.0
    %1319 = vmatpush1.msra.mxu0 0.0
    %1320 = vmatprep.subr.mxu0 0.0
    %1321 = vmatpush1.msra.mxu0 0.0
    %1322 = vmatprep.subr.mxu0 0.0
    %1323 = vmatpush1.msra.mxu0 0.0
    %1324 = vmatprep.subr.mxu0 0.0
    %1325 = vmatpush1.msra.mxu0 0.0
    %1326 = vmatprep.subr.mxu0 0.0
    %1327 = vmatpush1.msra.mxu0 0.0
    %1328 = vmatprep.subr.mxu0 0.0
    %1329 = vmatpush1.msra.mxu0 0.0
    %1330 = vmatprep.subr.mxu0 0.0
    %1331 = vmatpush1.msra.mxu0 0.0
    %1332 = vmatprep.subr.mxu0 0.0
    %1333 = vmatpush1.msra.mxu0 0.0
    %1334 = vmatprep.subr.mxu0 0.0
    %1335 = vmatpush1.msra.mxu0 0.0
    %1336 = vmatprep.subr.mxu0 0.0
    %1337 = vmatpush1.msra.mxu0 0.0
    %1338 = vmatprep.subr.mxu0 0.0
    %1339 = vmatpush1.msra.mxu0 0.0
    %1340 = vmatprep.subr.mxu0 0.0
    %1341 = vmatpush1.msra.mxu0 0.0
    %1342 = vmatprep.subr.mxu0 0.0
    %1343 = vmatpush1.msra.mxu0 0.0
    %1344 = vmatprep.subr.mxu0 0.0
    %1345 = vmatpush1.msra.mxu0 0.0
    %1346 = vmatprep.subr.mxu0 0.0
    %1347 = vmatpush1.msra.mxu0 0.0
    %1348 = vmatprep.subr.mxu0 0.0
    %1349 = vmatpush1.msra.mxu0 0.0
    %1350 = vmatprep.subr.mxu0 0.0
    %1351 = vmatpush1.msra.mxu0 0.0
    %1352 = vmatprep.subr.mxu0 0.0
    %1353 = vmatpush1.msra.mxu0 0.0
    %1354 = vmatprep.subr.mxu0 0.0
    %1355 = vmatpush1.msra.mxu0 0.0
    %1356 = vmatprep.mubr.f32.mxu0 0.0
    %1357 = vmatmul.mubr.f32.gmra.mrb[0].mxu0 %v1177
    %v1358 = vpop.f32.mrb[0].mxu0
    %v1359 = vadd.f32 %v1130, %v1358
    %v1360 = vpop.f32.mrb[0].mxu0
    %v1361 = vadd.f32 %v1132, %v1360
    %1362 = vmatprep.mubr.f32.mxu0 0.0
    %1363 = vmatmul.mubr.f32.gmra.mrb[0].mxu0 %v927
    %v1364 = vpop.f32.mrb[0].mxu0
    %v1365 = vadd.f32 %v1136, %v1364
    %v1366 = vpop.f32.mrb[0].mxu0
    %v1367 = vadd.f32 %v1138, %v1366
    %1368 = vmatprep.mubr.f32.mxu0 0.0
    %1369 = vmatmul.mubr.f32.gmra.mrb[0].mxu0 %v930
    %v1370 = vpop.f32.mrb[0].mxu0
    %v1371 = vadd.f32 %v1142, %v1370
    %v1372 = vpop.f32.mrb[0].mxu0
    %v1373 = vadd.f32 %v1144, %v1372
    %1374 = vmatprep.mubr.f32.mxu0 0.0
    %1375 = vmatmul.mubr.f32.gmra.mrb[0].mxu0 %v933
    %v1376 = vpop.f32.mrb[0].mxu0
    %v1377 = vadd.f32 %v1148, %v1376
    %v1378 = vpop.f32.mrb[0].mxu0
    %v1379 = vadd.f32 %v1150, %v1378
    %1380 = vmatprep.mubr.f32.mxu0 0.0
    %1381 = vmatmul.mubr.f32.gmra.mrb[0].mxu0 %v936
    %v1382 = vpop.f32.mrb[0].mxu0
    %v1383 = vadd.f32 %v1154, %v1382
    %v1384 = vpop.f32.mrb[0].mxu0
    %v1385 = vadd.f32 %v1156, %v1384
    %1386 = vmatprep.mubr.f32.mxu0 0.0
    %1387 = vmatmul.mubr.f32.gmra.mrb[0].mxu0 %v939
    %v1388 = vpop.f32.mrb[0].mxu0
    %v1389 = vadd.f32 %v1160, %v1388
    %v1390 = vpop.f32.mrb[0].mxu0
    %v1391 = vadd.f32 %v1162, %v1390
    %1392 = vmatprep.mubr.f32.mxu0 0.0
    %1393 = vmatmul.mubr.f32.gmra.mrb[0].mxu0 %v942
    %v1394 = vpop.f32.mrb[0].mxu0
    %v1395 = vadd.f32 %v1166, %v1394
    %v1396 = vpop.f32.mrb[0].mxu0
    %v1397 = vadd.f32 %v1168, %v1396
    %1398 = vmatprep.mubr.f32.mxu0 0.0
    %1399 = vmatmul.mubr.f32.gmra.mrb[0].mxu0 %v945
    %v1400 = vpop.f32.mrb[0].mxu0
    %v1401 = vadd.f32 %v1172, %v1400
    %v1402 = vpop.f32.mrb[0].mxu0
    %v1403 = vadd.f32 %v1174, %v1402
    %1404 = vdwg.mxu0
    %v1405 = vld [vmem:[#allocation2 + $0x10] sm:$0xff]
    %v1406 = vld [vmem:[#allocation2 + $0x18] sm:$0xff]
    %v1407 = vld [vmem:[#allocation2 + $0x20] sm:$0xff]
    %v1408 = vld [vmem:[#allocation2 + $0x28] sm:$0xff]
    %v1409 = vld [vmem:[#allocation2 + $0x30] sm:$0xff]
    %v1410 = vld [vmem:[#allocation2 + $0x38] sm:$0xff]
    %v1411 = vld [vmem:[#allocation2 + $0x40] sm:$0xff]
    %v1412 = vld [vmem:[#allocation2 + $0x48] sm:$0xff]
    %v1413 = vld [vmem:[#allocation9 + $0x100] sm:$0xff]
    %v1414 = vld [vmem:[#allocation9 + $0x108] sm:$0xff]
    %v1415 = vld [vmem:[#allocation9 + $0x110] sm:$0xff]
    %v1416 = vld [vmem:[#allocation9 + $0x118] sm:$0xff]
    %v1417 = vld [vmem:[#allocation9 + $0x120] sm:$0xff]
    %v1418 = vld [vmem:[#allocation9 + $0x128] sm:$0xff]
    %v1419 = vld [vmem:[#allocation9 + $0x130] sm:$0xff]
    %v1420 = vld [vmem:[#allocation9 + $0x138] sm:$0xff]
    %v1421 = vld [vmem:[#allocation9 + $0x140] sm:$0xff]
    %v1422 = vld [vmem:[#allocation9 + $0x148] sm:$0xff]
    %v1423 = vld [vmem:[#allocation9 + $0x150] sm:$0xff]
    %v1424 = vld [vmem:[#allocation9 + $0x158] sm:$0xff]
    %v1425 = vld [vmem:[#allocation9 + $0x160] sm:$0xff]
    %v1426 = vld [vmem:[#allocation9 + $0x168] sm:$0xff]
    %v1427 = vld [vmem:[#allocation9 + $0x170] sm:$0xff]
    %v1428 = vld [vmem:[#allocation9 + $0x178] sm:$0xff]
    %v1430 = vsel %vm72, %v1405, 0
    %v1433 = vsel %vm72, %v1406, 0
    %v1436 = vsel %vm72, %v1407, 0
    %v1439 = vsel %vm72, %v1408, 0
    %v1442 = vsel %vm72, %v1409, 0
    %v1445 = vsel %vm72, %v1410, 0
    %v1448 = vsel %vm72, %v1411, 0
    %v1451 = vsel %vm72, %v1412, 0
    %1453 = vmatprep.subr.mxu0 %v1414
    %1454 = vmatpush1.msra.mxu0 %v1413
    %1455 = vmatprep.subr.mxu0 %v1418
    %1456 = vmatpush1.msra.mxu0 %v1417
    %1457 = vmatprep.subr.mxu0 %v1422
    %1458 = vmatpush1.msra.mxu0 %v1421
    %1459 = vmatprep.subr.mxu0 %v1426
    %1460 = vmatpush1.msra.mxu0 %v1425
    %1461 = vmatprep.subr.mxu0 0.0
    %1462 = vmatpush1.msra.mxu0 0.0
    %1463 = vmatprep.subr.mxu0 0.0
    %1464 = vmatpush1.msra.mxu0 0.0
    %1465 = vmatprep.subr.mxu0 0.0
    %1466 = vmatpush1.msra.mxu0 0.0
    %1467 = vmatprep.subr.mxu0 0.0
    %1468 = vmatpush1.msra.mxu0 0.0
    %1469 = vmatprep.subr.mxu0 0.0
    %1470 = vmatpush1.msra.mxu0 0.0
    %1471 = vmatprep.subr.mxu0 0.0
    %1472 = vmatpush1.msra.mxu0 0.0
    %1473 = vmatprep.subr.mxu0 0.0
    %1474 = vmatpush1.msra.mxu0 0.0
    %1475 = vmatprep.subr.mxu0 0.0
    %1476 = vmatpush1.msra.mxu0 0.0
    %1477 = vmatprep.subr.mxu0 0.0
    %1478 = vmatpush1.msra.mxu0 0.0
    %1479 = vmatprep.subr.mxu0 0.0
    %1480 = vmatpush1.msra.mxu0 0.0
    %1481 = vmatprep.subr.mxu0 0.0
    %1482 = vmatpush1.msra.mxu0 0.0
    %1483 = vmatprep.subr.mxu0 0.0
    %1484 = vmatpush1.msra.mxu0 0.0
    %1485 = vmatprep.subr.mxu0 0.0
    %1486 = vmatpush1.msra.mxu0 0.0
    %1487 = vmatprep.subr.mxu0 0.0
    %1488 = vmatpush1.msra.mxu0 0.0
    %1489 = vmatprep.subr.mxu0 0.0
    %1490 = vmatpush1.msra.mxu0 0.0
    %1491 = vmatprep.subr.mxu0 0.0
    %1492 = vmatpush1.msra.mxu0 0.0
    %1493 = vmatprep.subr.mxu0 0.0
    %1494 = vmatpush1.msra.mxu0 0.0
    %1495 = vmatprep.subr.mxu0 0.0
    %1496 = vmatpush1.msra.mxu0 0.0
    %1497 = vmatprep.subr.mxu0 0.0
    %1498 = vmatpush1.msra.mxu0 0.0
    %1499 = vmatprep.subr.mxu0 0.0
    %1500 = vmatpush1.msra.mxu0 0.0
    %1501 = vmatprep.subr.mxu0 0.0
    %1502 = vmatpush1.msra.mxu0 0.0
    %1503 = vmatprep.subr.mxu0 0.0
    %1504 = vmatpush1.msra.mxu0 0.0
    %1505 = vmatprep.subr.mxu0 0.0
    %1506 = vmatpush1.msra.mxu0 0.0
    %1507 = vmatprep.subr.mxu0 0.0
    %1508 = vmatpush1.msra.mxu0 0.0
    %1509 = vmatprep.subr.mxu0 0.0
    %1510 = vmatpush1.msra.mxu0 0.0
    %1511 = vmatprep.subr.mxu0 0.0
    %1512 = vmatpush1.msra.mxu0 0.0
    %1513 = vmatprep.subr.mxu0 0.0
    %1514 = vmatpush1.msra.mxu0 0.0
    %1515 = vmatprep.subr.mxu0 0.0
    %1516 = vmatpush1.msra.mxu0 0.0
    %1517 = vmatprep.mubr.f32.mxu0 0.0
    %1518 = vmatmul.mubr.f32.gmra.mrb[0].mxu0 %v1430
    %v1519 = vpop.f32.mrb[0].mxu0
    %v1520 = vadd.f32 0.0, %v1519
    %v1521 = vpop.f32.mrb[0].mxu0
    %v1522 = vadd.f32 0.0, %v1521
    %1523 = vmatprep.mubr.f32.mxu0 0.0
    %1524 = vmatmul.mubr.f32.gmra.mrb[0].mxu0 %v1433
    %v1525 = vpop.f32.mrb[0].mxu0
    %v1526 = vadd.f32 0.0, %v1525
    %v1527 = vpop.f32.mrb[0].mxu0
    %v1528 = vadd.f32 0.0, %v1527
    %1529 = vmatprep.mubr.f32.mxu0 0.0
    %1530 = vmatmul.mubr.f32.gmra.mrb[0].mxu0 %v1436
    %v1531 = vpop.f32.mrb[0].mxu0
    %v1532 = vadd.f32 0.0, %v1531
    %v1533 = vpop.f32.mrb[0].mxu0
    %v1534 = vadd.f32 0.0, %v1533
    %1535 = vmatprep.mubr.f32.mxu0 0.0
    %1536 = vmatmul.mubr.f32.gmra.mrb[0].mxu0 %v1439
    %v1537 = vpop.f32.mrb[0].mxu0
    %v1538 = vadd.f32 0.0, %v1537
    %v1539 = vpop.f32.mrb[0].mxu0
    %v1540 = vadd.f32 0.0, %v1539
    %1541 = vmatprep.mubr.f32.mxu0 0.0
    %1542 = vmatmul.mubr.f32.gmra.mrb[0].mxu0 %v1442
    %v1543 = vpop.f32.mrb[0].mxu0
    %v1544 = vadd.f32 0.0, %v1543
    %v1545 = vpop.f32.mrb[0].mxu0
    %v1546 = vadd.f32 0.0, %v1545
    %1547 = vmatprep.mubr.f32.mxu0 0.0
    %1548 = vmatmul.mubr.f32.gmra.mrb[0].mxu0 %v1445
    %v1549 = vpop.f32.mrb[0].mxu0
    %v1550 = vadd.f32 0.0, %v1549
    %v1551 = vpop.f32.mrb[0].mxu0
    %v1552 = vadd.f32 0.0, %v1551
    %1553 = vmatprep.mubr.f32.mxu0 0.0
    %1554 = vmatmul.mubr.f32.gmra.mrb[0].mxu0 %v1448
    %v1555 = vpop.f32.mrb[0].mxu0
    %v1556 = vadd.f32 0.0, %v1555
    %v1557 = vpop.f32.mrb[0].mxu0
    %v1558 = vadd.f32 0.0, %v1557
    %1559 = vmatprep.mubr.f32.mxu0 0.0
    %1560 = vmatmul.mubr.f32.gmra.mrb[0].mxu0 %v1451
    %v1561 = vpop.f32.mrb[0].mxu0
    %v1562 = vadd.f32 0.0, %v1561
    %v1563 = vpop.f32.mrb[0].mxu0
    %v1564 = vadd.f32 0.0, %v1563
    %1565 = vdwg.mxu0
    %1566 = vmatprep.subr.mxu0 %v1416
    %1567 = vmatpush1.msra.mxu0 %v1415
    %1568 = vmatprep.subr.mxu0 %v1420
    %1569 = vmatpush1.msra.mxu0 %v1419
    %1570 = vmatprep.subr.mxu0 %v1424
    %1571 = vmatpush1.msra.mxu0 %v1423
    %1572 = vmatprep.subr.mxu0 %v1428
    %1573 = vmatpush1.msra.mxu0 %v1427
    %1574 = vmatprep.subr.mxu0 0.0
    %1575 = vmatpush1.msra.mxu0 0.0
    %1576 = vmatprep.subr.mxu0 0.0
    %1577 = vmatpush1.msra.mxu0 0.0
    %1578 = vmatprep.subr.mxu0 0.0
    %1579 = vmatpush1.msra.mxu0 0.0
    %1580 = vmatprep.subr.mxu0 0.0
    %1581 = vmatpush1.msra.mxu0 0.0
    %1582 = vmatprep.subr.mxu0 0.0
    %1583 = vmatpush1.msra.mxu0 0.0
    %1584 = vmatprep.subr.mxu0 0.0
    %1585 = vmatpush1.msra.mxu0 0.0
    %1586 = vmatprep.subr.mxu0 0.0
    %1587 = vmatpush1.msra.mxu0 0.0
    %1588 = vmatprep.subr.mxu0 0.0
    %1589 = vmatpush1.msra.mxu0 0.0
    %1590 = vmatprep.subr.mxu0 0.0
    %1591 = vmatpush1.msra.mxu0 0.0
    %1592 = vmatprep.subr.mxu0 0.0
    %1593 = vmatpush1.msra.mxu0 0.0
    %1594 = vmatprep.subr.mxu0 0.0
    %1595 = vmatpush1.msra.mxu0 0.0
    %1596 = vmatprep.subr.mxu0 0.0
    %1597 = vmatpush1.msra.mxu0 0.0
    %1598 = vmatprep.subr.mxu0 0.0
    %1599 = vmatpush1.msra.mxu0 0.0
    %1600 = vmatprep.subr.mxu0 0.0
    %1601 = vmatpush1.msra.mxu0 0.0
    %1602 = vmatprep.subr.mxu0 0.0
    %1603 = vmatpush1.msra.mxu0 0.0
    %1604 = vmatprep.subr.mxu0 0.0
    %1605 = vmatpush1.msra.mxu0 0.0
    %1606 = vmatprep.subr.mxu0 0.0
    %1607 = vmatpush1.msra.mxu0 0.0
    %1608 = vmatprep.subr.mxu0 0.0
    %1609 = vmatpush1.msra.mxu0 0.0
    %1610 = vmatprep.subr.mxu0 0.0
    %1611 = vmatpush1.msra.mxu0 0.0
    %1612 = vmatprep.subr.mxu0 0.0
    %1613 = vmatpush1.msra.mxu0 0.0
    %1614 = vmatprep.subr.mxu0 0.0
    %1615 = vmatpush1.msra.mxu0 0.0
    %1616 = vmatprep.subr.mxu0 0.0
    %1617 = vmatpush1.msra.mxu0 0.0
    %1618 = vmatprep.subr.mxu0 0.0
    %1619 = vmatpush1.msra.mxu0 0.0
    %1620 = vmatprep.subr.mxu0 0.0
    %1621 = vmatpush1.msra.mxu0 0.0
    %1622 = vmatprep.subr.mxu0 0.0
    %1623 = vmatpush1.msra.mxu0 0.0
    %1624 = vmatprep.subr.mxu0 0.0
    %1625 = vmatpush1.msra.mxu0 0.0
    %1626 = vmatprep.subr.mxu0 0.0
    %1627 = vmatpush1.msra.mxu0 0.0
    %1628 = vmatprep.subr.mxu0 0.0
    %1629 = vmatpush1.msra.mxu0 0.0
    %1630 = vmatprep.mubr.f32.mxu0 0.0
    %1631 = vmatmul.mubr.f32.gmra.mrb[0].mxu0 %v1430
    %v1632 = vpop.f32.mrb[0].mxu0
    %v1633 = vadd.f32 0.0, %v1632
    %v1634 = vpop.f32.mrb[0].mxu0
    %v1635 = vadd.f32 0.0, %v1634
    %1636 = vmatprep.mubr.f32.mxu0 0.0
    %1637 = vmatmul.mubr.f32.gmra.mrb[0].mxu0 %v1433
    %v1638 = vpop.f32.mrb[0].mxu0
    %v1639 = vadd.f32 0.0, %v1638
    %v1640 = vpop.f32.mrb[0].mxu0
    %v1641 = vadd.f32 0.0, %v1640
    %1642 = vmatprep.mubr.f32.mxu0 0.0
    %1643 = vmatmul.mubr.f32.gmra.mrb[0].mxu0 %v1436
    %v1644 = vpop.f32.mrb[0].mxu0
    %v1645 = vadd.f32 0.0, %v1644
    %v1646 = vpop.f32.mrb[0].mxu0
    %v1647 = vadd.f32 0.0, %v1646
    %1648 = vmatprep.mubr.f32.mxu0 0.0
    %1649 = vmatmul.mubr.f32.gmra.mrb[0].mxu0 %v1439
    %v1650 = vpop.f32.mrb[0].mxu0
    %v1651 = vadd.f32 0.0, %v1650
    %v1652 = vpop.f32.mrb[0].mxu0
    %v1653 = vadd.f32 0.0, %v1652
    %1654 = vmatprep.mubr.f32.mxu0 0.0
    %1655 = vmatmul.mubr.f32.gmra.mrb[0].mxu0 %v1442
    %v1656 = vpop.f32.mrb[0].mxu0
    %v1657 = vadd.f32 0.0, %v1656
    %v1658 = vpop.f32.mrb[0].mxu0
    %v1659 = vadd.f32 0.0, %v1658
    %1660 = vmatprep.mubr.f32.mxu0 0.0
    %1661 = vmatmul.mubr.f32.gmra.mrb[0].mxu0 %v1445
    %v1662 = vpop.f32.mrb[0].mxu0
    %v1663 = vadd.f32 0.0, %v1662
    %v1664 = vpop.f32.mrb[0].mxu0
    %v1665 = vadd.f32 0.0, %v1664
    %1666 = vmatprep.mubr.f32.mxu0 0.0
    %1667 = vmatmul.mubr.f32.gmra.mrb[0].mxu0 %v1448
    %v1668 = vpop.f32.mrb[0].mxu0
    %v1669 = vadd.f32 0.0, %v1668
    %v1670 = vpop.f32.mrb[0].mxu0
    %v1671 = vadd.f32 0.0, %v1670
    %1672 = vmatprep.mubr.f32.mxu0 0.0
    %1673 = vmatmul.mubr.f32.gmra.mrb[0].mxu0 %v1451
    %v1674 = vpop.f32.mrb[0].mxu0
    %v1675 = vadd.f32 0.0, %v1674
    %v1676 = vpop.f32.mrb[0].mxu0
    %v1677 = vadd.f32 0.0, %v1676
    %1678 = vdwg.mxu0
    %v1679 = vadd.f32 %v1246, %v1520
    %v1680 = vadd.f32 %v1248, %v1522
    %v1681 = vadd.f32 %v1359, %v1633
    %v1682 = vadd.f32 %v1361, %v1635
    %v1683 = vadd.f32 %v1252, %v1526
    %v1684 = vadd.f32 %v1254, %v1528
    %v1685 = vadd.f32 %v1365, %v1639
    %v1686 = vadd.f32 %v1367, %v1641
    %v1687 = vadd.f32 %v1258, %v1532
    %v1688 = vadd.f32 %v1260, %v1534
    %v1689 = vadd.f32 %v1371, %v1645
    %v1690 = vadd.f32 %v1373, %v1647
    %v1691 = vadd.f32 %v1264, %v1538
    %v1692 = vadd.f32 %v1266, %v1540
    %v1693 = vadd.f32 %v1377, %v1651
    %v1694 = vadd.f32 %v1379, %v1653
    %v1695 = vadd.f32 %v1270, %v1544
    %v1696 = vadd.f32 %v1272, %v1546
    %v1697 = vadd.f32 %v1383, %v1657
    %v1698 = vadd.f32 %v1385, %v1659
    %v1699 = vadd.f32 %v1276, %v1550
    %v1700 = vadd.f32 %v1278, %v1552
    %v1701 = vadd.f32 %v1389, %v1663
    %v1702 = vadd.f32 %v1391, %v1665
    %v1703 = vadd.f32 %v1282, %v1556
    %v1704 = vadd.f32 %v1284, %v1558
    %v1705 = vadd.f32 %v1395, %v1669
    %v1706 = vadd.f32 %v1397, %v1671
    %v1707 = vadd.f32 %v1288, %v1562
    %v1708 = vadd.f32 %v1290, %v1564
    %v1709 = vadd.f32 %v1401, %v1675
    %v1710 = vadd.f32 %v1403, %v1677
    %v1711 = vld [vmem:[#allocation2 + $0x18] sm:$0xff]
    %v1712 = vld [vmem:[#allocation2 + $0x20] sm:$0xff]
    %v1713 = vld [vmem:[#allocation2 + $0x28] sm:$0xff]
    %v1714 = vld [vmem:[#allocation2 + $0x30] sm:$0xff]
    %v1715 = vld [vmem:[#allocation2 + $0x38] sm:$0xff]
    %v1716 = vld [vmem:[#allocation2 + $0x40] sm:$0xff]
    %v1717 = vld [vmem:[#allocation2 + $0x48] sm:$0xff]
    %v1718 = vld [vmem:[#allocation2 + $0x50] sm:$0xff]
    %v1719 = vld [vmem:[#allocation9 + $0x180] sm:$0xff]
    %v1720 = vld [vmem:[#allocation9 + $0x188] sm:$0xff]
    %v1721 = vld [vmem:[#allocation9 + $0x190] sm:$0xff]
    %v1722 = vld [vmem:[#allocation9 + $0x198] sm:$0xff]
    %v1723 = vld [vmem:[#allocation9 + $0x1a0] sm:$0xff]
    %v1724 = vld [vmem:[#allocation9 + $0x1a8] sm:$0xff]
    %v1725 = vld [vmem:[#allocation9 + $0x1b0] sm:$0xff]
    %v1726 = vld [vmem:[#allocation9 + $0x1b8] sm:$0xff]
    %v1727 = vld [vmem:[#allocation9 + $0x1c0] sm:$0xff]
    %v1728 = vld [vmem:[#allocation9 + $0x1c8] sm:$0xff]
    %v1729 = vld [vmem:[#allocation9 + $0x1d0] sm:$0xff]
    %v1730 = vld [vmem:[#allocation9 + $0x1d8] sm:$0xff]
    %v1731 = vld [vmem:[#allocation9 + $0x1e0] sm:$0xff]
    %v1732 = vld [vmem:[#allocation9 + $0x1e8] sm:$0xff]
    %v1733 = vld [vmem:[#allocation9 + $0x1f0] sm:$0xff]
    %v1734 = vld [vmem:[#allocation9 + $0x1f8] sm:$0xff]
    %v1736 = vsel %vm72, %v1711, 0
    %v1739 = vsel %vm72, %v1712, 0
    %v1742 = vsel %vm72, %v1713, 0
    %v1745 = vsel %vm72, %v1714, 0
    %v1748 = vsel %vm72, %v1715, 0
    %v1751 = vsel %vm72, %v1716, 0
    %v1754 = vsel %vm72, %v1717, 0
    %v1757 = vsel %vm72, %v1718, 0
    %1759 = vmatprep.subr.mxu0 %v1720
    %1760 = vmatpush1.msra.mxu0 %v1719
    %1761 = vmatprep.subr.mxu0 %v1724
    %1762 = vmatpush1.msra.mxu0 %v1723
    %1763 = vmatprep.subr.mxu0 %v1728
    %1764 = vmatpush1.msra.mxu0 %v1727
    %1765 = vmatprep.subr.mxu0 %v1732
    %1766 = vmatpush1.msra.mxu0 %v1731
    %1767 = vmatprep.subr.mxu0 0.0
    %1768 = vmatpush1.msra.mxu0 0.0
    %1769 = vmatprep.subr.mxu0 0.0
    %1770 = vmatpush1.msra.mxu0 0.0
    %1771 = vmatprep.subr.mxu0 0.0
    %1772 = vmatpush1.msra.mxu0 0.0
    %1773 = vmatprep.subr.mxu0 0.0
    %1774 = vmatpush1.msra.mxu0 0.0
    %1775 = vmatprep.subr.mxu0 0.0
    %1776 = vmatpush1.msra.mxu0 0.0
    %1777 = vmatprep.subr.mxu0 0.0
    %1778 = vmatpush1.msra.mxu0 0.0
    %1779 = vmatprep.subr.mxu0 0.0
    %1780 = vmatpush1.msra.mxu0 0.0
    %1781 = vmatprep.subr.mxu0 0.0
    %1782 = vmatpush1.msra.mxu0 0.0
    %1783 = vmatprep.subr.mxu0 0.0
    %1784 = vmatpush1.msra.mxu0 0.0
    %1785 = vmatprep.subr.mxu0 0.0
    %1786 = vmatpush1.msra.mxu0 0.0
    %1787 = vmatprep.subr.mxu0 0.0
    %1788 = vmatpush1.msra.mxu0 0.0
    %1789 = vmatprep.subr.mxu0 0.0
    %1790 = vmatpush1.msra.mxu0 0.0
    %1791 = vmatprep.subr.mxu0 0.0
    %1792 = vmatpush1.msra.mxu0 0.0
    %1793 = vmatprep.subr.mxu0 0.0
    %1794 = vmatpush1.msra.mxu0 0.0
    %1795 = vmatprep.subr.mxu0 0.0
    %1796 = vmatpush1.msra.mxu0 0.0
    %1797 = vmatprep.subr.mxu0 0.0
    %1798 = vmatpush1.msra.mxu0 0.0
    %1799 = vmatprep.subr.mxu0 0.0
    %1800 = vmatpush1.msra.mxu0 0.0
    %1801 = vmatprep.subr.mxu0 0.0
    %1802 = vmatpush1.msra.mxu0 0.0
    %1803 = vmatprep.subr.mxu0 0.0
    %1804 = vmatpush1.msra.mxu0 0.0
    %1805 = vmatprep.subr.mxu0 0.0
    %1806 = vmatpush1.msra.mxu0 0.0
    %1807 = vmatprep.subr.mxu0 0.0
    %1808 = vmatpush1.msra.mxu0 0.0
    %1809 = vmatprep.subr.mxu0 0.0
    %1810 = vmatpush1.msra.mxu0 0.0
    %1811 = vmatprep.subr.mxu0 0.0
    %1812 = vmatpush1.msra.mxu0 0.0
    %1813 = vmatprep.subr.mxu0 0.0
    %1814 = vmatpush1.msra.mxu0 0.0
    %1815 = vmatprep.subr.mxu0 0.0
    %1816 = vmatpush1.msra.mxu0 0.0
    %1817 = vmatprep.subr.mxu0 0.0
    %1818 = vmatpush1.msra.mxu0 0.0
    %1819 = vmatprep.subr.mxu0 0.0
    %1820 = vmatpush1.msra.mxu0 0.0
    %1821 = vmatprep.subr.mxu0 0.0
    %1822 = vmatpush1.msra.mxu0 0.0
    %1823 = vmatprep.mubr.f32.mxu0 0.0
    %1824 = vmatmul.mubr.f32.gmra.mrb[0].mxu0 %v1736
    %v1825 = vpop.f32.mrb[0].mxu0
    %v1826 = vadd.f32 0.0, %v1825
    %v1827 = vpop.f32.mrb[0].mxu0
    %v1828 = vadd.f32 0.0, %v1827
    %1829 = vmatprep.mubr.f32.mxu0 0.0
    %1830 = vmatmul.mubr.f32.gmra.mrb[0].mxu0 %v1739
    %v1831 = vpop.f32.mrb[0].mxu0
    %v1832 = vadd.f32 0.0, %v1831
    %v1833 = vpop.f32.mrb[0].mxu0
    %v1834 = vadd.f32 0.0, %v1833
    %1835 = vmatprep.mubr.f32.mxu0 0.0
    %1836 = vmatmul.mubr.f32.gmra.mrb[0].mxu0 %v1742
    %v1837 = vpop.f32.mrb[0].mxu0
    %v1838 = vadd.f32 0.0, %v1837
    %v1839 = vpop.f32.mrb[0].mxu0
    %v1840 = vadd.f32 0.0, %v1839
    %1841 = vmatprep.mubr.f32.mxu0 0.0
    %1842 = vmatmul.mubr.f32.gmra.mrb[0].mxu0 %v1745
    %v1843 = vpop.f32.mrb[0].mxu0
    %v1844 = vadd.f32 0.0, %v1843
    %v1845 = vpop.f32.mrb[0].mxu0
    %v1846 = vadd.f32 0.0, %v1845
    %1847 = vmatprep.mubr.f32.mxu0 0.0
    %1848 = vmatmul.mubr.f32.gmra.mrb[0].mxu0 %v1748
    %v1849 = vpop.f32.mrb[0].mxu0
    %v1850 = vadd.f32 0.0, %v1849
    %v1851 = vpop.f32.mrb[0].mxu0
    %v1852 = vadd.f32 0.0, %v1851
    %1853 = vmatprep.mubr.f32.mxu0 0.0
    %1854 = vmatmul.mubr.f32.gmra.mrb[0].mxu0 %v1751
    %v1855 = vpop.f32.mrb[0].mxu0
    %v1856 = vadd.f32 0.0, %v1855
    %v1857 = vpop.f32.mrb[0].mxu0
    %v1858 = vadd.f32 0.0, %v1857
    %1859 = vmatprep.mubr.f32.mxu0 0.0
    %1860 = vmatmul.mubr.f32.gmra.mrb[0].mxu0 %v1754
    %v1861 = vpop.f32.mrb[0].mxu0
    %v1862 = vadd.f32 0.0, %v1861
    %v1863 = vpop.f32.mrb[0].mxu0
    %v1864 = vadd.f32 0.0, %v1863
    %1865 = vmatprep.mubr.f32.mxu0 0.0
    %1866 = vmatmul.mubr.f32.gmra.mrb[0].mxu0 %v1757
    %v1867 = vpop.f32.mrb[0].mxu0
    %v1868 = vadd.f32 0.0, %v1867
    %v1869 = vpop.f32.mrb[0].mxu0
    %v1870 = vadd.f32 0.0, %v1869
    %1871 = vdwg.mxu0
    %1872 = vmatprep.subr.mxu0 %v1722
    %1873 = vmatpush1.msra.mxu0 %v1721
    %1874 = vmatprep.subr.mxu0 %v1726
    %1875 = vmatpush1.msra.mxu0 %v1725
    %1876 = vmatprep.subr.mxu0 %v1730
    %1877 = vmatpush1.msra.mxu0 %v1729
    %1878 = vmatprep.subr.mxu0 %v1734
    %1879 = vmatpush1.msra.mxu0 %v1733
    %1880 = vmatprep.subr.mxu0 0.0
    %1881 = vmatpush1.msra.mxu0 0.0
    %1882 = vmatprep.subr.mxu0 0.0
    %1883 = vmatpush1.msra.mxu0 0.0
    %1884 = vmatprep.subr.mxu0 0.0
    %1885 = vmatpush1.msra.mxu0 0.0
    %1886 = vmatprep.subr.mxu0 0.0
    %1887 = vmatpush1.msra.mxu0 0.0
    %1888 = vmatprep.subr.mxu0 0.0
    %1889 = vmatpush1.msra.mxu0 0.0
    %1890 = vmatprep.subr.mxu0 0.0
    %1891 = vmatpush1.msra.mxu0 0.0
    %1892 = vmatprep.subr.mxu0 0.0
    %1893 = vmatpush1.msra.mxu0 0.0
    %1894 = vmatprep.subr.mxu0 0.0
    %1895 = vmatpush1.msra.mxu0 0.0
    %1896 = vmatprep.subr.mxu0 0.0
    %1897 = vmatpush1.msra.mxu0 0.0
    %1898 = vmatprep.subr.mxu0 0.0
    %1899 = vmatpush1.msra.mxu0 0.0
    %1900 = vmatprep.subr.mxu0 0.0
    %1901 = vmatpush1.msra.mxu0 0.0
    %1902 = vmatprep.subr.mxu0 0.0
    %1903 = vmatpush1.msra.mxu0 0.0
    %1904 = vmatprep.subr.mxu0 0.0
    %1905 = vmatpush1.msra.mxu0 0.0
    %1906 = vmatprep.subr.mxu0 0.0
    %1907 = vmatpush1.msra.mxu0 0.0
    %1908 = vmatprep.subr.mxu0 0.0
    %1909 = vmatpush1.msra.mxu0 0.0
    %1910 = vmatprep.subr.mxu0 0.0
    %1911 = vmatpush1.msra.mxu0 0.0
    %1912 = vmatprep.subr.mxu0 0.0
    %1913 = vmatpush1.msra.mxu0 0.0
    %1914 = vmatprep.subr.mxu0 0.0
    %1915 = vmatpush1.msra.mxu0 0.0
    %1916 = vmatprep.subr.mxu0 0.0
    %1917 = vmatpush1.msra.mxu0 0.0
    %1918 = vmatprep.subr.mxu0 0.0
    %1919 = vmatpush1.msra.mxu0 0.0
    %1920 = vmatprep.subr.mxu0 0.0
    %1921 = vmatpush1.msra.mxu0 0.0
    %1922 = vmatprep.subr.mxu0 0.0
    %1923 = vmatpush1.msra.mxu0 0.0
    %1924 = vmatprep.subr.mxu0 0.0
    %1925 = vmatpush1.msra.mxu0 0.0
    %1926 = vmatprep.subr.mxu0 0.0
    %1927 = vmatpush1.msra.mxu0 0.0
    %1928 = vmatprep.subr.mxu0 0.0
    %1929 = vmatpush1.msra.mxu0 0.0
    %1930 = vmatprep.subr.mxu0 0.0
    %1931 = vmatpush1.msra.mxu0 0.0
    %1932 = vmatprep.subr.mxu0 0.0
    %1933 = vmatpush1.msra.mxu0 0.0
    %1934 = vmatprep.subr.mxu0 0.0
    %1935 = vmatpush1.msra.mxu0 0.0
    %1936 = vmatprep.mubr.f32.mxu0 0.0
    %1937 = vmatmul.mubr.f32.gmra.mrb[0].mxu0 %v1736
    %v1938 = vpop.f32.mrb[0].mxu0
    %v1939 = vadd.f32 0.0, %v1938
    %v1940 = vpop.f32.mrb[0].mxu0
    %v1941 = vadd.f32 0.0, %v1940
    %1942 = vmatprep.mubr.f32.mxu0 0.0
    %1943 = vmatmul.mubr.f32.gmra.mrb[0].mxu0 %v1739
    %v1944 = vpop.f32.mrb[0].mxu0
    %v1945 = vadd.f32 0.0, %v1944
    %v1946 = vpop.f32.mrb[0].mxu0
    %v1947 = vadd.f32 0.0, %v1946
    %1948 = vmatprep.mubr.f32.mxu0 0.0
    %1949 = vmatmul.mubr.f32.gmra.mrb[0].mxu0 %v1742
    %v1950 = vpop.f32.mrb[0].mxu0
    %v1951 = vadd.f32 0.0, %v1950
    %v1952 = vpop.f32.mrb[0].mxu0
    %v1953 = vadd.f32 0.0, %v1952
    %1954 = vmatprep.mubr.f32.mxu0 0.0
    %1955 = vmatmul.mubr.f32.gmra.mrb[0].mxu0 %v1745
    %v1956 = vpop.f32.mrb[0].mxu0
    %v1957 = vadd.f32 0.0, %v1956
    %v1958 = vpop.f32.mrb[0].mxu0
    %v1959 = vadd.f32 0.0, %v1958
    %1960 = vmatprep.mubr.f32.mxu0 0.0
    %1961 = vmatmul.mubr.f32.gmra.mrb[0].mxu0 %v1748
    %v1962 = vpop.f32.mrb[0].mxu0
    %v1963 = vadd.f32 0.0, %v1962
    %v1964 = vpop.f32.mrb[0].mxu0
    %v1965 = vadd.f32 0.0, %v1964
    %1966 = vmatprep.mubr.f32.mxu0 0.0
    %1967 = vmatmul.mubr.f32.gmra.mrb[0].mxu0 %v1751
    %v1968 = vpop.f32.mrb[0].mxu0
    %v1969 = vadd.f32 0.0, %v1968
    %v1970 = vpop.f32.mrb[0].mxu0
    %v1971 = vadd.f32 0.0, %v1970
    %1972 = vmatprep.mubr.f32.mxu0 0.0
    %1973 = vmatmul.mubr.f32.gmra.mrb[0].mxu0 %v1754
    %v1974 = vpop.f32.mrb[0].mxu0
    %v1975 = vadd.f32 0.0, %v1974
    %v1976 = vpop.f32.mrb[0].mxu0
    %v1977 = vadd.f32 0.0, %v1976
    %1978 = vmatprep.mubr.f32.mxu0 0.0
    %1979 = vmatmul.mubr.f32.gmra.mrb[0].mxu0 %v1757
    %v1980 = vpop.f32.mrb[0].mxu0
    %v1981 = vadd.f32 0.0, %v1980
    %v1982 = vpop.f32.mrb[0].mxu0
    %v1983 = vadd.f32 0.0, %v1982
    %1984 = vdwg.mxu0
    %v1985 = vadd.f32 %v1679, %v1826
    %v1986 = vadd.f32 %v1680, %v1828
    %v1987 = vadd.f32 %v1681, %v1939
    %v1988 = vadd.f32 %v1682, %v1941
    %v1989 = vadd.f32 %v1683, %v1832
    %v1990 = vadd.f32 %v1684, %v1834
    %v1991 = vadd.f32 %v1685, %v1945
    %v1992 = vadd.f32 %v1686, %v1947
    %v1993 = vadd.f32 %v1687, %v1838
    %v1994 = vadd.f32 %v1688, %v1840
    %v1995 = vadd.f32 %v1689, %v1951
    %v1996 = vadd.f32 %v1690, %v1953
    %v1997 = vadd.f32 %v1691, %v1844
    %v1998 = vadd.f32 %v1692, %v1846
    %v1999 = vadd.f32 %v1693, %v1957
    %v2000 = vadd.f32 %v1694, %v1959
    %v2001 = vadd.f32 %v1695, %v1850
    %v2002 = vadd.f32 %v1696, %v1852
    %v2003 = vadd.f32 %v1697, %v1963
    %v2004 = vadd.f32 %v1698, %v1965
    %v2005 = vadd.f32 %v1699, %v1856
    %v2006 = vadd.f32 %v1700, %v1858
    %v2007 = vadd.f32 %v1701, %v1969
    %v2008 = vadd.f32 %v1702, %v1971
    %v2009 = vadd.f32 %v1703, %v1862
    %v2010 = vadd.f32 %v1704, %v1864
    %v2011 = vadd.f32 %v1705, %v1975
    %v2012 = vadd.f32 %v1706, %v1977
    %v2013 = vadd.f32 %v1707, %v1868
    %v2014 = vadd.f32 %v1708, %v1870
    %v2015 = vadd.f32 %v1709, %v1981
    %v2016 = vadd.f32 %v1710, %v1983
    %v2017 = vld [vmem:[#allocation2 + $0x20] sm:$0xff]
    %v2018 = vld [vmem:[#allocation2 + $0x28] sm:$0xff]
    %v2019 = vld [vmem:[#allocation2 + $0x30] sm:$0xff]
    %v2020 = vld [vmem:[#allocation2 + $0x38] sm:$0xff]
    %v2021 = vld [vmem:[#allocation2 + $0x40] sm:$0xff]
    %v2022 = vld [vmem:[#allocation2 + $0x48] sm:$0xff]
    %v2023 = vld [vmem:[#allocation2 + $0x50] sm:$0xff]
    %v2024 = vld [vmem:[#allocation2 + $0x58] sm:$0xff]
    %v2025 = vld [vmem:[#allocation9 + $0x200] sm:$0xff]
    %v2026 = vld [vmem:[#allocation9 + $0x208] sm:$0xff]
    %v2027 = vld [vmem:[#allocation9 + $0x210] sm:$0xff]
    %v2028 = vld [vmem:[#allocation9 + $0x218] sm:$0xff]
    %v2029 = vld [vmem:[#allocation9 + $0x220] sm:$0xff]
    %v2030 = vld [vmem:[#allocation9 + $0x228] sm:$0xff]
    %v2031 = vld [vmem:[#allocation9 + $0x230] sm:$0xff]
    %v2032 = vld [vmem:[#allocation9 + $0x238] sm:$0xff]
    %v2033 = vld [vmem:[#allocation9 + $0x240] sm:$0xff]
    %v2034 = vld [vmem:[#allocation9 + $0x248] sm:$0xff]
    %v2035 = vld [vmem:[#allocation9 + $0x250] sm:$0xff]
    %v2036 = vld [vmem:[#allocation9 + $0x258] sm:$0xff]
    %v2037 = vld [vmem:[#allocation9 + $0x260] sm:$0xff]
    %v2038 = vld [vmem:[#allocation9 + $0x268] sm:$0xff]
    %v2039 = vld [vmem:[#allocation9 + $0x270] sm:$0xff]
    %v2040 = vld [vmem:[#allocation9 + $0x278] sm:$0xff]
    %v2042 = vsel %vm72, %v2017, 0
    %v2045 = vsel %vm72, %v2018, 0
    %v2048 = vsel %vm72, %v2019, 0
    %v2051 = vsel %vm72, %v2020, 0
    %v2054 = vsel %vm72, %v2021, 0
    %v2057 = vsel %vm72, %v2022, 0
    %v2060 = vsel %vm72, %v2023, 0
    %v2063 = vsel %vm72, %v2024, 0
    %2065 = vmatprep.subr.mxu0 %v2026
    %2066 = vmatpush1.msra.mxu0 %v2025
    %2067 = vmatprep.subr.mxu0 %v2030
    %2068 = vmatpush1.msra.mxu0 %v2029
    %2069 = vmatprep.subr.mxu0 %v2034
    %2070 = vmatpush1.msra.mxu0 %v2033
    %2071 = vmatprep.subr.mxu0 %v2038
    %2072 = vmatpush1.msra.mxu0 %v2037
    %2073 = vmatprep.subr.mxu0 0.0
    %2074 = vmatpush1.msra.mxu0 0.0
    %2075 = vmatprep.subr.mxu0 0.0
    %2076 = vmatpush1.msra.mxu0 0.0
    %2077 = vmatprep.subr.mxu0 0.0
    %2078 = vmatpush1.msra.mxu0 0.0
    %2079 = vmatprep.subr.mxu0 0.0
    %2080 = vmatpush1.msra.mxu0 0.0
    %2081 = vmatprep.subr.mxu0 0.0
    %2082 = vmatpush1.msra.mxu0 0.0
    %2083 = vmatprep.subr.mxu0 0.0
    %2084 = vmatpush1.msra.mxu0 0.0
    %2085 = vmatprep.subr.mxu0 0.0
    %2086 = vmatpush1.msra.mxu0 0.0
    %2087 = vmatprep.subr.mxu0 0.0
    %2088 = vmatpush1.msra.mxu0 0.0
    %2089 = vmatprep.subr.mxu0 0.0
    %2090 = vmatpush1.msra.mxu0 0.0
    %2091 = vmatprep.subr.mxu0 0.0
    %2092 = vmatpush1.msra.mxu0 0.0
    %2093 = vmatprep.subr.mxu0 0.0
    %2094 = vmatpush1.msra.mxu0 0.0
    %2095 = vmatprep.subr.mxu0 0.0
    %2096 = vmatpush1.msra.mxu0 0.0
    %2097 = vmatprep.subr.mxu0 0.0
    %2098 = vmatpush1.msra.mxu0 0.0
    %2099 = vmatprep.subr.mxu0 0.0
    %2100 = vmatpush1.msra.mxu0 0.0
    %2101 = vmatprep.subr.mxu0 0.0
    %2102 = vmatpush1.msra.mxu0 0.0
    %2103 = vmatprep.subr.mxu0 0.0
    %2104 = vmatpush1.msra.mxu0 0.0
    %2105 = vmatprep.subr.mxu0 0.0
    %2106 = vmatpush1.msra.mxu0 0.0
    %2107 = vmatprep.subr.mxu0 0.0
    %2108 = vmatpush1.msra.mxu0 0.0
    %2109 = vmatprep.subr.mxu0 0.0
    %2110 = vmatpush1.msra.mxu0 0.0
    %2111 = vmatprep.subr.mxu0 0.0
    %2112 = vmatpush1.msra.mxu0 0.0
    %2113 = vmatprep.subr.mxu0 0.0
    %2114 = vmatpush1.msra.mxu0 0.0
    %2115 = vmatprep.subr.mxu0 0.0
    %2116 = vmatpush1.msra.mxu0 0.0
    %2117 = vmatprep.subr.mxu0 0.0
    %2118 = vmatpush1.msra.mxu0 0.0
    %2119 = vmatprep.subr.mxu0 0.0
    %2120 = vmatpush1.msra.mxu0 0.0
    %2121 = vmatprep.subr.mxu0 0.0
    %2122 = vmatpush1.msra.mxu0 0.0
    %2123 = vmatprep.subr.mxu0 0.0
    %2124 = vmatpush1.msra.mxu0 0.0
    %2125 = vmatprep.subr.mxu0 0.0
    %2126 = vmatpush1.msra.mxu0 0.0
    %2127 = vmatprep.subr.mxu0 0.0
    %2128 = vmatpush1.msra.mxu0 0.0
    %2129 = vmatprep.mubr.f32.mxu0 0.0
    %2130 = vmatmul.mubr.f32.gmra.mrb[0].mxu0 %v2042
    %v2131 = vpop.f32.mrb[0].mxu0
    %v2132 = vadd.f32 0.0, %v2131
    %v2133 = vpop.f32.mrb[0].mxu0
    %v2134 = vadd.f32 0.0, %v2133
    %2135 = vmatprep.mubr.f32.mxu0 0.0
    %2136 = vmatmul.mubr.f32.gmra.mrb[0].mxu0 %v2045
    %v2137 = vpop.f32.mrb[0].mxu0
    %v2138 = vadd.f32 0.0, %v2137
    %v2139 = vpop.f32.mrb[0].mxu0
    %v2140 = vadd.f32 0.0, %v2139
    %2141 = vmatprep.mubr.f32.mxu0 0.0
    %2142 = vmatmul.mubr.f32.gmra.mrb[0].mxu0 %v2048
    %v2143 = vpop.f32.mrb[0].mxu0
    %v2144 = vadd.f32 0.0, %v2143
    %v2145 = vpop.f32.mrb[0].mxu0
    %v2146 = vadd.f32 0.0, %v2145
    %2147 = vmatprep.mubr.f32.mxu0 0.0
    %2148 = vmatmul.mubr.f32.gmra.mrb[0].mxu0 %v2051
    %v2149 = vpop.f32.mrb[0].mxu0
    %v2150 = vadd.f32 0.0, %v2149
    %v2151 = vpop.f32.mrb[0].mxu0
    %v2152 = vadd.f32 0.0, %v2151
    %2153 = vmatprep.mubr.f32.mxu0 0.0
    %2154 = vmatmul.mubr.f32.gmra.mrb[0].mxu0 %v2054
    %v2155 = vpop.f32.mrb[0].mxu0
    %v2156 = vadd.f32 0.0, %v2155
    %v2157 = vpop.f32.mrb[0].mxu0
    %v2158 = vadd.f32 0.0, %v2157
    %2159 = vmatprep.mubr.f32.mxu0 0.0
    %2160 = vmatmul.mubr.f32.gmra.mrb[0].mxu0 %v2057
    %v2161 = vpop.f32.mrb[0].mxu0
    %v2162 = vadd.f32 0.0, %v2161
    %v2163 = vpop.f32.mrb[0].mxu0
    %v2164 = vadd.f32 0.0, %v2163
    %2165 = vmatprep.mubr.f32.mxu0 0.0
    %2166 = vmatmul.mubr.f32.gmra.mrb[0].mxu0 %v2060
    %v2167 = vpop.f32.mrb[0].mxu0
    %v2168 = vadd.f32 0.0, %v2167
    %v2169 = vpop.f32.mrb[0].mxu0
    %v2170 = vadd.f32 0.0, %v2169
    %2171 = vmatprep.mubr.f32.mxu0 0.0
    %2172 = vmatmul.mubr.f32.gmra.mrb[0].mxu0 %v2063
    %v2173 = vpop.f32.mrb[0].mxu0
    %v2174 = vadd.f32 0.0, %v2173
    %v2175 = vpop.f32.mrb[0].mxu0
    %v2176 = vadd.f32 0.0, %v2175
    %2177 = vdwg.mxu0
    %2178 = vmatprep.subr.mxu0 %v2028
    %2179 = vmatpush1.msra.mxu0 %v2027
    %2180 = vmatprep.subr.mxu0 %v2032
    %2181 = vmatpush1.msra.mxu0 %v2031
    %2182 = vmatprep.subr.mxu0 %v2036
    %2183 = vmatpush1.msra.mxu0 %v2035
    %2184 = vmatprep.subr.mxu0 %v2040
    %2185 = vmatpush1.msra.mxu0 %v2039
    %2186 = vmatprep.subr.mxu0 0.0
    %2187 = vmatpush1.msra.mxu0 0.0
    %2188 = vmatprep.subr.mxu0 0.0
    %2189 = vmatpush1.msra.mxu0 0.0
    %2190 = vmatprep.subr.mxu0 0.0
    %2191 = vmatpush1.msra.mxu0 0.0
    %2192 = vmatprep.subr.mxu0 0.0
    %2193 = vmatpush1.msra.mxu0 0.0
    %2194 = vmatprep.subr.mxu0 0.0
    %2195 = vmatpush1.msra.mxu0 0.0
    %2196 = vmatprep.subr.mxu0 0.0
    %2197 = vmatpush1.msra.mxu0 0.0
    %2198 = vmatprep.subr.mxu0 0.0
    %2199 = vmatpush1.msra.mxu0 0.0
    %2200 = vmatprep.subr.mxu0 0.0
    %2201 = vmatpush1.msra.mxu0 0.0
    %2202 = vmatprep.subr.mxu0 0.0
    %2203 = vmatpush1.msra.mxu0 0.0
    %2204 = vmatprep.subr.mxu0 0.0
    %2205 = vmatpush1.msra.mxu0 0.0
    %2206 = vmatprep.subr.mxu0 0.0
    %2207 = vmatpush1.msra.mxu0 0.0
    %2208 = vmatprep.subr.mxu0 0.0
    %2209 = vmatpush1.msra.mxu0 0.0
    %2210 = vmatprep.subr.mxu0 0.0
    %2211 = vmatpush1.msra.mxu0 0.0
    %2212 = vmatprep.subr.mxu0 0.0
    %2213 = vmatpush1.msra.mxu0 0.0
    %2214 = vmatprep.subr.mxu0 0.0
    %2215 = vmatpush1.msra.mxu0 0.0
    %2216 = vmatprep.subr.mxu0 0.0
    %2217 = vmatpush1.msra.mxu0 0.0
    %2218 = vmatprep.subr.mxu0 0.0
    %2219 = vmatpush1.msra.mxu0 0.0
    %2220 = vmatprep.subr.mxu0 0.0
    %2221 = vmatpush1.msra.mxu0 0.0
    %2222 = vmatprep.subr.mxu0 0.0
    %2223 = vmatpush1.msra.mxu0 0.0
    %2224 = vmatprep.subr.mxu0 0.0
    %2225 = vmatpush1.msra.mxu0 0.0
    %2226 = vmatprep.subr.mxu0 0.0
    %2227 = vmatpush1.msra.mxu0 0.0
    %2228 = vmatprep.subr.mxu0 0.0
    %2229 = vmatpush1.msra.mxu0 0.0
    %2230 = vmatprep.subr.mxu0 0.0
    %2231 = vmatpush1.msra.mxu0 0.0
    %2232 = vmatprep.subr.mxu0 0.0
    %2233 = vmatpush1.msra.mxu0 0.0
    %2234 = vmatprep.subr.mxu0 0.0
    %2235 = vmatpush1.msra.mxu0 0.0
    %2236 = vmatprep.subr.mxu0 0.0
    %2237 = vmatpush1.msra.mxu0 0.0
    %2238 = vmatprep.subr.mxu0 0.0
    %2239 = vmatpush1.msra.mxu0 0.0
    %2240 = vmatprep.subr.mxu0 0.0
    %2241 = vmatpush1.msra.mxu0 0.0
    %2242 = vmatprep.mubr.f32.mxu0 0.0
    %2243 = vmatmul.mubr.f32.gmra.mrb[0].mxu0 %v2042
    %v2244 = vpop.f32.mrb[0].mxu0
    %v2245 = vadd.f32 0.0, %v2244
    %v2246 = vpop.f32.mrb[0].mxu0
    %v2247 = vadd.f32 0.0, %v2246
    %2248 = vmatprep.mubr.f32.mxu0 0.0
    %2249 = vmatmul.mubr.f32.gmra.mrb[0].mxu0 %v2045
    %v2250 = vpop.f32.mrb[0].mxu0
    %v2251 = vadd.f32 0.0, %v2250
    %v2252 = vpop.f32.mrb[0].mxu0
    %v2253 = vadd.f32 0.0, %v2252
    %2254 = vmatprep.mubr.f32.mxu0 0.0
    %2255 = vmatmul.mubr.f32.gmra.mrb[0].mxu0 %v2048
    %v2256 = vpop.f32.mrb[0].mxu0
    %v2257 = vadd.f32 0.0, %v2256
    %v2258 = vpop.f32.mrb[0].mxu0
    %v2259 = vadd.f32 0.0, %v2258
    %2260 = vmatprep.mubr.f32.mxu0 0.0
    %2261 = vmatmul.mubr.f32.gmra.mrb[0].mxu0 %v2051
    %v2262 = vpop.f32.mrb[0].mxu0
    %v2263 = vadd.f32 0.0, %v2262
    %v2264 = vpop.f32.mrb[0].mxu0
    %v2265 = vadd.f32 0.0, %v2264
    %2266 = vmatprep.mubr.f32.mxu0 0.0
    %2267 = vmatmul.mubr.f32.gmra.mrb[0].mxu0 %v2054
    %v2268 = vpop.f32.mrb[0].mxu0
    %v2269 = vadd.f32 0.0, %v2268
    %v2270 = vpop.f32.mrb[0].mxu0
    %v2271 = vadd.f32 0.0, %v2270
    %2272 = vmatprep.mubr.f32.mxu0 0.0
    %2273 = vmatmul.mubr.f32.gmra.mrb[0].mxu0 %v2057
    %v2274 = vpop.f32.mrb[0].mxu0
    %v2275 = vadd.f32 0.0, %v2274
    %v2276 = vpop.f32.mrb[0].mxu0
    %v2277 = vadd.f32 0.0, %v2276
    %2278 = vmatprep.mubr.f32.mxu0 0.0
    %2279 = vmatmul.mubr.f32.gmra.mrb[0].mxu0 %v2060
    %v2280 = vpop.f32.mrb[0].mxu0
    %v2281 = vadd.f32 0.0, %v2280
    %v2282 = vpop.f32.mrb[0].mxu0
    %v2283 = vadd.f32 0.0, %v2282
    %2284 = vmatprep.mubr.f32.mxu0 0.0
    %2285 = vmatmul.mubr.f32.gmra.mrb[0].mxu0 %v2063
    %v2286 = vpop.f32.mrb[0].mxu0
    %v2287 = vadd.f32 0.0, %v2286
    %v2288 = vpop.f32.mrb[0].mxu0
    %v2289 = vadd.f32 0.0, %v2288
    %2290 = vdwg.mxu0
    %v2291 = vadd.f32 %v1985, %v2132
    %v2292 = vadd.f32 %v1986, %v2134
    %v2293 = vadd.f32 %v1987, %v2245
    %v2294 = vadd.f32 %v1988, %v2247
    %v2295 = vadd.f32 %v1989, %v2138
    %v2296 = vadd.f32 %v1990, %v2140
    %v2297 = vadd.f32 %v1991, %v2251
    %v2298 = vadd.f32 %v1992, %v2253
    %v2299 = vadd.f32 %v1993, %v2144
    %v2300 = vadd.f32 %v1994, %v2146
    %v2301 = vadd.f32 %v1995, %v2257
    %v2302 = vadd.f32 %v1996, %v2259
    %v2303 = vadd.f32 %v1997, %v2150
    %v2304 = vadd.f32 %v1998, %v2152
    %v2305 = vadd.f32 %v1999, %v2263
    %v2306 = vadd.f32 %v2000, %v2265
    %v2307 = vadd.f32 %v2001, %v2156
    %v2308 = vadd.f32 %v2002, %v2158
    %v2309 = vadd.f32 %v2003, %v2269
    %v2310 = vadd.f32 %v2004, %v2271
    %v2311 = vadd.f32 %v2005, %v2162
    %v2312 = vadd.f32 %v2006, %v2164
    %v2313 = vadd.f32 %v2007, %v2275
    %v2314 = vadd.f32 %v2008, %v2277
    %v2315 = vadd.f32 %v2009, %v2168
    %v2316 = vadd.f32 %v2010, %v2170
    %v2317 = vadd.f32 %v2011, %v2281
    %v2318 = vadd.f32 %v2012, %v2283
    %v2319 = vadd.f32 %v2013, %v2174
    %v2320 = vadd.f32 %v2014, %v2176
    %v2321 = vadd.f32 %v2015, %v2287
    %v2322 = vadd.f32 %v2016, %v2289
    %v2323 = vld [vmem:[%s3] sm:$0xf]
    %v2325 = vlaneseq
    %v2326 = vshrl.u32 %v2325, 7
    %v2327 = vsub.s32 0, %v2326
    %v2328 = vrot.slane %v2323, %v2327
    %v2329 = vlaneseq
    %v2330 = vshrl.u32 %v2329, 7
    %v2331 = vsub.s32 1, %v2330
    %v2332 = vrot.slane %v2323, %v2331
    %v2333 = vlaneseq
    %v2334 = vshrl.u32 %v2333, 7
    %v2335 = vsub.s32 2, %v2334
    %v2336 = vrot.slane %v2323, %v2335
    %v2337 = vlaneseq
    %v2338 = vshrl.u32 %v2337, 7
    %v2339 = vsub.s32 3, %v2338
    %v2340 = vrot.slane %v2323, %v2339
    %v2345 = vadd.f32 %v2291, %v2328
    %v2346 = vadd.f32 %v2292, %v2332
    %v2347 = vadd.f32 %v2293, %v2336
    %v2348 = vadd.f32 %v2294, %v2340
    %v2349 = vadd.f32 %v2295, %v2328
    %v2350 = vadd.f32 %v2296, %v2332
    %v2351 = vadd.f32 %v2297, %v2336
    %v2352 = vadd.f32 %v2298, %v2340
    %v2353 = vadd.f32 %v2299, %v2328
    %v2354 = vadd.f32 %v2300, %v2332
    %v2355 = vadd.f32 %v2301, %v2336
    %v2356 = vadd.f32 %v2302, %v2340
    %v2357 = vadd.f32 %v2303, %v2328
    %v2358 = vadd.f32 %v2304, %v2332
    %v2359 = vadd.f32 %v2305, %v2336
    %v2360 = vadd.f32 %v2306, %v2340
    %v2361 = vadd.f32 %v2307, %v2328
    %v2362 = vadd.f32 %v2308, %v2332
    %v2363 = vadd.f32 %v2309, %v2336
    %v2364 = vadd.f32 %v2310, %v2340
    %v2365 = vadd.f32 %v2311, %v2328
    %v2366 = vadd.f32 %v2312, %v2332
    %v2367 = vadd.f32 %v2313, %v2336
    %v2368 = vadd.f32 %v2314, %v2340
    %v2369 = vadd.f32 %v2315, %v2328
    %v2370 = vadd.f32 %v2316, %v2332
    %v2371 = vadd.f32 %v2317, %v2336
    %v2372 = vadd.f32 %v2318, %v2340
    %v2373 = vadd.f32 %v2319, %v2328
    %v2374 = vadd.f32 %v2320, %v2332
    %v2375 = vadd.f32 %v2321, %v2336
    %v2376 = vadd.f32 %v2322, %v2340
    %v2377 = vmax.f32 %v2345, 0.0
    %v2378 = vmax.f32 %v2346, 0.0
    %v2379 = vmax.f32 %v2347, 0.0
    %v2380 = vmax.f32 %v2348, 0.0
    %v2381 = vmax.f32 %v2349, 0.0
    %v2382 = vmax.f32 %v2350, 0.0
    %v2383 = vmax.f32 %v2351, 0.0
    %v2384 = vmax.f32 %v2352, 0.0
    %v2385 = vmax.f32 %v2353, 0.0
    %v2386 = vmax.f32 %v2354, 0.0
    %v2387 = vmax.f32 %v2355, 0.0
    %v2388 = vmax.f32 %v2356, 0.0
    %v2389 = vmax.f32 %v2357, 0.0
    %v2390 = vmax.f32 %v2358, 0.0
    %v2391 = vmax.f32 %v2359, 0.0
    %v2392 = vmax.f32 %v2360, 0.0
    %v2393 = vmax.f32 %v2361, 0.0
    %v2394 = vmax.f32 %v2362, 0.0
    %v2395 = vmax.f32 %v2363, 0.0
    %v2396 = vmax.f32 %v2364, 0.0
    %v2397 = vmax.f32 %v2365, 0.0
    %v2398 = vmax.f32 %v2366, 0.0
    %v2399 = vmax.f32 %v2367, 0.0
    %v2400 = vmax.f32 %v2368, 0.0
    %v2401 = vmax.f32 %v2369, 0.0
    %v2402 = vmax.f32 %v2370, 0.0
    %v2403 = vmax.f32 %v2371, 0.0
    %v2404 = vmax.f32 %v2372, 0.0
    %v2405 = vmax.f32 %v2373, 0.0
    %v2406 = vmax.f32 %v2374, 0.0
    %v2407 = vmax.f32 %v2375, 0.0
    %v2408 = vmax.f32 %v2376, 0.0
    %2425 = vrot.lane.b32.xlu0 %v2378, 106
    %v2426 = vpop.permute.xlu0 %2425
    %2427 = vrot.lane.b32.xlu0 %v2379, 106
    %v2428 = vpop.permute.xlu0 %2427
    %2429 = vrot.lane.b32.xlu0 %v2382, 106
    %v2430 = vpop.permute.xlu0 %2429
    %2431 = vrot.lane.b32.xlu0 %v2383, 106
    %v2432 = vpop.permute.xlu0 %2431
    %2433 = vrot.lane.b32.xlu0 %v2386, 106
    %v2434 = vpop.permute.xlu0 %2433
    %2435 = vrot.lane.b32.xlu0 %v2387, 106
    %v2436 = vpop.permute.xlu0 %2435
    %2437 = vrot.lane.b32.xlu0 %v2390, 106
    %v2438 = vpop.permute.xlu0 %2437
    %2439 = vrot.lane.b32.xlu0 %v2391, 106
    %v2440 = vpop.permute.xlu0 %2439
    %2441 = vrot.lane.b32.xlu0 %v2394, 106
    %v2442 = vpop.permute.xlu0 %2441
    %2443 = vrot.lane.b32.xlu0 %v2395, 106
    %v2444 = vpop.permute.xlu0 %2443
    %2445 = vrot.lane.b32.xlu0 %v2398, 106
    %v2446 = vpop.permute.xlu0 %2445
    %2447 = vrot.lane.b32.xlu0 %v2399, 106
    %v2448 = vpop.permute.xlu0 %2447
    %2449 = vrot.lane.b32.xlu0 %v2402, 106
    %v2450 = vpop.permute.xlu0 %2449
    %2451 = vrot.lane.b32.xlu0 %v2403, 106
    %v2452 = vpop.permute.xlu0 %2451
    %2453 = vrot.lane.b32.xlu0 %v2406, 106
    %v2454 = vpop.permute.xlu0 %2453
    %2455 = vrot.lane.b32.xlu0 %v2407, 106
    %v2456 = vpop.permute.xlu0 %2455
    %vm2457 = vcmask 867328
    %v2458 = vsel %vm2457, %v2426, %v2428
    %v2459 = vsel %vm2457, %v2430, %v2432
    %v2460 = vsel %vm2457, %v2434, %v2436
    %v2461 = vsel %vm2457, %v2438, %v2440
    %v2462 = vsel %vm2457, %v2442, %v2444
    %v2463 = vsel %vm2457, %v2446, %v2448
    %v2464 = vsel %vm2457, %v2450, %v2452
    %v2465 = vsel %vm2457, %v2454, %v2456
    %2482 = vrot.lane.b32.xlu0 %v2379, 84
    %v2483 = vpop.permute.xlu0 %2482
    %2484 = vrot.lane.b32.xlu0 %v2380, 84
    %v2485 = vpop.permute.xlu0 %2484
    %2486 = vrot.lane.b32.xlu0 %v2383, 84
    %v2487 = vpop.permute.xlu0 %2486
    %2488 = vrot.lane.b32.xlu0 %v2384, 84
    %v2489 = vpop.permute.xlu0 %2488
    %2490 = vrot.lane.b32.xlu0 %v2387, 84
    %v2491 = vpop.permute.xlu0 %2490
    %2492 = vrot.lane.b32.xlu0 %v2388, 84
    %v2493 = vpop.permute.xlu0 %2492
    %2494 = vrot.lane.b32.xlu0 %v2391, 84
    %v2495 = vpop.permute.xlu0 %2494
    %2496 = vrot.lane.b32.xlu0 %v2392, 84
    %v2497 = vpop.permute.xlu0 %2496
    %2498 = vrot.lane.b32.xlu0 %v2395, 84
    %v2499 = vpop.permute.xlu0 %2498
    %2500 = vrot.lane.b32.xlu0 %v2396, 84
    %v2501 = vpop.permute.xlu0 %2500
    %2502 = vrot.lane.b32.xlu0 %v2399, 84
    %v2503 = vpop.permute.xlu0 %2502
    %2504 = vrot.lane.b32.xlu0 %v2400, 84
    %v2505 = vpop.permute.xlu0 %2504
    %2506 = vrot.lane.b32.xlu0 %v2403, 84
    %v2507 = vpop.permute.xlu0 %2506
    %2508 = vrot.lane.b32.xlu0 %v2404, 84
    %v2509 = vpop.permute.xlu0 %2508
    %2510 = vrot.lane.b32.xlu0 %v2407, 84
    %v2511 = vpop.permute.xlu0 %2510
    %2512 = vrot.lane.b32.xlu0 %v2408, 84
    %v2513 = vpop.permute.xlu0 %2512
    %vm2514 = vcmask 687104
    %v2515 = vsel %vm2514, %v2483, %v2485
    %v2516 = vsel %vm2514, %v2487, %v2489
    %v2517 = vsel %vm2514, %v2491, %v2493
    %v2518 = vsel %vm2514, %v2495, %v2497
    %v2519 = vsel %vm2514, %v2499, %v2501
    %v2520 = vsel %vm2514, %v2503, %v2505
    %v2521 = vsel %vm2514, %v2507, %v2509
    %v2522 = vsel %vm2514, %v2511, %v2513
    %v2531 = vld [vmem:[%s4] sm:$0xff]
    %v2532 = vld [vmem:[%s4 + $0x8] sm:$0xff]
    %v2533 = vld [vmem:[%s4 + $0x10] sm:$0xff]
    %v2534 = vld [vmem:[%s4 + $0x18] sm:$0xff]
    %v2535 = vld [vmem:[%s4 + $0x20] sm:$0xff]
    %v2536 = vld [vmem:[%s4 + $0x28] sm:$0xff]
    %v2537 = vld [vmem:[%s4 + $0x30] sm:$0xff]
    %v2538 = vld [vmem:[%s4 + $0x38] sm:$0xff]
    %v2539 = vld [vmem:[%s4 + $0x40] sm:$0xff]
    %v2540 = vld [vmem:[%s4 + $0x48] sm:$0xff]
    %v2541 = vld [vmem:[%s4 + $0x50] sm:$0xff]
    %v2542 = vld [vmem:[%s4 + $0x58] sm:$0xff]
    %v2543 = vld [vmem:[%s4 + $0x60] sm:$0xff]
    %v2544 = vld [vmem:[%s4 + $0x68] sm:$0xff]
    %v2545 = vld [vmem:[%s4 + $0x70] sm:$0xff]
    %v2546 = vld [vmem:[%s4 + $0x78] sm:$0xff]
    %v2547 = vld [vmem:[%s4 + $0x80] sm:$0xff]
    %v2548 = vld [vmem:[%s4 + $0x88] sm:$0xff]
    %v2549 = vld [vmem:[%s4 + $0x90] sm:$0x3f]
    %v2550 = vld [vmem:[%s5] sm:$0x1]
    %v2552 = vlaneseq
    %v2553 = vshrl.u32 %v2552, 7
    %v2554 = vsub.s32 0, %v2553
    %v2555 = vrot.slane %v2550, %v2554
    %vm2557 = vcmask 179200
    %v2558 = vsel %vm2557, %v2378, 0
    %v2560 = vsel %vm2557, %v2382, 0
    %v2562 = vsel %vm2557, %v2386, 0
    %v2564 = vsel %vm2557, %v2390, 0
    %v2566 = vsel %vm2557, %v2394, 0
    %v2568 = vsel %vm2557, %v2398, 0
    %v2570 = vsel %vm2557, %v2402, 0
    %v2572 = vsel %vm2557, %v2406, 0
    %v2574 = vsel %vm2557, %v2428, 0
    %v2576 = vsel %vm2557, %v2432, 0
    %v2578 = vsel %vm2557, %v2436, 0
    %v2580 = vsel %vm2557, %v2440, 0
    %v2582 = vsel %vm2557, %v2444, 0
    %v2584 = vsel %vm2557, %v2448, 0
    %v2586 = vsel %vm2557, %v2452, 0
    %v2588 = vsel %vm2557, %v2456, 0
    %v2590 = vsel %vm2557, %v2485, 0
    %v2592 = vsel %vm2557, %v2489, 0
    %v2594 = vsel %vm2557, %v2493, 0
    %v2596 = vsel %vm2557, %v2497, 0
    %v2598 = vsel %vm2557, %v2501, 0
    %v2600 = vsel %vm2557, %v2505, 0
    %v2602 = vsel %vm2557, %v2509, 0
    %v2604 = vsel %vm2557, %v2513, 0
    %vm2606 = vcmask 1045504
    %v2608 = vsel %vm2606, %v2549, 0
    %2610 = vmatprep.subr.mxu0 0.0
    %2611 = vmatpush1.msra.mxu0 %v2531
    %2612 = vmatprep.subr.mxu0 0.0
    %2613 = vmatpush1.msra.mxu0 %v2532
    %2614 = vmatprep.subr.mxu0 0.0
    %2615 = vmatpush1.msra.mxu0 %v2533
    %2616 = vmatprep.subr.mxu0 0.0
    %2617 = vmatpush1.msra.mxu0 %v2534
    %2618 = vmatprep.subr.mxu0 0.0
    %2619 = vmatpush1.msra.mxu0 %v2535
    %2620 = vmatprep.subr.mxu0 0.0
    %2621 = vmatpush1.msra.mxu0 %v2536
    %2622 = vmatprep.subr.mxu0 0.0
    %2623 = vmatpush1.msra.mxu0 %v2537
    %2624 = vmatprep.subr.mxu0 0.0
    %2625 = vmatpush1.msra.mxu0 %v2538
    %2626 = vmatprep.subr.mxu0 0.0
    %2627 = vmatpush1.msra.mxu0 %v2539
    %2628 = vmatprep.subr.mxu0 0.0
    %2629 = vmatpush1.msra.mxu0 %v2540
    %2630 = vmatprep.subr.mxu0 0.0
    %2631 = vmatpush1.msra.mxu0 %v2541
    %2632 = vmatprep.subr.mxu0 0.0
    %2633 = vmatpush1.msra.mxu0 %v2542
    %2634 = vmatprep.subr.mxu0 0.0
    %2635 = vmatpush1.msra.mxu0 %v2543
    %2636 = vmatprep.subr.mxu0 0.0
    %2637 = vmatpush1.msra.mxu0 %v2544
    %2638 = vmatprep.subr.mxu0 0.0
    %2639 = vmatpush1.msra.mxu0 %v2545
    %2640 = vmatprep.subr.mxu0 0.0
    %2641 = vmatpush1.msra.mxu0 %v2546
    %2642 = vmatprep.subr.mxu0 0.0
    %2643 = vmatpush1.msra.mxu0 %v2547
    %2644 = vmatprep.subr.mxu0 0.0
    %2645 = vmatpush1.msra.mxu0 %v2548
    %2646 = vmatprep.subr.mxu0 0.0
    %2647 = vmatpush1.msra.mxu0 %v2608
    %2648 = vmatprep.subr.mxu0 0.0
    %2649 = vmatpush1.msra.mxu0 0.0
    %2650 = vmatprep.subr.mxu0 0.0
    %2651 = vmatpush1.msra.mxu0 0.0
    %2652 = vmatprep.subr.mxu0 0.0
    %2653 = vmatpush1.msra.mxu0 0.0
    %2654 = vmatprep.subr.mxu0 0.0
    %2655 = vmatpush1.msra.mxu0 0.0
    %2656 = vmatprep.subr.mxu0 0.0
    %2657 = vmatpush1.msra.mxu0 0.0
    %2658 = vmatprep.subr.mxu0 0.0
    %2659 = vmatpush1.msra.mxu0 0.0
    %2660 = vmatprep.subr.mxu0 0.0
    %2661 = vmatpush1.msra.mxu0 0.0
    %2662 = vmatprep.subr.mxu0 0.0
    %2663 = vmatpush1.msra.mxu0 0.0
    %2664 = vmatprep.subr.mxu0 0.0
    %2665 = vmatpush1.msra.mxu0 0.0
    %2666 = vmatprep.subr.mxu0 0.0
    %2667 = vmatpush1.msra.mxu0 0.0
    %2668 = vmatprep.subr.mxu0 0.0
    %2669 = vmatpush1.msra.mxu0 0.0
    %2670 = vmatprep.subr.mxu0 0.0
    %2671 = vmatpush1.msra.mxu0 0.0
    %2672 = vmatprep.subr.mxu0 0.0
    %2673 = vmatpush1.msra.mxu0 0.0
    %2674 = vmatprep.mubr.f32.mxu0 %v2558
    %2675 = vmatmul.mubr.f32.gmra.mrb[0].mxu0 %v2377
    %v2676 = vpop.f32.mrb[0].mxu0
    %v2677 = vadd.f32 %v2555, %v2676
    %v2678 = vpop.f32.mrb[0].mxu0
    %2679 = vmatprep.mubr.f32.mxu0 %v2560
    %2680 = vmatmul.mubr.f32.gmra.mrb[0].mxu0 %v2381
    %v2681 = vpop.f32.mrb[0].mxu0
    %v2682 = vadd.f32 %v2555, %v2681
    %v2683 = vpop.f32.mrb[0].mxu0
    %2684 = vmatprep.mubr.f32.mxu0 %v2562
    %2685 = vmatmul.mubr.f32.gmra.mrb[0].mxu0 %v2385
    %v2686 = vpop.f32.mrb[0].mxu0
    %v2687 = vadd.f32 %v2555, %v2686
    %v2688 = vpop.f32.mrb[0].mxu0
    %2689 = vmatprep.mubr.f32.mxu0 %v2564
    %2690 = vmatmul.mubr.f32.gmra.mrb[0].mxu0 %v2389
    %v2691 = vpop.f32.mrb[0].mxu0
    %v2692 = vadd.f32 %v2555, %v2691
    %v2693 = vpop.f32.mrb[0].mxu0
    %2694 = vmatprep.mubr.f32.mxu0 %v2566
    %2695 = vmatmul.mubr.f32.gmra.mrb[0].mxu0 %v2393
    %v2696 = vpop.f32.mrb[0].mxu0
    %v2697 = vadd.f32 %v2555, %v2696
    %v2698 = vpop.f32.mrb[0].mxu0
    %2699 = vmatprep.mubr.f32.mxu0 %v2568
    %2700 = vmatmul.mubr.f32.gmra.mrb[0].mxu0 %v2397
    %v2701 = vpop.f32.mrb[0].mxu0
    %v2702 = vadd.f32 %v2555, %v2701
    %v2703 = vpop.f32.mrb[0].mxu0
    %2704 = vmatprep.mubr.f32.mxu0 %v2570
    %2705 = vmatmul.mubr.f32.gmra.mrb[0].mxu0 %v2401
    %v2706 = vpop.f32.mrb[0].mxu0
    %v2707 = vadd.f32 %v2555, %v2706
    %v2708 = vpop.f32.mrb[0].mxu0
    %2709 = vmatprep.mubr.f32.mxu0 %v2572
    %2710 = vmatmul.mubr.f32.gmra.mrb[0].mxu0 %v2405
    %v2711 = vpop.f32.mrb[0].mxu0
    %v2712 = vadd.f32 %v2555, %v2711
    %v2713 = vpop.f32.mrb[0].mxu0
    %2714 = vmatprep.mubr.f32.mxu0 %v2574
    %2715 = vmatmul.mubr.f32.gmra.mrb[0].mxu0 %v2458
    %v2716 = vpop.f32.mrb[0].mxu0
    %v2717 = vadd.f32 %v2555, %v2716
    %v2718 = vpop.f32.mrb[0].mxu0
    %2719 = vmatprep.mubr.f32.mxu0 %v2576
    %2720 = vmatmul.mubr.f32.gmra.mrb[0].mxu0 %v2459
    %v2721 = vpop.f32.mrb[0].mxu0
    %v2722 = vadd.f32 %v2555, %v2721
    %v2723 = vpop.f32.mrb[0].mxu0
    %2724 = vmatprep.mubr.f32.mxu0 %v2578
    %2725 = vmatmul.mubr.f32.gmra.mrb[0].mxu0 %v2460
    %v2726 = vpop.f32.mrb[0].mxu0
    %v2727 = vadd.f32 %v2555, %v2726
    %v2728 = vpop.f32.mrb[0].mxu0
    %2729 = vmatprep.mubr.f32.mxu0 %v2580
    %2730 = vmatmul.mubr.f32.gmra.mrb[0].mxu0 %v2461
    %v2731 = vpop.f32.mrb[0].mxu0
    %v2732 = vadd.f32 %v2555, %v2731
    %v2733 = vpop.f32.mrb[0].mxu0
    %2734 = vmatprep.mubr.f32.mxu0 %v2582
    %2735 = vmatmul.mubr.f32.gmra.mrb[0].mxu0 %v2462
    %v2736 = vpop.f32.mrb[0].mxu0
    %v2737 = vadd.f32 %v2555, %v2736
    %v2738 = vpop.f32.mrb[0].mxu0
    %2739 = vmatprep.mubr.f32.mxu0 %v2584
    %2740 = vmatmul.mubr.f32.gmra.mrb[0].mxu0 %v2463
    %v2741 = vpop.f32.mrb[0].mxu0
    %v2742 = vadd.f32 %v2555, %v2741
    %v2743 = vpop.f32.mrb[0].mxu0
    %2744 = vmatprep.mubr.f32.mxu0 %v2586
    %2745 = vmatmul.mubr.f32.gmra.mrb[0].mxu0 %v2464
    %v2746 = vpop.f32.mrb[0].mxu0
    %v2747 = vadd.f32 %v2555, %v2746
    %v2748 = vpop.f32.mrb[0].mxu0
    %2749 = vmatprep.mubr.f32.mxu0 %v2588
    %2750 = vmatmul.mubr.f32.gmra.mrb[0].mxu0 %v2465
    %v2751 = vpop.f32.mrb[0].mxu0
    %v2752 = vadd.f32 %v2555, %v2751
    %v2753 = vpop.f32.mrb[0].mxu0
    %2754 = vmatprep.mubr.f32.mxu0 %v2590
    %2755 = vmatmul.mubr.f32.gmra.mrb[0].mxu0 %v2515
    %v2756 = vpop.f32.mrb[0].mxu0
    %v2757 = vadd.f32 %v2555, %v2756
    %v2758 = vpop.f32.mrb[0].mxu0
    %2759 = vmatprep.mubr.f32.mxu0 %v2592
    %2760 = vmatmul.mubr.f32.gmra.mrb[0].mxu0 %v2516
    %v2761 = vpop.f32.mrb[0].mxu0
    %v2762 = vadd.f32 %v2555, %v2761
    %v2763 = vpop.f32.mrb[0].mxu0
    %2764 = vmatprep.mubr.f32.mxu0 %v2594
    %2765 = vmatmul.mubr.f32.gmra.mrb[0].mxu0 %v2517
    %v2766 = vpop.f32.mrb[0].mxu0
    %v2767 = vadd.f32 %v2555, %v2766
    %v2768 = vpop.f32.mrb[0].mxu0
    %2769 = vmatprep.mubr.f32.mxu0 %v2596
    %2770 = vmatmul.mubr.f32.gmra.mrb[0].mxu0 %v2518
    %v2771 = vpop.f32.mrb[0].mxu0
    %v2772 = vadd.f32 %v2555, %v2771
    %v2773 = vpop.f32.mrb[0].mxu0
    %2774 = vmatprep.mubr.f32.mxu0 %v2598
    %2775 = vmatmul.mubr.f32.gmra.mrb[0].mxu0 %v2519
    %v2776 = vpop.f32.mrb[0].mxu0
    %v2777 = vadd.f32 %v2555, %v2776
    %v2778 = vpop.f32.mrb[0].mxu0
    %2779 = vmatprep.mubr.f32.mxu0 %v2600
    %2780 = vmatmul.mubr.f32.gmra.mrb[0].mxu0 %v2520
    %v2781 = vpop.f32.mrb[0].mxu0
    %v2782 = vadd.f32 %v2555, %v2781
    %v2783 = vpop.f32.mrb[0].mxu0
    %2784 = vmatprep.mubr.f32.mxu0 %v2602
    %2785 = vmatmul.mubr.f32.gmra.mrb[0].mxu0 %v2521
    %v2786 = vpop.f32.mrb[0].mxu0
    %v2787 = vadd.f32 %v2555, %v2786
    %v2788 = vpop.f32.mrb[0].mxu0
    %2789 = vmatprep.mubr.f32.mxu0 %v2604
    %2790 = vmatmul.mubr.f32.gmra.mrb[0].mxu0 %v2522
    %v2791 = vpop.f32.mrb[0].mxu0
    %v2792 = vadd.f32 %v2555, %v2791
    %v2793 = vpop.f32.mrb[0].mxu0
    %2794 = vdwg.mxu0
    %2795 = vst [vmem:[#allocation3] sm:$0xff] %v2677
    %2796 = vst [vmem:[#allocation3 + $0x8] sm:$0xff] %v2682
    %2797 = vst [vmem:[#allocation3 + $0x10] sm:$0xff] %v2687
    %2798 = vst [vmem:[#allocation3 + $0x18] sm:$0xff] %v2692
    %2799 = vst [vmem:[#allocation3 + $0x20] sm:$0xff] %v2697
    %2800 = vst [vmem:[#allocation3 + $0x28] sm:$0xff] %v2702
    %2801 = vst [vmem:[#allocation3 + $0x30] sm:$0xff] %v2707
    %2802 = vst [vmem:[#allocation3 + $0x38] sm:$0xff] %v2712
    %2803 = vst [vmem:[#allocation3 + $0x40] sm:$0xff] %v2717
    %2804 = vst [vmem:[#allocation3 + $0x48] sm:$0xff] %v2722
    %2805 = vst [vmem:[#allocation3 + $0x50] sm:$0xff] %v2727
    %2806 = vst [vmem:[#allocation3 + $0x58] sm:$0xff] %v2732
    %2807 = vst [vmem:[#allocation3 + $0x60] sm:$0xff] %v2737
    %2808 = vst [vmem:[#allocation3 + $0x68] sm:$0xff] %v2742
    %2809 = vst [vmem:[#allocation3 + $0x70] sm:$0xff] %v2747
    %2810 = vst [vmem:[#allocation3 + $0x78] sm:$0xff] %v2752
    %2811 = vst [vmem:[#allocation3 + $0x80] sm:$0xff] %v2757
    %2812 = vst [vmem:[#allocation3 + $0x88] sm:$0xff] %v2762
    %2813 = vst [vmem:[#allocation3 + $0x90] sm:$0xff] %v2767
    %2814 = vst [vmem:[#allocation3 + $0x98] sm:$0xff] %v2772
    %2815 = vst [vmem:[#allocation3 + $0xa0] sm:$0xff] %v2777
    %2816 = vst [vmem:[#allocation3 + $0xa8] sm:$0xff] %v2782
    %2817 = vst [vmem:[#allocation3 + $0xb0] sm:$0xff] %v2787
    %2818 = vst [vmem:[#allocation3 + $0xb8] sm:$0xff] %v2792
    %v2819 = vld [vmem:[#allocation10] sm:$0xff]
    %v2820 = vld [vmem:[#allocation10 + $0x8] sm:$0xff]
    %v2821 = vld [vmem:[#allocation10 + $0x10] sm:$0xff]
    %v2822 = vld [vmem:[#allocation10 + $0x18] sm:$0xff]
    %v2823 = vld [vmem:[#allocation3] sm:$0xff]
    %v2825 = vsel %vm72, 0.0, 0
    %2827 = vmatprep.subr.mxu0 0.0
    %2828 = vmatpush1.msra.mxu0 %v2819
    %2829 = vmatprep.subr.mxu0 0.0
    %2830 = vmatpush1.msra.mxu0 %v2820
    %2831 = vmatprep.subr.mxu0 0.0
    %2832 = vmatpush1.msra.mxu0 %v2821
    %2833 = vmatprep.subr.mxu0 0.0
    %2834 = vmatpush1.msra.mxu0 %v2822
    %2835 = vmatprep.subr.mxu0 0.0
    %2836 = vmatpush1.msra.mxu0 0.0
    %2837 = vmatprep.subr.mxu0 0.0
    %2838 = vmatpush1.msra.mxu0 0.0
    %2839 = vmatprep.subr.mxu0 0.0
    %2840 = vmatpush1.msra.mxu0 0.0
    %2841 = vmatprep.subr.mxu0 0.0
    %2842 = vmatpush1.msra.mxu0 0.0
    %2843 = vmatprep.subr.mxu0 0.0
    %2844 = vmatpush1.msra.mxu0 0.0
    %2845 = vmatprep.subr.mxu0 0.0
    %2846 = vmatpush1.msra.mxu0 0.0
    %2847 = vmatprep.subr.mxu0 0.0
    %2848 = vmatpush1.msra.mxu0 0.0
    %2849 = vmatprep.subr.mxu0 0.0
    %2850 = vmatpush1.msra.mxu0 0.0
    %2851 = vmatprep.subr.mxu0 0.0
    %2852 = vmatpush1.msra.mxu0 0.0
    %2853 = vmatprep.subr.mxu0 0.0
    %2854 = vmatpush1.msra.mxu0 0.0
    %2855 = vmatprep.subr.mxu0 0.0
    %2856 = vmatpush1.msra.mxu0 0.0
    %2857 = vmatprep.subr.mxu0 0.0
    %2858 = vmatpush1.msra.mxu0 0.0
    %2859 = vmatprep.subr.mxu0 0.0
    %2860 = vmatpush1.msra.mxu0 0.0
    %2861 = vmatprep.subr.mxu0 0.0
    %2862 = vmatpush1.msra.mxu0 0.0
    %2863 = vmatprep.subr.mxu0 0.0
    %2864 = vmatpush1.msra.mxu0 0.0
    %2865 = vmatprep.subr.mxu0 0.0
    %2866 = vmatpush1.msra.mxu0 0.0
    %2867 = vmatprep.subr.mxu0 0.0
    %2868 = vmatpush1.msra.mxu0 0.0
    %2869 = vmatprep.subr.mxu0 0.0
    %2870 = vmatpush1.msra.mxu0 0.0
    %2871 = vmatprep.subr.mxu0 0.0
    %2872 = vmatpush1.msra.mxu0 0.0
    %2873 = vmatprep.subr.mxu0 0.0
    %2874 = vmatpush1.msra.mxu0 0.0
    %2875 = vmatprep.subr.mxu0 0.0
    %2876 = vmatpush1.msra.mxu0 0.0
    %2877 = vmatprep.subr.mxu0 0.0
    %2878 = vmatpush1.msra.mxu0 0.0
    %2879 = vmatprep.subr.mxu0 0.0
    %2880 = vmatpush1.msra.mxu0 0.0
    %2881 = vmatprep.subr.mxu0 0.0
    %2882 = vmatpush1.msra.mxu0 0.0
    %2883 = vmatprep.subr.mxu0 0.0
    %2884 = vmatpush1.msra.mxu0 0.0
    %2885 = vmatprep.subr.mxu0 0.0
    %2886 = vmatpush1.msra.mxu0 0.0
    %2887 = vmatprep.subr.mxu0 0.0
    %2888 = vmatpush1.msra.mxu0 0.0
    %2889 = vmatprep.subr.mxu0 0.0
    %2890 = vmatpush1.msra.mxu0 0.0
    %2891 = vmatprep.mubr.f32.mxu0 0.0
    %2892 = vmatmul.mubr.f32.gmra.mrb[0].mxu0 %v2825
    %v2893 = vpop.f32.mrb[0].mxu0
    %v2894 = vadd.f32 0.0, %v2893
    %v2895 = vpop.f32.mrb[0].mxu0
    %2896 = vdwg.mxu0
    %v2897 = vadd.f32 %v2823, %v2894
    %v2898 = vmax.f32 %v2897, -30.0
    %v2899 = vsub.f32 0.0, %v2898
    %v2900 = vmul.f32 %v2899, 1.442695
    %v2901 = vpow.pop %v2900
    %v2902 = vadd.f32 %v2901, 1.0
    %v2903 = vrcp.pop %v2902
    %v2904 = vmul.f32 %v2902, %v2903
    %v2905 = vsub.f32 2.0, %v2904
    %v2906 = vmul.f32 %v2903, %v2905
    %v2907 = vtanh.pop %v2897
    %v2908 = vmul.f32 %v2906, 0.0
    %2910 = vrot.lane.b32.xlu0 %v2907, 64
    %v2911 = vpop.permute.xlu0 %2910
    %v2913 = vmul.f32 %v2906, %v2911
    %2915 = vrot.lane.b32.xlu0 %v2913, 32
    %v2916 = vpop.permute.xlu0 %2915
    %v2918 = vadd.f32 %v2908, %v2916
    %v2919 = vtanh.pop %v2918
    %2921 = vrot.lane.b32.xlu0 %v2919, 64
    %v2922 = vpop.permute.xlu0 %2921
    %v2924 = vmul.f32 %v2906, %v2922
    %v2925 = vld [vmem:[#allocation3 + $0x8] sm:$0xff]
    %2927 = vrot.lane.b32.xlu0 %v2924, 32
    %v2928 = vpop.permute.xlu0 %2927
    %v2929 = vsel %vm72, %v2928, 0
    %2931 = vmatprep.subr.mxu0 0.0
    %2932 = vmatpush1.msra.mxu0 %v2819
    %2933 = vmatprep.subr.mxu0 0.0
    %2934 = vmatpush1.msra.mxu0 %v2820
    %2935 = vmatprep.subr.mxu0 0.0
    %2936 = vmatpush1.msra.mxu0 %v2821
    %2937 = vmatprep.subr.mxu0 0.0
    %2938 = vmatpush1.msra.mxu0 %v2822
    %2939 = vmatprep.subr.mxu0 0.0
    %2940 = vmatpush1.msra.mxu0 0.0
    %2941 = vmatprep.subr.mxu0 0.0
    %2942 = vmatpush1.msra.mxu0 0.0
    %2943 = vmatprep.subr.mxu0 0.0
    %2944 = vmatpush1.msra.mxu0 0.0
    %2945 = vmatprep.subr.mxu0 0.0
    %2946 = vmatpush1.msra.mxu0 0.0
    %2947 = vmatprep.subr.mxu0 0.0
    %2948 = vmatpush1.msra.mxu0 0.0
    %2949 = vmatprep.subr.mxu0 0.0
    %2950 = vmatpush1.msra.mxu0 0.0
    %2951 = vmatprep.subr.mxu0 0.0
    %2952 = vmatpush1.msra.mxu0 0.0
    %2953 = vmatprep.subr.mxu0 0.0
    %2954 = vmatpush1.msra.mxu0 0.0
    %2955 = vmatprep.subr.mxu0 0.0
    %2956 = vmatpush1.msra.mxu0 0.0
    %2957 = vmatprep.subr.mxu0 0.0
    %2958 = vmatpush1.msra.mxu0 0.0
    %2959 = vmatprep.subr.mxu0 0.0
    %2960 = vmatpush1.msra.mxu0 0.0
    %2961 = vmatprep.subr.mxu0 0.0
    %2962 = vmatpush1.msra.mxu0 0.0
    %2963 = vmatprep.subr.mxu0 0.0
    %2964 = vmatpush1.msra.mxu0 0.0
    %2965 = vmatprep.subr.mxu0 0.0
    %2966 = vmatpush1.msra.mxu0 0.0
    %2967 = vmatprep.subr.mxu0 0.0
    %2968 = vmatpush1.msra.mxu0 0.0
    %2969 = vmatprep.subr.mxu0 0.0
    %2970 = vmatpush1.msra.mxu0 0.0
    %2971 = vmatprep.subr.mxu0 0.0
    %2972 = vmatpush1.msra.mxu0 0.0
    %2973 = vmatprep.subr.mxu0 0.0
    %2974 = vmatpush1.msra.mxu0 0.0
    %2975 = vmatprep.subr.mxu0 0.0
    %2976 = vmatpush1.msra.mxu0 0.0
    %2977 = vmatprep.subr.mxu0 0.0
    %2978 = vmatpush1.msra.mxu0 0.0
    %2979 = vmatprep.subr.mxu0 0.0
    %2980 = vmatpush1.msra.mxu0 0.0
    %2981 = vmatprep.subr.mxu0 0.0
    %2982 = vmatpush1.msra.mxu0 0.0
    %2983 = vmatprep.subr.mxu0 0.0
    %2984 = vmatpush1.msra.mxu0 0.0
    %2985 = vmatprep.subr.mxu0 0.0
    %2986 = vmatpush1.msra.mxu0 0.0
    %2987 = vmatprep.subr.mxu0 0.0
    %2988 = vmatpush1.msra.mxu0 0.0
    %2989 = vmatprep.subr.mxu0 0.0
    %2990 = vmatpush1.msra.mxu0 0.0
    %2991 = vmatprep.subr.mxu0 0.0
    %2992 = vmatpush1.msra.mxu0 0.0
    %2993 = vmatprep.subr.mxu0 0.0
    %2994 = vmatpush1.msra.mxu0 0.0
    %2995 = vmatprep.mubr.f32.mxu0 0.0
    %2996 = vmatmul.mubr.f32.gmra.mrb[0].mxu0 %v2929
    %v2997 = vpop.f32.mrb[0].mxu0
    %v2998 = vadd.f32 0.0, %v2997
    %v2999 = vpop.f32.mrb[0].mxu0
    %3000 = vdwg.mxu0
    %v3001 = vadd.f32 %v2925, %v2998
    %v3002 = vmax.f32 %v3001, -30.0
    %v3003 = vsub.f32 0.0, %v3002
    %v3004 = vmul.f32 %v3003, 1.442695
    %v3005 = vpow.pop %v3004
    %v3006 = vadd.f32 %v3005, 1.0
    %v3007 = vrcp.pop %v3006
    %v3008 = vmul.f32 %v3006, %v3007
    %v3009 = vsub.f32 2.0, %v3008
    %v3010 = vmul.f32 %v3007, %v3009
    %v3011 = vtanh.pop %v3001
    %v3012 = vmul.f32 %v3010, %v2918
    %3014 = vrot.lane.b32.xlu0 %v3011, 64
    %v3015 = vpop.permute.xlu0 %3014
    %v3017 = vmul.f32 %v3010, %v3015
    %3019 = vrot.lane.b32.xlu0 %v3017, 32
    %v3020 = vpop.permute.xlu0 %3019
    %v3022 = vadd.f32 %v3012, %v3020
    %v3023 = vtanh.pop %v3022
    %3025 = vrot.lane.b32.xlu0 %v3023, 64
    %v3026 = vpop.permute.xlu0 %3025
    %v3028 = vmul.f32 %v3010, %v3026
    %v3029 = vmax.f32 %v2924, %v3028
    %v3030 = vld [vmem:[#allocation3 + $0x10] sm:$0xff]
    %3032 = vrot.lane.b32.xlu0 %v3028, 32
    %v3033 = vpop.permute.xlu0 %3032
    %v3034 = vsel %vm72, %v3033, 0
    %3036 = vmatprep.subr.mxu0 0.0
    %3037 = vmatpush1.msra.mxu0 %v2819
    %3038 = vmatprep.subr.mxu0 0.0
    %3039 = vmatpush1.msra.mxu0 %v2820
    %3040 = vmatprep.subr.mxu0 0.0
    %3041 = vmatpush1.msra.mxu0 %v2821
    %3042 = vmatprep.subr.mxu0 0.0
    %3043 = vmatpush1.msra.mxu0 %v2822
    %3044 = vmatprep.subr.mxu0 0.0
    %3045 = vmatpush1.msra.mxu0 0.0
    %3046 = vmatprep.subr.mxu0 0.0
    %3047 = vmatpush1.msra.mxu0 0.0
    %3048 = vmatprep.subr.mxu0 0.0
    %3049 = vmatpush1.msra.mxu0 0.0
    %3050 = vmatprep.subr.mxu0 0.0
    %3051 = vmatpush1.msra.mxu0 0.0
    %3052 = vmatprep.subr.mxu0 0.0
    %3053 = vmatpush1.msra.mxu0 0.0
    %3054 = vmatprep.subr.mxu0 0.0
    %3055 = vmatpush1.msra.mxu0 0.0
    %3056 = vmatprep.subr.mxu0 0.0
    %3057 = vmatpush1.msra.mxu0 0.0
    %3058 = vmatprep.subr.mxu0 0.0
    %3059 = vmatpush1.msra.mxu0 0.0
    %3060 = vmatprep.subr.mxu0 0.0
    %3061 = vmatpush1.msra.mxu0 0.0
    %3062 = vmatprep.subr.mxu0 0.0
    %3063 = vmatpush1.msra.mxu0 0.0
    %3064 = vmatprep.subr.mxu0 0.0
    %3065 = vmatpush1.msra.mxu0 0.0
    %3066 = vmatprep.subr.mxu0 0.0
    %3067 = vmatpush1.msra.mxu0 0.0
    %3068 = vmatprep.subr.mxu0 0.0
    %3069 = vmatpush1.msra.mxu0 0.0
    %3070 = vmatprep.subr.mxu0 0.0
    %3071 = vmatpush1.msra.mxu0 0.0
    %3072 = vmatprep.subr.mxu0 0.0
    %3073 = vmatpush1.msra.mxu0 0.0
    %3074 = vmatprep.subr.mxu0 0.0
    %3075 = vmatpush1.msra.mxu0 0.0
    %3076 = vmatprep.subr.mxu0 0.0
    %3077 = vmatpush1.msra.mxu0 0.0
    %3078 = vmatprep.subr.mxu0 0.0
    %3079 = vmatpush1.msra.mxu0 0.0
    %3080 = vmatprep.subr.mxu0 0.0
    %3081 = vmatpush1.msra.mxu0 0.0
    %3082 = vmatprep.subr.mxu0 0.0
    %3083 = vmatpush1.msra.mxu0 0.0
    %3084 = vmatprep.subr.mxu0 0.0
    %3085 = vmatpush1.msra.mxu0 0.0
    %3086 = vmatprep.subr.mxu0 0.0
    %3087 = vmatpush1.msra.mxu0 0.0
    %3088 = vmatprep.subr.mxu0 0.0
    %3089 = vmatpush1.msra.mxu0 0.0
    %3090 = vmatprep.subr.mxu0 0.0
    %3091 = vmatpush1.msra.mxu0 0.0
    %3092 = vmatprep.subr.mxu0 0.0
    %3093 = vmatpush1.msra.mxu0 0.0
    %3094 = vmatprep.subr.mxu0 0.0
    %3095 = vmatpush1.msra.mxu0 0.0
    %3096 = vmatprep.subr.mxu0 0.0
    %3097 = vmatpush1.msra.mxu0 0.0
    %3098 = vmatprep.subr.mxu0 0.0
    %3099 = vmatpush1.msra.mxu0 0.0
    %3100 = vmatprep.mubr.f32.mxu0 0.0
    %3101 = vmatmul.mubr.f32.gmra.mrb[0].mxu0 %v3034
    %v3102 = vpop.f32.mrb[0].mxu0
    %v3103 = vadd.f32 0.0, %v3102
    %v3104 = vpop.f32.mrb[0].mxu0
    %3105 = vdwg.mxu0
    %v3106 = vadd.f32 %v3030, %v3103
    %v3107 = vmax.f32 %v3106, -30.0
    %v3108 = vsub.f32 0.0, %v3107
    %v3109 = vmul.f32 %v3108, 1.442695
    %v3110 = vpow.pop %v3109
    %v3111 = vadd.f32 %v3110, 1.0
    %v3112 = vrcp.pop %v3111
    %v3113 = vmul.f32 %v3111, %v3112
    %v3114 = vsub.f32 2.0, %v3113
    %v3115 = vmul.f32 %v3112, %v3114
    %v3116 = vtanh.pop %v3106
    %v3117 = vmul.f32 %v3115, %v3022
    %3119 = vrot.lane.b32.xlu0 %v3116, 64
    %v3120 = vpop.permute.xlu0 %3119
    %v3122 = vmul.f32 %v3115, %v3120
    %3124 = vrot.lane.b32.xlu0 %v3122, 32
    %v3125 = vpop.permute.xlu0 %3124
    %v3127 = vadd.f32 %v3117, %v3125
    %v3128 = vtanh.pop %v3127
    %3130 = vrot.lane.b32.xlu0 %v3128, 64
    %v3131 = vpop.permute.xlu0 %3130
    %v3133 = vmul.f32 %v3115, %v3131
    %v3134 = vmax.f32 %v3029, %v3133
    %v3135 = vld [vmem:[#allocation3 + $0x18] sm:$0xff]
    %3137 = vrot.lane.b32.xlu0 %v3133, 32
    %v3138 = vpop.permute.xlu0 %3137
    %v3139 = vsel %vm72, %v3138, 0
    %3141 = vmatprep.subr.mxu0 0.0
    %3142 = vmatpush1.msra.mxu0 %v2819
    %3143 = vmatprep.subr.mxu0 0.0
    %3144 = vmatpush1.msra.mxu0 %v2820
    %3145 = vmatprep.subr.mxu0 0.0
    %3146 = vmatpush1.msra.mxu0 %v2821
    %3147 = vmatprep.subr.mxu0 0.0
    %3148 = vmatpush1.msra.mxu0 %v2822
    %3149 = vmatprep.subr.mxu0 0.0
    %3150 = vmatpush1.msra.mxu0 0.0
    %3151 = vmatprep.subr.mxu0 0.0
    %3152 = vmatpush1.msra.mxu0 0.0
    %3153 = vmatprep.subr.mxu0 0.0
    %3154 = vmatpush1.msra.mxu0 0.0
    %3155 = vmatprep.subr.mxu0 0.0
    %3156 = vmatpush1.msra.mxu0 0.0
    %3157 = vmatprep.subr.mxu0 0.0
    %3158 = vmatpush1.msra.mxu0 0.0
    %3159 = vmatprep.subr.mxu0 0.0
    %3160 = vmatpush1.msra.mxu0 0.0
    %3161 = vmatprep.subr.mxu0 0.0
    %3162 = vmatpush1.msra.mxu0 0.0
    %3163 = vmatprep.subr.mxu0 0.0
    %3164 = vmatpush1.msra.mxu0 0.0
    %3165 = vmatprep.subr.mxu0 0.0
    %3166 = vmatpush1.msra.mxu0 0.0
    %3167 = vmatprep.subr.mxu0 0.0
    %3168 = vmatpush1.msra.mxu0 0.0
    %3169 = vmatprep.subr.mxu0 0.0
    %3170 = vmatpush1.msra.mxu0 0.0
    %3171 = vmatprep.subr.mxu0 0.0
    %3172 = vmatpush1.msra.mxu0 0.0
    %3173 = vmatprep.subr.mxu0 0.0
    %3174 = vmatpush1.msra.mxu0 0.0
    %3175 = vmatprep.subr.mxu0 0.0
    %3176 = vmatpush1.msra.mxu0 0.0
    %3177 = vmatprep.subr.mxu0 0.0
    %3178 = vmatpush1.msra.mxu0 0.0
    %3179 = vmatprep.subr.mxu0 0.0
    %3180 = vmatpush1.msra.mxu0 0.0
    %3181 = vmatprep.subr.mxu0 0.0
    %3182 = vmatpush1.msra.mxu0 0.0
    %3183 = vmatprep.subr.mxu0 0.0
    %3184 = vmatpush1.msra.mxu0 0.0
    %3185 = vmatprep.subr.mxu0 0.0
    %3186 = vmatpush1.msra.mxu0 0.0
    %3187 = vmatprep.subr.mxu0 0.0
    %3188 = vmatpush1.msra.mxu0 0.0
    %3189 = vmatprep.subr.mxu0 0.0
    %3190 = vmatpush1.msra.mxu0 0.0
    %3191 = vmatprep.subr.mxu0 0.0
    %3192 = vmatpush1.msra.mxu0 0.0
    %3193 = vmatprep.subr.mxu0 0.0
    %3194 = vmatpush1.msra.mxu0 0.0
    %3195 = vmatprep.subr.mxu0 0.0
    %3196 = vmatpush1.msra.mxu0 0.0
    %3197 = vmatprep.subr.mxu0 0.0
    %3198 = vmatpush1.msra.mxu0 0.0
    %3199 = vmatprep.subr.mxu0 0.0
    %3200 = vmatpush1.msra.mxu0 0.0
    %3201 = vmatprep.subr.mxu0 0.0
    %3202 = vmatpush1.msra.mxu0 0.0
    %3203 = vmatprep.subr.mxu0 0.0
    %3204 = vmatpush1.msra.mxu0 0.0
    %3205 = vmatprep.mubr.f32.mxu0 0.0
    %3206 = vmatmul.mubr.f32.gmra.mrb[0].mxu0 %v3139
    %v3207 = vpop.f32.mrb[0].mxu0
    %v3208 = vadd.f32 0.0, %v3207
    %v3209 = vpop.f32.mrb[0].mxu0
    %3210 = vdwg.mxu0
    %v3211 = vadd.f32 %v3135, %v3208
    %v3212 = vmax.f32 %v3211, -30.0
    %v3213 = vsub.f32 0.0, %v3212
    %v3214 = vmul.f32 %v3213, 1.442695
    %v3215 = vpow.pop %v3214
    %v3216 = vadd.f32 %v3215, 1.0
    %v3217 = vrcp.pop %v3216
    %v3218 = vmul.f32 %v3216, %v3217
    %v3219 = vsub.f32 2.0, %v3218
    %v3220 = vmul.f32 %v3217, %v3219
    %v3221 = vtanh.pop %v3211
    %v3222 = vmul.f32 %v3220, %v3127
    %3224 = vrot.lane.b32.xlu0 %v3221, 64
    %v3225 = vpop.permute.xlu0 %3224
    %v3227 = vmul.f32 %v3220, %v3225
    %3229 = vrot.lane.b32.xlu0 %v3227, 32
    %v3230 = vpop.permute.xlu0 %3229
    %v3232 = vadd.f32 %v3222, %v3230
    %v3233 = vtanh.pop %v3232
    %3235 = vrot.lane.b32.xlu0 %v3233, 64
    %v3236 = vpop.permute.xlu0 %3235
    %v3238 = vmul.f32 %v3220, %v3236
    %v3239 = vmax.f32 %v3134, %v3238
    %v3240 = vld [vmem:[#allocation3 + $0x20] sm:$0xff]
    %3242 = vrot.lane.b32.xlu0 %v3238, 32
    %v3243 = vpop.permute.xlu0 %3242
    %v3244 = vsel %vm72, %v3243, 0
    %3246 = vmatprep.subr.mxu0 0.0
    %3247 = vmatpush1.msra.mxu0 %v2819
    %3248 = vmatprep.subr.mxu0 0.0
    %3249 = vmatpush1.msra.mxu0 %v2820
    %3250 = vmatprep.subr.mxu0 0.0
    %3251 = vmatpush1.msra.mxu0 %v2821
    %3252 = vmatprep.subr.mxu0 0.0
    %3253 = vmatpush1.msra.mxu0 %v2822
    %3254 = vmatprep.subr.mxu0 0.0
    %3255 = vmatpush1.msra.mxu0 0.0
    %3256 = vmatprep.subr.mxu0 0.0
    %3257 = vmatpush1.msra.mxu0 0.0
    %3258 = vmatprep.subr.mxu0 0.0
    %3259 = vmatpush1.msra.mxu0 0.0
    %3260 = vmatprep.subr.mxu0 0.0
    %3261 = vmatpush1.msra.mxu0 0.0
    %3262 = vmatprep.subr.mxu0 0.0
    %3263 = vmatpush1.msra.mxu0 0.0
    %3264 = vmatprep.subr.mxu0 0.0
    %3265 = vmatpush1.msra.mxu0 0.0
    %3266 = vmatprep.subr.mxu0 0.0
    %3267 = vmatpush1.msra.mxu0 0.0
    %3268 = vmatprep.subr.mxu0 0.0
    %3269 = vmatpush1.msra.mxu0 0.0
    %3270 = vmatprep.subr.mxu0 0.0
    %3271 = vmatpush1.msra.mxu0 0.0
    %3272 = vmatprep.subr.mxu0 0.0
    %3273 = vmatpush1.msra.mxu0 0.0
    %3274 = vmatprep.subr.mxu0 0.0
    %3275 = vmatpush1.msra.mxu0 0.0
    %3276 = vmatprep.subr.mxu0 0.0
    %3277 = vmatpush1.msra.mxu0 0.0
    %3278 = vmatprep.subr.mxu0 0.0
    %3279 = vmatpush1.msra.mxu0 0.0
    %3280 = vmatprep.subr.mxu0 0.0
    %3281 = vmatpush1.msra.mxu0 0.0
    %3282 = vmatprep.subr.mxu0 0.0
    %3283 = vmatpush1.msra.mxu0 0.0
    %3284 = vmatprep.subr.mxu0 0.0
    %3285 = vmatpush1.msra.mxu0 0.0
    %3286 = vmatprep.subr.mxu0 0.0
    %3287 = vmatpush1.msra.mxu0 0.0
    %3288 = vmatprep.subr.mxu0 0.0
    %3289 = vmatpush1.msra.mxu0 0.0
    %3290 = vmatprep.subr.mxu0 0.0
    %3291 = vmatpush1.msra.mxu0 0.0
    %3292 = vmatprep.subr.mxu0 0.0
    %3293 = vmatpush1.msra.mxu0 0.0
    %3294 = vmatprep.subr.mxu0 0.0
    %3295 = vmatpush1.msra.mxu0 0.0
    %3296 = vmatprep.subr.mxu0 0.0
    %3297 = vmatpush1.msra.mxu0 0.0
    %3298 = vmatprep.subr.mxu0 0.0
    %3299 = vmatpush1.msra.mxu0 0.0
    %3300 = vmatprep.subr.mxu0 0.0
    %3301 = vmatpush1.msra.mxu0 0.0
    %3302 = vmatprep.subr.mxu0 0.0
    %3303 = vmatpush1.msra.mxu0 0.0
    %3304 = vmatprep.subr.mxu0 0.0
    %3305 = vmatpush1.msra.mxu0 0.0
    %3306 = vmatprep.subr.mxu0 0.0
    %3307 = vmatpush1.msra.mxu0 0.0
    %3308 = vmatprep.subr.mxu0 0.0
    %3309 = vmatpush1.msra.mxu0 0.0
    %3310 = vmatprep.mubr.f32.mxu0 0.0
    %3311 = vmatmul.mubr.f32.gmra.mrb[0].mxu0 %v3244
    %v3312 = vpop.f32.mrb[0].mxu0
    %v3313 = vadd.f32 0.0, %v3312
    %v3314 = vpop.f32.mrb[0].mxu0
    %3315 = vdwg.mxu0
    %v3316 = vadd.f32 %v3240, %v3313
    %v3317 = vmax.f32 %v3316, -30.0
    %v3318 = vsub.f32 0.0, %v3317
    %v3319 = vmul.f32 %v3318, 1.442695
    %v3320 = vpow.pop %v3319
    %v3321 = vadd.f32 %v3320, 1.0
    %v3322 = vrcp.pop %v3321
    %v3323 = vmul.f32 %v3321, %v3322
    %v3324 = vsub.f32 2.0, %v3323
    %v3325 = vmul.f32 %v3322, %v3324
    %v3326 = vtanh.pop %v3316
    %v3327 = vmul.f32 %v3325, %v3232
    %3329 = vrot.lane.b32.xlu0 %v3326, 64
    %v3330 = vpop.permute.xlu0 %3329
    %v3332 = vmul.f32 %v3325, %v3330
    %3334 = vrot.lane.b32.xlu0 %v3332, 32
    %v3335 = vpop.permute.xlu0 %3334
    %v3337 = vadd.f32 %v3327, %v3335
    %v3338 = vtanh.pop %v3337
    %3340 = vrot.lane.b32.xlu0 %v3338, 64
    %v3341 = vpop.permute.xlu0 %3340
    %v3343 = vmul.f32 %v3325, %v3341
    %v3344 = vmax.f32 %v3239, %v3343
    %v3345 = vld [vmem:[#allocation3 + $0x28] sm:$0xff]
    %3347 = vrot.lane.b32.xlu0 %v3343, 32
    %v3348 = vpop.permute.xlu0 %3347
    %v3349 = vsel %vm72, %v3348, 0
    %3351 = vmatprep.subr.mxu0 0.0
    %3352 = vmatpush1.msra.mxu0 %v2819
    %3353 = vmatprep.subr.mxu0 0.0
    %3354 = vmatpush1.msra.mxu0 %v2820
    %3355 = vmatprep.subr.mxu0 0.0
    %3356 = vmatpush1.msra.mxu0 %v2821
    %3357 = vmatprep.subr.mxu0 0.0
    %3358 = vmatpush1.msra.mxu0 %v2822
    %3359 = vmatprep.subr.mxu0 0.0
    %3360 = vmatpush1.msra.mxu0 0.0
    %3361 = vmatprep.subr.mxu0 0.0
    %3362 = vmatpush1.msra.mxu0 0.0
    %3363 = vmatprep.subr.mxu0 0.0
    %3364 = vmatpush1.msra.mxu0 0.0
    %3365 = vmatprep.subr.mxu0 0.0
    %3366 = vmatpush1.msra.mxu0 0.0
    %3367 = vmatprep.subr.mxu0 0.0
    %3368 = vmatpush1.msra.mxu0 0.0
    %3369 = vmatprep.subr.mxu0 0.0
    %3370 = vmatpush1.msra.mxu0 0.0
    %3371 = vmatprep.subr.mxu0 0.0
    %3372 = vmatpush1.msra.mxu0 0.0
    %3373 = vmatprep.subr.mxu0 0.0
    %3374 = vmatpush1.msra.mxu0 0.0
    %3375 = vmatprep.subr.mxu0 0.0
    %3376 = vmatpush1.msra.mxu0 0.0
    %3377 = vmatprep.subr.mxu0 0.0
    %3378 = vmatpush1.msra.mxu0 0.0
    %3379 = vmatprep.subr.mxu0 0.0
    %3380 = vmatpush1.msra.mxu0 0.0
    %3381 = vmatprep.subr.mxu0 0.0
    %3382 = vmatpush1.msra.mxu0 0.0
    %3383 = vmatprep.subr.mxu0 0.0
    %3384 = vmatpush1.msra.mxu0 0.0
    %3385 = vmatprep.subr.mxu0 0.0
    %3386 = vmatpush1.msra.mxu0 0.0
    %3387 = vmatprep.subr.mxu0 0.0
    %3388 = vmatpush1.msra.mxu0 0.0
    %3389 = vmatprep.subr.mxu0 0.0
    %3390 = vmatpush1.msra.mxu0 0.0
    %3391 = vmatprep.subr.mxu0 0.0
    %3392 = vmatpush1.msra.mxu0 0.0
    %3393 = vmatprep.subr.mxu0 0.0
    %3394 = vmatpush1.msra.mxu0 0.0
    %3395 = vmatprep.subr.mxu0 0.0
    %3396 = vmatpush1.msra.mxu0 0.0
    %3397 = vmatprep.subr.mxu0 0.0
    %3398 = vmatpush1.msra.mxu0 0.0
    %3399 = vmatprep.subr.mxu0 0.0
    %3400 = vmatpush1.msra.mxu0 0.0
    %3401 = vmatprep.subr.mxu0 0.0
    %3402 = vmatpush1.msra.mxu0 0.0
    %3403 = vmatprep.subr.mxu0 0.0
    %3404 = vmatpush1.msra.mxu0 0.0
    %3405 = vmatprep.subr.mxu0 0.0
    %3406 = vmatpush1.msra.mxu0 0.0
    %3407 = vmatprep.subr.mxu0 0.0
    %3408 = vmatpush1.msra.mxu0 0.0
    %3409 = vmatprep.subr.mxu0 0.0
    %3410 = vmatpush1.msra.mxu0 0.0
    %3411 = vmatprep.subr.mxu0 0.0
    %3412 = vmatpush1.msra.mxu0 0.0
    %3413 = vmatprep.subr.mxu0 0.0
    %3414 = vmatpush1.msra.mxu0 0.0
    %3415 = vmatprep.mubr.f32.mxu0 0.0
    %3416 = vmatmul.mubr.f32.gmra.mrb[0].mxu0 %v3349
    %v3417 = vpop.f32.mrb[0].mxu0
    %v3418 = vadd.f32 0.0, %v3417
    %v3419 = vpop.f32.mrb[0].mxu0
    %3420 = vdwg.mxu0
    %v3421 = vadd.f32 %v3345, %v3418
    %v3422 = vmax.f32 %v3421, -30.0
    %v3423 = vsub.f32 0.0, %v3422
    %v3424 = vmul.f32 %v3423, 1.442695
    %v3425 = vpow.pop %v3424
    %v3426 = vadd.f32 %v3425, 1.0
    %v3427 = vrcp.pop %v3426
    %v3428 = vmul.f32 %v3426, %v3427
    %v3429 = vsub.f32 2.0, %v3428
    %v3430 = vmul.f32 %v3427, %v3429
    %v3431 = vtanh.pop %v3421
    %v3432 = vmul.f32 %v3430, %v3337
    %3434 = vrot.lane.b32.xlu0 %v3431, 64
    %v3435 = vpop.permute.xlu0 %3434
    %v3437 = vmul.f32 %v3430, %v3435
    %3439 = vrot.lane.b32.xlu0 %v3437, 32
    %v3440 = vpop.permute.xlu0 %3439
    %v3442 = vadd.f32 %v3432, %v3440
    %v3443 = vtanh.pop %v3442
    %3445 = vrot.lane.b32.xlu0 %v3443, 64
    %v3446 = vpop.permute.xlu0 %3445
    %v3448 = vmul.f32 %v3430, %v3446
    %v3449 = vmax.f32 %v3344, %v3448
    %v3450 = vld [vmem:[#allocation3 + $0x30] sm:$0xff]
    %3452 = vrot.lane.b32.xlu0 %v3448, 32
    %v3453 = vpop.permute.xlu0 %3452
    %v3454 = vsel %vm72, %v3453, 0
    %3456 = vmatprep.subr.mxu0 0.0
    %3457 = vmatpush1.msra.mxu0 %v2819
    %3458 = vmatprep.subr.mxu0 0.0
    %3459 = vmatpush1.msra.mxu0 %v2820
    %3460 = vmatprep.subr.mxu0 0.0
    %3461 = vmatpush1.msra.mxu0 %v2821
    %3462 = vmatprep.subr.mxu0 0.0
    %3463 = vmatpush1.msra.mxu0 %v2822
    %3464 = vmatprep.subr.mxu0 0.0
    %3465 = vmatpush1.msra.mxu0 0.0
    %3466 = vmatprep.subr.mxu0 0.0
    %3467 = vmatpush1.msra.mxu0 0.0
    %3468 = vmatprep.subr.mxu0 0.0
    %3469 = vmatpush1.msra.mxu0 0.0
    %3470 = vmatprep.subr.mxu0 0.0
    %3471 = vmatpush1.msra.mxu0 0.0
    %3472 = vmatprep.subr.mxu0 0.0
    %3473 = vmatpush1.msra.mxu0 0.0
    %3474 = vmatprep.subr.mxu0 0.0
    %3475 = vmatpush1.msra.mxu0 0.0
    %3476 = vmatprep.subr.mxu0 0.0
    %3477 = vmatpush1.msra.mxu0 0.0
    %3478 = vmatprep.subr.mxu0 0.0
    %3479 = vmatpush1.msra.mxu0 0.0
    %3480 = vmatprep.subr.mxu0 0.0
    %3481 = vmatpush1.msra.mxu0 0.0
    %3482 = vmatprep.subr.mxu0 0.0
    %3483 = vmatpush1.msra.mxu0 0.0
    %3484 = vmatprep.subr.mxu0 0.0
    %3485 = vmatpush1.msra.mxu0 0.0
    %3486 = vmatprep.subr.mxu0 0.0
    %3487 = vmatpush1.msra.mxu0 0.0
    %3488 = vmatprep.subr.mxu0 0.0
    %3489 = vmatpush1.msra.mxu0 0.0
    %3490 = vmatprep.subr.mxu0 0.0
    %3491 = vmatpush1.msra.mxu0 0.0
    %3492 = vmatprep.subr.mxu0 0.0
    %3493 = vmatpush1.msra.mxu0 0.0
    %3494 = vmatprep.subr.mxu0 0.0
    %3495 = vmatpush1.msra.mxu0 0.0
    %3496 = vmatprep.subr.mxu0 0.0
    %3497 = vmatpush1.msra.mxu0 0.0
    %3498 = vmatprep.subr.mxu0 0.0
    %3499 = vmatpush1.msra.mxu0 0.0
    %3500 = vmatprep.subr.mxu0 0.0
    %3501 = vmatpush1.msra.mxu0 0.0
    %3502 = vmatprep.subr.mxu0 0.0
    %3503 = vmatpush1.msra.mxu0 0.0
    %3504 = vmatprep.subr.mxu0 0.0
    %3505 = vmatpush1.msra.mxu0 0.0
    %3506 = vmatprep.subr.mxu0 0.0
    %3507 = vmatpush1.msra.mxu0 0.0
    %3508 = vmatprep.subr.mxu0 0.0
    %3509 = vmatpush1.msra.mxu0 0.0
    %3510 = vmatprep.subr.mxu0 0.0
    %3511 = vmatpush1.msra.mxu0 0.0
    %3512 = vmatprep.subr.mxu0 0.0
    %3513 = vmatpush1.msra.mxu0 0.0
    %3514 = vmatprep.subr.mxu0 0.0
    %3515 = vmatpush1.msra.mxu0 0.0
    %3516 = vmatprep.subr.mxu0 0.0
    %3517 = vmatpush1.msra.mxu0 0.0
    %3518 = vmatprep.subr.mxu0 0.0
    %3519 = vmatpush1.msra.mxu0 0.0
    %3520 = vmatprep.mubr.f32.mxu0 0.0
    %3521 = vmatmul.mubr.f32.gmra.mrb[0].mxu0 %v3454
    %v3522 = vpop.f32.mrb[0].mxu0
    %v3523 = vadd.f32 0.0, %v3522
    %v3524 = vpop.f32.mrb[0].mxu0
    %3525 = vdwg.mxu0
    %v3526 = vadd.f32 %v3450, %v3523
    %v3527 = vmax.f32 %v3526, -30.0
    %v3528 = vsub.f32 0.0, %v3527
    %v3529 = vmul.f32 %v3528, 1.442695
    %v3530 = vpow.pop %v3529
    %v3531 = vadd.f32 %v3530, 1.0
    %v3532 = vrcp.pop %v3531
    %v3533 = vmul.f32 %v3531, %v3532
    %v3534 = vsub.f32 2.0, %v3533
    %v3535 = vmul.f32 %v3532, %v3534
    %v3536 = vtanh.pop %v3526
    %v3537 = vmul.f32 %v3535, %v3442
    %3539 = vrot.lane.b32.xlu0 %v3536, 64
    %v3540 = vpop.permute.xlu0 %3539
    %v3542 = vmul.f32 %v3535, %v3540
    %3544 = vrot.lane.b32.xlu0 %v3542, 32
    %v3545 = vpop.permute.xlu0 %3544
    %v3547 = vadd.f32 %v3537, %v3545
    %v3548 = vtanh.pop %v3547
    %3550 = vrot.lane.b32.xlu0 %v3548, 64
    %v3551 = vpop.permute.xlu0 %3550
    %v3553 = vmul.f32 %v3535, %v3551
    %v3554 = vmax.f32 %v3449, %v3553
    %v3555 = vld [vmem:[#allocation3 + $0x38] sm:$0xff]
    %3557 = vrot.lane.b32.xlu0 %v3553, 32
    %v3558 = vpop.permute.xlu0 %3557
    %v3559 = vsel %vm72, %v3558, 0
    %3561 = vmatprep.subr.mxu0 0.0
    %3562 = vmatpush1.msra.mxu0 %v2819
    %3563 = vmatprep.subr.mxu0 0.0
    %3564 = vmatpush1.msra.mxu0 %v2820
    %3565 = vmatprep.subr.mxu0 0.0
    %3566 = vmatpush1.msra.mxu0 %v2821
    %3567 = vmatprep.subr.mxu0 0.0
    %3568 = vmatpush1.msra.mxu0 %v2822
    %3569 = vmatprep.subr.mxu0 0.0
    %3570 = vmatpush1.msra.mxu0 0.0
    %3571 = vmatprep.subr.mxu0 0.0
    %3572 = vmatpush1.msra.mxu0 0.0
    %3573 = vmatprep.subr.mxu0 0.0
    %3574 = vmatpush1.msra.mxu0 0.0
    %3575 = vmatprep.subr.mxu0 0.0
    %3576 = vmatpush1.msra.mxu0 0.0
    %3577 = vmatprep.subr.mxu0 0.0
    %3578 = vmatpush1.msra.mxu0 0.0
    %3579 = vmatprep.subr.mxu0 0.0
    %3580 = vmatpush1.msra.mxu0 0.0
    %3581 = vmatprep.subr.mxu0 0.0
    %3582 = vmatpush1.msra.mxu0 0.0
    %3583 = vmatprep.subr.mxu0 0.0
    %3584 = vmatpush1.msra.mxu0 0.0
    %3585 = vmatprep.subr.mxu0 0.0
    %3586 = vmatpush1.msra.mxu0 0.0
    %3587 = vmatprep.subr.mxu0 0.0
    %3588 = vmatpush1.msra.mxu0 0.0
    %3589 = vmatprep.subr.mxu0 0.0
    %3590 = vmatpush1.msra.mxu0 0.0
    %3591 = vmatprep.subr.mxu0 0.0
    %3592 = vmatpush1.msra.mxu0 0.0
    %3593 = vmatprep.subr.mxu0 0.0
    %3594 = vmatpush1.msra.mxu0 0.0
    %3595 = vmatprep.subr.mxu0 0.0
    %3596 = vmatpush1.msra.mxu0 0.0
    %3597 = vmatprep.subr.mxu0 0.0
    %3598 = vmatpush1.msra.mxu0 0.0
    %3599 = vmatprep.subr.mxu0 0.0
    %3600 = vmatpush1.msra.mxu0 0.0
    %3601 = vmatprep.subr.mxu0 0.0
    %3602 = vmatpush1.msra.mxu0 0.0
    %3603 = vmatprep.subr.mxu0 0.0
    %3604 = vmatpush1.msra.mxu0 0.0
    %3605 = vmatprep.subr.mxu0 0.0
    %3606 = vmatpush1.msra.mxu0 0.0
    %3607 = vmatprep.subr.mxu0 0.0
    %3608 = vmatpush1.msra.mxu0 0.0
    %3609 = vmatprep.subr.mxu0 0.0
    %3610 = vmatpush1.msra.mxu0 0.0
    %3611 = vmatprep.subr.mxu0 0.0
    %3612 = vmatpush1.msra.mxu0 0.0
    %3613 = vmatprep.subr.mxu0 0.0
    %3614 = vmatpush1.msra.mxu0 0.0
    %3615 = vmatprep.subr.mxu0 0.0
    %3616 = vmatpush1.msra.mxu0 0.0
    %3617 = vmatprep.subr.mxu0 0.0
    %3618 = vmatpush1.msra.mxu0 0.0
    %3619 = vmatprep.subr.mxu0 0.0
    %3620 = vmatpush1.msra.mxu0 0.0
    %3621 = vmatprep.subr.mxu0 0.0
    %3622 = vmatpush1.msra.mxu0 0.0
    %3623 = vmatprep.subr.mxu0 0.0
    %3624 = vmatpush1.msra.mxu0 0.0
    %3625 = vmatprep.mubr.f32.mxu0 0.0
    %3626 = vmatmul.mubr.f32.gmra.mrb[0].mxu0 %v3559
    %v3627 = vpop.f32.mrb[0].mxu0
    %v3628 = vadd.f32 0.0, %v3627
    %v3629 = vpop.f32.mrb[0].mxu0
    %3630 = vdwg.mxu0
    %v3631 = vadd.f32 %v3555, %v3628
    %v3632 = vmax.f32 %v3631, -30.0
    %v3633 = vsub.f32 0.0, %v3632
    %v3634 = vmul.f32 %v3633, 1.442695
    %v3635 = vpow.pop %v3634
    %v3636 = vadd.f32 %v3635, 1.0
    %v3637 = vrcp.pop %v3636
    %v3638 = vmul.f32 %v3636, %v3637
    %v3639 = vsub.f32 2.0, %v3638
    %v3640 = vmul.f32 %v3637, %v3639
    %v3641 = vtanh.pop %v3631
    %v3642 = vmul.f32 %v3640, %v3547
    %3644 = vrot.lane.b32.xlu0 %v3641, 64
    %v3645 = vpop.permute.xlu0 %3644
    %v3647 = vmul.f32 %v3640, %v3645
    %3649 = vrot.lane.b32.xlu0 %v3647, 32
    %v3650 = vpop.permute.xlu0 %3649
    %v3652 = vadd.f32 %v3642, %v3650
    %v3653 = vtanh.pop %v3652
    %3655 = vrot.lane.b32.xlu0 %v3653, 64
    %v3656 = vpop.permute.xlu0 %3655
    %v3658 = vmul.f32 %v3640, %v3656
    %v3659 = vmax.f32 %v3554, %v3658
    %v3660 = vld [vmem:[#allocation3 + $0x40] sm:$0xff]
    %3662 = vrot.lane.b32.xlu0 %v3658, 32
    %v3663 = vpop.permute.xlu0 %3662
    %v3664 = vsel %vm72, %v3663, 0
    %3666 = vmatprep.subr.mxu0 0.0
    %3667 = vmatpush1.msra.mxu0 %v2819
    %3668 = vmatprep.subr.mxu0 0.0
    %3669 = vmatpush1.msra.mxu0 %v2820
    %3670 = vmatprep.subr.mxu0 0.0
    %3671 = vmatpush1.msra.mxu0 %v2821
    %3672 = vmatprep.subr.mxu0 0.0
    %3673 = vmatpush1.msra.mxu0 %v2822
    %3674 = vmatprep.subr.mxu0 0.0
    %3675 = vmatpush1.msra.mxu0 0.0
    %3676 = vmatprep.subr.mxu0 0.0
    %3677 = vmatpush1.msra.mxu0 0.0
    %3678 = vmatprep.subr.mxu0 0.0
    %3679 = vmatpush1.msra.mxu0 0.0
    %3680 = vmatprep.subr.mxu0 0.0
    %3681 = vmatpush1.msra.mxu0 0.0
    %3682 = vmatprep.subr.mxu0 0.0
    %3683 = vmatpush1.msra.mxu0 0.0
    %3684 = vmatprep.subr.mxu0 0.0
    %3685 = vmatpush1.msra.mxu0 0.0
    %3686 = vmatprep.subr.mxu0 0.0
    %3687 = vmatpush1.msra.mxu0 0.0
    %3688 = vmatprep.subr.mxu0 0.0
    %3689 = vmatpush1.msra.mxu0 0.0
    %3690 = vmatprep.subr.mxu0 0.0
    %3691 = vmatpush1.msra.mxu0 0.0
    %3692 = vmatprep.subr.mxu0 0.0
    %3693 = vmatpush1.msra.mxu0 0.0
    %3694 = vmatprep.subr.mxu0 0.0
    %3695 = vmatpush1.msra.mxu0 0.0
    %3696 = vmatprep.subr.mxu0 0.0
    %3697 = vmatpush1.msra.mxu0 0.0
    %3698 = vmatprep.subr.mxu0 0.0
    %3699 = vmatpush1.msra.mxu0 0.0
    %3700 = vmatprep.subr.mxu0 0.0
    %3701 = vmatpush1.msra.mxu0 0.0
    %3702 = vmatprep.subr.mxu0 0.0
    %3703 = vmatpush1.msra.mxu0 0.0
    %3704 = vmatprep.subr.mxu0 0.0
    %3705 = vmatpush1.msra.mxu0 0.0
    %3706 = vmatprep.subr.mxu0 0.0
    %3707 = vmatpush1.msra.mxu0 0.0
    %3708 = vmatprep.subr.mxu0 0.0
    %3709 = vmatpush1.msra.mxu0 0.0
    %3710 = vmatprep.subr.mxu0 0.0
    %3711 = vmatpush1.msra.mxu0 0.0
    %3712 = vmatprep.subr.mxu0 0.0
    %3713 = vmatpush1.msra.mxu0 0.0
    %3714 = vmatprep.subr.mxu0 0.0
    %3715 = vmatpush1.msra.mxu0 0.0
    %3716 = vmatprep.subr.mxu0 0.0
    %3717 = vmatpush1.msra.mxu0 0.0
    %3718 = vmatprep.subr.mxu0 0.0
    %3719 = vmatpush1.msra.mxu0 0.0
    %3720 = vmatprep.subr.mxu0 0.0
    %3721 = vmatpush1.msra.mxu0 0.0
    %3722 = vmatprep.subr.mxu0 0.0
    %3723 = vmatpush1.msra.mxu0 0.0
    %3724 = vmatprep.subr.mxu0 0.0
    %3725 = vmatpush1.msra.mxu0 0.0
    %3726 = vmatprep.subr.mxu0 0.0
    %3727 = vmatpush1.msra.mxu0 0.0
    %3728 = vmatprep.subr.mxu0 0.0
    %3729 = vmatpush1.msra.mxu0 0.0
    %3730 = vmatprep.mubr.f32.mxu0 0.0
    %3731 = vmatmul.mubr.f32.gmra.mrb[0].mxu0 %v3664
    %v3732 = vpop.f32.mrb[0].mxu0
    %v3733 = vadd.f32 0.0, %v3732
    %v3734 = vpop.f32.mrb[0].mxu0
    %3735 = vdwg.mxu0
    %v3736 = vadd.f32 %v3660, %v3733
    %v3737 = vmax.f32 %v3736, -30.0
    %v3738 = vsub.f32 0.0, %v3737
    %v3739 = vmul.f32 %v3738, 1.442695
    %v3740 = vpow.pop %v3739
    %v3741 = vadd.f32 %v3740, 1.0
    %v3742 = vrcp.pop %v3741
    %v3743 = vmul.f32 %v3741, %v3742
    %v3744 = vsub.f32 2.0, %v3743
    %v3745 = vmul.f32 %v3742, %v3744
    %v3746 = vtanh.pop %v3736
    %v3747 = vmul.f32 %v3745, %v3652
    %3749 = vrot.lane.b32.xlu0 %v3746, 64
    %v3750 = vpop.permute.xlu0 %3749
    %v3752 = vmul.f32 %v3745, %v3750
    %3754 = vrot.lane.b32.xlu0 %v3752, 32
    %v3755 = vpop.permute.xlu0 %3754
    %v3757 = vadd.f32 %v3747, %v3755
    %v3758 = vtanh.pop %v3757
    %3760 = vrot.lane.b32.xlu0 %v3758, 64
    %v3761 = vpop.permute.xlu0 %3760
    %v3763 = vmul.f32 %v3745, %v3761
    %v3764 = vmax.f32 %v3659, %v3763
    %v3765 = vld [vmem:[#allocation3 + $0x48] sm:$0xff]
    %3767 = vrot.lane.b32.xlu0 %v3763, 32
    %v3768 = vpop.permute.xlu0 %3767
    %v3769 = vsel %vm72, %v3768, 0
    %3771 = vmatprep.subr.mxu0 0.0
    %3772 = vmatpush1.msra.mxu0 %v2819
    %3773 = vmatprep.subr.mxu0 0.0
    %3774 = vmatpush1.msra.mxu0 %v2820
    %3775 = vmatprep.subr.mxu0 0.0
    %3776 = vmatpush1.msra.mxu0 %v2821
    %3777 = vmatprep.subr.mxu0 0.0
    %3778 = vmatpush1.msra.mxu0 %v2822
    %3779 = vmatprep.subr.mxu0 0.0
    %3780 = vmatpush1.msra.mxu0 0.0
    %3781 = vmatprep.subr.mxu0 0.0
    %3782 = vmatpush1.msra.mxu0 0.0
    %3783 = vmatprep.subr.mxu0 0.0
    %3784 = vmatpush1.msra.mxu0 0.0
    %3785 = vmatprep.subr.mxu0 0.0
    %3786 = vmatpush1.msra.mxu0 0.0
    %3787 = vmatprep.subr.mxu0 0.0
    %3788 = vmatpush1.msra.mxu0 0.0
    %3789 = vmatprep.subr.mxu0 0.0
    %3790 = vmatpush1.msra.mxu0 0.0
    %3791 = vmatprep.subr.mxu0 0.0
    %3792 = vmatpush1.msra.mxu0 0.0
    %3793 = vmatprep.subr.mxu0 0.0
    %3794 = vmatpush1.msra.mxu0 0.0
    %3795 = vmatprep.subr.mxu0 0.0
    %3796 = vmatpush1.msra.mxu0 0.0
    %3797 = vmatprep.subr.mxu0 0.0
    %3798 = vmatpush1.msra.mxu0 0.0
    %3799 = vmatprep.subr.mxu0 0.0
    %3800 = vmatpush1.msra.mxu0 0.0
    %3801 = vmatprep.subr.mxu0 0.0
    %3802 = vmatpush1.msra.mxu0 0.0
    %3803 = vmatprep.subr.mxu0 0.0
    %3804 = vmatpush1.msra.mxu0 0.0
    %3805 = vmatprep.subr.mxu0 0.0
    %3806 = vmatpush1.msra.mxu0 0.0
    %3807 = vmatprep.subr.mxu0 0.0
    %3808 = vmatpush1.msra.mxu0 0.0
    %3809 = vmatprep.subr.mxu0 0.0
    %3810 = vmatpush1.msra.mxu0 0.0
    %3811 = vmatprep.subr.mxu0 0.0
    %3812 = vmatpush1.msra.mxu0 0.0
    %3813 = vmatprep.subr.mxu0 0.0
    %3814 = vmatpush1.msra.mxu0 0.0
    %3815 = vmatprep.subr.mxu0 0.0
    %3816 = vmatpush1.msra.mxu0 0.0
    %3817 = vmatprep.subr.mxu0 0.0
    %3818 = vmatpush1.msra.mxu0 0.0
    %3819 = vmatprep.subr.mxu0 0.0
    %3820 = vmatpush1.msra.mxu0 0.0
    %3821 = vmatprep.subr.mxu0 0.0
    %3822 = vmatpush1.msra.mxu0 0.0
    %3823 = vmatprep.subr.mxu0 0.0
    %3824 = vmatpush1.msra.mxu0 0.0
    %3825 = vmatprep.subr.mxu0 0.0
    %3826 = vmatpush1.msra.mxu0 0.0
    %3827 = vmatprep.subr.mxu0 0.0
    %3828 = vmatpush1.msra.mxu0 0.0
    %3829 = vmatprep.subr.mxu0 0.0
    %3830 = vmatpush1.msra.mxu0 0.0
    %3831 = vmatprep.subr.mxu0 0.0
    %3832 = vmatpush1.msra.mxu0 0.0
    %3833 = vmatprep.subr.mxu0 0.0
    %3834 = vmatpush1.msra.mxu0 0.0
    %3835 = vmatprep.mubr.f32.mxu0 0.0
    %3836 = vmatmul.mubr.f32.gmra.mrb[0].mxu0 %v3769
    %v3837 = vpop.f32.mrb[0].mxu0
    %v3838 = vadd.f32 0.0, %v3837
    %v3839 = vpop.f32.mrb[0].mxu0
    %3840 = vdwg.mxu0
    %v3841 = vadd.f32 %v3765, %v3838
    %v3842 = vmax.f32 %v3841, -30.0
    %v3843 = vsub.f32 0.0, %v3842
    %v3844 = vmul.f32 %v3843, 1.442695
    %v3845 = vpow.pop %v3844
    %v3846 = vadd.f32 %v3845, 1.0
    %v3847 = vrcp.pop %v3846
    %v3848 = vmul.f32 %v3846, %v3847
    %v3849 = vsub.f32 2.0, %v3848
    %v3850 = vmul.f32 %v3847, %v3849
    %v3851 = vtanh.pop %v3841
    %v3852 = vmul.f32 %v3850, %v3757
    %3854 = vrot.lane.b32.xlu0 %v3851, 64
    %v3855 = vpop.permute.xlu0 %3854
    %v3857 = vmul.f32 %v3850, %v3855
    %3859 = vrot.lane.b32.xlu0 %v3857, 32
    %v3860 = vpop.permute.xlu0 %3859
    %v3862 = vadd.f32 %v3852, %v3860
    %v3863 = vtanh.pop %v3862
    %3865 = vrot.lane.b32.xlu0 %v3863, 64
    %v3866 = vpop.permute.xlu0 %3865
    %v3868 = vmul.f32 %v3850, %v3866
    %v3869 = vmax.f32 %v3764, %v3868
    %v3870 = vld [vmem:[#allocation3 + $0x50] sm:$0xff]
    %3872 = vrot.lane.b32.xlu0 %v3868, 32
    %v3873 = vpop.permute.xlu0 %3872
    %v3874 = vsel %vm72, %v3873, 0
    %3876 = vmatprep.subr.mxu0 0.0
    %3877 = vmatpush1.msra.mxu0 %v2819
    %3878 = vmatprep.subr.mxu0 0.0
    %3879 = vmatpush1.msra.mxu0 %v2820
    %3880 = vmatprep.subr.mxu0 0.0
    %3881 = vmatpush1.msra.mxu0 %v2821
    %3882 = vmatprep.subr.mxu0 0.0
    %3883 = vmatpush1.msra.mxu0 %v2822
    %3884 = vmatprep.subr.mxu0 0.0
    %3885 = vmatpush1.msra.mxu0 0.0
    %3886 = vmatprep.subr.mxu0 0.0
    %3887 = vmatpush1.msra.mxu0 0.0
    %3888 = vmatprep.subr.mxu0 0.0
    %3889 = vmatpush1.msra.mxu0 0.0
    %3890 = vmatprep.subr.mxu0 0.0
    %3891 = vmatpush1.msra.mxu0 0.0
    %3892 = vmatprep.subr.mxu0 0.0
    %3893 = vmatpush1.msra.mxu0 0.0
    %3894 = vmatprep.subr.mxu0 0.0
    %3895 = vmatpush1.msra.mxu0 0.0
    %3896 = vmatprep.subr.mxu0 0.0
    %3897 = vmatpush1.msra.mxu0 0.0
    %3898 = vmatprep.subr.mxu0 0.0
    %3899 = vmatpush1.msra.mxu0 0.0
    %3900 = vmatprep.subr.mxu0 0.0
    %3901 = vmatpush1.msra.mxu0 0.0
    %3902 = vmatprep.subr.mxu0 0.0
    %3903 = vmatpush1.msra.mxu0 0.0
    %3904 = vmatprep.subr.mxu0 0.0
    %3905 = vmatpush1.msra.mxu0 0.0
    %3906 = vmatprep.subr.mxu0 0.0
    %3907 = vmatpush1.msra.mxu0 0.0
    %3908 = vmatprep.subr.mxu0 0.0
    %3909 = vmatpush1.msra.mxu0 0.0
    %3910 = vmatprep.subr.mxu0 0.0
    %3911 = vmatpush1.msra.mxu0 0.0
    %3912 = vmatprep.subr.mxu0 0.0
    %3913 = vmatpush1.msra.mxu0 0.0
    %3914 = vmatprep.subr.mxu0 0.0
    %3915 = vmatpush1.msra.mxu0 0.0
    %3916 = vmatprep.subr.mxu0 0.0
    %3917 = vmatpush1.msra.mxu0 0.0
    %3918 = vmatprep.subr.mxu0 0.0
    %3919 = vmatpush1.msra.mxu0 0.0
    %3920 = vmatprep.subr.mxu0 0.0
    %3921 = vmatpush1.msra.mxu0 0.0
    %3922 = vmatprep.subr.mxu0 0.0
    %3923 = vmatpush1.msra.mxu0 0.0
    %3924 = vmatprep.subr.mxu0 0.0
    %3925 = vmatpush1.msra.mxu0 0.0
    %3926 = vmatprep.subr.mxu0 0.0
    %3927 = vmatpush1.msra.mxu0 0.0
    %3928 = vmatprep.subr.mxu0 0.0
    %3929 = vmatpush1.msra.mxu0 0.0
    %3930 = vmatprep.subr.mxu0 0.0
    %3931 = vmatpush1.msra.mxu0 0.0
    %3932 = vmatprep.subr.mxu0 0.0
    %3933 = vmatpush1.msra.mxu0 0.0
    %3934 = vmatprep.subr.mxu0 0.0
    %3935 = vmatpush1.msra.mxu0 0.0
    %3936 = vmatprep.subr.mxu0 0.0
    %3937 = vmatpush1.msra.mxu0 0.0
    %3938 = vmatprep.subr.mxu0 0.0
    %3939 = vmatpush1.msra.mxu0 0.0
    %3940 = vmatprep.mubr.f32.mxu0 0.0
    %3941 = vmatmul.mubr.f32.gmra.mrb[0].mxu0 %v3874
    %v3942 = vpop.f32.mrb[0].mxu0
    %v3943 = vadd.f32 0.0, %v3942
    %v3944 = vpop.f32.mrb[0].mxu0
    %3945 = vdwg.mxu0
    %v3946 = vadd.f32 %v3870, %v3943
    %v3947 = vmax.f32 %v3946, -30.0
    %v3948 = vsub.f32 0.0, %v3947
    %v3949 = vmul.f32 %v3948, 1.442695
    %v3950 = vpow.pop %v3949
    %v3951 = vadd.f32 %v3950, 1.0
    %v3952 = vrcp.pop %v3951
    %v3953 = vmul.f32 %v3951, %v3952
    %v3954 = vsub.f32 2.0, %v3953
    %v3955 = vmul.f32 %v3952, %v3954
    %v3956 = vtanh.pop %v3946
    %v3957 = vmul.f32 %v3955, %v3862
    %3959 = vrot.lane.b32.xlu0 %v3956, 64
    %v3960 = vpop.permute.xlu0 %3959
    %v3962 = vmul.f32 %v3955, %v3960
    %3964 = vrot.lane.b32.xlu0 %v3962, 32
    %v3965 = vpop.permute.xlu0 %3964
    %v3967 = vadd.f32 %v3957, %v3965
    %v3968 = vtanh.pop %v3967
    %3970 = vrot.lane.b32.xlu0 %v3968, 64
    %v3971 = vpop.permute.xlu0 %3970
    %v3973 = vmul.f32 %v3955, %v3971
    %v3974 = vmax.f32 %v3869, %v3973
    %v3975 = vld [vmem:[#allocation3 + $0x58] sm:$0xff]
    %3977 = vrot.lane.b32.xlu0 %v3973, 32
    %v3978 = vpop.permute.xlu0 %3977
    %v3979 = vsel %vm72, %v3978, 0
    %3981 = vmatprep.subr.mxu0 0.0
    %3982 = vmatpush1.msra.mxu0 %v2819
    %3983 = vmatprep.subr.mxu0 0.0
    %3984 = vmatpush1.msra.mxu0 %v2820
    %3985 = vmatprep.subr.mxu0 0.0
    %3986 = vmatpush1.msra.mxu0 %v2821
    %3987 = vmatprep.subr.mxu0 0.0
    %3988 = vmatpush1.msra.mxu0 %v2822
    %3989 = vmatprep.subr.mxu0 0.0
    %3990 = vmatpush1.msra.mxu0 0.0
    %3991 = vmatprep.subr.mxu0 0.0
    %3992 = vmatpush1.msra.mxu0 0.0
    %3993 = vmatprep.subr.mxu0 0.0
    %3994 = vmatpush1.msra.mxu0 0.0
    %3995 = vmatprep.subr.mxu0 0.0
    %3996 = vmatpush1.msra.mxu0 0.0
    %3997 = vmatprep.subr.mxu0 0.0
    %3998 = vmatpush1.msra.mxu0 0.0
    %3999 = vmatprep.subr.mxu0 0.0
    %4000 = vmatpush1.msra.mxu0 0.0
    %4001 = vmatprep.subr.mxu0 0.0
    %4002 = vmatpush1.msra.mxu0 0.0
    %4003 = vmatprep.subr.mxu0 0.0
    %4004 = vmatpush1.msra.mxu0 0.0
    %4005 = vmatprep.subr.mxu0 0.0
    %4006 = vmatpush1.msra.mxu0 0.0
    %4007 = vmatprep.subr.mxu0 0.0
    %4008 = vmatpush1.msra.mxu0 0.0
    %4009 = vmatprep.subr.mxu0 0.0
    %4010 = vmatpush1.msra.mxu0 0.0
    %4011 = vmatprep.subr.mxu0 0.0
    %4012 = vmatpush1.msra.mxu0 0.0
    %4013 = vmatprep.subr.mxu0 0.0
    %4014 = vmatpush1.msra.mxu0 0.0
    %4015 = vmatprep.subr.mxu0 0.0
    %4016 = vmatpush1.msra.mxu0 0.0
    %4017 = vmatprep.subr.mxu0 0.0
    %4018 = vmatpush1.msra.mxu0 0.0
    %4019 = vmatprep.subr.mxu0 0.0
    %4020 = vmatpush1.msra.mxu0 0.0
    %4021 = vmatprep.subr.mxu0 0.0
    %4022 = vmatpush1.msra.mxu0 0.0
    %4023 = vmatprep.subr.mxu0 0.0
    %4024 = vmatpush1.msra.mxu0 0.0
    %4025 = vmatprep.subr.mxu0 0.0
    %4026 = vmatpush1.msra.mxu0 0.0
    %4027 = vmatprep.subr.mxu0 0.0
    %4028 = vmatpush1.msra.mxu0 0.0
    %4029 = vmatprep.subr.mxu0 0.0
    %4030 = vmatpush1.msra.mxu0 0.0
    %4031 = vmatprep.subr.mxu0 0.0
    %4032 = vmatpush1.msra.mxu0 0.0
    %4033 = vmatprep.subr.mxu0 0.0
    %4034 = vmatpush1.msra.mxu0 0.0
    %4035 = vmatprep.subr.mxu0 0.0
    %4036 = vmatpush1.msra.mxu0 0.0
    %4037 = vmatprep.subr.mxu0 0.0
    %4038 = vmatpush1.msra.mxu0 0.0
    %4039 = vmatprep.subr.mxu0 0.0
    %4040 = vmatpush1.msra.mxu0 0.0
    %4041 = vmatprep.subr.mxu0 0.0
    %4042 = vmatpush1.msra.mxu0 0.0
    %4043 = vmatprep.subr.mxu0 0.0
    %4044 = vmatpush1.msra.mxu0 0.0
    %4045 = vmatprep.mubr.f32.mxu0 0.0
    %4046 = vmatmul.mubr.f32.gmra.mrb[0].mxu0 %v3979
    %v4047 = vpop.f32.mrb[0].mxu0
    %v4048 = vadd.f32 0.0, %v4047
    %v4049 = vpop.f32.mrb[0].mxu0
    %4050 = vdwg.mxu0
    %v4051 = vadd.f32 %v3975, %v4048
    %v4052 = vmax.f32 %v4051, -30.0
    %v4053 = vsub.f32 0.0, %v4052
    %v4054 = vmul.f32 %v4053, 1.442695
    %v4055 = vpow.pop %v4054
    %v4056 = vadd.f32 %v4055, 1.0
    %v4057 = vrcp.pop %v4056
    %v4058 = vmul.f32 %v4056, %v4057
    %v4059 = vsub.f32 2.0, %v4058
    %v4060 = vmul.f32 %v4057, %v4059
    %v4061 = vtanh.pop %v4051
    %v4062 = vmul.f32 %v4060, %v3967
    %4064 = vrot.lane.b32.xlu0 %v4061, 64
    %v4065 = vpop.permute.xlu0 %4064
    %v4067 = vmul.f32 %v4060, %v4065
    %4069 = vrot.lane.b32.xlu0 %v4067, 32
    %v4070 = vpop.permute.xlu0 %4069
    %v4072 = vadd.f32 %v4062, %v4070
    %v4073 = vtanh.pop %v4072
    %4075 = vrot.lane.b32.xlu0 %v4073, 64
    %v4076 = vpop.permute.xlu0 %4075
    %v4078 = vmul.f32 %v4060, %v4076
    %v4079 = vmax.f32 %v3974, %v4078
    %v4080 = vld [vmem:[#allocation3 + $0x60] sm:$0xff]
    %4082 = vrot.lane.b32.xlu0 %v4078, 32
    %v4083 = vpop.permute.xlu0 %4082
    %v4084 = vsel %vm72, %v4083, 0
    %4086 = vmatprep.subr.mxu0 0.0
    %4087 = vmatpush1.msra.mxu0 %v2819
    %4088 = vmatprep.subr.mxu0 0.0
    %4089 = vmatpush1.msra.mxu0 %v2820
    %4090 = vmatprep.subr.mxu0 0.0
    %4091 = vmatpush1.msra.mxu0 %v2821
    %4092 = vmatprep.subr.mxu0 0.0
    %4093 = vmatpush1.msra.mxu0 %v2822
    %4094 = vmatprep.subr.mxu0 0.0
    %4095 = vmatpush1.msra.mxu0 0.0
    %4096 = vmatprep.subr.mxu0 0.0
    %4097 = vmatpush1.msra.mxu0 0.0
    %4098 = vmatprep.subr.mxu0 0.0
    %4099 = vmatpush1.msra.mxu0 0.0
    %4100 = vmatprep.subr.mxu0 0.0
    %4101 = vmatpush1.msra.mxu0 0.0
    %4102 = vmatprep.subr.mxu0 0.0
    %4103 = vmatpush1.msra.mxu0 0.0
    %4104 = vmatprep.subr.mxu0 0.0
    %4105 = vmatpush1.msra.mxu0 0.0
    %4106 = vmatprep.subr.mxu0 0.0
    %4107 = vmatpush1.msra.mxu0 0.0
    %4108 = vmatprep.subr.mxu0 0.0
    %4109 = vmatpush1.msra.mxu0 0.0
    %4110 = vmatprep.subr.mxu0 0.0
    %4111 = vmatpush1.msra.mxu0 0.0
    %4112 = vmatprep.subr.mxu0 0.0
    %4113 = vmatpush1.msra.mxu0 0.0
    %4114 = vmatprep.subr.mxu0 0.0
    %4115 = vmatpush1.msra.mxu0 0.0
    %4116 = vmatprep.subr.mxu0 0.0
    %4117 = vmatpush1.msra.mxu0 0.0
    %4118 = vmatprep.subr.mxu0 0.0
    %4119 = vmatpush1.msra.mxu0 0.0
    %4120 = vmatprep.subr.mxu0 0.0
    %4121 = vmatpush1.msra.mxu0 0.0
    %4122 = vmatprep.subr.mxu0 0.0
    %4123 = vmatpush1.msra.mxu0 0.0
    %4124 = vmatprep.subr.mxu0 0.0
    %4125 = vmatpush1.msra.mxu0 0.0
    %4126 = vmatprep.subr.mxu0 0.0
    %4127 = vmatpush1.msra.mxu0 0.0
    %4128 = vmatprep.subr.mxu0 0.0
    %4129 = vmatpush1.msra.mxu0 0.0
    %4130 = vmatprep.subr.mxu0 0.0
    %4131 = vmatpush1.msra.mxu0 0.0
    %4132 = vmatprep.subr.mxu0 0.0
    %4133 = vmatpush1.msra.mxu0 0.0
    %4134 = vmatprep.subr.mxu0 0.0
    %4135 = vmatpush1.msra.mxu0 0.0
    %4136 = vmatprep.subr.mxu0 0.0
    %4137 = vmatpush1.msra.mxu0 0.0
    %4138 = vmatprep.subr.mxu0 0.0
    %4139 = vmatpush1.msra.mxu0 0.0
    %4140 = vmatprep.subr.mxu0 0.0
    %4141 = vmatpush1.msra.mxu0 0.0
    %4142 = vmatprep.subr.mxu0 0.0
    %4143 = vmatpush1.msra.mxu0 0.0
    %4144 = vmatprep.subr.mxu0 0.0
    %4145 = vmatpush1.msra.mxu0 0.0
    %4146 = vmatprep.subr.mxu0 0.0
    %4147 = vmatpush1.msra.mxu0 0.0
    %4148 = vmatprep.subr.mxu0 0.0
    %4149 = vmatpush1.msra.mxu0 0.0
    %4150 = vmatprep.mubr.f32.mxu0 0.0
    %4151 = vmatmul.mubr.f32.gmra.mrb[0].mxu0 %v4084
    %v4152 = vpop.f32.mrb[0].mxu0
    %v4153 = vadd.f32 0.0, %v4152
    %v4154 = vpop.f32.mrb[0].mxu0
    %4155 = vdwg.mxu0
    %v4156 = vadd.f32 %v4080, %v4153
    %v4157 = vmax.f32 %v4156, -30.0
    %v4158 = vsub.f32 0.0, %v4157
    %v4159 = vmul.f32 %v4158, 1.442695
    %v4160 = vpow.pop %v4159
    %v4161 = vadd.f32 %v4160, 1.0
    %v4162 = vrcp.pop %v4161
    %v4163 = vmul.f32 %v4161, %v4162
    %v4164 = vsub.f32 2.0, %v4163
    %v4165 = vmul.f32 %v4162, %v4164
    %v4166 = vtanh.pop %v4156
    %v4167 = vmul.f32 %v4165, %v4072
    %4169 = vrot.lane.b32.xlu0 %v4166, 64
    %v4170 = vpop.permute.xlu0 %4169
    %v4172 = vmul.f32 %v4165, %v4170
    %4174 = vrot.lane.b32.xlu0 %v4172, 32
    %v4175 = vpop.permute.xlu0 %4174
    %v4177 = vadd.f32 %v4167, %v4175
    %v4178 = vtanh.pop %v4177
    %4180 = vrot.lane.b32.xlu0 %v4178, 64
    %v4181 = vpop.permute.xlu0 %4180
    %v4183 = vmul.f32 %v4165, %v4181
    %v4184 = vmax.f32 %v4079, %v4183
    %v4185 = vld [vmem:[#allocation3 + $0x68] sm:$0xff]
    %4187 = vrot.lane.b32.xlu0 %v4183, 32
    %v4188 = vpop.permute.xlu0 %4187
    %v4189 = vsel %vm72, %v4188, 0
    %4191 = vmatprep.subr.mxu0 0.0
    %4192 = vmatpush1.msra.mxu0 %v2819
    %4193 = vmatprep.subr.mxu0 0.0
    %4194 = vmatpush1.msra.mxu0 %v2820
    %4195 = vmatprep.subr.mxu0 0.0
    %4196 = vmatpush1.msra.mxu0 %v2821
    %4197 = vmatprep.subr.mxu0 0.0
    %4198 = vmatpush1.msra.mxu0 %v2822
    %4199 = vmatprep.subr.mxu0 0.0
    %4200 = vmatpush1.msra.mxu0 0.0
    %4201 = vmatprep.subr.mxu0 0.0
    %4202 = vmatpush1.msra.mxu0 0.0
    %4203 = vmatprep.subr.mxu0 0.0
    %4204 = vmatpush1.msra.mxu0 0.0
    %4205 = vmatprep.subr.mxu0 0.0
    %4206 = vmatpush1.msra.mxu0 0.0
    %4207 = vmatprep.subr.mxu0 0.0
    %4208 = vmatpush1.msra.mxu0 0.0
    %4209 = vmatprep.subr.mxu0 0.0
    %4210 = vmatpush1.msra.mxu0 0.0
    %4211 = vmatprep.subr.mxu0 0.0
    %4212 = vmatpush1.msra.mxu0 0.0
    %4213 = vmatprep.subr.mxu0 0.0
    %4214 = vmatpush1.msra.mxu0 0.0
    %4215 = vmatprep.subr.mxu0 0.0
    %4216 = vmatpush1.msra.mxu0 0.0
    %4217 = vmatprep.subr.mxu0 0.0
    %4218 = vmatpush1.msra.mxu0 0.0
    %4219 = vmatprep.subr.mxu0 0.0
    %4220 = vmatpush1.msra.mxu0 0.0
    %4221 = vmatprep.subr.mxu0 0.0
    %4222 = vmatpush1.msra.mxu0 0.0
    %4223 = vmatprep.subr.mxu0 0.0
    %4224 = vmatpush1.msra.mxu0 0.0
    %4225 = vmatprep.subr.mxu0 0.0
    %4226 = vmatpush1.msra.mxu0 0.0
    %4227 = vmatprep.subr.mxu0 0.0
    %4228 = vmatpush1.msra.mxu0 0.0
    %4229 = vmatprep.subr.mxu0 0.0
    %4230 = vmatpush1.msra.mxu0 0.0
    %4231 = vmatprep.subr.mxu0 0.0
    %4232 = vmatpush1.msra.mxu0 0.0
    %4233 = vmatprep.subr.mxu0 0.0
    %4234 = vmatpush1.msra.mxu0 0.0
    %4235 = vmatprep.subr.mxu0 0.0
    %4236 = vmatpush1.msra.mxu0 0.0
    %4237 = vmatprep.subr.mxu0 0.0
    %4238 = vmatpush1.msra.mxu0 0.0
    %4239 = vmatprep.subr.mxu0 0.0
    %4240 = vmatpush1.msra.mxu0 0.0
    %4241 = vmatprep.subr.mxu0 0.0
    %4242 = vmatpush1.msra.mxu0 0.0
    %4243 = vmatprep.subr.mxu0 0.0
    %4244 = vmatpush1.msra.mxu0 0.0
    %4245 = vmatprep.subr.mxu0 0.0
    %4246 = vmatpush1.msra.mxu0 0.0
    %4247 = vmatprep.subr.mxu0 0.0
    %4248 = vmatpush1.msra.mxu0 0.0
    %4249 = vmatprep.subr.mxu0 0.0
    %4250 = vmatpush1.msra.mxu0 0.0
    %4251 = vmatprep.subr.mxu0 0.0
    %4252 = vmatpush1.msra.mxu0 0.0
    %4253 = vmatprep.subr.mxu0 0.0
    %4254 = vmatpush1.msra.mxu0 0.0
    %4255 = vmatprep.mubr.f32.mxu0 0.0
    %4256 = vmatmul.mubr.f32.gmra.mrb[0].mxu0 %v4189
    %v4257 = vpop.f32.mrb[0].mxu0
    %v4258 = vadd.f32 0.0, %v4257
    %v4259 = vpop.f32.mrb[0].mxu0
    %4260 = vdwg.mxu0
    %v4261 = vadd.f32 %v4185, %v4258
    %v4262 = vmax.f32 %v4261, -30.0
    %v4263 = vsub.f32 0.0, %v4262
    %v4264 = vmul.f32 %v4263, 1.442695
    %v4265 = vpow.pop %v4264
    %v4266 = vadd.f32 %v4265, 1.0
    %v4267 = vrcp.pop %v4266
    %v4268 = vmul.f32 %v4266, %v4267
    %v4269 = vsub.f32 2.0, %v4268
    %v4270 = vmul.f32 %v4267, %v4269
    %v4271 = vtanh.pop %v4261
    %v4272 = vmul.f32 %v4270, %v4177
    %4274 = vrot.lane.b32.xlu0 %v4271, 64
    %v4275 = vpop.permute.xlu0 %4274
    %v4277 = vmul.f32 %v4270, %v4275
    %4279 = vrot.lane.b32.xlu0 %v4277, 32
    %v4280 = vpop.permute.xlu0 %4279
    %v4282 = vadd.f32 %v4272, %v4280
    %v4283 = vtanh.pop %v4282
    %4285 = vrot.lane.b32.xlu0 %v4283, 64
    %v4286 = vpop.permute.xlu0 %4285
    %v4288 = vmul.f32 %v4270, %v4286
    %v4289 = vmax.f32 %v4184, %v4288
    %v4290 = vld [vmem:[#allocation3 + $0x70] sm:$0xff]
    %4292 = vrot.lane.b32.xlu0 %v4288, 32
    %v4293 = vpop.permute.xlu0 %4292
    %v4294 = vsel %vm72, %v4293, 0
    %4296 = vmatprep.subr.mxu0 0.0
    %4297 = vmatpush1.msra.mxu0 %v2819
    %4298 = vmatprep.subr.mxu0 0.0
    %4299 = vmatpush1.msra.mxu0 %v2820
    %4300 = vmatprep.subr.mxu0 0.0
    %4301 = vmatpush1.msra.mxu0 %v2821
    %4302 = vmatprep.subr.mxu0 0.0
    %4303 = vmatpush1.msra.mxu0 %v2822
    %4304 = vmatprep.subr.mxu0 0.0
    %4305 = vmatpush1.msra.mxu0 0.0
    %4306 = vmatprep.subr.mxu0 0.0
    %4307 = vmatpush1.msra.mxu0 0.0
    %4308 = vmatprep.subr.mxu0 0.0
    %4309 = vmatpush1.msra.mxu0 0.0
    %4310 = vmatprep.subr.mxu0 0.0
    %4311 = vmatpush1.msra.mxu0 0.0
    %4312 = vmatprep.subr.mxu0 0.0
    %4313 = vmatpush1.msra.mxu0 0.0
    %4314 = vmatprep.subr.mxu0 0.0
    %4315 = vmatpush1.msra.mxu0 0.0
    %4316 = vmatprep.subr.mxu0 0.0
    %4317 = vmatpush1.msra.mxu0 0.0
    %4318 = vmatprep.subr.mxu0 0.0
    %4319 = vmatpush1.msra.mxu0 0.0
    %4320 = vmatprep.subr.mxu0 0.0
    %4321 = vmatpush1.msra.mxu0 0.0
    %4322 = vmatprep.subr.mxu0 0.0
    %4323 = vmatpush1.msra.mxu0 0.0
    %4324 = vmatprep.subr.mxu0 0.0
    %4325 = vmatpush1.msra.mxu0 0.0
    %4326 = vmatprep.subr.mxu0 0.0
    %4327 = vmatpush1.msra.mxu0 0.0
    %4328 = vmatprep.subr.mxu0 0.0
    %4329 = vmatpush1.msra.mxu0 0.0
    %4330 = vmatprep.subr.mxu0 0.0
    %4331 = vmatpush1.msra.mxu0 0.0
    %4332 = vmatprep.subr.mxu0 0.0
    %4333 = vmatpush1.msra.mxu0 0.0
    %4334 = vmatprep.subr.mxu0 0.0
    %4335 = vmatpush1.msra.mxu0 0.0
    %4336 = vmatprep.subr.mxu0 0.0
    %4337 = vmatpush1.msra.mxu0 0.0
    %4338 = vmatprep.subr.mxu0 0.0
    %4339 = vmatpush1.msra.mxu0 0.0
    %4340 = vmatprep.subr.mxu0 0.0
    %4341 = vmatpush1.msra.mxu0 0.0
    %4342 = vmatprep.subr.mxu0 0.0
    %4343 = vmatpush1.msra.mxu0 0.0
    %4344 = vmatprep.subr.mxu0 0.0
    %4345 = vmatpush1.msra.mxu0 0.0
    %4346 = vmatprep.subr.mxu0 0.0
    %4347 = vmatpush1.msra.mxu0 0.0
    %4348 = vmatprep.subr.mxu0 0.0
    %4349 = vmatpush1.msra.mxu0 0.0
    %4350 = vmatprep.subr.mxu0 0.0
    %4351 = vmatpush1.msra.mxu0 0.0
    %4352 = vmatprep.subr.mxu0 0.0
    %4353 = vmatpush1.msra.mxu0 0.0
    %4354 = vmatprep.subr.mxu0 0.0
    %4355 = vmatpush1.msra.mxu0 0.0
    %4356 = vmatprep.subr.mxu0 0.0
    %4357 = vmatpush1.msra.mxu0 0.0
    %4358 = vmatprep.subr.mxu0 0.0
    %4359 = vmatpush1.msra.mxu0 0.0
    %4360 = vmatprep.mubr.f32.mxu0 0.0
    %4361 = vmatmul.mubr.f32.gmra.mrb[0].mxu0 %v4294
    %v4362 = vpop.f32.mrb[0].mxu0
    %v4363 = vadd.f32 0.0, %v4362
    %v4364 = vpop.f32.mrb[0].mxu0
    %4365 = vdwg.mxu0
    %v4366 = vadd.f32 %v4290, %v4363
    %v4367 = vmax.f32 %v4366, -30.0
    %v4368 = vsub.f32 0.0, %v4367
    %v4369 = vmul.f32 %v4368, 1.442695
    %v4370 = vpow.pop %v4369
    %v4371 = vadd.f32 %v4370, 1.0
    %v4372 = vrcp.pop %v4371
    %v4373 = vmul.f32 %v4371, %v4372
    %v4374 = vsub.f32 2.0, %v4373
    %v4375 = vmul.f32 %v4372, %v4374
    %v4376 = vtanh.pop %v4366
    %v4377 = vmul.f32 %v4375, %v4282
    %4379 = vrot.lane.b32.xlu0 %v4376, 64
    %v4380 = vpop.permute.xlu0 %4379
    %v4382 = vmul.f32 %v4375, %v4380
    %4384 = vrot.lane.b32.xlu0 %v4382, 32
    %v4385 = vpop.permute.xlu0 %4384
    %v4387 = vadd.f32 %v4377, %v4385
    %v4388 = vtanh.pop %v4387
    %4390 = vrot.lane.b32.xlu0 %v4388, 64
    %v4391 = vpop.permute.xlu0 %4390
    %v4393 = vmul.f32 %v4375, %v4391
    %v4394 = vmax.f32 %v4289, %v4393
    %v4395 = vld [vmem:[#allocation3 + $0x78] sm:$0xff]
    %4397 = vrot.lane.b32.xlu0 %v4393, 32
    %v4398 = vpop.permute.xlu0 %4397
    %v4399 = vsel %vm72, %v4398, 0
    %4401 = vmatprep.subr.mxu0 0.0
    %4402 = vmatpush1.msra.mxu0 %v2819
    %4403 = vmatprep.subr.mxu0 0.0
    %4404 = vmatpush1.msra.mxu0 %v2820
    %4405 = vmatprep.subr.mxu0 0.0
    %4406 = vmatpush1.msra.mxu0 %v2821
    %4407 = vmatprep.subr.mxu0 0.0
    %4408 = vmatpush1.msra.mxu0 %v2822
    %4409 = vmatprep.subr.mxu0 0.0
    %4410 = vmatpush1.msra.mxu0 0.0
    %4411 = vmatprep.subr.mxu0 0.0
    %4412 = vmatpush1.msra.mxu0 0.0
    %4413 = vmatprep.subr.mxu0 0.0
    %4414 = vmatpush1.msra.mxu0 0.0
    %4415 = vmatprep.subr.mxu0 0.0
    %4416 = vmatpush1.msra.mxu0 0.0
    %4417 = vmatprep.subr.mxu0 0.0
    %4418 = vmatpush1.msra.mxu0 0.0
    %4419 = vmatprep.subr.mxu0 0.0
    %4420 = vmatpush1.msra.mxu0 0.0
    %4421 = vmatprep.subr.mxu0 0.0
    %4422 = vmatpush1.msra.mxu0 0.0
    %4423 = vmatprep.subr.mxu0 0.0
    %4424 = vmatpush1.msra.mxu0 0.0
    %4425 = vmatprep.subr.mxu0 0.0
    %4426 = vmatpush1.msra.mxu0 0.0
    %4427 = vmatprep.subr.mxu0 0.0
    %4428 = vmatpush1.msra.mxu0 0.0
    %4429 = vmatprep.subr.mxu0 0.0
    %4430 = vmatpush1.msra.mxu0 0.0
    %4431 = vmatprep.subr.mxu0 0.0
    %4432 = vmatpush1.msra.mxu0 0.0
    %4433 = vmatprep.subr.mxu0 0.0
    %4434 = vmatpush1.msra.mxu0 0.0
    %4435 = vmatprep.subr.mxu0 0.0
    %4436 = vmatpush1.msra.mxu0 0.0
    %4437 = vmatprep.subr.mxu0 0.0
    %4438 = vmatpush1.msra.mxu0 0.0
    %4439 = vmatprep.subr.mxu0 0.0
    %4440 = vmatpush1.msra.mxu0 0.0
    %4441 = vmatprep.subr.mxu0 0.0
    %4442 = vmatpush1.msra.mxu0 0.0
    %4443 = vmatprep.subr.mxu0 0.0
    %4444 = vmatpush1.msra.mxu0 0.0
    %4445 = vmatprep.subr.mxu0 0.0
    %4446 = vmatpush1.msra.mxu0 0.0
    %4447 = vmatprep.subr.mxu0 0.0
    %4448 = vmatpush1.msra.mxu0 0.0
    %4449 = vmatprep.subr.mxu0 0.0
    %4450 = vmatpush1.msra.mxu0 0.0
    %4451 = vmatprep.subr.mxu0 0.0
    %4452 = vmatpush1.msra.mxu0 0.0
    %4453 = vmatprep.subr.mxu0 0.0
    %4454 = vmatpush1.msra.mxu0 0.0
    %4455 = vmatprep.subr.mxu0 0.0
    %4456 = vmatpush1.msra.mxu0 0.0
    %4457 = vmatprep.subr.mxu0 0.0
    %4458 = vmatpush1.msra.mxu0 0.0
    %4459 = vmatprep.subr.mxu0 0.0
    %4460 = vmatpush1.msra.mxu0 0.0
    %4461 = vmatprep.subr.mxu0 0.0
    %4462 = vmatpush1.msra.mxu0 0.0
    %4463 = vmatprep.subr.mxu0 0.0
    %4464 = vmatpush1.msra.mxu0 0.0
    %4465 = vmatprep.mubr.f32.mxu0 0.0
    %4466 = vmatmul.mubr.f32.gmra.mrb[0].mxu0 %v4399
    %v4467 = vpop.f32.mrb[0].mxu0
    %v4468 = vadd.f32 0.0, %v4467
    %v4469 = vpop.f32.mrb[0].mxu0
    %4470 = vdwg.mxu0
    %v4471 = vadd.f32 %v4395, %v4468
    %v4472 = vmax.f32 %v4471, -30.0
    %v4473 = vsub.f32 0.0, %v4472
    %v4474 = vmul.f32 %v4473, 1.442695
    %v4475 = vpow.pop %v4474
    %v4476 = vadd.f32 %v4475, 1.0
    %v4477 = vrcp.pop %v4476
    %v4478 = vmul.f32 %v4476, %v4477
    %v4479 = vsub.f32 2.0, %v4478
    %v4480 = vmul.f32 %v4477, %v4479
    %v4481 = vtanh.pop %v4471
    %v4482 = vmul.f32 %v4480, %v4387
    %4484 = vrot.lane.b32.xlu0 %v4481, 64
    %v4485 = vpop.permute.xlu0 %4484
    %v4487 = vmul.f32 %v4480, %v4485
    %4489 = vrot.lane.b32.xlu0 %v4487, 32
    %v4490 = vpop.permute.xlu0 %4489
    %v4492 = vadd.f32 %v4482, %v4490
    %v4493 = vtanh.pop %v4492
    %4495 = vrot.lane.b32.xlu0 %v4493, 64
    %v4496 = vpop.permute.xlu0 %4495
    %v4498 = vmul.f32 %v4480, %v4496
    %v4499 = vmax.f32 %v4394, %v4498
    %v4500 = vld [vmem:[#allocation3 + $0x80] sm:$0xff]
    %4502 = vrot.lane.b32.xlu0 %v4498, 32
    %v4503 = vpop.permute.xlu0 %4502
    %v4504 = vsel %vm72, %v4503, 0
    %4506 = vmatprep.subr.mxu0 0.0
    %4507 = vmatpush1.msra.mxu0 %v2819
    %4508 = vmatprep.subr.mxu0 0.0
    %4509 = vmatpush1.msra.mxu0 %v2820
    %4510 = vmatprep.subr.mxu0 0.0
    %4511 = vmatpush1.msra.mxu0 %v2821
    %4512 = vmatprep.subr.mxu0 0.0
    %4513 = vmatpush1.msra.mxu0 %v2822
    %4514 = vmatprep.subr.mxu0 0.0
    %4515 = vmatpush1.msra.mxu0 0.0
    %4516 = vmatprep.subr.mxu0 0.0
    %4517 = vmatpush1.msra.mxu0 0.0
    %4518 = vmatprep.subr.mxu0 0.0
    %4519 = vmatpush1.msra.mxu0 0.0
    %4520 = vmatprep.subr.mxu0 0.0
    %4521 = vmatpush1.msra.mxu0 0.0
    %4522 = vmatprep.subr.mxu0 0.0
    %4523 = vmatpush1.msra.mxu0 0.0
    %4524 = vmatprep.subr.mxu0 0.0
    %4525 = vmatpush1.msra.mxu0 0.0
    %4526 = vmatprep.subr.mxu0 0.0
    %4527 = vmatpush1.msra.mxu0 0.0
    %4528 = vmatprep.subr.mxu0 0.0
    %4529 = vmatpush1.msra.mxu0 0.0
    %4530 = vmatprep.subr.mxu0 0.0
    %4531 = vmatpush1.msra.mxu0 0.0
    %4532 = vmatprep.subr.mxu0 0.0
    %4533 = vmatpush1.msra.mxu0 0.0
    %4534 = vmatprep.subr.mxu0 0.0
    %4535 = vmatpush1.msra.mxu0 0.0
    %4536 = vmatprep.subr.mxu0 0.0
    %4537 = vmatpush1.msra.mxu0 0.0
    %4538 = vmatprep.subr.mxu0 0.0
    %4539 = vmatpush1.msra.mxu0 0.0
    %4540 = vmatprep.subr.mxu0 0.0
    %4541 = vmatpush1.msra.mxu0 0.0
    %4542 = vmatprep.subr.mxu0 0.0
    %4543 = vmatpush1.msra.mxu0 0.0
    %4544 = vmatprep.subr.mxu0 0.0
    %4545 = vmatpush1.msra.mxu0 0.0
    %4546 = vmatprep.subr.mxu0 0.0
    %4547 = vmatpush1.msra.mxu0 0.0
    %4548 = vmatprep.subr.mxu0 0.0
    %4549 = vmatpush1.msra.mxu0 0.0
    %4550 = vmatprep.subr.mxu0 0.0
    %4551 = vmatpush1.msra.mxu0 0.0
    %4552 = vmatprep.subr.mxu0 0.0
    %4553 = vmatpush1.msra.mxu0 0.0
    %4554 = vmatprep.subr.mxu0 0.0
    %4555 = vmatpush1.msra.mxu0 0.0
    %4556 = vmatprep.subr.mxu0 0.0
    %4557 = vmatpush1.msra.mxu0 0.0
    %4558 = vmatprep.subr.mxu0 0.0
    %4559 = vmatpush1.msra.mxu0 0.0
    %4560 = vmatprep.subr.mxu0 0.0
    %4561 = vmatpush1.msra.mxu0 0.0
    %4562 = vmatprep.subr.mxu0 0.0
    %4563 = vmatpush1.msra.mxu0 0.0
    %4564 = vmatprep.subr.mxu0 0.0
    %4565 = vmatpush1.msra.mxu0 0.0
    %4566 = vmatprep.subr.mxu0 0.0
    %4567 = vmatpush1.msra.mxu0 0.0
    %4568 = vmatprep.subr.mxu0 0.0
    %4569 = vmatpush1.msra.mxu0 0.0
    %4570 = vmatprep.mubr.f32.mxu0 0.0
    %4571 = vmatmul.mubr.f32.gmra.mrb[0].mxu0 %v4504
    %v4572 = vpop.f32.mrb[0].mxu0
    %v4573 = vadd.f32 0.0, %v4572
    %v4574 = vpop.f32.mrb[0].mxu0
    %4575 = vdwg.mxu0
    %v4576 = vadd.f32 %v4500, %v4573
    %v4577 = vmax.f32 %v4576, -30.0
    %v4578 = vsub.f32 0.0, %v4577
    %v4579 = vmul.f32 %v4578, 1.442695
    %v4580 = vpow.pop %v4579
    %v4581 = vadd.f32 %v4580, 1.0
    %v4582 = vrcp.pop %v4581
    %v4583 = vmul.f32 %v4581, %v4582
    %v4584 = vsub.f32 2.0, %v4583
    %v4585 = vmul.f32 %v4582, %v4584
    %v4586 = vtanh.pop %v4576
    %v4587 = vmul.f32 %v4585, %v4492
    %4589 = vrot.lane.b32.xlu0 %v4586, 64
    %v4590 = vpop.permute.xlu0 %4589
    %v4592 = vmul.f32 %v4585, %v4590
    %4594 = vrot.lane.b32.xlu0 %v4592, 32
    %v4595 = vpop.permute.xlu0 %4594
    %v4597 = vadd.f32 %v4587, %v4595
    %v4598 = vtanh.pop %v4597
    %4600 = vrot.lane.b32.xlu0 %v4598, 64
    %v4601 = vpop.permute.xlu0 %4600
    %v4603 = vmul.f32 %v4585, %v4601
    %v4604 = vmax.f32 %v4499, %v4603
    %v4605 = vld [vmem:[#allocation3 + $0x88] sm:$0xff]
    %4607 = vrot.lane.b32.xlu0 %v4603, 32
    %v4608 = vpop.permute.xlu0 %4607
    %v4609 = vsel %vm72, %v4608, 0
    %4611 = vmatprep.subr.mxu0 0.0
    %4612 = vmatpush1.msra.mxu0 %v2819
    %4613 = vmatprep.subr.mxu0 0.0
    %4614 = vmatpush1.msra.mxu0 %v2820
    %4615 = vmatprep.subr.mxu0 0.0
    %4616 = vmatpush1.msra.mxu0 %v2821
    %4617 = vmatprep.subr.mxu0 0.0
    %4618 = vmatpush1.msra.mxu0 %v2822
    %4619 = vmatprep.subr.mxu0 0.0
    %4620 = vmatpush1.msra.mxu0 0.0
    %4621 = vmatprep.subr.mxu0 0.0
    %4622 = vmatpush1.msra.mxu0 0.0
    %4623 = vmatprep.subr.mxu0 0.0
    %4624 = vmatpush1.msra.mxu0 0.0
    %4625 = vmatprep.subr.mxu0 0.0
    %4626 = vmatpush1.msra.mxu0 0.0
    %4627 = vmatprep.subr.mxu0 0.0
    %4628 = vmatpush1.msra.mxu0 0.0
    %4629 = vmatprep.subr.mxu0 0.0
    %4630 = vmatpush1.msra.mxu0 0.0
    %4631 = vmatprep.subr.mxu0 0.0
    %4632 = vmatpush1.msra.mxu0 0.0
    %4633 = vmatprep.subr.mxu0 0.0
    %4634 = vmatpush1.msra.mxu0 0.0
    %4635 = vmatprep.subr.mxu0 0.0
    %4636 = vmatpush1.msra.mxu0 0.0
    %4637 = vmatprep.subr.mxu0 0.0
    %4638 = vmatpush1.msra.mxu0 0.0
    %4639 = vmatprep.subr.mxu0 0.0
    %4640 = vmatpush1.msra.mxu0 0.0
    %4641 = vmatprep.subr.mxu0 0.0
    %4642 = vmatpush1.msra.mxu0 0.0
    %4643 = vmatprep.subr.mxu0 0.0
    %4644 = vmatpush1.msra.mxu0 0.0
    %4645 = vmatprep.subr.mxu0 0.0
    %4646 = vmatpush1.msra.mxu0 0.0
    %4647 = vmatprep.subr.mxu0 0.0
    %4648 = vmatpush1.msra.mxu0 0.0
    %4649 = vmatprep.subr.mxu0 0.0
    %4650 = vmatpush1.msra.mxu0 0.0
    %4651 = vmatprep.subr.mxu0 0.0
    %4652 = vmatpush1.msra.mxu0 0.0
    %4653 = vmatprep.subr.mxu0 0.0
    %4654 = vmatpush1.msra.mxu0 0.0
    %4655 = vmatprep.subr.mxu0 0.0
    %4656 = vmatpush1.msra.mxu0 0.0
    %4657 = vmatprep.subr.mxu0 0.0
    %4658 = vmatpush1.msra.mxu0 0.0
    %4659 = vmatprep.subr.mxu0 0.0
    %4660 = vmatpush1.msra.mxu0 0.0
    %4661 = vmatprep.subr.mxu0 0.0
    %4662 = vmatpush1.msra.mxu0 0.0
    %4663 = vmatprep.subr.mxu0 0.0
    %4664 = vmatpush1.msra.mxu0 0.0
    %4665 = vmatprep.subr.mxu0 0.0
    %4666 = vmatpush1.msra.mxu0 0.0
    %4667 = vmatprep.subr.mxu0 0.0
    %4668 = vmatpush1.msra.mxu0 0.0
    %4669 = vmatprep.subr.mxu0 0.0
    %4670 = vmatpush1.msra.mxu0 0.0
    %4671 = vmatprep.subr.mxu0 0.0
    %4672 = vmatpush1.msra.mxu0 0.0
    %4673 = vmatprep.subr.mxu0 0.0
    %4674 = vmatpush1.msra.mxu0 0.0
    %4675 = vmatprep.mubr.f32.mxu0 0.0
    %4676 = vmatmul.mubr.f32.gmra.mrb[0].mxu0 %v4609
    %v4677 = vpop.f32.mrb[0].mxu0
    %v4678 = vadd.f32 0.0, %v4677
    %v4679 = vpop.f32.mrb[0].mxu0
    %4680 = vdwg.mxu0
    %v4681 = vadd.f32 %v4605, %v4678
    %v4682 = vmax.f32 %v4681, -30.0
    %v4683 = vsub.f32 0.0, %v4682
    %v4684 = vmul.f32 %v4683, 1.442695
    %v4685 = vpow.pop %v4684
    %v4686 = vadd.f32 %v4685, 1.0
    %v4687 = vrcp.pop %v4686
    %v4688 = vmul.f32 %v4686, %v4687
    %v4689 = vsub.f32 2.0, %v4688
    %v4690 = vmul.f32 %v4687, %v4689
    %v4691 = vtanh.pop %v4681
    %v4692 = vmul.f32 %v4690, %v4597
    %4694 = vrot.lane.b32.xlu0 %v4691, 64
    %v4695 = vpop.permute.xlu0 %4694
    %v4697 = vmul.f32 %v4690, %v4695
    %4699 = vrot.lane.b32.xlu0 %v4697, 32
    %v4700 = vpop.permute.xlu0 %4699
    %v4702 = vadd.f32 %v4692, %v4700
    %v4703 = vtanh.pop %v4702
    %4705 = vrot.lane.b32.xlu0 %v4703, 64
    %v4706 = vpop.permute.xlu0 %4705
    %v4708 = vmul.f32 %v4690, %v4706
    %v4709 = vmax.f32 %v4604, %v4708
    %v4710 = vld [vmem:[#allocation3 + $0x90] sm:$0xff]
    %4712 = vrot.lane.b32.xlu0 %v4708, 32
    %v4713 = vpop.permute.xlu0 %4712
    %v4714 = vsel %vm72, %v4713, 0
    %4716 = vmatprep.subr.mxu0 0.0
    %4717 = vmatpush1.msra.mxu0 %v2819
    %4718 = vmatprep.subr.mxu0 0.0
    %4719 = vmatpush1.msra.mxu0 %v2820
    %4720 = vmatprep.subr.mxu0 0.0
    %4721 = vmatpush1.msra.mxu0 %v2821
    %4722 = vmatprep.subr.mxu0 0.0
    %4723 = vmatpush1.msra.mxu0 %v2822
    %4724 = vmatprep.subr.mxu0 0.0
    %4725 = vmatpush1.msra.mxu0 0.0
    %4726 = vmatprep.subr.mxu0 0.0
    %4727 = vmatpush1.msra.mxu0 0.0
    %4728 = vmatprep.subr.mxu0 0.0
    %4729 = vmatpush1.msra.mxu0 0.0
    %4730 = vmatprep.subr.mxu0 0.0
    %4731 = vmatpush1.msra.mxu0 0.0
    %4732 = vmatprep.subr.mxu0 0.0
    %4733 = vmatpush1.msra.mxu0 0.0
    %4734 = vmatprep.subr.mxu0 0.0
    %4735 = vmatpush1.msra.mxu0 0.0
    %4736 = vmatprep.subr.mxu0 0.0
    %4737 = vmatpush1.msra.mxu0 0.0
    %4738 = vmatprep.subr.mxu0 0.0
    %4739 = vmatpush1.msra.mxu0 0.0
    %4740 = vmatprep.subr.mxu0 0.0
    %4741 = vmatpush1.msra.mxu0 0.0
    %4742 = vmatprep.subr.mxu0 0.0
    %4743 = vmatpush1.msra.mxu0 0.0
    %4744 = vmatprep.subr.mxu0 0.0
    %4745 = vmatpush1.msra.mxu0 0.0
    %4746 = vmatprep.subr.mxu0 0.0
    %4747 = vmatpush1.msra.mxu0 0.0
    %4748 = vmatprep.subr.mxu0 0.0
    %4749 = vmatpush1.msra.mxu0 0.0
    %4750 = vmatprep.subr.mxu0 0.0
    %4751 = vmatpush1.msra.mxu0 0.0
    %4752 = vmatprep.subr.mxu0 0.0
    %4753 = vmatpush1.msra.mxu0 0.0
    %4754 = vmatprep.subr.mxu0 0.0
    %4755 = vmatpush1.msra.mxu0 0.0
    %4756 = vmatprep.subr.mxu0 0.0
    %4757 = vmatpush1.msra.mxu0 0.0
    %4758 = vmatprep.subr.mxu0 0.0
    %4759 = vmatpush1.msra.mxu0 0.0
    %4760 = vmatprep.subr.mxu0 0.0
    %4761 = vmatpush1.msra.mxu0 0.0
    %4762 = vmatprep.subr.mxu0 0.0
    %4763 = vmatpush1.msra.mxu0 0.0
    %4764 = vmatprep.subr.mxu0 0.0
    %4765 = vmatpush1.msra.mxu0 0.0
    %4766 = vmatprep.subr.mxu0 0.0
    %4767 = vmatpush1.msra.mxu0 0.0
    %4768 = vmatprep.subr.mxu0 0.0
    %4769 = vmatpush1.msra.mxu0 0.0
    %4770 = vmatprep.subr.mxu0 0.0
    %4771 = vmatpush1.msra.mxu0 0.0
    %4772 = vmatprep.subr.mxu0 0.0
    %4773 = vmatpush1.msra.mxu0 0.0
    %4774 = vmatprep.subr.mxu0 0.0
    %4775 = vmatpush1.msra.mxu0 0.0
    %4776 = vmatprep.subr.mxu0 0.0
    %4777 = vmatpush1.msra.mxu0 0.0
    %4778 = vmatprep.subr.mxu0 0.0
    %4779 = vmatpush1.msra.mxu0 0.0
    %4780 = vmatprep.mubr.f32.mxu0 0.0
    %4781 = vmatmul.mubr.f32.gmra.mrb[0].mxu0 %v4714
    %v4782 = vpop.f32.mrb[0].mxu0
    %v4783 = vadd.f32 0.0, %v4782
    %v4784 = vpop.f32.mrb[0].mxu0
    %4785 = vdwg.mxu0
    %v4786 = vadd.f32 %v4710, %v4783
    %v4787 = vmax.f32 %v4786, -30.0
    %v4788 = vsub.f32 0.0, %v4787
    %v4789 = vmul.f32 %v4788, 1.442695
    %v4790 = vpow.pop %v4789
    %v4791 = vadd.f32 %v4790, 1.0
    %v4792 = vrcp.pop %v4791
    %v4793 = vmul.f32 %v4791, %v4792
    %v4794 = vsub.f32 2.0, %v4793
    %v4795 = vmul.f32 %v4792, %v4794
    %v4796 = vtanh.pop %v4786
    %v4797 = vmul.f32 %v4795, %v4702
    %4799 = vrot.lane.b32.xlu0 %v4796, 64
    %v4800 = vpop.permute.xlu0 %4799
    %v4802 = vmul.f32 %v4795, %v4800
    %4804 = vrot.lane.b32.xlu0 %v4802, 32
    %v4805 = vpop.permute.xlu0 %4804
    %v4807 = vadd.f32 %v4797, %v4805
    %v4808 = vtanh.pop %v4807
    %4810 = vrot.lane.b32.xlu0 %v4808, 64
    %v4811 = vpop.permute.xlu0 %4810
    %v4813 = vmul.f32 %v4795, %v4811
    %v4814 = vmax.f32 %v4709, %v4813
    %v4815 = vld [vmem:[#allocation3 + $0x98] sm:$0xff]
    %4817 = vrot.lane.b32.xlu0 %v4813, 32
    %v4818 = vpop.permute.xlu0 %4817
    %v4819 = vsel %vm72, %v4818, 0
    %4821 = vmatprep.subr.mxu0 0.0
    %4822 = vmatpush1.msra.mxu0 %v2819
    %4823 = vmatprep.subr.mxu0 0.0
    %4824 = vmatpush1.msra.mxu0 %v2820
    %4825 = vmatprep.subr.mxu0 0.0
    %4826 = vmatpush1.msra.mxu0 %v2821
    %4827 = vmatprep.subr.mxu0 0.0
    %4828 = vmatpush1.msra.mxu0 %v2822
    %4829 = vmatprep.subr.mxu0 0.0
    %4830 = vmatpush1.msra.mxu0 0.0
    %4831 = vmatprep.subr.mxu0 0.0
    %4832 = vmatpush1.msra.mxu0 0.0
    %4833 = vmatprep.subr.mxu0 0.0
    %4834 = vmatpush1.msra.mxu0 0.0
    %4835 = vmatprep.subr.mxu0 0.0
    %4836 = vmatpush1.msra.mxu0 0.0
    %4837 = vmatprep.subr.mxu0 0.0
    %4838 = vmatpush1.msra.mxu0 0.0
    %4839 = vmatprep.subr.mxu0 0.0
    %4840 = vmatpush1.msra.mxu0 0.0
    %4841 = vmatprep.subr.mxu0 0.0
    %4842 = vmatpush1.msra.mxu0 0.0
    %4843 = vmatprep.subr.mxu0 0.0
    %4844 = vmatpush1.msra.mxu0 0.0
    %4845 = vmatprep.subr.mxu0 0.0
    %4846 = vmatpush1.msra.mxu0 0.0
    %4847 = vmatprep.subr.mxu0 0.0
    %4848 = vmatpush1.msra.mxu0 0.0
    %4849 = vmatprep.subr.mxu0 0.0
    %4850 = vmatpush1.msra.mxu0 0.0
    %4851 = vmatprep.subr.mxu0 0.0
    %4852 = vmatpush1.msra.mxu0 0.0
    %4853 = vmatprep.subr.mxu0 0.0
    %4854 = vmatpush1.msra.mxu0 0.0
    %4855 = vmatprep.subr.mxu0 0.0
    %4856 = vmatpush1.msra.mxu0 0.0
    %4857 = vmatprep.subr.mxu0 0.0
    %4858 = vmatpush1.msra.mxu0 0.0
    %4859 = vmatprep.subr.mxu0 0.0
    %4860 = vmatpush1.msra.mxu0 0.0
    %4861 = vmatprep.subr.mxu0 0.0
    %4862 = vmatpush1.msra.mxu0 0.0
    %4863 = vmatprep.subr.mxu0 0.0
    %4864 = vmatpush1.msra.mxu0 0.0
    %4865 = vmatprep.subr.mxu0 0.0
    %4866 = vmatpush1.msra.mxu0 0.0
    %4867 = vmatprep.subr.mxu0 0.0
    %4868 = vmatpush1.msra.mxu0 0.0
    %4869 = vmatprep.subr.mxu0 0.0
    %4870 = vmatpush1.msra.mxu0 0.0
    %4871 = vmatprep.subr.mxu0 0.0
    %4872 = vmatpush1.msra.mxu0 0.0
    %4873 = vmatprep.subr.mxu0 0.0
    %4874 = vmatpush1.msra.mxu0 0.0
    %4875 = vmatprep.subr.mxu0 0.0
    %4876 = vmatpush1.msra.mxu0 0.0
    %4877 = vmatprep.subr.mxu0 0.0
    %4878 = vmatpush1.msra.mxu0 0.0
    %4879 = vmatprep.subr.mxu0 0.0
    %4880 = vmatpush1.msra.mxu0 0.0
    %4881 = vmatprep.subr.mxu0 0.0
    %4882 = vmatpush1.msra.mxu0 0.0
    %4883 = vmatprep.subr.mxu0 0.0
    %4884 = vmatpush1.msra.mxu0 0.0
    %4885 = vmatprep.mubr.f32.mxu0 0.0
    %4886 = vmatmul.mubr.f32.gmra.mrb[0].mxu0 %v4819
    %v4887 = vpop.f32.mrb[0].mxu0
    %v4888 = vadd.f32 0.0, %v4887
    %v4889 = vpop.f32.mrb[0].mxu0
    %4890 = vdwg.mxu0
    %v4891 = vadd.f32 %v4815, %v4888
    %v4892 = vmax.f32 %v4891, -30.0
    %v4893 = vsub.f32 0.0, %v4892
    %v4894 = vmul.f32 %v4893, 1.442695
    %v4895 = vpow.pop %v4894
    %v4896 = vadd.f32 %v4895, 1.0
    %v4897 = vrcp.pop %v4896
    %v4898 = vmul.f32 %v4896, %v4897
    %v4899 = vsub.f32 2.0, %v4898
    %v4900 = vmul.f32 %v4897, %v4899
    %v4901 = vtanh.pop %v4891
    %v4902 = vmul.f32 %v4900, %v4807
    %4904 = vrot.lane.b32.xlu0 %v4901, 64
    %v4905 = vpop.permute.xlu0 %4904
    %v4907 = vmul.f32 %v4900, %v4905
    %4909 = vrot.lane.b32.xlu0 %v4907, 32
    %v4910 = vpop.permute.xlu0 %4909
    %v4912 = vadd.f32 %v4902, %v4910
    %v4913 = vtanh.pop %v4912
    %4915 = vrot.lane.b32.xlu0 %v4913, 64
    %v4916 = vpop.permute.xlu0 %4915
    %v4918 = vmul.f32 %v4900, %v4916
    %v4919 = vmax.f32 %v4814, %v4918
    %v4920 = vld [vmem:[#allocation3 + $0xa0] sm:$0xff]
    %4922 = vrot.lane.b32.xlu0 %v4918, 32
    %v4923 = vpop.permute.xlu0 %4922
    %v4924 = vsel %vm72, %v4923, 0
    %4926 = vmatprep.subr.mxu0 0.0
    %4927 = vmatpush1.msra.mxu0 %v2819
    %4928 = vmatprep.subr.mxu0 0.0
    %4929 = vmatpush1.msra.mxu0 %v2820
    %4930 = vmatprep.subr.mxu0 0.0
    %4931 = vmatpush1.msra.mxu0 %v2821
    %4932 = vmatprep.subr.mxu0 0.0
    %4933 = vmatpush1.msra.mxu0 %v2822
    %4934 = vmatprep.subr.mxu0 0.0
    %4935 = vmatpush1.msra.mxu0 0.0
    %4936 = vmatprep.subr.mxu0 0.0
    %4937 = vmatpush1.msra.mxu0 0.0
    %4938 = vmatprep.subr.mxu0 0.0
    %4939 = vmatpush1.msra.mxu0 0.0
    %4940 = vmatprep.subr.mxu0 0.0
    %4941 = vmatpush1.msra.mxu0 0.0
    %4942 = vmatprep.subr.mxu0 0.0
    %4943 = vmatpush1.msra.mxu0 0.0
    %4944 = vmatprep.subr.mxu0 0.0
    %4945 = vmatpush1.msra.mxu0 0.0
    %4946 = vmatprep.subr.mxu0 0.0
    %4947 = vmatpush1.msra.mxu0 0.0
    %4948 = vmatprep.subr.mxu0 0.0
    %4949 = vmatpush1.msra.mxu0 0.0
    %4950 = vmatprep.subr.mxu0 0.0
    %4951 = vmatpush1.msra.mxu0 0.0
    %4952 = vmatprep.subr.mxu0 0.0
    %4953 = vmatpush1.msra.mxu0 0.0
    %4954 = vmatprep.subr.mxu0 0.0
    %4955 = vmatpush1.msra.mxu0 0.0
    %4956 = vmatprep.subr.mxu0 0.0
    %4957 = vmatpush1.msra.mxu0 0.0
    %4958 = vmatprep.subr.mxu0 0.0
    %4959 = vmatpush1.msra.mxu0 0.0
    %4960 = vmatprep.subr.mxu0 0.0
    %4961 = vmatpush1.msra.mxu0 0.0
    %4962 = vmatprep.subr.mxu0 0.0
    %4963 = vmatpush1.msra.mxu0 0.0
    %4964 = vmatprep.subr.mxu0 0.0
    %4965 = vmatpush1.msra.mxu0 0.0
    %4966 = vmatprep.subr.mxu0 0.0
    %4967 = vmatpush1.msra.mxu0 0.0
    %4968 = vmatprep.subr.mxu0 0.0
    %4969 = vmatpush1.msra.mxu0 0.0
    %4970 = vmatprep.subr.mxu0 0.0
    %4971 = vmatpush1.msra.mxu0 0.0
    %4972 = vmatprep.subr.mxu0 0.0
    %4973 = vmatpush1.msra.mxu0 0.0
    %4974 = vmatprep.subr.mxu0 0.0
    %4975 = vmatpush1.msra.mxu0 0.0
    %4976 = vmatprep.subr.mxu0 0.0
    %4977 = vmatpush1.msra.mxu0 0.0
    %4978 = vmatprep.subr.mxu0 0.0
    %4979 = vmatpush1.msra.mxu0 0.0
    %4980 = vmatprep.subr.mxu0 0.0
    %4981 = vmatpush1.msra.mxu0 0.0
    %4982 = vmatprep.subr.mxu0 0.0
    %4983 = vmatpush1.msra.mxu0 0.0
    %4984 = vmatprep.subr.mxu0 0.0
    %4985 = vmatpush1.msra.mxu0 0.0
    %4986 = vmatprep.subr.mxu0 0.0
    %4987 = vmatpush1.msra.mxu0 0.0
    %4988 = vmatprep.subr.mxu0 0.0
    %4989 = vmatpush1.msra.mxu0 0.0
    %4990 = vmatprep.mubr.f32.mxu0 0.0
    %4991 = vmatmul.mubr.f32.gmra.mrb[0].mxu0 %v4924
    %v4992 = vpop.f32.mrb[0].mxu0
    %v4993 = vadd.f32 0.0, %v4992
    %v4994 = vpop.f32.mrb[0].mxu0
    %4995 = vdwg.mxu0
    %v4996 = vadd.f32 %v4920, %v4993
    %v4997 = vmax.f32 %v4996, -30.0
    %v4998 = vsub.f32 0.0, %v4997
    %v4999 = vmul.f32 %v4998, 1.442695
    %v5000 = vpow.pop %v4999
    %v5001 = vadd.f32 %v5000, 1.0
    %v5002 = vrcp.pop %v5001
    %v5003 = vmul.f32 %v5001, %v5002
    %v5004 = vsub.f32 2.0, %v5003
    %v5005 = vmul.f32 %v5002, %v5004
    %v5006 = vtanh.pop %v4996
    %v5007 = vmul.f32 %v5005, %v4912
    %5009 = vrot.lane.b32.xlu0 %v5006, 64
    %v5010 = vpop.permute.xlu0 %5009
    %v5012 = vmul.f32 %v5005, %v5010
    %5014 = vrot.lane.b32.xlu0 %v5012, 32
    %v5015 = vpop.permute.xlu0 %5014
    %v5017 = vadd.f32 %v5007, %v5015
    %v5018 = vtanh.pop %v5017
    %5020 = vrot.lane.b32.xlu0 %v5018, 64
    %v5021 = vpop.permute.xlu0 %5020
    %v5023 = vmul.f32 %v5005, %v5021
    %v5024 = vmax.f32 %v4919, %v5023
    %v5025 = vld [vmem:[#allocation3 + $0xa8] sm:$0xff]
    %5027 = vrot.lane.b32.xlu0 %v5023, 32
    %v5028 = vpop.permute.xlu0 %5027
    %v5029 = vsel %vm72, %v5028, 0
    %5031 = vmatprep.subr.mxu0 0.0
    %5032 = vmatpush1.msra.mxu0 %v2819
    %5033 = vmatprep.subr.mxu0 0.0
    %5034 = vmatpush1.msra.mxu0 %v2820
    %5035 = vmatprep.subr.mxu0 0.0
    %5036 = vmatpush1.msra.mxu0 %v2821
    %5037 = vmatprep.subr.mxu0 0.0
    %5038 = vmatpush1.msra.mxu0 %v2822
    %5039 = vmatprep.subr.mxu0 0.0
    %5040 = vmatpush1.msra.mxu0 0.0
    %5041 = vmatprep.subr.mxu0 0.0
    %5042 = vmatpush1.msra.mxu0 0.0
    %5043 = vmatprep.subr.mxu0 0.0
    %5044 = vmatpush1.msra.mxu0 0.0
    %5045 = vmatprep.subr.mxu0 0.0
    %5046 = vmatpush1.msra.mxu0 0.0
    %5047 = vmatprep.subr.mxu0 0.0
    %5048 = vmatpush1.msra.mxu0 0.0
    %5049 = vmatprep.subr.mxu0 0.0
    %5050 = vmatpush1.msra.mxu0 0.0
    %5051 = vmatprep.subr.mxu0 0.0
    %5052 = vmatpush1.msra.mxu0 0.0
    %5053 = vmatprep.subr.mxu0 0.0
    %5054 = vmatpush1.msra.mxu0 0.0
    %5055 = vmatprep.subr.mxu0 0.0
    %5056 = vmatpush1.msra.mxu0 0.0
    %5057 = vmatprep.subr.mxu0 0.0
    %5058 = vmatpush1.msra.mxu0 0.0
    %5059 = vmatprep.subr.mxu0 0.0
    %5060 = vmatpush1.msra.mxu0 0.0
    %5061 = vmatprep.subr.mxu0 0.0
    %5062 = vmatpush1.msra.mxu0 0.0
    %5063 = vmatprep.subr.mxu0 0.0
    %5064 = vmatpush1.msra.mxu0 0.0
    %5065 = vmatprep.subr.mxu0 0.0
    %5066 = vmatpush1.msra.mxu0 0.0
    %5067 = vmatprep.subr.mxu0 0.0
    %5068 = vmatpush1.msra.mxu0 0.0
    %5069 = vmatprep.subr.mxu0 0.0
    %5070 = vmatpush1.msra.mxu0 0.0
    %5071 = vmatprep.subr.mxu0 0.0
    %5072 = vmatpush1.msra.mxu0 0.0
    %5073 = vmatprep.subr.mxu0 0.0
    %5074 = vmatpush1.msra.mxu0 0.0
    %5075 = vmatprep.subr.mxu0 0.0
    %5076 = vmatpush1.msra.mxu0 0.0
    %5077 = vmatprep.subr.mxu0 0.0
    %5078 = vmatpush1.msra.mxu0 0.0
    %5079 = vmatprep.subr.mxu0 0.0
    %5080 = vmatpush1.msra.mxu0 0.0
    %5081 = vmatprep.subr.mxu0 0.0
    %5082 = vmatpush1.msra.mxu0 0.0
    %5083 = vmatprep.subr.mxu0 0.0
    %5084 = vmatpush1.msra.mxu0 0.0
    %5085 = vmatprep.subr.mxu0 0.0
    %5086 = vmatpush1.msra.mxu0 0.0
    %5087 = vmatprep.subr.mxu0 0.0
    %5088 = vmatpush1.msra.mxu0 0.0
    %5089 = vmatprep.subr.mxu0 0.0
    %5090 = vmatpush1.msra.mxu0 0.0
    %5091 = vmatprep.subr.mxu0 0.0
    %5092 = vmatpush1.msra.mxu0 0.0
    %5093 = vmatprep.subr.mxu0 0.0
    %5094 = vmatpush1.msra.mxu0 0.0
    %5095 = vmatprep.mubr.f32.mxu0 0.0
    %5096 = vmatmul.mubr.f32.gmra.mrb[0].mxu0 %v5029
    %v5097 = vpop.f32.mrb[0].mxu0
    %v5098 = vadd.f32 0.0, %v5097
    %v5099 = vpop.f32.mrb[0].mxu0
    %5100 = vdwg.mxu0
    %v5101 = vadd.f32 %v5025, %v5098
    %v5102 = vmax.f32 %v5101, -30.0
    %v5103 = vsub.f32 0.0, %v5102
    %v5104 = vmul.f32 %v5103, 1.442695
    %v5105 = vpow.pop %v5104
    %v5106 = vadd.f32 %v5105, 1.0
    %v5107 = vrcp.pop %v5106
    %v5108 = vmul.f32 %v5106, %v5107
    %v5109 = vsub.f32 2.0, %v5108
    %v5110 = vmul.f32 %v5107, %v5109
    %v5111 = vtanh.pop %v5101
    %v5112 = vmul.f32 %v5110, %v5017
    %5114 = vrot.lane.b32.xlu0 %v5111, 64
    %v5115 = vpop.permute.xlu0 %5114
    %v5117 = vmul.f32 %v5110, %v5115
    %5119 = vrot.lane.b32.xlu0 %v5117, 32
    %v5120 = vpop.permute.xlu0 %5119
    %v5122 = vadd.f32 %v5112, %v5120
    %v5123 = vtanh.pop %v5122
    %5125 = vrot.lane.b32.xlu0 %v5123, 64
    %v5126 = vpop.permute.xlu0 %5125
    %v5128 = vmul.f32 %v5110, %v5126
    %v5129 = vmax.f32 %v5024, %v5128
    %v5130 = vld [vmem:[#allocation3 + $0xb0] sm:$0xff]
    %5132 = vrot.lane.b32.xlu0 %v5128, 32
    %v5133 = vpop.permute.xlu0 %5132
    %v5134 = vsel %vm72, %v5133, 0
    %5136 = vmatprep.subr.mxu0 0.0
    %5137 = vmatpush1.msra.mxu0 %v2819
    %5138 = vmatprep.subr.mxu0 0.0
    %5139 = vmatpush1.msra.mxu0 %v2820
    %5140 = vmatprep.subr.mxu0 0.0
    %5141 = vmatpush1.msra.mxu0 %v2821
    %5142 = vmatprep.subr.mxu0 0.0
    %5143 = vmatpush1.msra.mxu0 %v2822
    %5144 = vmatprep.subr.mxu0 0.0
    %5145 = vmatpush1.msra.mxu0 0.0
    %5146 = vmatprep.subr.mxu0 0.0
    %5147 = vmatpush1.msra.mxu0 0.0
    %5148 = vmatprep.subr.mxu0 0.0
    %5149 = vmatpush1.msra.mxu0 0.0
    %5150 = vmatprep.subr.mxu0 0.0
    %5151 = vmatpush1.msra.mxu0 0.0
    %5152 = vmatprep.subr.mxu0 0.0
    %5153 = vmatpush1.msra.mxu0 0.0
    %5154 = vmatprep.subr.mxu0 0.0
    %5155 = vmatpush1.msra.mxu0 0.0
    %5156 = vmatprep.subr.mxu0 0.0
    %5157 = vmatpush1.msra.mxu0 0.0
    %5158 = vmatprep.subr.mxu0 0.0
    %5159 = vmatpush1.msra.mxu0 0.0
    %5160 = vmatprep.subr.mxu0 0.0
    %5161 = vmatpush1.msra.mxu0 0.0
    %5162 = vmatprep.subr.mxu0 0.0
    %5163 = vmatpush1.msra.mxu0 0.0
    %5164 = vmatprep.subr.mxu0 0.0
    %5165 = vmatpush1.msra.mxu0 0.0
    %5166 = vmatprep.subr.mxu0 0.0
    %5167 = vmatpush1.msra.mxu0 0.0
    %5168 = vmatprep.subr.mxu0 0.0
    %5169 = vmatpush1.msra.mxu0 0.0
    %5170 = vmatprep.subr.mxu0 0.0
    %5171 = vmatpush1.msra.mxu0 0.0
    %5172 = vmatprep.subr.mxu0 0.0
    %5173 = vmatpush1.msra.mxu0 0.0
    %5174 = vmatprep.subr.mxu0 0.0
    %5175 = vmatpush1.msra.mxu0 0.0
    %5176 = vmatprep.subr.mxu0 0.0
    %5177 = vmatpush1.msra.mxu0 0.0
    %5178 = vmatprep.subr.mxu0 0.0
    %5179 = vmatpush1.msra.mxu0 0.0
    %5180 = vmatprep.subr.mxu0 0.0
    %5181 = vmatpush1.msra.mxu0 0.0
    %5182 = vmatprep.subr.mxu0 0.0
    %5183 = vmatpush1.msra.mxu0 0.0
    %5184 = vmatprep.subr.mxu0 0.0
    %5185 = vmatpush1.msra.mxu0 0.0
    %5186 = vmatprep.subr.mxu0 0.0
    %5187 = vmatpush1.msra.mxu0 0.0
    %5188 = vmatprep.subr.mxu0 0.0
    %5189 = vmatpush1.msra.mxu0 0.0
    %5190 = vmatprep.subr.mxu0 0.0
    %5191 = vmatpush1.msra.mxu0 0.0
    %5192 = vmatprep.subr.mxu0 0.0
    %5193 = vmatpush1.msra.mxu0 0.0
    %5194 = vmatprep.subr.mxu0 0.0
    %5195 = vmatpush1.msra.mxu0 0.0
    %5196 = vmatprep.subr.mxu0 0.0
    %5197 = vmatpush1.msra.mxu0 0.0
    %5198 = vmatprep.subr.mxu0 0.0
    %5199 = vmatpush1.msra.mxu0 0.0
    %5200 = vmatprep.mubr.f32.mxu0 0.0
    %5201 = vmatmul.mubr.f32.gmra.mrb[0].mxu0 %v5134
    %v5202 = vpop.f32.mrb[0].mxu0
    %v5203 = vadd.f32 0.0, %v5202
    %v5204 = vpop.f32.mrb[0].mxu0
    %5205 = vdwg.mxu0
    %v5206 = vadd.f32 %v5130, %v5203
    %v5207 = vmax.f32 %v5206, -30.0
    %v5208 = vsub.f32 0.0, %v5207
    %v5209 = vmul.f32 %v5208, 1.442695
    %v5210 = vpow.pop %v5209
    %v5211 = vadd.f32 %v5210, 1.0
    %v5212 = vrcp.pop %v5211
    %v5213 = vmul.f32 %v5211, %v5212
    %v5214 = vsub.f32 2.0, %v5213
    %v5215 = vmul.f32 %v5212, %v5214
    %v5216 = vtanh.pop %v5206
    %v5217 = vmul.f32 %v5215, %v5122
    %5219 = vrot.lane.b32.xlu0 %v5216, 64
    %v5220 = vpop.permute.xlu0 %5219
    %v5222 = vmul.f32 %v5215, %v5220
    %5224 = vrot.lane.b32.xlu0 %v5222, 32
    %v5225 = vpop.permute.xlu0 %5224
    %v5227 = vadd.f32 %v5217, %v5225
    %v5228 = vtanh.pop %v5227
    %5230 = vrot.lane.b32.xlu0 %v5228, 64
    %v5231 = vpop.permute.xlu0 %5230
    %v5233 = vmul.f32 %v5215, %v5231
    %v5234 = vmax.f32 %v5129, %v5233
    %v5235 = vld [vmem:[#allocation3 + $0xb8] sm:$0xff]
    %5237 = vrot.lane.b32.xlu0 %v5233, 32
    %v5238 = vpop.permute.xlu0 %5237
    %v5239 = vsel %vm72, %v5238, 0
    %5241 = vmatprep.subr.mxu0 0.0
    %5242 = vmatpush1.msra.mxu0 %v2819
    %5243 = vmatprep.subr.mxu0 0.0
    %5244 = vmatpush1.msra.mxu0 %v2820
    %5245 = vmatprep.subr.mxu0 0.0
    %5246 = vmatpush1.msra.mxu0 %v2821
    %5247 = vmatprep.subr.mxu0 0.0
    %5248 = vmatpush1.msra.mxu0 %v2822
    %5249 = vmatprep.subr.mxu0 0.0
    %5250 = vmatpush1.msra.mxu0 0.0
    %5251 = vmatprep.subr.mxu0 0.0
    %5252 = vmatpush1.msra.mxu0 0.0
    %5253 = vmatprep.subr.mxu0 0.0
    %5254 = vmatpush1.msra.mxu0 0.0
    %5255 = vmatprep.subr.mxu0 0.0
    %5256 = vmatpush1.msra.mxu0 0.0
    %5257 = vmatprep.subr.mxu0 0.0
    %5258 = vmatpush1.msra.mxu0 0.0
    %5259 = vmatprep.subr.mxu0 0.0
    %5260 = vmatpush1.msra.mxu0 0.0
    %5261 = vmatprep.subr.mxu0 0.0
    %5262 = vmatpush1.msra.mxu0 0.0
    %5263 = vmatprep.subr.mxu0 0.0
    %5264 = vmatpush1.msra.mxu0 0.0
    %5265 = vmatprep.subr.mxu0 0.0
    %5266 = vmatpush1.msra.mxu0 0.0
    %5267 = vmatprep.subr.mxu0 0.0
    %5268 = vmatpush1.msra.mxu0 0.0
    %5269 = vmatprep.subr.mxu0 0.0
    %5270 = vmatpush1.msra.mxu0 0.0
    %5271 = vmatprep.subr.mxu0 0.0
    %5272 = vmatpush1.msra.mxu0 0.0
    %5273 = vmatprep.subr.mxu0 0.0
    %5274 = vmatpush1.msra.mxu0 0.0
    %5275 = vmatprep.subr.mxu0 0.0
    %5276 = vmatpush1.msra.mxu0 0.0
    %5277 = vmatprep.subr.mxu0 0.0
    %5278 = vmatpush1.msra.mxu0 0.0
    %5279 = vmatprep.subr.mxu0 0.0
    %5280 = vmatpush1.msra.mxu0 0.0
    %5281 = vmatprep.subr.mxu0 0.0
    %5282 = vmatpush1.msra.mxu0 0.0
    %5283 = vmatprep.subr.mxu0 0.0
    %5284 = vmatpush1.msra.mxu0 0.0
    %5285 = vmatprep.subr.mxu0 0.0
    %5286 = vmatpush1.msra.mxu0 0.0
    %5287 = vmatprep.subr.mxu0 0.0
    %5288 = vmatpush1.msra.mxu0 0.0
    %5289 = vmatprep.subr.mxu0 0.0
    %5290 = vmatpush1.msra.mxu0 0.0
    %5291 = vmatprep.subr.mxu0 0.0
    %5292 = vmatpush1.msra.mxu0 0.0
    %5293 = vmatprep.subr.mxu0 0.0
    %5294 = vmatpush1.msra.mxu0 0.0
    %5295 = vmatprep.subr.mxu0 0.0
    %5296 = vmatpush1.msra.mxu0 0.0
    %5297 = vmatprep.subr.mxu0 0.0
    %5298 = vmatpush1.msra.mxu0 0.0
    %5299 = vmatprep.subr.mxu0 0.0
    %5300 = vmatpush1.msra.mxu0 0.0
    %5301 = vmatprep.subr.mxu0 0.0
    %5302 = vmatpush1.msra.mxu0 0.0
    %5303 = vmatprep.subr.mxu0 0.0
    %5304 = vmatpush1.msra.mxu0 0.0
    %5305 = vmatprep.mubr.f32.mxu0 0.0
    %5306 = vmatmul.mubr.f32.gmra.mrb[0].mxu0 %v5239
    %v5307 = vpop.f32.mrb[0].mxu0
    %v5308 = vadd.f32 0.0, %v5307
    %v5309 = vpop.f32.mrb[0].mxu0
    %5310 = vdwg.mxu0
    %v5311 = vadd.f32 %v5235, %v5308
    %v5312 = vmax.f32 %v5311, -30.0
    %v5313 = vsub.f32 0.0, %v5312
    %v5314 = vmul.f32 %v5313, 1.442695
    %v5315 = vpow.pop %v5314
    %v5316 = vadd.f32 %v5315, 1.0
    %v5317 = vrcp.pop %v5316
    %v5318 = vmul.f32 %v5316, %v5317
    %v5319 = vsub.f32 2.0, %v5318
    %v5320 = vmul.f32 %v5317, %v5319
    %v5321 = vtanh.pop %v5311
    %v5322 = vmul.f32 %v5320, %v5227
    %5324 = vrot.lane.b32.xlu0 %v5321, 64
    %v5325 = vpop.permute.xlu0 %5324
    %v5327 = vmul.f32 %v5320, %v5325
    %5329 = vrot.lane.b32.xlu0 %v5327, 32
    %v5330 = vpop.permute.xlu0 %5329
    %v5332 = vadd.f32 %v5322, %v5330
    %v5333 = vtanh.pop %v5332
    %5335 = vrot.lane.b32.xlu0 %v5333, 64
    %v5336 = vpop.permute.xlu0 %5335
    %v5338 = vmul.f32 %v5320, %v5336
    %v5339 = vmax.f32 %v5234, %v5338
    %v5340 = vld [vmem:[%s7] sm:$0xff]
    %v5341 = vld [vmem:[%s7 + $0x8] sm:$0xff]
    %v5342 = vld [vmem:[%s7 + $0x10] sm:$0xff]
    %v5343 = vld [vmem:[%s7 + $0x18] sm:$0xff]
    %v5344 = vld [vmem:[%s8] sm:$0x1]
    %v5346 = vlaneseq
    %v5347 = vshrl.u32 %v5346, 7
    %v5348 = vsub.s32 0, %v5347
    %v5349 = vrot.slane %v5344, %v5348
    %5352 = vrot.lane.b32.xlu0 %v5339, 32
    %v5353 = vpop.permute.xlu0 %5352
    %v5354 = vsel %vm72, %v5353, 0
    %5356 = vmatprep.subr.mxu0 0.0
    %5357 = vmatpush1.msra.mxu0 %v5340
    %5358 = vmatprep.subr.mxu0 0.0
    %5359 = vmatpush1.msra.mxu0 %v5341
    %5360 = vmatprep.subr.mxu0 0.0
    %5361 = vmatpush1.msra.mxu0 %v5342
    %5362 = vmatprep.subr.mxu0 0.0
    %5363 = vmatpush1.msra.mxu0 %v5343
    %5364 = vmatprep.subr.mxu0 0.0
    %5365 = vmatpush1.msra.mxu0 0.0
    %5366 = vmatprep.subr.mxu0 0.0
    %5367 = vmatpush1.msra.mxu0 0.0
    %5368 = vmatprep.subr.mxu0 0.0
    %5369 = vmatpush1.msra.mxu0 0.0
    %5370 = vmatprep.subr.mxu0 0.0
    %5371 = vmatpush1.msra.mxu0 0.0
    %5372 = vmatprep.subr.mxu0 0.0
    %5373 = vmatpush1.msra.mxu0 0.0
    %5374 = vmatprep.subr.mxu0 0.0
    %5375 = vmatpush1.msra.mxu0 0.0
    %5376 = vmatprep.subr.mxu0 0.0
    %5377 = vmatpush1.msra.mxu0 0.0
    %5378 = vmatprep.subr.mxu0 0.0
    %5379 = vmatpush1.msra.mxu0 0.0
    %5380 = vmatprep.subr.mxu0 0.0
    %5381 = vmatpush1.msra.mxu0 0.0
    %5382 = vmatprep.subr.mxu0 0.0
    %5383 = vmatpush1.msra.mxu0 0.0
    %5384 = vmatprep.subr.mxu0 0.0
    %5385 = vmatpush1.msra.mxu0 0.0
    %5386 = vmatprep.subr.mxu0 0.0
    %5387 = vmatpush1.msra.mxu0 0.0
    %5388 = vmatprep.subr.mxu0 0.0
    %5389 = vmatpush1.msra.mxu0 0.0
    %5390 = vmatprep.subr.mxu0 0.0
    %5391 = vmatpush1.msra.mxu0 0.0
    %5392 = vmatprep.subr.mxu0 0.0
    %5393 = vmatpush1.msra.mxu0 0.0
    %5394 = vmatprep.subr.mxu0 0.0
    %5395 = vmatpush1.msra.mxu0 0.0
    %5396 = vmatprep.subr.mxu0 0.0
    %5397 = vmatpush1.msra.mxu0 0.0
    %5398 = vmatprep.subr.mxu0 0.0
    %5399 = vmatpush1.msra.mxu0 0.0
    %5400 = vmatprep.subr.mxu0 0.0
    %5401 = vmatpush1.msra.mxu0 0.0
    %5402 = vmatprep.subr.mxu0 0.0
    %5403 = vmatpush1.msra.mxu0 0.0
    %5404 = vmatprep.subr.mxu0 0.0
    %5405 = vmatpush1.msra.mxu0 0.0
    %5406 = vmatprep.subr.mxu0 0.0
    %5407 = vmatpush1.msra.mxu0 0.0
    %5408 = vmatprep.subr.mxu0 0.0
    %5409 = vmatpush1.msra.mxu0 0.0
    %5410 = vmatprep.subr.mxu0 0.0
    %5411 = vmatpush1.msra.mxu0 0.0
    %5412 = vmatprep.subr.mxu0 0.0
    %5413 = vmatpush1.msra.mxu0 0.0
    %5414 = vmatprep.subr.mxu0 0.0
    %5415 = vmatpush1.msra.mxu0 0.0
    %5416 = vmatprep.subr.mxu0 0.0
    %5417 = vmatpush1.msra.mxu0 0.0
    %5418 = vmatprep.subr.mxu0 0.0
    %5419 = vmatpush1.msra.mxu0 0.0
    %5420 = vmatprep.mubr.f32.mxu0 0.0
    %5421 = vmatmul.mubr.f32.gmra.mrb[0].mxu0 %v5354
    %v5422 = vpop.f32.mrb[0].mxu0
    %v5423 = vadd.f32 %v5349, %v5422
    %v5424 = vpop.f32.mrb[0].mxu0
    %5425 = vdwg.mxu0
    %vm5426 = vcmask 25600
    %5427 = vst.msk [vmem:[#allocation12] sm:$0x3] %vm5426, %v5423
    // Predicated region
    $region526: #{experiment14_forward.1} parent=1 // pred_check
      _
    $region527: #{experiment14_forward.1} parent=1 // pred_check_branch
      %5429 = sbr.rel (0) target = $region529
    $region528: #{experiment14_forward.1} parent=1 // pred_region
      %s5431 = ssub.s32 32, 32
      %5432 = vsyncadd [#allocation7], %s5431
      %s5434 = sshll.u32 [#allocation12], 4
      %s5435 = int_to_ptr.vmem [resolvable:$true] %s5434
      %5437 = dma.vmem_to_hbm [thread:$0]  %s5435, 32, %s9, [#allocation7]
    $region529: #{experiment14_forward.1} parent=1 // pred_fallthru
      _
    // Predicated region
    $region530: #{experiment14_forward.1} parent=1 // pred_check
      _
    $region531: #{experiment14_forward.1} parent=1 // pred_check_branch
      %5439 = sbr.rel (0) target = $region533
    $region532: #{experiment14_forward.1} parent=1 // pred_region
      %5440 = dma.done [#allocation7], 32
    $region533: #{experiment14_forward.1} parent=1 // pred_fallthru
      _
    %5441 = vsyncpa [#allocation6], 1
    %5442 = vsyncpa [#allocation11], 1
    %5443 = vsyncpa [#allocation7], 1
    %5444 = vsyncpa [#allocation8], 1
  %5445 = vsyncmov [#allocation4]
  %s5446 = vpop.sfrf %5445
  %p5447 = scmp.eq.s32.totalorder %s5446, 0
  %p5448 = pneg %p5447
  %5450 = shalt.err (%p5448)
  %s5451 = scalar_lea.sflag [#allocation4], 1
  %5452 = vsyncmov %s5451
  %s5453 = vpop.sfrf %5452
  %p5454 = scmp.eq.s32.totalorder %s5453, 0
  %p5455 = pneg %p5454
  %5457 = shalt.err (%p5455)
  %s5458 = scalar_lea.sflag [#allocation4], 2
  %5459 = vsyncmov %s5458
  %s5460 = vpop.sfrf %5459
  %p5461 = scmp.eq.s32.totalorder %s5460, 0
  %p5462 = pneg %p5461
  %5464 = shalt.err (%p5462)
  %s5465 = scalar_lea.sflag [#allocation4], 3
  %5466 = vsyncmov %s5465
  %s5467 = vpop.sfrf %5466
  %p5468 = scmp.eq.s32.totalorder %s5467, 0
  %p5469 = pneg %p5468
  %5471 = shalt.err (%p5469)
  %s5472 = scalar_lea.sflag [#allocation4], 4
  %5473 = vsyncmov %s5472
  %s5474 = vpop.sfrf %5473
  %p5475 = scmp.eq.s32.totalorder %s5474, 0
  %p5476 = pneg %p5475
  %5478 = shalt.err (%p5476)
  %s5479 = scalar_lea.sflag [#allocation4], 5
  %5480 = vsyncmov %s5479
  %s5481 = vpop.sfrf %5480
  %p5482 = scmp.eq.s32.totalorder %s5481, 0
  %p5483 = pneg %p5482
  %5485 = shalt.err (%p5483)
  %s5486 = scalar_lea.sflag [#allocation4], 6
  %5487 = vsyncmov %s5486
  %s5488 = vpop.sfrf %5487
  %p5489 = scmp.eq.s32.totalorder %s5488, 0
  %p5490 = pneg %p5489
  %5492 = shalt.err (%p5490)
  %s5493 = scalar_lea.sflag [#allocation4], 7
  %5494 = vsyncmov %s5493
  %s5495 = vpop.sfrf %5494
  %p5496 = scmp.eq.s32.totalorder %s5495, 0
  %p5497 = pneg %p5496
  %5499 = shalt.err (%p5497)
  %s5500 = scalar_lea.sflag [#allocation4], 8
  %5501 = vsyncmov %s5500
  %s5502 = vpop.sfrf %5501
  %p5503 = scmp.eq.s32.totalorder %s5502, 0
  %p5504 = pneg %p5503
  %5506 = shalt.err (%p5504)
  %s5507 = scalar_lea.sflag [#allocation4], 9
  %5508 = vsyncmov %s5507
  %s5509 = vpop.sfrf %5508
  %p5510 = scmp.eq.s32.totalorder %s5509, 0
  %p5511 = pneg %p5510
  %5513 = shalt.err (%p5511)
  %s5514 = scalar_lea.sflag [#allocation4], 10
  %5515 = vsyncmov %s5514
  %s5516 = vpop.sfrf %5515
  %p5517 = scmp.eq.s32.totalorder %s5516, 0
  %p5518 = pneg %p5517
  %5520 = shalt.err (%p5518)
  %s5521 = scalar_lea.sflag [#allocation4], 11
  %5522 = vsyncmov %s5521
  %s5523 = vpop.sfrf %5522
  %p5524 = scmp.eq.s32.totalorder %s5523, 0
  %p5525 = pneg %p5524
  %5527 = shalt.err (%p5525)
  %s5528 = scalar_lea.sflag [#allocation4], 12
  %5529 = vsyncmov %s5528
  %s5530 = vpop.sfrf %5529
  %p5531 = scmp.eq.s32.totalorder %s5530, 0
  %p5532 = pneg %p5531
  %5534 = shalt.err (%p5532)
  %s5535 = scalar_lea.sflag [#allocation4], 13
  %5536 = vsyncmov %s5535
  %s5537 = vpop.sfrf %5536
  %p5538 = scmp.eq.s32.totalorder %s5537, 0
  %p5539 = pneg %p5538
  %5541 = shalt.err (%p5539)
  %s5542 = scalar_lea.sflag [#allocation4], 14
  %5543 = vsyncmov %s5542
  %s5544 = vpop.sfrf %5543
  %p5545 = scmp.eq.s32.totalorder %s5544, 0
  %p5546 = pneg %p5545
  %5548 = shalt.err (%p5546)
  %s5549 = scalar_lea.sflag [#allocation4], 15
  %5550 = vsyncmov %s5549
  %s5551 = vpop.sfrf %5550
  %p5552 = scmp.eq.s32.totalorder %s5551, 0
  %p5553 = pneg %p5552
  %5555 = shalt.err (%p5553)

</llo_original>
